<compile_context>
chip_gen: v7x
topology: tpu7x:2x2x1
jax: 0.10.0
libtpu: 0.0.40
codegen_flags: <defaults>
</compile_context>

<pallas_src>
import math
import functools

import jax
import jax.numpy as jnp
from jax.experimental import pallas as pl
from jax.experimental.pallas import tpu as pltpu

# -----------------------------------------------------------------------------
# Model config (small, deterministic synthetic setup; LoFTR "fine" config)
# -----------------------------------------------------------------------------
D_MODEL = 128
NHEAD = 8
LAYER_NAMES = ("self", "cross")
N = 2          # batch
L = 64         # seq length of feat0
S = 64         # seq length of feat1
LN_EPS = 1e-5
ATTN_EPS = 1e-6


def _elu_plus_one(x):
    # elu(x) + 1 == x + 1 (x > 0) ; exp(x) (x <= 0) -- strictly positive.
    return jnp.where(x > 0, x + 1.0, jnp.exp(jnp.minimum(x, 0.0)))


def _layer_norm(x, gamma, beta):
    # Single-pass statistics: var = E[x^2] - E[x]^2 (halves XLU reductions).
    mu = jnp.mean(x, axis=-1, keepdims=True)
    ms = jnp.mean(x * x, axis=-1, keepdims=True)
    var = jnp.maximum(ms - mu * mu, 0.0)
    return (x - mu) * jax.lax.rsqrt(var + LN_EPS) * gamma + beta


# -----------------------------------------------------------------------------
# Fused kernel: runs ALL encoder layers for one batch block, fully VMEM-resident.
#   f0_ref : [bb, L, C]   feat0 block
#   f1_ref : [bb, S, C]   feat1 block
#   hm2_ref: [C, 2C]      f32  [head_mask | head_mask] (block-diagonal per head)
#   wqkv_ref: [nl, C, 3C] bf16 [Wq^T | Wk^T | Wv^T]
#   wm_ref : [nl, C, C]   bf16 Wmerge^T
#   w1_ref : [nl, 2C, 2C] bf16 Wmlp1^T (rows 0:C multiply x, rows C:2C multiply msg)
#   w2_ref : [nl, 2C, C]  bf16 Wmlp2^T
#   ln_ref : [nl, 4, C]   f32  [gamma1; beta1; gamma2; beta2]
# -----------------------------------------------------------------------------
def _loftr_fused_kernel(f0_ref, f1_ref, hm2_ref,
                        wqkv_ref, wm_ref, w1_ref, w2_ref, ln_ref,
                        o0_ref, o1_ref, *, layer_names):
    bf16 = jnp.bfloat16
    f0 = f0_ref[...].astype(jnp.float32)       # (bb, L, C)
    f1 = f1_ref[...].astype(jnp.float32)       # (bb, S, C)
    hm2 = hm2_ref[...]                         # (C, 2C) f32
    c = f0.shape[-1]

    def encoder_layer(li, x3, src3, is_self):
        bb, l, _ = x3.shape
        s = src3.shape[1]
        wqkv = wqkv_ref[li]                    # (C, 3C)  bf16
        wm = wm_ref[li]                        # (C, C)   bf16
        w1 = w1_ref[li]                        # (2C, 2C) bf16
        w2 = w2_ref[li]                        # (2C, C)  bf16
        ln = ln_ref[li]                        # (4, C)   f32
        g1, b1 = ln[0:1, :], ln[1:2, :]
        g2, b2 = ln[2:3, :], ln[3:4, :]

        x2 = x3.reshape(bb * l, c)
        x2b = x2.astype(bf16)

        # ---- Q/K/V projections (fused wide MXU matmuls, f32 accumulation) ----
        if is_self:
            qkv = jnp.dot(x2b, wqkv, preferred_element_type=jnp.float32)
            q2, k2, v2 = qkv[:, :c], qkv[:, c:2 * c], qkv[:, 2 * c:]
        else:
            src2b = src3.reshape(bb * s, c).astype(bf16)
            q2 = jnp.dot(x2b, wqkv[:, :c], preferred_element_type=jnp.float32)
            kv2 = jnp.dot(src2b, wqkv[:, c:], preferred_element_type=jnp.float32)
            k2, v2 = kv2[:, :c], kv2[:, c:]

        # ---- linear attention: feature map hoisted, num|den fused ----
        q3 = _elu_plus_one(q2).reshape(bb, l, c)    # f32, > 0
        k3 = _elu_plus_one(k2).reshape(bb, s, c)    # f32, > 0
        v3 = v2.reshape(bb, s, c)

        # Augment V with ones so one 2C-wide contraction yields [K^T V | K_sum].
        v_aug = jnp.concatenate([v3, jnp.ones_like(v3)], axis=-1).astype(bf16)
        kv_aug = jnp.einsum('bsc,bsd->bcd', k3.astype(bf16), v_aug,
                            preferred_element_type=jnp.float32)      # (bb, C, 2C)
        m_aug = (kv_aug * hm2[None]).astype(bf16)                    # per-head mask
        numden = jnp.einsum('blc,bcm->blm', q3.astype(bf16), m_aug,
                            preferred_element_type=jnp.float32)      # (bb, L, 2C)
        num, den = numden[..., :c], numden[..., c:]
        msg = num * pl.reciprocal(den + ATTN_EPS, approx=True)       # den > 0

        # ---- merge projection + LayerNorm1 ----
        msg2 = jnp.dot(msg.reshape(bb * l, c).astype(bf16), wm,
                       preferred_element_type=jnp.float32)
        msg2 = _layer_norm(msg2, g1, b1)

        # ---- MLP(concat([x, message])) without the concat: split W1^T rows ----
        h1 = (jnp.dot(x2b, w1[:c, :], preferred_element_type=jnp.float32)
              + jnp.dot(msg2.astype(bf16), w1[c:, :],
                        preferred_element_type=jnp.float32))
        h1 = jnp.maximum(h1, 0.0)
        m2 = jnp.dot(h1.astype(bf16), w2, preferred_element_type=jnp.float32)
        m2 = _layer_norm(m2, g2, b2)

        # ---- residual ----
        return x3 + m2.reshape(bb, l, c)

    for li, name in enumerate(layer_names):
        if name == "self":
            f0 = encoder_layer(li, f0, f0, True)
            f1 = encoder_layer(li, f1, f1, True)
        elif name == "cross":
            f0 = encoder_layer(li, f0, f1, False)   # feat0 attends feat1
            f1 = encoder_layer(li, f1, f0, False)   # feat1 attends *updated* feat0
        else:
            raise KeyError(name)

    o0_ref[...] = f0.astype(o0_ref.dtype)
    o1_ref[...] = f1.astype(o1_ref.dtype)
    # TODO(synk): return_attn=True (stacked dot-product attention maps) and the
    # optional x_mask/source_mask paths are not implemented (config uses
    # return_attn=False, masks=None).


def _num_batch_blocks(n):
    """2 blocks (one per TensorCore) on 2-TC chips (v7x); 1 block on v5e/v6e."""
    try:
        kind = jax.devices()[0].device_kind.lower()
    except Exception:
        kind = ""
    if n % 2 == 0 and ("v7" in kind or "tpu7" in kind or "7x" in kind):
        return 2
    return 1


def local_feature_transformer(feat0, feat1, params, layer_names=LAYER_NAMES):
    """Full LoFTR LocalFeatureTransformer forward in one pallas_call."""
    n, l, c = feat0.shape
    _, s, _ = feat1.shape
    nl = len(layer_names)
    assert params["wqkv_t"].shape[0] == nl
    assert c == D_MODEL

    nb = _num_batch_blocks(n)
    bb = n // nb

    kernel = functools.partial(_loftr_fused_kernel,
                               layer_names=tuple(layer_names))
    batch_map = lambda i: (i, 0, 0)
    fixed2 = lambda i: (0, 0)
    fixed3 = lambda i: (0, 0, 0)

    grid_spec = pltpu.PrefetchScalarGridSpec(
        num_scalar_prefetch=0,
        grid=(nb,),
        in_specs=[
            pl.BlockSpec((bb, l, c), batch_map),        # feat0
            pl.BlockSpec((bb, s, c), batch_map),        # feat1
            pl.BlockSpec((c, 2 * c), fixed2),           # [head_mask | head_mask]
            pl.BlockSpec((nl, c, 3 * c), fixed3),       # Wq^T|Wk^T|Wv^T
            pl.BlockSpec((nl, c, c), fixed3),           # Wmerge^T
            pl.BlockSpec((nl, 2 * c, 2 * c), fixed3),   # Wmlp1^T
            pl.BlockSpec((nl, 2 * c, c), fixed3),       # Wmlp2^T
            pl.BlockSpec((nl, 4, c), fixed3),           # LayerNorm gamma/beta
        ],
        out_specs=[
            pl.BlockSpec((bb, l, c), batch_map),
            pl.BlockSpec((bb, s, c), batch_map),
        ],
    )

    out0, out1 = pl.pallas_call(
        kernel,
        out_shape=(jax.ShapeDtypeStruct((n, l, c), feat0.dtype),
                   jax.ShapeDtypeStruct((n, s, c), feat1.dtype)),
        grid_spec=grid_spec,
        input_output_aliases={0: 0, 1: 1},   # residual buffers reused for outputs
        compiler_params=pltpu.CompilerParams(
            dimension_semantics=("parallel",)),
    )(feat0, feat1, params["head_mask2"],
      params["wqkv_t"], params["wm_t"], params["w1_t"], params["w2_t"],
      params["ln"])
    return out0, out1


# -----------------------------------------------------------------------------
# Parameter construction (deterministic xavier-uniform, matching __init__ shapes)
# -----------------------------------------------------------------------------
def _xavier(key, out_dim, in_dim):
    bound = math.sqrt(6.0 / (in_dim + out_dim))
    return jax.random.uniform(key, (out_dim, in_dim), jnp.float32, -bound, bound)


def make_params(key, d_model, nhead, layer_names):
    nl = len(layer_names)
    keys = jax.random.split(key, nl)
    wqkv, wm, w1, w2, ln = [], [], [], [], []
    for k in keys:
        ks = jax.random.split(k, 6)
        q_w = _xavier(ks[0], d_model, d_model)
        k_w = _xavier(ks[1], d_model, d_model)
        v_w = _xavier(ks[2], d_model, d_model)
        m_w = _xavier(ks[3], d_model, d_model)
        w1_w = _xavier(ks[4], 2 * d_model, 2 * d_model)
        w2_w = _xavier(ks[5], d_model, 2 * d_model)
        # pre-transposed (in, out) for the kernel's x @ W layout
        wqkv.append(jnp.concatenate([q_w.T, k_w.T, v_w.T], axis=1))   # (C, 3C)
        wm.append(m_w.T)                                              # (C, C)
        w1.append(w1_w.T)                 # (2C, 2C): rows [0:C]->x, [C:2C]->message
        w2.append(w2_w.T)                                             # (2C, C)
        # LayerNorm affine params (dim==1 -> untouched by xavier reset)
        ln.append(jnp.stack([jnp.ones(d_model), jnp.zeros(d_model),
                             jnp.ones(d_model), jnp.zeros(d_model)]))
    dim = d_model // nhead
    h = jnp.arange(d_model) // dim
    head_mask = (h[:, None] == h[None, :]).astype(jnp.float32)        # (C, C)
    return {
        "wqkv_t": jnp.stack(wqkv).astype(jnp.bfloat16),
        "wm_t": jnp.stack(wm).astype(jnp.bfloat16),
        "w1_t": jnp.stack(w1).astype(jnp.bfloat16),
        "w2_t": jnp.stack(w2).astype(jnp.bfloat16),
        "ln": jnp.stack(ln).astype(jnp.float32),
        "head_mask2": jnp.concatenate([head_mask, head_mask], axis=1),  # (C, 2C)
    }


if __name__ == "__main__":
    root = jax.random.PRNGKey(0)
    k_f0, k_f1, k_params = jax.random.split(root, 3)

    feat0 = jax.random.normal(k_f0, (N, L, D_MODEL), jnp.float32)
    feat1 = jax.random.normal(k_f1, (N, S, D_MODEL), jnp.float32)
    params = make_params(k_params, D_MODEL, NHEAD, LAYER_NAMES)

    fwd = jax.jit(local_feature_transformer)
    out0, out1 = fwd(feat0, feat1, params)
    jax.block_until_ready((out0, out1))

    assert out0.shape == (N, L, D_MODEL) and out1.shape == (N, S, D_MODEL)
    assert bool(jnp.all(jnp.isfinite(out0))) and bool(jnp.all(jnp.isfinite(out1)))
    print("KERNEL_OK")
</pallas_src>

<mosaic_0001>
module attributes {stable_mosaic.version = 11 : i64} {
  func.func @_loftr_fused_kernel(%arg0: i32, %arg1: memref<2x64x128xf32, #tpu.memory_space<vmem>>, %arg2: memref<2x64x128xf32, #tpu.memory_space<vmem>>, %arg3: memref<128x256xf32, #tpu.memory_space<vmem>>, %arg4: memref<2x128x384xbf16, #tpu.memory_space<vmem>>, %arg5: memref<2x128x128xbf16, #tpu.memory_space<vmem>>, %arg6: memref<2x256x256xbf16, #tpu.memory_space<vmem>>, %arg7: memref<2x256x128xbf16, #tpu.memory_space<vmem>>, %arg8: memref<2x4x128xf32, #tpu.memory_space<vmem>>, %arg9: memref<2x64x128xf32, #tpu.memory_space<vmem>>, %arg10: memref<2x64x128xf32, #tpu.memory_space<vmem>>) attributes {dimension_semantics = [#tpu.dimension_semantics<parallel>], iteration_bounds = array<i64: 1>, scalar_prefetch = 0 : i64, scratch_operands = 0 : i64, tpu.core_type = #tpu.core_type<tc>, window_params = [{transform_indices = @transform_0, window_bounds = array<i64: 2, 64, 128>}, {transform_indices = @transform_1, window_bounds = array<i64: 2, 64, 128>}, {pipeline_mode = #tpu.pipeline_mode<synchronous>, transform_indices = @transform_2, window_bounds = array<i64: 128, 256>}, {pipeline_mode = #tpu.pipeline_mode<synchronous>, transform_indices = @transform_3, window_bounds = array<i64: 2, 128, 384>}, {pipeline_mode = #tpu.pipeline_mode<synchronous>, transform_indices = @transform_4, window_bounds = array<i64: 2, 128, 128>}, {pipeline_mode = #tpu.pipeline_mode<synchronous>, transform_indices = @transform_5, window_bounds = array<i64: 2, 256, 256>}, {pipeline_mode = #tpu.pipeline_mode<synchronous>, transform_indices = @transform_6, window_bounds = array<i64: 2, 256, 128>}, {pipeline_mode = #tpu.pipeline_mode<synchronous>, transform_indices = @transform_7, window_bounds = array<i64: 2, 4, 128>}, {transform_indices = @transform_8, window_bounds = array<i64: 2, 64, 128>}, {transform_indices = @transform_9, window_bounds = array<i64: 2, 64, 128>}]} {
    %c0 = arith.constant 0 : index
    %c0_0 = arith.constant 0 : index
    %c0_1 = arith.constant 0 : index
    %0 = vector.load %arg1[%c0, %c0_0, %c0_1] : memref<2x64x128xf32, #tpu.memory_space<vmem>>, vector<2x64x128xf32>
    %c0_2 = arith.constant 0 : index
    %c0_3 = arith.constant 0 : index
    %c0_4 = arith.constant 0 : index
    %1 = vector.load %arg2[%c0_2, %c0_3, %c0_4] : memref<2x64x128xf32, #tpu.memory_space<vmem>>, vector<2x64x128xf32>
    %c0_5 = arith.constant 0 : index
    %c0_6 = arith.constant 0 : index
    %2 = vector.load %arg3[%c0_5, %c0_6] : memref<128x256xf32, #tpu.memory_space<vmem>>, vector<128x256xf32>
    %c0_7 = arith.constant 0 : index
    %c0_8 = arith.constant 0 : index
    %c0_9 = arith.constant 0 : index
    %3 = vector.load %arg4[%c0_7, %c0_8, %c0_9] : memref<2x128x384xbf16, #tpu.memory_space<vmem>>, vector<1x128x384xbf16>
    %4 = vector.shape_cast %3 : vector<1x128x384xbf16> to vector<128x384xbf16>
    %c0_10 = arith.constant 0 : index
    %c0_11 = arith.constant 0 : index
    %c0_12 = arith.constant 0 : index
    %5 = vector.load %arg5[%c0_10, %c0_11, %c0_12] : memref<2x128x128xbf16, #tpu.memory_space<vmem>>, vector<1x128x128xbf16>
    %6 = vector.shape_cast %5 : vector<1x128x128xbf16> to vector<128x128xbf16>
    %c0_13 = arith.constant 0 : index
    %c0_14 = arith.constant 0 : index
    %c0_15 = arith.constant 0 : index
    %7 = vector.load %arg6[%c0_13, %c0_14, %c0_15] : memref<2x256x256xbf16, #tpu.memory_space<vmem>>, vector<1x256x256xbf16>
    %8 = vector.shape_cast %7 : vector<1x256x256xbf16> to vector<256x256xbf16>
    %c0_16 = arith.constant 0 : index
    %c0_17 = arith.constant 0 : index
    %c0_18 = arith.constant 0 : index
    %9 = vector.load %arg7[%c0_16, %c0_17, %c0_18] : memref<2x256x128xbf16, #tpu.memory_space<vmem>>, vector<1x256x128xbf16>
    %10 = vector.shape_cast %9 : vector<1x256x128xbf16> to vector<256x128xbf16>
    %c0_19 = arith.constant 0 : index
    %c0_20 = arith.constant 0 : index
    %c0_21 = arith.constant 0 : index
    %11 = vector.load %arg8[%c0_19, %c0_20, %c0_21] : memref<2x4x128xf32, #tpu.memory_space<vmem>>, vector<1x4x128xf32>
    %12 = vector.shape_cast %11 : vector<1x4x128xf32> to vector<4x128xf32>
    %13 = vector.extract_strided_slice %12 {offsets = [0, 0], sizes = [1, 128], strides = [1, 1]} : vector<4x128xf32> to vector<1x128xf32>
    %14 = vector.extract_strided_slice %12 {offsets = [1, 0], sizes = [1, 128], strides = [1, 1]} : vector<4x128xf32> to vector<1x128xf32>
    %15 = vector.extract_strided_slice %12 {offsets = [2, 0], sizes = [1, 128], strides = [1, 1]} : vector<4x128xf32> to vector<1x128xf32>
    %16 = vector.extract_strided_slice %12 {offsets = [3, 0], sizes = [1, 128], strides = [1, 1]} : vector<4x128xf32> to vector<1x128xf32>
    %17 = vector.shape_cast %0 : vector<2x64x128xf32> to vector<128x128xf32>
    %18 = arith.truncf %17 : vector<128x128xf32> to vector<128x128xbf16>
    %cst = arith.constant dense<0.000000e+00> : vector<128x384xf32>
    %19 = tpu.matmul %18, %4, %cst {dimension_numbers = #tpu.dot_dimension_numbers<[1], [0], [0], [1], [0, 0, 1, 1], [], []>} : vector<128x128xbf16>, vector<128x384xbf16>, vector<128x384xf32> -> vector<128x384xf32>
    %20 = vector.extract_strided_slice %19 {offsets = [0, 0], sizes = [128, 128], strides = [1, 1]} : vector<128x384xf32> to vector<128x128xf32>
    %21 = vector.extract_strided_slice %19 {offsets = [0, 128], sizes = [128, 128], strides = [1, 1]} : vector<128x384xf32> to vector<128x128xf32>
    %22 = vector.extract_strided_slice %19 {offsets = [0, 256], sizes = [128, 128], strides = [1, 1]} : vector<128x384xf32> to vector<128x128xf32>
    %cst_22 = arith.constant 0.000000e+00 : f32
    %23 = vector.broadcast %cst_22 : f32 to vector<128x128xf32>
    %24 = arith.cmpf ogt, %20, %23 : vector<128x128xf32>
    %cst_23 = arith.constant 1.000000e+00 : f32
    %25 = vector.broadcast %cst_23 : f32 to vector<128x128xf32>
    %26 = arith.addf %20, %25 : vector<128x128xf32>
    %cst_24 = arith.constant 0.000000e+00 : f32
    %27 = vector.broadcast %cst_24 : f32 to vector<128x128xf32>
    %28 = arith.minimumf %20, %27 : vector<128x128xf32>
    %29 = math.exp %28 : vector<128x128xf32>
    %30 = arith.select %24, %26, %29 : vector<128x128xi1>, vector<128x128xf32>
    %31 = vector.shape_cast %30 : vector<128x128xf32> to vector<2x64x128xf32>
    %cst_25 = arith.constant 0.000000e+00 : f32
    %32 = vector.broadcast %cst_25 : f32 to vector<128x128xf32>
    %33 = arith.cmpf ogt, %21, %32 : vector<128x128xf32>
    %cst_26 = arith.constant 1.000000e+00 : f32
    %34 = vector.broadcast %cst_26 : f32 to vector<128x128xf32>
    %35 = arith.addf %21, %34 : vector<128x128xf32>
    %cst_27 = arith.constant 0.000000e+00 : f32
    %36 = vector.broadcast %cst_27 : f32 to vector<128x128xf32>
    %37 = arith.minimumf %21, %36 : vector<128x128xf32>
    %38 = math.exp %37 : vector<128x128xf32>
    %39 = arith.select %33, %35, %38 : vector<128x128xi1>, vector<128x128xf32>
    %40 = vector.shape_cast %39 : vector<128x128xf32> to vector<2x64x128xf32>
    %41 = vector.shape_cast %22 : vector<128x128xf32> to vector<2x64x128xf32>
    %cst_28 = arith.constant 1.000000e+00 : f32
    %42 = vector.broadcast %cst_28 : f32 to vector<2x64x128xf32>
    %43 = tpu.concatenate %41, %42 in 2 : vector<2x64x128xf32>, vector<2x64x128xf32> -> vector<2x64x256xf32>
    %44 = arith.truncf %43 : vector<2x64x256xf32> to vector<2x64x256xbf16>
    %45 = arith.truncf %40 : vector<2x64x128xf32> to vector<2x64x128xbf16>
    "tpu.trace_start"() <{level = 10 : i32, message = "bsc,bsd->bcd"}> : () -> ()
    %cst_29 = arith.constant dense<0.000000e+00> : vector<2x128x256xf32>
    %46 = tpu.matmul %45, %44, %cst_29 {dimension_numbers = #tpu.dot_dimension_numbers<[1], [1], [2], [2], [0, 0, 0, 2, 1, 2], [0], [0]>} : vector<2x64x128xbf16>, vector<2x64x256xbf16>, vector<2x128x256xf32> -> vector<2x128x256xf32>
    "tpu.trace_stop"() : () -> ()
    %47 = vector.shape_cast %2 : vector<128x256xf32> to vector<1x128x256xf32>
    %48 = vector.broadcast %47 : vector<1x128x256xf32> to vector<2x128x256xf32>
    %49 = arith.mulf %46, %48 : vector<2x128x256xf32>
    %50 = arith.truncf %49 : vector<2x128x256xf32> to vector<2x128x256xbf16>
    %51 = arith.truncf %31 : vector<2x64x128xf32> to vector<2x64x128xbf16>
    "tpu.trace_start"() <{level = 10 : i32, message = "blc,bcm->blm"}> : () -> ()
    %cst_30 = arith.constant dense<0.000000e+00> : vector<2x64x256xf32>
    %52 = tpu.matmul %51, %50, %cst_30 {dimension_numbers = #tpu.dot_dimension_numbers<[2], [1], [1], [2], [0, 0, 0, 1, 1, 2], [0], [0]>} : vector<2x64x128xbf16>, vector<2x128x256xbf16>, vector<2x64x256xf32> -> vector<2x64x256xf32>
    "tpu.trace_stop"() : () -> ()
    %53 = vector.extract_strided_slice %52 {offsets = [0, 0, 0], sizes = [2, 64, 128], strides = [1, 1, 1]} : vector<2x64x256xf32> to vector<2x64x128xf32>
    %54 = vector.extract_strided_slice %52 {offsets = [0, 0, 128], sizes = [2, 64, 128], strides = [1, 1, 1]} : vector<2x64x256xf32> to vector<2x64x128xf32>
    %cst_31 = arith.constant 9.99999997E-7 : f32
    %55 = vector.broadcast %cst_31 : f32 to vector<2x64x128xf32>
    %56 = arith.addf %54, %55 : vector<2x64x128xf32>
    %57 = tpu.reciprocal %56 {approx = true} : vector<2x64x128xf32> -> vector<2x64x128xf32>
    %58 = arith.mulf %53, %57 : vector<2x64x128xf32>
    %59 = vector.shape_cast %58 : vector<2x64x128xf32> to vector<128x128xf32>
    %60 = arith.truncf %59 : vector<128x128xf32> to vector<128x128xbf16>
    %cst_32 = arith.constant dense<0.000000e+00> : vector<128x128xf32>
    %61 = tpu.matmul %60, %6, %cst_32 {dimension_numbers = #tpu.dot_dimension_numbers<[1], [0], [0], [1], [0, 0, 1, 1], [], []>} : vector<128x128xbf16>, vector<128x128xbf16>, vector<128x128xf32> -> vector<128x128xf32>
    %cst_33 = arith.constant dense<0.000000e+00> : vector<128xf32>
    %62 = vector.multi_reduction <add>, %61, %cst_33 [1] : vector<128x128xf32> to vector<128xf32>
    %63 = vector.shape_cast %62 : vector<128xf32> to vector<128x1xf32>
    %cst_34 = arith.constant 1.280000e+02 : f32
    %64 = vector.broadcast %cst_34 : f32 to vector<128x1xf32>
    %65 = arith.divf %63, %64 : vector<128x1xf32>
    %66 = arith.mulf %61, %61 : vector<128x128xf32>
    %cst_35 = arith.constant dense<0.000000e+00> : vector<128xf32>
    %67 = vector.multi_reduction <add>, %66, %cst_35 [1] : vector<128x128xf32> to vector<128xf32>
    %68 = vector.shape_cast %67 : vector<128xf32> to vector<128x1xf32>
    %cst_36 = arith.constant 1.280000e+02 : f32
    %69 = vector.broadcast %cst_36 : f32 to vector<128x1xf32>
    %70 = arith.divf %68, %69 : vector<128x1xf32>
    %71 = arith.mulf %65, %65 : vector<128x1xf32>
    %72 = arith.subf %70, %71 : vector<128x1xf32>
    %cst_37 = arith.constant 0.000000e+00 : f32
    %73 = vector.broadcast %cst_37 : f32 to vector<128x1xf32>
    %74 = arith.maximumf %72, %73 : vector<128x1xf32>
    %75 = vector.broadcast %65 : vector<128x1xf32> to vector<128x128xf32>
    %76 = arith.subf %61, %75 : vector<128x128xf32>
    %cst_38 = arith.constant 9.99999974E-6 : f32
    %77 = vector.broadcast %cst_38 : f32 to vector<128x1xf32>
    %78 = arith.addf %74, %77 : vector<128x1xf32>
    %79 = math.rsqrt %78 : vector<128x1xf32>
    %80 = vector.broadcast %79 : vector<128x1xf32> to vector<128x128xf32>
    %81 = arith.mulf %76, %80 : vector<128x128xf32>
    %82 = vector.broadcast %13 : vector<1x128xf32> to vector<128x128xf32>
    %83 = arith.mulf %81, %82 : vector<128x128xf32>
    %84 = vector.broadcast %14 : vector<1x128xf32> to vector<128x128xf32>
    %85 = arith.addf %83, %84 : vector<128x128xf32>
    %86 = vector.extract_strided_slice %8 {offsets = [0, 0], sizes = [128, 256], strides = [1, 1]} : vector<256x256xbf16> to vector<128x256xbf16>
    %cst_39 = arith.constant dense<0.000000e+00> : vector<128x256xf32>
    %87 = tpu.matmul %18, %86, %cst_39 {dimension_numbers = #tpu.dot_dimension_numbers<[1], [0], [0], [1], [0, 0, 1, 1], [], []>} : vector<128x128xbf16>, vector<128x256xbf16>, vector<128x256xf32> -> vector<128x256xf32>
    %88 = arith.truncf %85 : vector<128x128xf32> to vector<128x128xbf16>
    %89 = vector.extract_strided_slice %8 {offsets = [128, 0], sizes = [128, 256], strides = [1, 1]} : vector<256x256xbf16> to vector<128x256xbf16>
    %cst_40 = arith.constant dense<0.000000e+00> : vector<128x256xf32>
    %90 = tpu.matmul %88, %89, %cst_40 {dimension_numbers = #tpu.dot_dimension_numbers<[1], [0], [0], [1], [0, 0, 1, 1], [], []>} : vector<128x128xbf16>, vector<128x256xbf16>, vector<128x256xf32> -> vector<128x256xf32>
    %91 = arith.addf %87, %90 : vector<128x256xf32>
    %cst_41 = arith.constant 0.000000e+00 : f32
    %92 = vector.broadcast %cst_41 : f32 to vector<128x256xf32>
    %93 = arith.maximumf %91, %92 : vector<128x256xf32>
    %94 = arith.truncf %93 : vector<128x256xf32> to vector<128x256xbf16>
    %cst_42 = arith.constant dense<0.000000e+00> : vector<128x128xf32>
    %95 = tpu.matmul %94, %10, %cst_42 {dimension_numbers = #tpu.dot_dimension_numbers<[1], [0], [0], [1], [0, 0, 1, 1], [], []>} : vector<128x256xbf16>, vector<256x128xbf16>, vector<128x128xf32> -> vector<128x128xf32>
    %cst_43 = arith.constant dense<0.000000e+00> : vector<128xf32>
    %96 = vector.multi_reduction <add>, %95, %cst_43 [1] : vector<128x128xf32> to vector<128xf32>
    %97 = vector.shape_cast %96 : vector<128xf32> to vector<128x1xf32>
    %cst_44 = arith.constant 1.280000e+02 : f32
    %98 = vector.broadcast %cst_44 : f32 to vector<128x1xf32>
    %99 = arith.divf %97, %98 : vector<128x1xf32>
    %100 = arith.mulf %95, %95 : vector<128x128xf32>
    %cst_45 = arith.constant dense<0.000000e+00> : vector<128xf32>
    %101 = vector.multi_reduction <add>, %100, %cst_45 [1] : vector<128x128xf32> to vector<128xf32>
    %102 = vector.shape_cast %101 : vector<128xf32> to vector<128x1xf32>
    %cst_46 = arith.constant 1.280000e+02 : f32
    %103 = vector.broadcast %cst_46 : f32 to vector<128x1xf32>
    %104 = arith.divf %102, %103 : vector<128x1xf32>
    %105 = arith.mulf %99, %99 : vector<128x1xf32>
    %106 = arith.subf %104, %105 : vector<128x1xf32>
    %cst_47 = arith.constant 0.000000e+00 : f32
    %107 = vector.broadcast %cst_47 : f32 to vector<128x1xf32>
    %108 = arith.maximumf %106, %107 : vector<128x1xf32>
    %109 = vector.broadcast %99 : vector<128x1xf32> to vector<128x128xf32>
    %110 = arith.subf %95, %109 : vector<128x128xf32>
    %cst_48 = arith.constant 9.99999974E-6 : f32
    %111 = vector.broadcast %cst_48 : f32 to vector<128x1xf32>
    %112 = arith.addf %108, %111 : vector<128x1xf32>
    %113 = math.rsqrt %112 : vector<128x1xf32>
    %114 = vector.broadcast %113 : vector<128x1xf32> to vector<128x128xf32>
    %115 = arith.mulf %110, %114 : vector<128x128xf32>
    %116 = vector.broadcast %15 : vector<1x128xf32> to vector<128x128xf32>
    %117 = arith.mulf %115, %116 : vector<128x128xf32>
    %118 = vector.broadcast %16 : vector<1x128xf32> to vector<128x128xf32>
    %119 = arith.addf %117, %118 : vector<128x128xf32>
    %120 = vector.shape_cast %119 : vector<128x128xf32> to vector<2x64x128xf32>
    %121 = arith.addf %0, %120 : vector<2x64x128xf32>
    %c0_49 = arith.constant 0 : index
    %c0_50 = arith.constant 0 : index
    %c0_51 = arith.constant 0 : index
    %122 = vector.load %arg4[%c0_49, %c0_50, %c0_51] : memref<2x128x384xbf16, #tpu.memory_space<vmem>>, vector<1x128x384xbf16>
    %123 = vector.shape_cast %122 : vector<1x128x384xbf16> to vector<128x384xbf16>
    %c0_52 = arith.constant 0 : index
    %c0_53 = arith.constant 0 : index
    %c0_54 = arith.constant 0 : index
    %124 = vector.load %arg5[%c0_52, %c0_53, %c0_54] : memref<2x128x128xbf16, #tpu.memory_space<vmem>>, vector<1x128x128xbf16>
    %125 = vector.shape_cast %124 : vector<1x128x128xbf16> to vector<128x128xbf16>
    %c0_55 = arith.constant 0 : index
    %c0_56 = arith.constant 0 : index
    %c0_57 = arith.constant 0 : index
    %126 = vector.load %arg6[%c0_55, %c0_56, %c0_57] : memref<2x256x256xbf16, #tpu.memory_space<vmem>>, vector<1x256x256xbf16>
    %127 = vector.shape_cast %126 : vector<1x256x256xbf16> to vector<256x256xbf16>
    %c0_58 = arith.constant 0 : index
    %c0_59 = arith.constant 0 : index
    %c0_60 = arith.constant 0 : index
    %128 = vector.load %arg7[%c0_58, %c0_59, %c0_60] : memref<2x256x128xbf16, #tpu.memory_space<vmem>>, vector<1x256x128xbf16>
    %129 = vector.shape_cast %128 : vector<1x256x128xbf16> to vector<256x128xbf16>
    %c0_61 = arith.constant 0 : index
    %c0_62 = arith.constant 0 : index
    %c0_63 = arith.constant 0 : index
    %130 = vector.load %arg8[%c0_61, %c0_62, %c0_63] : memref<2x4x128xf32, #tpu.memory_space<vmem>>, vector<1x4x128xf32>
    %131 = vector.shape_cast %130 : vector<1x4x128xf32> to vector<4x128xf32>
    %132 = vector.extract_strided_slice %131 {offsets = [0, 0], sizes = [1, 128], strides = [1, 1]} : vector<4x128xf32> to vector<1x128xf32>
    %133 = vector.extract_strided_slice %131 {offsets = [1, 0], sizes = [1, 128], strides = [1, 1]} : vector<4x128xf32> to vector<1x128xf32>
    %134 = vector.extract_strided_slice %131 {offsets = [2, 0], sizes = [1, 128], strides = [1, 1]} : vector<4x128xf32> to vector<1x128xf32>
    %135 = vector.extract_strided_slice %131 {offsets = [3, 0], sizes = [1, 128], strides = [1, 1]} : vector<4x128xf32> to vector<1x128xf32>
    %136 = vector.shape_cast %1 : vector<2x64x128xf32> to vector<128x128xf32>
    %137 = arith.truncf %136 : vector<128x128xf32> to vector<128x128xbf16>
    %cst_64 = arith.constant dense<0.000000e+00> : vector<128x384xf32>
    %138 = tpu.matmul %137, %123, %cst_64 {dimension_numbers = #tpu.dot_dimension_numbers<[1], [0], [0], [1], [0, 0, 1, 1], [], []>} : vector<128x128xbf16>, vector<128x384xbf16>, vector<128x384xf32> -> vector<128x384xf32>
    %139 = vector.extract_strided_slice %138 {offsets = [0, 0], sizes = [128, 128], strides = [1, 1]} : vector<128x384xf32> to vector<128x128xf32>
    %140 = vector.extract_strided_slice %138 {offsets = [0, 128], sizes = [128, 128], strides = [1, 1]} : vector<128x384xf32> to vector<128x128xf32>
    %141 = vector.extract_strided_slice %138 {offsets = [0, 256], sizes = [128, 128], strides = [1, 1]} : vector<128x384xf32> to vector<128x128xf32>
    %cst_65 = arith.constant 0.000000e+00 : f32
    %142 = vector.broadcast %cst_65 : f32 to vector<128x128xf32>
    %143 = arith.cmpf ogt, %139, %142 : vector<128x128xf32>
    %cst_66 = arith.constant 1.000000e+00 : f32
    %144 = vector.broadcast %cst_66 : f32 to vector<128x128xf32>
    %145 = arith.addf %139, %144 : vector<128x128xf32>
    %cst_67 = arith.constant 0.000000e+00 : f32
    %146 = vector.broadcast %cst_67 : f32 to vector<128x128xf32>
    %147 = arith.minimumf %139, %146 : vector<128x128xf32>
    %148 = math.exp %147 : vector<128x128xf32>
    %149 = arith.select %143, %145, %148 : vector<128x128xi1>, vector<128x128xf32>
    %150 = vector.shape_cast %149 : vector<128x128xf32> to vector<2x64x128xf32>
    %cst_68 = arith.constant 0.000000e+00 : f32
    %151 = vector.broadcast %cst_68 : f32 to vector<128x128xf32>
    %152 = arith.cmpf ogt, %140, %151 : vector<128x128xf32>
    %cst_69 = arith.constant 1.000000e+00 : f32
    %153 = vector.broadcast %cst_69 : f32 to vector<128x128xf32>
    %154 = arith.addf %140, %153 : vector<128x128xf32>
    %cst_70 = arith.constant 0.000000e+00 : f32
    %155 = vector.broadcast %cst_70 : f32 to vector<128x128xf32>
    %156 = arith.minimumf %140, %155 : vector<128x128xf32>
    %157 = math.exp %156 : vector<128x128xf32>
    %158 = arith.select %152, %154, %157 : vector<128x128xi1>, vector<128x128xf32>
    %159 = vector.shape_cast %158 : vector<128x128xf32> to vector<2x64x128xf32>
    %160 = vector.shape_cast %141 : vector<128x128xf32> to vector<2x64x128xf32>
    %cst_71 = arith.constant 1.000000e+00 : f32
    %161 = vector.broadcast %cst_71 : f32 to vector<2x64x128xf32>
    %162 = tpu.concatenate %160, %161 in 2 : vector<2x64x128xf32>, vector<2x64x128xf32> -> vector<2x64x256xf32>
    %163 = arith.truncf %162 : vector<2x64x256xf32> to vector<2x64x256xbf16>
    %164 = arith.truncf %159 : vector<2x64x128xf32> to vector<2x64x128xbf16>
    "tpu.trace_start"() <{level = 10 : i32, message = "bsc,bsd->bcd"}> : () -> ()
    %cst_72 = arith.constant dense<0.000000e+00> : vector<2x128x256xf32>
    %165 = tpu.matmul %164, %163, %cst_72 {dimension_numbers = #tpu.dot_dimension_numbers<[1], [1], [2], [2], [0, 0, 0, 2, 1, 2], [0], [0]>} : vector<2x64x128xbf16>, vector<2x64x256xbf16>, vector<2x128x256xf32> -> vector<2x128x256xf32>
    "tpu.trace_stop"() : () -> ()
    %166 = vector.shape_cast %2 : vector<128x256xf32> to vector<1x128x256xf32>
    %167 = vector.broadcast %166 : vector<1x128x256xf32> to vector<2x128x256xf32>
    %168 = arith.mulf %165, %167 : vector<2x128x256xf32>
    %169 = arith.truncf %168 : vector<2x128x256xf32> to vector<2x128x256xbf16>
    %170 = arith.truncf %150 : vector<2x64x128xf32> to vector<2x64x128xbf16>
    "tpu.trace_start"() <{level = 10 : i32, message = "blc,bcm->blm"}> : () -> ()
    %cst_73 = arith.constant dense<0.000000e+00> : vector<2x64x256xf32>
    %171 = tpu.matmul %170, %169, %cst_73 {dimension_numbers = #tpu.dot_dimension_numbers<[2], [1], [1], [2], [0, 0, 0, 1, 1, 2], [0], [0]>} : vector<2x64x128xbf16>, vector<2x128x256xbf16>, vector<2x64x256xf32> -> vector<2x64x256xf32>
    "tpu.trace_stop"() : () -> ()
    %172 = vector.extract_strided_slice %171 {offsets = [0, 0, 0], sizes = [2, 64, 128], strides = [1, 1, 1]} : vector<2x64x256xf32> to vector<2x64x128xf32>
    %173 = vector.extract_strided_slice %171 {offsets = [0, 0, 128], sizes = [2, 64, 128], strides = [1, 1, 1]} : vector<2x64x256xf32> to vector<2x64x128xf32>
    %cst_74 = arith.constant 9.99999997E-7 : f32
    %174 = vector.broadcast %cst_74 : f32 to vector<2x64x128xf32>
    %175 = arith.addf %173, %174 : vector<2x64x128xf32>
    %176 = tpu.reciprocal %175 {approx = true} : vector<2x64x128xf32> -> vector<2x64x128xf32>
    %177 = arith.mulf %172, %176 : vector<2x64x128xf32>
    %178 = vector.shape_cast %177 : vector<2x64x128xf32> to vector<128x128xf32>
    %179 = arith.truncf %178 : vector<128x128xf32> to vector<128x128xbf16>
    %cst_75 = arith.constant dense<0.000000e+00> : vector<128x128xf32>
    %180 = tpu.matmul %179, %125, %cst_75 {dimension_numbers = #tpu.dot_dimension_numbers<[1], [0], [0], [1], [0, 0, 1, 1], [], []>} : vector<128x128xbf16>, vector<128x128xbf16>, vector<128x128xf32> -> vector<128x128xf32>
    %cst_76 = arith.constant dense<0.000000e+00> : vector<128xf32>
    %181 = vector.multi_reduction <add>, %180, %cst_76 [1] : vector<128x128xf32> to vector<128xf32>
    %182 = vector.shape_cast %181 : vector<128xf32> to vector<128x1xf32>
    %cst_77 = arith.constant 1.280000e+02 : f32
    %183 = vector.broadcast %cst_77 : f32 to vector<128x1xf32>
    %184 = arith.divf %182, %183 : vector<128x1xf32>
    %185 = arith.mulf %180, %180 : vector<128x128xf32>
    %cst_78 = arith.constant dense<0.000000e+00> : vector<128xf32>
    %186 = vector.multi_reduction <add>, %185, %cst_78 [1] : vector<128x128xf32> to vector<128xf32>
    %187 = vector.shape_cast %186 : vector<128xf32> to vector<128x1xf32>
    %cst_79 = arith.constant 1.280000e+02 : f32
    %188 = vector.broadcast %cst_79 : f32 to vector<128x1xf32>
    %189 = arith.divf %187, %188 : vector<128x1xf32>
    %190 = arith.mulf %184, %184 : vector<128x1xf32>
    %191 = arith.subf %189, %190 : vector<128x1xf32>
    %cst_80 = arith.constant 0.000000e+00 : f32
    %192 = vector.broadcast %cst_80 : f32 to vector<128x1xf32>
    %193 = arith.maximumf %191, %192 : vector<128x1xf32>
    %194 = vector.broadcast %184 : vector<128x1xf32> to vector<128x128xf32>
    %195 = arith.subf %180, %194 : vector<128x128xf32>
    %cst_81 = arith.constant 9.99999974E-6 : f32
    %196 = vector.broadcast %cst_81 : f32 to vector<128x1xf32>
    %197 = arith.addf %193, %196 : vector<128x1xf32>
    %198 = math.rsqrt %197 : vector<128x1xf32>
    %199 = vector.broadcast %198 : vector<128x1xf32> to vector<128x128xf32>
    %200 = arith.mulf %195, %199 : vector<128x128xf32>
    %201 = vector.broadcast %132 : vector<1x128xf32> to vector<128x128xf32>
    %202 = arith.mulf %200, %201 : vector<128x128xf32>
    %203 = vector.broadcast %133 : vector<1x128xf32> to vector<128x128xf32>
    %204 = arith.addf %202, %203 : vector<128x128xf32>
    %205 = vector.extract_strided_slice %127 {offsets = [0, 0], sizes = [128, 256], strides = [1, 1]} : vector<256x256xbf16> to vector<128x256xbf16>
    %cst_82 = arith.constant dense<0.000000e+00> : vector<128x256xf32>
    %206 = tpu.matmul %137, %205, %cst_82 {dimension_numbers = #tpu.dot_dimension_numbers<[1], [0], [0], [1], [0, 0, 1, 1], [], []>} : vector<128x128xbf16>, vector<128x256xbf16>, vector<128x256xf32> -> vector<128x256xf32>
    %207 = arith.truncf %204 : vector<128x128xf32> to vector<128x128xbf16>
    %208 = vector.extract_strided_slice %127 {offsets = [128, 0], sizes = [128, 256], strides = [1, 1]} : vector<256x256xbf16> to vector<128x256xbf16>
    %cst_83 = arith.constant dense<0.000000e+00> : vector<128x256xf32>
    %209 = tpu.matmul %207, %208, %cst_83 {dimension_numbers = #tpu.dot_dimension_numbers<[1], [0], [0], [1], [0, 0, 1, 1], [], []>} : vector<128x128xbf16>, vector<128x256xbf16>, vector<128x256xf32> -> vector<128x256xf32>
    %210 = arith.addf %206, %209 : vector<128x256xf32>
    %cst_84 = arith.constant 0.000000e+00 : f32
    %211 = vector.broadcast %cst_84 : f32 to vector<128x256xf32>
    %212 = arith.maximumf %210, %211 : vector<128x256xf32>
    %213 = arith.truncf %212 : vector<128x256xf32> to vector<128x256xbf16>
    %cst_85 = arith.constant dense<0.000000e+00> : vector<128x128xf32>
    %214 = tpu.matmul %213, %129, %cst_85 {dimension_numbers = #tpu.dot_dimension_numbers<[1], [0], [0], [1], [0, 0, 1, 1], [], []>} : vector<128x256xbf16>, vector<256x128xbf16>, vector<128x128xf32> -> vector<128x128xf32>
    %cst_86 = arith.constant dense<0.000000e+00> : vector<128xf32>
    %215 = vector.multi_reduction <add>, %214, %cst_86 [1] : vector<128x128xf32> to vector<128xf32>
    %216 = vector.shape_cast %215 : vector<128xf32> to vector<128x1xf32>
    %cst_87 = arith.constant 1.280000e+02 : f32
    %217 = vector.broadcast %cst_87 : f32 to vector<128x1xf32>
    %218 = arith.divf %216, %217 : vector<128x1xf32>
    %219 = arith.mulf %214, %214 : vector<128x128xf32>
    %cst_88 = arith.constant dense<0.000000e+00> : vector<128xf32>
    %220 = vector.multi_reduction <add>, %219, %cst_88 [1] : vector<128x128xf32> to vector<128xf32>
    %221 = vector.shape_cast %220 : vector<128xf32> to vector<128x1xf32>
    %cst_89 = arith.constant 1.280000e+02 : f32
    %222 = vector.broadcast %cst_89 : f32 to vector<128x1xf32>
    %223 = arith.divf %221, %222 : vector<128x1xf32>
    %224 = arith.mulf %218, %218 : vector<128x1xf32>
    %225 = arith.subf %223, %224 : vector<128x1xf32>
    %cst_90 = arith.constant 0.000000e+00 : f32
    %226 = vector.broadcast %cst_90 : f32 to vector<128x1xf32>
    %227 = arith.maximumf %225, %226 : vector<128x1xf32>
    %228 = vector.broadcast %218 : vector<128x1xf32> to vector<128x128xf32>
    %229 = arith.subf %214, %228 : vector<128x128xf32>
    %cst_91 = arith.constant 9.99999974E-6 : f32
    %230 = vector.broadcast %cst_91 : f32 to vector<128x1xf32>
    %231 = arith.addf %227, %230 : vector<128x1xf32>
    %232 = math.rsqrt %231 : vector<128x1xf32>
    %233 = vector.broadcast %232 : vector<128x1xf32> to vector<128x128xf32>
    %234 = arith.mulf %229, %233 : vector<128x128xf32>
    %235 = vector.broadcast %134 : vector<1x128xf32> to vector<128x128xf32>
    %236 = arith.mulf %234, %235 : vector<128x128xf32>
    %237 = vector.broadcast %135 : vector<1x128xf32> to vector<128x128xf32>
    %238 = arith.addf %236, %237 : vector<128x128xf32>
    %239 = vector.shape_cast %238 : vector<128x128xf32> to vector<2x64x128xf32>
    %240 = arith.addf %1, %239 : vector<2x64x128xf32>
    %c1 = arith.constant 1 : index
    %c0_92 = arith.constant 0 : index
    %c0_93 = arith.constant 0 : index
    %241 = vector.load %arg4[%c1, %c0_92, %c0_93] : memref<2x128x384xbf16, #tpu.memory_space<vmem>>, vector<1x128x384xbf16>
    %242 = vector.shape_cast %241 : vector<1x128x384xbf16> to vector<128x384xbf16>
    %c1_94 = arith.constant 1 : index
    %c0_95 = arith.constant 0 : index
    %c0_96 = arith.constant 0 : index
    %243 = vector.load %arg5[%c1_94, %c0_95, %c0_96] : memref<2x128x128xbf16, #tpu.memory_space<vmem>>, vector<1x128x128xbf16>
    %244 = vector.shape_cast %243 : vector<1x128x128xbf16> to vector<128x128xbf16>
    %c1_97 = arith.constant 1 : index
    %c0_98 = arith.constant 0 : index
    %c0_99 = arith.constant 0 : index
    %245 = vector.load %arg6[%c1_97, %c0_98, %c0_99] : memref<2x256x256xbf16, #tpu.memory_space<vmem>>, vector<1x256x256xbf16>
    %246 = vector.shape_cast %245 : vector<1x256x256xbf16> to vector<256x256xbf16>
    %c1_100 = arith.constant 1 : index
    %c0_101 = arith.constant 0 : index
    %c0_102 = arith.constant 0 : index
    %247 = vector.load %arg7[%c1_100, %c0_101, %c0_102] : memref<2x256x128xbf16, #tpu.memory_space<vmem>>, vector<1x256x128xbf16>
    %248 = vector.shape_cast %247 : vector<1x256x128xbf16> to vector<256x128xbf16>
    %c1_103 = arith.constant 1 : index
    %c0_104 = arith.constant 0 : index
    %c0_105 = arith.constant 0 : index
    %249 = vector.load %arg8[%c1_103, %c0_104, %c0_105] : memref<2x4x128xf32, #tpu.memory_space<vmem>>, vector<1x4x128xf32>
    %250 = vector.shape_cast %249 : vector<1x4x128xf32> to vector<4x128xf32>
    %251 = vector.extract_strided_slice %250 {offsets = [0, 0], sizes = [1, 128], strides = [1, 1]} : vector<4x128xf32> to vector<1x128xf32>
    %252 = vector.extract_strided_slice %250 {offsets = [1, 0], sizes = [1, 128], strides = [1, 1]} : vector<4x128xf32> to vector<1x128xf32>
    %253 = vector.extract_strided_slice %250 {offsets = [2, 0], sizes = [1, 128], strides = [1, 1]} : vector<4x128xf32> to vector<1x128xf32>
    %254 = vector.extract_strided_slice %250 {offsets = [3, 0], sizes = [1, 128], strides = [1, 1]} : vector<4x128xf32> to vector<1x128xf32>
    %255 = vector.shape_cast %121 : vector<2x64x128xf32> to vector<128x128xf32>
    %256 = arith.truncf %255 : vector<128x128xf32> to vector<128x128xbf16>
    %257 = vector.shape_cast %240 : vector<2x64x128xf32> to vector<128x128xf32>
    %258 = arith.truncf %257 : vector<128x128xf32> to vector<128x128xbf16>
    %259 = vector.extract_strided_slice %242 {offsets = [0, 0], sizes = [128, 128], strides = [1, 1]} : vector<128x384xbf16> to vector<128x128xbf16>
    %cst_106 = arith.constant dense<0.000000e+00> : vector<128x128xf32>
    %260 = tpu.matmul %256, %259, %cst_106 {dimension_numbers = #tpu.dot_dimension_numbers<[1], [0], [0], [1], [0, 0, 1, 1], [], []>} : vector<128x128xbf16>, vector<128x128xbf16>, vector<128x128xf32> -> vector<128x128xf32>
    %261 = vector.extract_strided_slice %242 {offsets = [0, 128], sizes = [128, 256], strides = [1, 1]} : vector<128x384xbf16> to vector<128x256xbf16>
    %cst_107 = arith.constant dense<0.000000e+00> : vector<128x256xf32>
    %262 = tpu.matmul %258, %261, %cst_107 {dimension_numbers = #tpu.dot_dimension_numbers<[1], [0], [0], [1], [0, 0, 1, 1], [], []>} : vector<128x128xbf16>, vector<128x256xbf16>, vector<128x256xf32> -> vector<128x256xf32>
    %263 = vector.extract_strided_slice %262 {offsets = [0, 0], sizes = [128, 128], strides = [1, 1]} : vector<128x256xf32> to vector<128x128xf32>
    %264 = vector.extract_strided_slice %262 {offsets = [0, 128], sizes = [128, 128], strides = [1, 1]} : vector<128x256xf32> to vector<128x128xf32>
    %cst_108 = arith.constant 0.000000e+00 : f32
    %265 = vector.broadcast %cst_108 : f32 to vector<128x128xf32>
    %266 = arith.cmpf ogt, %260, %265 : vector<128x128xf32>
    %cst_109 = arith.constant 1.000000e+00 : f32
    %267 = vector.broadcast %cst_109 : f32 to vector<128x128xf32>
    %268 = arith.addf %260, %267 : vector<128x128xf32>
    %cst_110 = arith.constant 0.000000e+00 : f32
    %269 = vector.broadcast %cst_110 : f32 to vector<128x128xf32>
    %270 = arith.minimumf %260, %269 : vector<128x128xf32>
    %271 = math.exp %270 : vector<128x128xf32>
    %272 = arith.select %266, %268, %271 : vector<128x128xi1>, vector<128x128xf32>
    %273 = vector.shape_cast %272 : vector<128x128xf32> to vector<2x64x128xf32>
    %cst_111 = arith.constant 0.000000e+00 : f32
    %274 = vector.broadcast %cst_111 : f32 to vector<128x128xf32>
    %275 = arith.cmpf ogt, %263, %274 : vector<128x128xf32>
    %cst_112 = arith.constant 1.000000e+00 : f32
    %276 = vector.broadcast %cst_112 : f32 to vector<128x128xf32>
    %277 = arith.addf %263, %276 : vector<128x128xf32>
    %cst_113 = arith.constant 0.000000e+00 : f32
    %278 = vector.broadcast %cst_113 : f32 to vector<128x128xf32>
    %279 = arith.minimumf %263, %278 : vector<128x128xf32>
    %280 = math.exp %279 : vector<128x128xf32>
    %281 = arith.select %275, %277, %280 : vector<128x128xi1>, vector<128x128xf32>
    %282 = vector.shape_cast %281 : vector<128x128xf32> to vector<2x64x128xf32>
    %283 = vector.shape_cast %264 : vector<128x128xf32> to vector<2x64x128xf32>
    %cst_114 = arith.constant 1.000000e+00 : f32
    %284 = vector.broadcast %cst_114 : f32 to vector<2x64x128xf32>
    %285 = tpu.concatenate %283, %284 in 2 : vector<2x64x128xf32>, vector<2x64x128xf32> -> vector<2x64x256xf32>
    %286 = arith.truncf %285 : vector<2x64x256xf32> to vector<2x64x256xbf16>
    %287 = arith.truncf %282 : vector<2x64x128xf32> to vector<2x64x128xbf16>
    "tpu.trace_start"() <{level = 10 : i32, message = "bsc,bsd->bcd"}> : () -> ()
    %cst_115 = arith.constant dense<0.000000e+00> : vector<2x128x256xf32>
    %288 = tpu.matmul %287, %286, %cst_115 {dimension_numbers = #tpu.dot_dimension_numbers<[1], [1], [2], [2], [0, 0, 0, 2, 1, 2], [0], [0]>} : vector<2x64x128xbf16>, vector<2x64x256xbf16>, vector<2x128x256xf32> -> vector<2x128x256xf32>
    "tpu.trace_stop"() : () -> ()
    %289 = vector.shape_cast %2 : vector<128x256xf32> to vector<1x128x256xf32>
    %290 = vector.broadcast %289 : vector<1x128x256xf32> to vector<2x128x256xf32>
    %291 = arith.mulf %288, %290 : vector<2x128x256xf32>
    %292 = arith.truncf %291 : vector<2x128x256xf32> to vector<2x128x256xbf16>
    %293 = arith.truncf %273 : vector<2x64x128xf32> to vector<2x64x128xbf16>
    "tpu.trace_start"() <{level = 10 : i32, message = "blc,bcm->blm"}> : () -> ()
    %cst_116 = arith.constant dense<0.000000e+00> : vector<2x64x256xf32>
    %294 = tpu.matmul %293, %292, %cst_116 {dimension_numbers = #tpu.dot_dimension_numbers<[2], [1], [1], [2], [0, 0, 0, 1, 1, 2], [0], [0]>} : vector<2x64x128xbf16>, vector<2x128x256xbf16>, vector<2x64x256xf32> -> vector<2x64x256xf32>
    "tpu.trace_stop"() : () -> ()
    %295 = vector.extract_strided_slice %294 {offsets = [0, 0, 0], sizes = [2, 64, 128], strides = [1, 1, 1]} : vector<2x64x256xf32> to vector<2x64x128xf32>
    %296 = vector.extract_strided_slice %294 {offsets = [0, 0, 128], sizes = [2, 64, 128], strides = [1, 1, 1]} : vector<2x64x256xf32> to vector<2x64x128xf32>
    %cst_117 = arith.constant 9.99999997E-7 : f32
    %297 = vector.broadcast %cst_117 : f32 to vector<2x64x128xf32>
    %298 = arith.addf %296, %297 : vector<2x64x128xf32>
    %299 = tpu.reciprocal %298 {approx = true} : vector<2x64x128xf32> -> vector<2x64x128xf32>
    %300 = arith.mulf %295, %299 : vector<2x64x128xf32>
    %301 = vector.shape_cast %300 : vector<2x64x128xf32> to vector<128x128xf32>
    %302 = arith.truncf %301 : vector<128x128xf32> to vector<128x128xbf16>
    %cst_118 = arith.constant dense<0.000000e+00> : vector<128x128xf32>
    %303 = tpu.matmul %302, %244, %cst_118 {dimension_numbers = #tpu.dot_dimension_numbers<[1], [0], [0], [1], [0, 0, 1, 1], [], []>} : vector<128x128xbf16>, vector<128x128xbf16>, vector<128x128xf32> -> vector<128x128xf32>
    %cst_119 = arith.constant dense<0.000000e+00> : vector<128xf32>
    %304 = vector.multi_reduction <add>, %303, %cst_119 [1] : vector<128x128xf32> to vector<128xf32>
    %305 = vector.shape_cast %304 : vector<128xf32> to vector<128x1xf32>
    %cst_120 = arith.constant 1.280000e+02 : f32
    %306 = vector.broadcast %cst_120 : f32 to vector<128x1xf32>
    %307 = arith.divf %305, %306 : vector<128x1xf32>
    %308 = arith.mulf %303, %303 : vector<128x128xf32>
    %cst_121 = arith.constant dense<0.000000e+00> : vector<128xf32>
    %309 = vector.multi_reduction <add>, %308, %cst_121 [1] : vector<128x128xf32> to vector<128xf32>
    %310 = vector.shape_cast %309 : vector<128xf32> to vector<128x1xf32>
    %cst_122 = arith.constant 1.280000e+02 : f32
    %311 = vector.broadcast %cst_122 : f32 to vector<128x1xf32>
    %312 = arith.divf %310, %311 : vector<128x1xf32>
    %313 = arith.mulf %307, %307 : vector<128x1xf32>
    %314 = arith.subf %312, %313 : vector<128x1xf32>
    %cst_123 = arith.constant 0.000000e+00 : f32
    %315 = vector.broadcast %cst_123 : f32 to vector<128x1xf32>
    %316 = arith.maximumf %314, %315 : vector<128x1xf32>
    %317 = vector.broadcast %307 : vector<128x1xf32> to vector<128x128xf32>
    %318 = arith.subf %303, %317 : vector<128x128xf32>
    %cst_124 = arith.constant 9.99999974E-6 : f32
    %319 = vector.broadcast %cst_124 : f32 to vector<128x1xf32>
    %320 = arith.addf %316, %319 : vector<128x1xf32>
    %321 = math.rsqrt %320 : vector<128x1xf32>
    %322 = vector.broadcast %321 : vector<128x1xf32> to vector<128x128xf32>
    %323 = arith.mulf %318, %322 : vector<128x128xf32>
    %324 = vector.broadcast %251 : vector<1x128xf32> to vector<128x128xf32>
    %325 = arith.mulf %323, %324 : vector<128x128xf32>
    %326 = vector.broadcast %252 : vector<1x128xf32> to vector<128x128xf32>
    %327 = arith.addf %325, %326 : vector<128x128xf32>
    %328 = vector.extract_strided_slice %246 {offsets = [0, 0], sizes = [128, 256], strides = [1, 1]} : vector<256x256xbf16> to vector<128x256xbf16>
    %cst_125 = arith.constant dense<0.000000e+00> : vector<128x256xf32>
    %329 = tpu.matmul %256, %328, %cst_125 {dimension_numbers = #tpu.dot_dimension_numbers<[1], [0], [0], [1], [0, 0, 1, 1], [], []>} : vector<128x128xbf16>, vector<128x256xbf16>, vector<128x256xf32> -> vector<128x256xf32>
    %330 = arith.truncf %327 : vector<128x128xf32> to vector<128x128xbf16>
    %331 = vector.extract_strided_slice %246 {offsets = [128, 0], sizes = [128, 256], strides = [1, 1]} : vector<256x256xbf16> to vector<128x256xbf16>
    %cst_126 = arith.constant dense<0.000000e+00> : vector<128x256xf32>
    %332 = tpu.matmul %330, %331, %cst_126 {dimension_numbers = #tpu.dot_dimension_numbers<[1], [0], [0], [1], [0, 0, 1, 1], [], []>} : vector<128x128xbf16>, vector<128x256xbf16>, vector<128x256xf32> -> vector<128x256xf32>
    %333 = arith.addf %329, %332 : vector<128x256xf32>
    %cst_127 = arith.constant 0.000000e+00 : f32
    %334 = vector.broadcast %cst_127 : f32 to vector<128x256xf32>
    %335 = arith.maximumf %333, %334 : vector<128x256xf32>
    %336 = arith.truncf %335 : vector<128x256xf32> to vector<128x256xbf16>
    %cst_128 = arith.constant dense<0.000000e+00> : vector<128x128xf32>
    %337 = tpu.matmul %336, %248, %cst_128 {dimension_numbers = #tpu.dot_dimension_numbers<[1], [0], [0], [1], [0, 0, 1, 1], [], []>} : vector<128x256xbf16>, vector<256x128xbf16>, vector<128x128xf32> -> vector<128x128xf32>
    %cst_129 = arith.constant dense<0.000000e+00> : vector<128xf32>
    %338 = vector.multi_reduction <add>, %337, %cst_129 [1] : vector<128x128xf32> to vector<128xf32>
    %339 = vector.shape_cast %338 : vector<128xf32> to vector<128x1xf32>
    %cst_130 = arith.constant 1.280000e+02 : f32
    %340 = vector.broadcast %cst_130 : f32 to vector<128x1xf32>
    %341 = arith.divf %339, %340 : vector<128x1xf32>
    %342 = arith.mulf %337, %337 : vector<128x128xf32>
    %cst_131 = arith.constant dense<0.000000e+00> : vector<128xf32>
    %343 = vector.multi_reduction <add>, %342, %cst_131 [1] : vector<128x128xf32> to vector<128xf32>
    %344 = vector.shape_cast %343 : vector<128xf32> to vector<128x1xf32>
    %cst_132 = arith.constant 1.280000e+02 : f32
    %345 = vector.broadcast %cst_132 : f32 to vector<128x1xf32>
    %346 = arith.divf %344, %345 : vector<128x1xf32>
    %347 = arith.mulf %341, %341 : vector<128x1xf32>
    %348 = arith.subf %346, %347 : vector<128x1xf32>
    %cst_133 = arith.constant 0.000000e+00 : f32
    %349 = vector.broadcast %cst_133 : f32 to vector<128x1xf32>
    %350 = arith.maximumf %348, %349 : vector<128x1xf32>
    %351 = vector.broadcast %341 : vector<128x1xf32> to vector<128x128xf32>
    %352 = arith.subf %337, %351 : vector<128x128xf32>
    %cst_134 = arith.constant 9.99999974E-6 : f32
    %353 = vector.broadcast %cst_134 : f32 to vector<128x1xf32>
    %354 = arith.addf %350, %353 : vector<128x1xf32>
    %355 = math.rsqrt %354 : vector<128x1xf32>
    %356 = vector.broadcast %355 : vector<128x1xf32> to vector<128x128xf32>
    %357 = arith.mulf %352, %356 : vector<128x128xf32>
    %358 = vector.broadcast %253 : vector<1x128xf32> to vector<128x128xf32>
    %359 = arith.mulf %357, %358 : vector<128x128xf32>
    %360 = vector.broadcast %254 : vector<1x128xf32> to vector<128x128xf32>
    %361 = arith.addf %359, %360 : vector<128x128xf32>
    %362 = vector.shape_cast %361 : vector<128x128xf32> to vector<2x64x128xf32>
    %363 = arith.addf %121, %362 : vector<2x64x128xf32>
    %c1_135 = arith.constant 1 : index
    %c0_136 = arith.constant 0 : index
    %c0_137 = arith.constant 0 : index
    %364 = vector.load %arg4[%c1_135, %c0_136, %c0_137] : memref<2x128x384xbf16, #tpu.memory_space<vmem>>, vector<1x128x384xbf16>
    %365 = vector.shape_cast %364 : vector<1x128x384xbf16> to vector<128x384xbf16>
    %c1_138 = arith.constant 1 : index
    %c0_139 = arith.constant 0 : index
    %c0_140 = arith.constant 0 : index
    %366 = vector.load %arg5[%c1_138, %c0_139, %c0_140] : memref<2x128x128xbf16, #tpu.memory_space<vmem>>, vector<1x128x128xbf16>
    %367 = vector.shape_cast %366 : vector<1x128x128xbf16> to vector<128x128xbf16>
    %c1_141 = arith.constant 1 : index
    %c0_142 = arith.constant 0 : index
    %c0_143 = arith.constant 0 : index
    %368 = vector.load %arg6[%c1_141, %c0_142, %c0_143] : memref<2x256x256xbf16, #tpu.memory_space<vmem>>, vector<1x256x256xbf16>
    %369 = vector.shape_cast %368 : vector<1x256x256xbf16> to vector<256x256xbf16>
    %c1_144 = arith.constant 1 : index
    %c0_145 = arith.constant 0 : index
    %c0_146 = arith.constant 0 : index
    %370 = vector.load %arg7[%c1_144, %c0_145, %c0_146] : memref<2x256x128xbf16, #tpu.memory_space<vmem>>, vector<1x256x128xbf16>
    %371 = vector.shape_cast %370 : vector<1x256x128xbf16> to vector<256x128xbf16>
    %c1_147 = arith.constant 1 : index
    %c0_148 = arith.constant 0 : index
    %c0_149 = arith.constant 0 : index
    %372 = vector.load %arg8[%c1_147, %c0_148, %c0_149] : memref<2x4x128xf32, #tpu.memory_space<vmem>>, vector<1x4x128xf32>
    %373 = vector.shape_cast %372 : vector<1x4x128xf32> to vector<4x128xf32>
    %374 = vector.extract_strided_slice %373 {offsets = [0, 0], sizes = [1, 128], strides = [1, 1]} : vector<4x128xf32> to vector<1x128xf32>
    %375 = vector.extract_strided_slice %373 {offsets = [1, 0], sizes = [1, 128], strides = [1, 1]} : vector<4x128xf32> to vector<1x128xf32>
    %376 = vector.extract_strided_slice %373 {offsets = [2, 0], sizes = [1, 128], strides = [1, 1]} : vector<4x128xf32> to vector<1x128xf32>
    %377 = vector.extract_strided_slice %373 {offsets = [3, 0], sizes = [1, 128], strides = [1, 1]} : vector<4x128xf32> to vector<1x128xf32>
    %378 = vector.shape_cast %240 : vector<2x64x128xf32> to vector<128x128xf32>
    %379 = arith.truncf %378 : vector<128x128xf32> to vector<128x128xbf16>
    %380 = vector.shape_cast %363 : vector<2x64x128xf32> to vector<128x128xf32>
    %381 = arith.truncf %380 : vector<128x128xf32> to vector<128x128xbf16>
    %382 = vector.extract_strided_slice %365 {offsets = [0, 0], sizes = [128, 128], strides = [1, 1]} : vector<128x384xbf16> to vector<128x128xbf16>
    %cst_150 = arith.constant dense<0.000000e+00> : vector<128x128xf32>
    %383 = tpu.matmul %379, %382, %cst_150 {dimension_numbers = #tpu.dot_dimension_numbers<[1], [0], [0], [1], [0, 0, 1, 1], [], []>} : vector<128x128xbf16>, vector<128x128xbf16>, vector<128x128xf32> -> vector<128x128xf32>
    %384 = vector.extract_strided_slice %365 {offsets = [0, 128], sizes = [128, 256], strides = [1, 1]} : vector<128x384xbf16> to vector<128x256xbf16>
    %cst_151 = arith.constant dense<0.000000e+00> : vector<128x256xf32>
    %385 = tpu.matmul %381, %384, %cst_151 {dimension_numbers = #tpu.dot_dimension_numbers<[1], [0], [0], [1], [0, 0, 1, 1], [], []>} : vector<128x128xbf16>, vector<128x256xbf16>, vector<128x256xf32> -> vector<128x256xf32>
    %386 = vector.extract_strided_slice %385 {offsets = [0, 0], sizes = [128, 128], strides = [1, 1]} : vector<128x256xf32> to vector<128x128xf32>
    %387 = vector.extract_strided_slice %385 {offsets = [0, 128], sizes = [128, 128], strides = [1, 1]} : vector<128x256xf32> to vector<128x128xf32>
    %cst_152 = arith.constant 0.000000e+00 : f32
    %388 = vector.broadcast %cst_152 : f32 to vector<128x128xf32>
    %389 = arith.cmpf ogt, %383, %388 : vector<128x128xf32>
    %cst_153 = arith.constant 1.000000e+00 : f32
    %390 = vector.broadcast %cst_153 : f32 to vector<128x128xf32>
    %391 = arith.addf %383, %390 : vector<128x128xf32>
    %cst_154 = arith.constant 0.000000e+00 : f32
    %392 = vector.broadcast %cst_154 : f32 to vector<128x128xf32>
    %393 = arith.minimumf %383, %392 : vector<128x128xf32>
    %394 = math.exp %393 : vector<128x128xf32>
    %395 = arith.select %389, %391, %394 : vector<128x128xi1>, vector<128x128xf32>
    %396 = vector.shape_cast %395 : vector<128x128xf32> to vector<2x64x128xf32>
    %cst_155 = arith.constant 0.000000e+00 : f32
    %397 = vector.broadcast %cst_155 : f32 to vector<128x128xf32>
    %398 = arith.cmpf ogt, %386, %397 : vector<128x128xf32>
    %cst_156 = arith.constant 1.000000e+00 : f32
    %399 = vector.broadcast %cst_156 : f32 to vector<128x128xf32>
    %400 = arith.addf %386, %399 : vector<128x128xf32>
    %cst_157 = arith.constant 0.000000e+00 : f32
    %401 = vector.broadcast %cst_157 : f32 to vector<128x128xf32>
    %402 = arith.minimumf %386, %401 : vector<128x128xf32>
    %403 = math.exp %402 : vector<128x128xf32>
    %404 = arith.select %398, %400, %403 : vector<128x128xi1>, vector<128x128xf32>
    %405 = vector.shape_cast %404 : vector<128x128xf32> to vector<2x64x128xf32>
    %406 = vector.shape_cast %387 : vector<128x128xf32> to vector<2x64x128xf32>
    %cst_158 = arith.constant 1.000000e+00 : f32
    %407 = vector.broadcast %cst_158 : f32 to vector<2x64x128xf32>
    %408 = tpu.concatenate %406, %407 in 2 : vector<2x64x128xf32>, vector<2x64x128xf32> -> vector<2x64x256xf32>
    %409 = arith.truncf %408 : vector<2x64x256xf32> to vector<2x64x256xbf16>
    %410 = arith.truncf %405 : vector<2x64x128xf32> to vector<2x64x128xbf16>
    "tpu.trace_start"() <{level = 10 : i32, message = "bsc,bsd->bcd"}> : () -> ()
    %cst_159 = arith.constant dense<0.000000e+00> : vector<2x128x256xf32>
    %411 = tpu.matmul %410, %409, %cst_159 {dimension_numbers = #tpu.dot_dimension_numbers<[1], [1], [2], [2], [0, 0, 0, 2, 1, 2], [0], [0]>} : vector<2x64x128xbf16>, vector<2x64x256xbf16>, vector<2x128x256xf32> -> vector<2x128x256xf32>
    "tpu.trace_stop"() : () -> ()
    %412 = vector.shape_cast %2 : vector<128x256xf32> to vector<1x128x256xf32>
    %413 = vector.broadcast %412 : vector<1x128x256xf32> to vector<2x128x256xf32>
    %414 = arith.mulf %411, %413 : vector<2x128x256xf32>
    %415 = arith.truncf %414 : vector<2x128x256xf32> to vector<2x128x256xbf16>
    %416 = arith.truncf %396 : vector<2x64x128xf32> to vector<2x64x128xbf16>
    "tpu.trace_start"() <{level = 10 : i32, message = "blc,bcm->blm"}> : () -> ()
    %cst_160 = arith.constant dense<0.000000e+00> : vector<2x64x256xf32>
    %417 = tpu.matmul %416, %415, %cst_160 {dimension_numbers = #tpu.dot_dimension_numbers<[2], [1], [1], [2], [0, 0, 0, 1, 1, 2], [0], [0]>} : vector<2x64x128xbf16>, vector<2x128x256xbf16>, vector<2x64x256xf32> -> vector<2x64x256xf32>
    "tpu.trace_stop"() : () -> ()
    %418 = vector.extract_strided_slice %417 {offsets = [0, 0, 0], sizes = [2, 64, 128], strides = [1, 1, 1]} : vector<2x64x256xf32> to vector<2x64x128xf32>
    %419 = vector.extract_strided_slice %417 {offsets = [0, 0, 128], sizes = [2, 64, 128], strides = [1, 1, 1]} : vector<2x64x256xf32> to vector<2x64x128xf32>
    %cst_161 = arith.constant 9.99999997E-7 : f32
    %420 = vector.broadcast %cst_161 : f32 to vector<2x64x128xf32>
    %421 = arith.addf %419, %420 : vector<2x64x128xf32>
    %422 = tpu.reciprocal %421 {approx = true} : vector<2x64x128xf32> -> vector<2x64x128xf32>
    %423 = arith.mulf %418, %422 : vector<2x64x128xf32>
    %424 = vector.shape_cast %423 : vector<2x64x128xf32> to vector<128x128xf32>
    %425 = arith.truncf %424 : vector<128x128xf32> to vector<128x128xbf16>
    %cst_162 = arith.constant dense<0.000000e+00> : vector<128x128xf32>
    %426 = tpu.matmul %425, %367, %cst_162 {dimension_numbers = #tpu.dot_dimension_numbers<[1], [0], [0], [1], [0, 0, 1, 1], [], []>} : vector<128x128xbf16>, vector<128x128xbf16>, vector<128x128xf32> -> vector<128x128xf32>
    %cst_163 = arith.constant dense<0.000000e+00> : vector<128xf32>
    %427 = vector.multi_reduction <add>, %426, %cst_163 [1] : vector<128x128xf32> to vector<128xf32>
    %428 = vector.shape_cast %427 : vector<128xf32> to vector<128x1xf32>
    %cst_164 = arith.constant 1.280000e+02 : f32
    %429 = vector.broadcast %cst_164 : f32 to vector<128x1xf32>
    %430 = arith.divf %428, %429 : vector<128x1xf32>
    %431 = arith.mulf %426, %426 : vector<128x128xf32>
    %cst_165 = arith.constant dense<0.000000e+00> : vector<128xf32>
    %432 = vector.multi_reduction <add>, %431, %cst_165 [1] : vector<128x128xf32> to vector<128xf32>
    %433 = vector.shape_cast %432 : vector<128xf32> to vector<128x1xf32>
    %cst_166 = arith.constant 1.280000e+02 : f32
    %434 = vector.broadcast %cst_166 : f32 to vector<128x1xf32>
    %435 = arith.divf %433, %434 : vector<128x1xf32>
    %436 = arith.mulf %430, %430 : vector<128x1xf32>
    %437 = arith.subf %435, %436 : vector<128x1xf32>
    %cst_167 = arith.constant 0.000000e+00 : f32
    %438 = vector.broadcast %cst_167 : f32 to vector<128x1xf32>
    %439 = arith.maximumf %437, %438 : vector<128x1xf32>
    %440 = vector.broadcast %430 : vector<128x1xf32> to vector<128x128xf32>
    %441 = arith.subf %426, %440 : vector<128x128xf32>
    %cst_168 = arith.constant 9.99999974E-6 : f32
    %442 = vector.broadcast %cst_168 : f32 to vector<128x1xf32>
    %443 = arith.addf %439, %442 : vector<128x1xf32>
    %444 = math.rsqrt %443 : vector<128x1xf32>
    %445 = vector.broadcast %444 : vector<128x1xf32> to vector<128x128xf32>
    %446 = arith.mulf %441, %445 : vector<128x128xf32>
    %447 = vector.broadcast %374 : vector<1x128xf32> to vector<128x128xf32>
    %448 = arith.mulf %446, %447 : vector<128x128xf32>
    %449 = vector.broadcast %375 : vector<1x128xf32> to vector<128x128xf32>
    %450 = arith.addf %448, %449 : vector<128x128xf32>
    %451 = vector.extract_strided_slice %369 {offsets = [0, 0], sizes = [128, 256], strides = [1, 1]} : vector<256x256xbf16> to vector<128x256xbf16>
    %cst_169 = arith.constant dense<0.000000e+00> : vector<128x256xf32>
    %452 = tpu.matmul %379, %451, %cst_169 {dimension_numbers = #tpu.dot_dimension_numbers<[1], [0], [0], [1], [0, 0, 1, 1], [], []>} : vector<128x128xbf16>, vector<128x256xbf16>, vector<128x256xf32> -> vector<128x256xf32>
    %453 = arith.truncf %450 : vector<128x128xf32> to vector<128x128xbf16>
    %454 = vector.extract_strided_slice %369 {offsets = [128, 0], sizes = [128, 256], strides = [1, 1]} : vector<256x256xbf16> to vector<128x256xbf16>
    %cst_170 = arith.constant dense<0.000000e+00> : vector<128x256xf32>
    %455 = tpu.matmul %453, %454, %cst_170 {dimension_numbers = #tpu.dot_dimension_numbers<[1], [0], [0], [1], [0, 0, 1, 1], [], []>} : vector<128x128xbf16>, vector<128x256xbf16>, vector<128x256xf32> -> vector<128x256xf32>
    %456 = arith.addf %452, %455 : vector<128x256xf32>
    %cst_171 = arith.constant 0.000000e+00 : f32
    %457 = vector.broadcast %cst_171 : f32 to vector<128x256xf32>
    %458 = arith.maximumf %456, %457 : vector<128x256xf32>
    %459 = arith.truncf %458 : vector<128x256xf32> to vector<128x256xbf16>
    %cst_172 = arith.constant dense<0.000000e+00> : vector<128x128xf32>
    %460 = tpu.matmul %459, %371, %cst_172 {dimension_numbers = #tpu.dot_dimension_numbers<[1], [0], [0], [1], [0, 0, 1, 1], [], []>} : vector<128x256xbf16>, vector<256x128xbf16>, vector<128x128xf32> -> vector<128x128xf32>
    %cst_173 = arith.constant dense<0.000000e+00> : vector<128xf32>
    %461 = vector.multi_reduction <add>, %460, %cst_173 [1] : vector<128x128xf32> to vector<128xf32>
    %462 = vector.shape_cast %461 : vector<128xf32> to vector<128x1xf32>
    %cst_174 = arith.constant 1.280000e+02 : f32
    %463 = vector.broadcast %cst_174 : f32 to vector<128x1xf32>
    %464 = arith.divf %462, %463 : vector<128x1xf32>
    %465 = arith.mulf %460, %460 : vector<128x128xf32>
    %cst_175 = arith.constant dense<0.000000e+00> : vector<128xf32>
    %466 = vector.multi_reduction <add>, %465, %cst_175 [1] : vector<128x128xf32> to vector<128xf32>
    %467 = vector.shape_cast %466 : vector<128xf32> to vector<128x1xf32>
    %cst_176 = arith.constant 1.280000e+02 : f32
    %468 = vector.broadcast %cst_176 : f32 to vector<128x1xf32>
    %469 = arith.divf %467, %468 : vector<128x1xf32>
    %470 = arith.mulf %464, %464 : vector<128x1xf32>
    %471 = arith.subf %469, %470 : vector<128x1xf32>
    %cst_177 = arith.constant 0.000000e+00 : f32
    %472 = vector.broadcast %cst_177 : f32 to vector<128x1xf32>
    %473 = arith.maximumf %471, %472 : vector<128x1xf32>
    %474 = vector.broadcast %464 : vector<128x1xf32> to vector<128x128xf32>
    %475 = arith.subf %460, %474 : vector<128x128xf32>
    %cst_178 = arith.constant 9.99999974E-6 : f32
    %476 = vector.broadcast %cst_178 : f32 to vector<128x1xf32>
    %477 = arith.addf %473, %476 : vector<128x1xf32>
    %478 = math.rsqrt %477 : vector<128x1xf32>
    %479 = vector.broadcast %478 : vector<128x1xf32> to vector<128x128xf32>
    %480 = arith.mulf %475, %479 : vector<128x128xf32>
    %481 = vector.broadcast %376 : vector<1x128xf32> to vector<128x128xf32>
    %482 = arith.mulf %480, %481 : vector<128x128xf32>
    %483 = vector.broadcast %377 : vector<1x128xf32> to vector<128x128xf32>
    %484 = arith.addf %482, %483 : vector<128x128xf32>
    %485 = vector.shape_cast %484 : vector<128x128xf32> to vector<2x64x128xf32>
    %486 = arith.addf %240, %485 : vector<2x64x128xf32>
    %c0_179 = arith.constant 0 : index
    %c0_180 = arith.constant 0 : index
    %c0_181 = arith.constant 0 : index
    %487 = vector.load %arg9[%c0_179, %c0_180, %c0_181] : memref<2x64x128xf32, #tpu.memory_space<vmem>>, vector<2x64x128xf32>
    tpu.vector_store %arg9[%c0_179, %c0_180, %c0_181], %363 {strides = array<i32>} : memref<2x64x128xf32, #tpu.memory_space<vmem>>, vector<2x64x128xf32>,
    %c0_182 = arith.constant 0 : index
    %c0_183 = arith.constant 0 : index
    %c0_184 = arith.constant 0 : index
    %488 = vector.load %arg10[%c0_182, %c0_183, %c0_184] : memref<2x64x128xf32, #tpu.memory_space<vmem>>, vector<2x64x128xf32>
    tpu.vector_store %arg10[%c0_182, %c0_183, %c0_184], %486 {strides = array<i32>} : memref<2x64x128xf32, #tpu.memory_space<vmem>>, vector<2x64x128xf32>,
    return
  }
  func.func @transform_0(%arg0: i32) -> (i32, i32, i32) {
    %c0_i32 = arith.constant 0 : i32
    %c0_i32_0 = arith.constant 0 : i32
    %c0_i32_1 = arith.constant 0 : i32
    return %arg0, %c0_i32, %c0_i32_0 : i32, i32, i32
  }
  func.func @transform_1(%arg0: i32) -> (i32, i32, i32) {
    %c0_i32 = arith.constant 0 : i32
    %c0_i32_0 = arith.constant 0 : i32
    %c0_i32_1 = arith.constant 0 : i32
    return %arg0, %c0_i32, %c0_i32_0 : i32, i32, i32
  }
  func.func @transform_2(%arg0: i32) -> (i32, i32) {
    %c0_i32 = arith.constant 0 : i32
    %c0_i32_0 = arith.constant 0 : i32
    %c0_i32_1 = arith.constant 0 : i32
    return %c0_i32, %c0_i32_0 : i32, i32
  }
  func.func @transform_3(%arg0: i32) -> (i32, i32, i32) {
    %c0_i32 = arith.constant 0 : i32
    %c0_i32_0 = arith.constant 0 : i32
    %c0_i32_1 = arith.constant 0 : i32
    %c0_i32_2 = arith.constant 0 : i32
    return %c0_i32, %c0_i32_0, %c0_i32_1 : i32, i32, i32
  }
  func.func @transform_4(%arg0: i32) -> (i32, i32, i32) {
    %c0_i32 = arith.constant 0 : i32
    %c0_i32_0 = arith.constant 0 : i32
    %c0_i32_1 = arith.constant 0 : i32
    %c0_i32_2 = arith.constant 0 : i32
    return %c0_i32, %c0_i32_0, %c0_i32_1 : i32, i32, i32
  }
  func.func @transform_5(%arg0: i32) -> (i32, i32, i32) {
    %c0_i32 = arith.constant 0 : i32
    %c0_i32_0 = arith.constant 0 : i32
    %c0_i32_1 = arith.constant 0 : i32
    %c0_i32_2 = arith.constant 0 : i32
    return %c0_i32, %c0_i32_0, %c0_i32_1 : i32, i32, i32
  }
  func.func @transform_6(%arg0: i32) -> (i32, i32, i32) {
    %c0_i32 = arith.constant 0 : i32
    %c0_i32_0 = arith.constant 0 : i32
    %c0_i32_1 = arith.constant 0 : i32
    %c0_i32_2 = arith.constant 0 : i32
    return %c0_i32, %c0_i32_0, %c0_i32_1 : i32, i32, i32
  }
  func.func @transform_7(%arg0: i32) -> (i32, i32, i32) {
    %c0_i32 = arith.constant 0 : i32
    %c0_i32_0 = arith.constant 0 : i32
    %c0_i32_1 = arith.constant 0 : i32
    %c0_i32_2 = arith.constant 0 : i32
    return %c0_i32, %c0_i32_0, %c0_i32_1 : i32, i32, i32
  }
  func.func @transform_8(%arg0: i32) -> (i32, i32, i32) {
    %c0_i32 = arith.constant 0 : i32
    %c0_i32_0 = arith.constant 0 : i32
    %c0_i32_1 = arith.constant 0 : i32
    return %arg0, %c0_i32, %c0_i32_0 : i32, i32, i32
  }
  func.func @transform_9(%arg0: i32) -> (i32, i32, i32) {
    %c0_i32 = arith.constant 0 : i32
    %c0_i32_0 = arith.constant 0 : i32
    %c0_i32_1 = arith.constant 0 : i32
    return %arg0, %c0_i32, %c0_i32_0 : i32, i32, i32
  }
}

</mosaic_0001>

<llo_original>
// kernel: local_feature_transformer.1
$region0: #{local_feature_transformer.1}
  #allocation0 [shape = 'u32[]', space=smem, size = 0x4, offset = 0x4, fixed_abs, tag = 'smem constant byte address 0x4 - core index']
  #allocation1 [shape = 'u32[144,128]{1,0:T(1,128)}', space=vmem, size = 0x12000, scoped, tag = 'internal scratch']
  %s0 = inlined_call_operand.hbm [shape: f32[2,64,128], index: 0, kind: input, shape index: {}, may-alias: {0,8}]
  %s1 = inlined_call_operand.hbm [shape: f32[2,64,128], index: 1, kind: input, shape index: {}, may-alias: {1,9}]
  %s2 = inlined_call_operand.hbm [shape: f32[128,256], index: 2, kind: input, shape index: {}]
  %s3 = inlined_call_operand.hbm [shape: bf16[2,128,384], index: 3, kind: input, shape index: {}]
  %s4 = inlined_call_operand.hbm [shape: bf16[2,128,128], index: 4, kind: input, shape index: {}]
  %s5 = inlined_call_operand.vmem [shape: bf16[2,256,256], index: 5, kind: input, shape index: {}]
  %s6 = inlined_call_operand.hbm [shape: bf16[2,256,128], index: 6, kind: input, shape index: {}]
  %s7 = inlined_call_operand.vmem [shape: f32[2,4,128], index: 7, kind: input, shape index: {}]
  %s8 = inlined_call_operand.hbm [shape: f32[2,64,128], index: 8, kind: output, shape index: {0}, may-alias: {0,8}]
  %s9 = inlined_call_operand.hbm [shape: f32[2,64,128], index: 9, kind: output, shape index: {1}, may-alias: {1,9}]
  %10 = xla_tuple %s8, %s9
  %s11 = sld [smem:[#allocation0]]
  $region74: #{local_feature_transformer.1} parent=0
    _
  %s13 = ssub.s32 1, %s11
  %s14 = scalar_select 0, %s13, %s11
  $region1: #{local_feature_transformer.1} parent=0
    #allocation2 [shape = 'u8[65536]{0}', space=vmem, size = 0x10000, scoped, tag = 'input window, operand 0, single buffered']
    #allocation3 [shape = 's32[1]{0}', space=sflag, size = 0x4, scoped, tag = 'scoped memory for local_feature_transformer.1']
    #allocation4 [shape = 's32[1]{0}', space=sflag, size = 0x4, scoped, tag = 'scoped memory for local_feature_transformer.1']
    #allocation5 [shape = 'u8[65536]{0}', space=vmem, size = 0x10000, scoped, tag = 'input window, operand 1, single buffered']
    #allocation6 [shape = 's32[1]{0}', space=sflag, size = 0x4, scoped, tag = 'scoped memory for local_feature_transformer.1']
    #allocation7 [shape = 'u8[131072]{0}', space=vmem, size = 0x20000, scoped, tag = 'input window, operand 2, single buffered']
    #allocation8 [shape = 'u8[196608]{0}', space=vmem, size = 0x30000, scoped, tag = 'input window, operand 3, single buffered']
    #allocation9 [shape = 's32[1]{0}', space=sflag, size = 0x4, scoped, tag = 'scoped memory for local_feature_transformer.1']
    #allocation10 [shape = 'u8[65536]{0}', space=vmem, size = 0x10000, scoped, tag = 'input window, operand 4, single buffered']
    #allocation11 [shape = 'u8[131072]{0}', space=vmem, size = 0x20000, scoped, tag = 'input window, operand 6, single buffered']
    #allocation12 [shape = 's32[1]{0}', space=sflag, size = 0x4, scoped, tag = 'scoped memory for local_feature_transformer.1']
    #allocation13 [shape = 'u8[65536]{0}', space=vmem, size = 0x10000, scoped, tag = 'output window, operand 0, single buffered']
    #allocation14 [shape = 'u8[65536]{0}', space=vmem, size = 0x10000, scoped, tag = 'output window, operand 1, single buffered']
    #allocation15 [shape = 's32[1]{0}', space=sflag, size = 0x4, scoped, tag = 'scoped memory for local_feature_transformer.1']
    %15 = vsyncpa [#allocation3], 0
    %16 = vsyncpa [#allocation6], 0
    %17 = vsyncpa [#allocation9], 0
    %18 = vsyncpa [#allocation12], 0
    %19 = vsyncpa [#allocation4], 0
    %20 = vsyncpa [#allocation15], 0
    // Predicated region
    $region2: #{local_feature_transformer.1} parent=1 // pred_check
      _
    $region3: #{local_feature_transformer.1} parent=1 // pred_check_branch
      %22 = sbr.rel (0) target = $region5
    $region4: #{local_feature_transformer.1} parent=1 // pred_region
      %s24 = ssub.s32 2048, 2048
      %25 = vsyncadd [#allocation3], %s24
      %s26 = sshll.u32 [#allocation2], 4
      %s27 = int_to_ptr.vmem [resolvable:$true] %s26
      %32 = dma.hbm_to_vmem [thread:$0]  %s0, 2048, %s27, [#allocation3], 128, 128, 8
    $region5: #{local_feature_transformer.1} parent=1 // pred_fallthru
      _
    // Predicated region
    $region6: #{local_feature_transformer.1} parent=1 // pred_check
      _
    $region7: #{local_feature_transformer.1} parent=1 // pred_check_branch
      %34 = sbr.rel (0) target = $region9
    $region8: #{local_feature_transformer.1} parent=1 // pred_region
      %s36 = ssub.s32 2048, 2048
      %37 = vsyncadd [#allocation6], %s36
      %s38 = sshll.u32 [#allocation5], 4
      %s39 = int_to_ptr.vmem [resolvable:$true] %s38
      %44 = dma.hbm_to_vmem [thread:$0]  %s1, 2048, %s39, [#allocation6], 128, 128, 8
    $region9: #{local_feature_transformer.1} parent=1 // pred_fallthru
      _
    // Predicated region
    $region10: #{local_feature_transformer.1} parent=1 // pred_check
      _
    $region11: #{local_feature_transformer.1} parent=1 // pred_check_branch
      %46 = sbr.rel (0) target = $region13
    $region12: #{local_feature_transformer.1} parent=1 // pred_region
      %s48 = ssub.s32 4096, 4096
      %49 = vsyncadd [#allocation6], %s48
      %s50 = sshll.u32 [#allocation7], 4
      %s51 = int_to_ptr.vmem [resolvable:$true] %s50
      %56 = dma.hbm_to_vmem [thread:$0]  %s2, 4096, %s51, [#allocation6], 256, 256, 16
    $region13: #{local_feature_transformer.1} parent=1 // pred_fallthru
      _
    // Predicated region
    $region14: #{local_feature_transformer.1} parent=1 // pred_check
      _
    $region15: #{local_feature_transformer.1} parent=1 // pred_check_branch
      %58 = sbr.rel (0) target = $region17
    $region16: #{local_feature_transformer.1} parent=1 // pred_region
      %s60 = ssub.s32 6144, 6144
      %61 = vsyncadd [#allocation9], %s60
      %s62 = sshll.u32 [#allocation8], 4
      %s63 = int_to_ptr.vmem [resolvable:$true] %s62
      %68 = dma.hbm_to_vmem [thread:$0]  %s3, 6144, %s63, [#allocation9], 192, 192, 12
    $region17: #{local_feature_transformer.1} parent=1 // pred_fallthru
      _
    // Predicated region
    $region18: #{local_feature_transformer.1} parent=1 // pred_check
      _
    $region19: #{local_feature_transformer.1} parent=1 // pred_check_branch
      %70 = sbr.rel (0) target = $region21
    $region20: #{local_feature_transformer.1} parent=1 // pred_region
      %s72 = ssub.s32 2048, 2048
      %73 = vsyncadd [#allocation9], %s72
      %s74 = sshll.u32 [#allocation10], 4
      %s75 = int_to_ptr.vmem [resolvable:$true] %s74
      %80 = dma.hbm_to_vmem [thread:$0]  %s4, 2048, %s75, [#allocation9], 64, 64, 4
    $region21: #{local_feature_transformer.1} parent=1 // pred_fallthru
      _
    // Predicated region
    $region22: #{local_feature_transformer.1} parent=1 // pred_check
      _
    $region23: #{local_feature_transformer.1} parent=1 // pred_check_branch
      %82 = sbr.rel (0) target = $region25
    $region24: #{local_feature_transformer.1} parent=1 // pred_region
      _
    $region25: #{local_feature_transformer.1} parent=1 // pred_fallthru
      _
    // Predicated region
    $region26: #{local_feature_transformer.1} parent=1 // pred_check
      _
    $region27: #{local_feature_transformer.1} parent=1 // pred_check_branch
      %84 = sbr.rel (0) target = $region29
    $region28: #{local_feature_transformer.1} parent=1 // pred_region
      %s86 = ssub.s32 4096, 4096
      %87 = vsyncadd [#allocation12], %s86
      %s88 = sshll.u32 [#allocation11], 4
      %s89 = int_to_ptr.vmem [resolvable:$true] %s88
      %94 = dma.hbm_to_vmem [thread:$0]  %s6, 4096, %s89, [#allocation12], 64, 64, 4
    $region29: #{local_feature_transformer.1} parent=1 // pred_fallthru
      _
    // Predicated region
    $region30: #{local_feature_transformer.1} parent=1 // pred_check
      _
    $region31: #{local_feature_transformer.1} parent=1 // pred_check_branch
      %96 = sbr.rel (0) target = $region33
    $region32: #{local_feature_transformer.1} parent=1 // pred_region
      _
    $region33: #{local_feature_transformer.1} parent=1 // pred_fallthru
      _
    // Predicated region
    $region34: #{local_feature_transformer.1} parent=1 // pred_check
      _
    $region35: #{local_feature_transformer.1} parent=1 // pred_check_branch
      %98 = sbr.rel (0) target = $region37
    $region36: #{local_feature_transformer.1} parent=1 // pred_region
      %99 = dma.done [#allocation3], 2048
    $region37: #{local_feature_transformer.1} parent=1 // pred_fallthru
      _
    // Predicated region
    $region38: #{local_feature_transformer.1} parent=1 // pred_check
      _
    $region39: #{local_feature_transformer.1} parent=1 // pred_check_branch
      %101 = sbr.rel (0) target = $region41
    $region40: #{local_feature_transformer.1} parent=1 // pred_region
      %102 = dma.done [#allocation6], 2048
    $region41: #{local_feature_transformer.1} parent=1 // pred_fallthru
      _
    // Predicated region
    $region42: #{local_feature_transformer.1} parent=1 // pred_check
      _
    $region43: #{local_feature_transformer.1} parent=1 // pred_check_branch
      %104 = sbr.rel (0) target = $region45
    $region44: #{local_feature_transformer.1} parent=1 // pred_region
      %105 = dma.done [#allocation6], 4096
    $region45: #{local_feature_transformer.1} parent=1 // pred_fallthru
      _
    // Predicated region
    $region46: #{local_feature_transformer.1} parent=1 // pred_check
      _
    $region47: #{local_feature_transformer.1} parent=1 // pred_check_branch
      %107 = sbr.rel (0) target = $region49
    $region48: #{local_feature_transformer.1} parent=1 // pred_region
      %108 = dma.done [#allocation9], 6144
    $region49: #{local_feature_transformer.1} parent=1 // pred_fallthru
      _
    // Predicated region
    $region50: #{local_feature_transformer.1} parent=1 // pred_check
      _
    $region51: #{local_feature_transformer.1} parent=1 // pred_check_branch
      %110 = sbr.rel (0) target = $region53
    $region52: #{local_feature_transformer.1} parent=1 // pred_region
      %111 = dma.done [#allocation9], 2048
    $region53: #{local_feature_transformer.1} parent=1 // pred_fallthru
      _
    // Predicated region
    $region54: #{local_feature_transformer.1} parent=1 // pred_check
      _
    $region55: #{local_feature_transformer.1} parent=1 // pred_check_branch
      %113 = sbr.rel (0) target = $region57
    $region56: #{local_feature_transformer.1} parent=1 // pred_region
      %114 = dma.done [#allocation12], 4096
    $region57: #{local_feature_transformer.1} parent=1 // pred_fallthru
      _
    %v116 = vld [vmem:[#allocation2] sm:$0xff]
    %v117 = vld [vmem:[#allocation2 + $0x8] sm:$0xff]
    %v118 = vld [vmem:[#allocation2 + $0x10] sm:$0xff]
    %v119 = vld [vmem:[#allocation2 + $0x18] sm:$0xff]
    %v120 = vld [vmem:[#allocation2 + $0x20] sm:$0xff]
    %v121 = vld [vmem:[#allocation2 + $0x28] sm:$0xff]
    %v122 = vld [vmem:[#allocation2 + $0x30] sm:$0xff]
    %v123 = vld [vmem:[#allocation2 + $0x38] sm:$0xff]
    %v124 = vld [vmem:[#allocation2 + $0x40] sm:$0xff]
    %v125 = vld [vmem:[#allocation2 + $0x48] sm:$0xff]
    %v126 = vld [vmem:[#allocation2 + $0x50] sm:$0xff]
    %v127 = vld [vmem:[#allocation2 + $0x58] sm:$0xff]
    %v128 = vld [vmem:[#allocation2 + $0x60] sm:$0xff]
    %v129 = vld [vmem:[#allocation2 + $0x68] sm:$0xff]
    %v130 = vld [vmem:[#allocation2 + $0x70] sm:$0xff]
    %v131 = vld [vmem:[#allocation2 + $0x78] sm:$0xff]
    %v132 = vld [vmem:[#allocation5] sm:$0xff]
    %v133 = vld [vmem:[#allocation5 + $0x8] sm:$0xff]
    %v134 = vld [vmem:[#allocation5 + $0x10] sm:$0xff]
    %v135 = vld [vmem:[#allocation5 + $0x18] sm:$0xff]
    %v136 = vld [vmem:[#allocation5 + $0x20] sm:$0xff]
    %v137 = vld [vmem:[#allocation5 + $0x28] sm:$0xff]
    %v138 = vld [vmem:[#allocation5 + $0x30] sm:$0xff]
    %v139 = vld [vmem:[#allocation5 + $0x38] sm:$0xff]
    %v140 = vld [vmem:[#allocation5 + $0x40] sm:$0xff]
    %v141 = vld [vmem:[#allocation5 + $0x48] sm:$0xff]
    %v142 = vld [vmem:[#allocation5 + $0x50] sm:$0xff]
    %v143 = vld [vmem:[#allocation5 + $0x58] sm:$0xff]
    %v144 = vld [vmem:[#allocation5 + $0x60] sm:$0xff]
    %v145 = vld [vmem:[#allocation5 + $0x68] sm:$0xff]
    %v146 = vld [vmem:[#allocation5 + $0x70] sm:$0xff]
    %v147 = vld [vmem:[#allocation5 + $0x78] sm:$0xff]
    %v148 = vld [vmem:[#allocation7] sm:$0xff]
    %v149 = vld [vmem:[#allocation7 + $0x8] sm:$0xff]
    %v150 = vld [vmem:[#allocation7 + $0x10] sm:$0xff]
    %v151 = vld [vmem:[#allocation7 + $0x18] sm:$0xff]
    %v152 = vld [vmem:[#allocation7 + $0x20] sm:$0xff]
    %v153 = vld [vmem:[#allocation7 + $0x28] sm:$0xff]
    %v154 = vld [vmem:[#allocation7 + $0x30] sm:$0xff]
    %v155 = vld [vmem:[#allocation7 + $0x38] sm:$0xff]
    %v156 = vld [vmem:[#allocation7 + $0x40] sm:$0xff]
    %v157 = vld [vmem:[#allocation7 + $0x48] sm:$0xff]
    %v158 = vld [vmem:[#allocation7 + $0x50] sm:$0xff]
    %v159 = vld [vmem:[#allocation7 + $0x58] sm:$0xff]
    %v160 = vld [vmem:[#allocation7 + $0x60] sm:$0xff]
    %v161 = vld [vmem:[#allocation7 + $0x68] sm:$0xff]
    %v162 = vld [vmem:[#allocation7 + $0x70] sm:$0xff]
    %v163 = vld [vmem:[#allocation7 + $0x78] sm:$0xff]
    %v164 = vld [vmem:[#allocation7 + $0x80] sm:$0xff]
    %v165 = vld [vmem:[#allocation7 + $0x88] sm:$0xff]
    %v166 = vld [vmem:[#allocation7 + $0x90] sm:$0xff]
    %v167 = vld [vmem:[#allocation7 + $0x98] sm:$0xff]
    %v168 = vld [vmem:[#allocation7 + $0xa0] sm:$0xff]
    %v169 = vld [vmem:[#allocation7 + $0xa8] sm:$0xff]
    %v170 = vld [vmem:[#allocation7 + $0xb0] sm:$0xff]
    %v171 = vld [vmem:[#allocation7 + $0xb8] sm:$0xff]
    %v172 = vld [vmem:[#allocation7 + $0xc0] sm:$0xff]
    %v173 = vld [vmem:[#allocation7 + $0xc8] sm:$0xff]
    %v174 = vld [vmem:[#allocation7 + $0xd0] sm:$0xff]
    %v175 = vld [vmem:[#allocation7 + $0xd8] sm:$0xff]
    %v176 = vld [vmem:[#allocation7 + $0xe0] sm:$0xff]
    %v177 = vld [vmem:[#allocation7 + $0xe8] sm:$0xff]
    %v178 = vld [vmem:[#allocation7 + $0xf0] sm:$0xff]
    %v179 = vld [vmem:[#allocation7 + $0xf8] sm:$0xff]
    %v180 = vld [vmem:[#allocation8] sm:$0xff]
    %v181 = vld [vmem:[#allocation8 + $0x8] sm:$0xf]
    %v182 = vld [vmem:[#allocation8 + $0xc] sm:$0xff]
    %v183 = vld [vmem:[#allocation8 + $0x14] sm:$0xf]
    %v184 = vld [vmem:[#allocation8 + $0x18] sm:$0xff]
    %v185 = vld [vmem:[#allocation8 + $0x20] sm:$0xf]
    %v186 = vld [vmem:[#allocation8 + $0x24] sm:$0xff]
    %v187 = vld [vmem:[#allocation8 + $0x2c] sm:$0xf]
    %v188 = vld [vmem:[#allocation8 + $0x30] sm:$0xff]
    %v189 = vld [vmem:[#allocation8 + $0x38] sm:$0xf]
    %v190 = vld [vmem:[#allocation8 + $0x3c] sm:$0xff]
    %v191 = vld [vmem:[#allocation8 + $0x44] sm:$0xf]
    %v192 = vld [vmem:[#allocation8 + $0x48] sm:$0xff]
    %v193 = vld [vmem:[#allocation8 + $0x50] sm:$0xf]
    %v194 = vld [vmem:[#allocation8 + $0x54] sm:$0xff]
    %v195 = vld [vmem:[#allocation8 + $0x5c] sm:$0xf]
    %v196 = vld [vmem:[#allocation8 + $0x60] sm:$0xff]
    %v197 = vld [vmem:[#allocation8 + $0x68] sm:$0xf]
    %v198 = vld [vmem:[#allocation8 + $0x6c] sm:$0xff]
    %v199 = vld [vmem:[#allocation8 + $0x74] sm:$0xf]
    %v200 = vld [vmem:[#allocation8 + $0x78] sm:$0xff]
    %v201 = vld [vmem:[#allocation8 + $0x80] sm:$0xf]
    %v202 = vld [vmem:[#allocation8 + $0x84] sm:$0xff]
    %v203 = vld [vmem:[#allocation8 + $0x8c] sm:$0xf]
    %v204 = vld [vmem:[#allocation8 + $0x90] sm:$0xff]
    %v205 = vld [vmem:[#allocation8 + $0x98] sm:$0xf]
    %v206 = vld [vmem:[#allocation8 + $0x9c] sm:$0xff]
    %v207 = vld [vmem:[#allocation8 + $0xa4] sm:$0xf]
    %v208 = vld [vmem:[#allocation8 + $0xa8] sm:$0xff]
    %v209 = vld [vmem:[#allocation8 + $0xb0] sm:$0xf]
    %v210 = vld [vmem:[#allocation8 + $0xb4] sm:$0xff]
    %v211 = vld [vmem:[#allocation8 + $0xbc] sm:$0xf]
    %v212 = vld [vmem:[#allocation10] sm:$0xf]
    %v213 = vld [vmem:[#allocation10 + $0x4] sm:$0xf]
    %v214 = vld [vmem:[#allocation10 + $0x8] sm:$0xf]
    %v215 = vld [vmem:[#allocation10 + $0xc] sm:$0xf]
    %v216 = vld [vmem:[#allocation10 + $0x10] sm:$0xf]
    %v217 = vld [vmem:[#allocation10 + $0x14] sm:$0xf]
    %v218 = vld [vmem:[#allocation10 + $0x18] sm:$0xf]
    %v219 = vld [vmem:[#allocation10 + $0x1c] sm:$0xf]
    %v220 = vld [vmem:[#allocation10 + $0x20] sm:$0xf]
    %v221 = vld [vmem:[#allocation10 + $0x24] sm:$0xf]
    %v222 = vld [vmem:[#allocation10 + $0x28] sm:$0xf]
    %v223 = vld [vmem:[#allocation10 + $0x2c] sm:$0xf]
    %v224 = vld [vmem:[#allocation10 + $0x30] sm:$0xf]
    %v225 = vld [vmem:[#allocation10 + $0x34] sm:$0xf]
    %v226 = vld [vmem:[#allocation10 + $0x38] sm:$0xf]
    %v227 = vld [vmem:[#allocation10 + $0x3c] sm:$0xf]
    %v228 = vld [vmem:[%s5] sm:$0xff]
    %v229 = vld [vmem:[%s5 + $0x8] sm:$0xff]
    %v230 = vld [vmem:[%s5 + $0x10] sm:$0xff]
    %v231 = vld [vmem:[%s5 + $0x18] sm:$0xff]
    %v232 = vld [vmem:[%s5 + $0x20] sm:$0xff]
    %v233 = vld [vmem:[%s5 + $0x28] sm:$0xff]
    %v234 = vld [vmem:[%s5 + $0x30] sm:$0xff]
    %v235 = vld [vmem:[%s5 + $0x38] sm:$0xff]
    %v236 = vld [vmem:[%s5 + $0x40] sm:$0xff]
    %v237 = vld [vmem:[%s5 + $0x48] sm:$0xff]
    %v238 = vld [vmem:[%s5 + $0x50] sm:$0xff]
    %v239 = vld [vmem:[%s5 + $0x58] sm:$0xff]
    %v240 = vld [vmem:[%s5 + $0x60] sm:$0xff]
    %v241 = vld [vmem:[%s5 + $0x68] sm:$0xff]
    %v242 = vld [vmem:[%s5 + $0x70] sm:$0xff]
    %v243 = vld [vmem:[%s5 + $0x78] sm:$0xff]
    %v244 = vld [vmem:[%s5 + $0x80] sm:$0xff]
    %v245 = vld [vmem:[%s5 + $0x88] sm:$0xff]
    %v246 = vld [vmem:[%s5 + $0x90] sm:$0xff]
    %v247 = vld [vmem:[%s5 + $0x98] sm:$0xff]
    %v248 = vld [vmem:[%s5 + $0xa0] sm:$0xff]
    %v249 = vld [vmem:[%s5 + $0xa8] sm:$0xff]
    %v250 = vld [vmem:[%s5 + $0xb0] sm:$0xff]
    %v251 = vld [vmem:[%s5 + $0xb8] sm:$0xff]
    %v252 = vld [vmem:[%s5 + $0xc0] sm:$0xff]
    %v253 = vld [vmem:[%s5 + $0xc8] sm:$0xff]
    %v254 = vld [vmem:[%s5 + $0xd0] sm:$0xff]
    %v255 = vld [vmem:[%s5 + $0xd8] sm:$0xff]
    %v256 = vld [vmem:[%s5 + $0xe0] sm:$0xff]
    %v257 = vld [vmem:[%s5 + $0xe8] sm:$0xff]
    %v258 = vld [vmem:[%s5 + $0xf0] sm:$0xff]
    %v259 = vld [vmem:[%s5 + $0xf8] sm:$0xff]
    %v260 = vld [vmem:[#allocation11] sm:$0xf]
    %v261 = vld [vmem:[#allocation11 + $0x4] sm:$0xf]
    %v262 = vld [vmem:[#allocation11 + $0x8] sm:$0xf]
    %v263 = vld [vmem:[#allocation11 + $0xc] sm:$0xf]
    %v264 = vld [vmem:[#allocation11 + $0x10] sm:$0xf]
    %v265 = vld [vmem:[#allocation11 + $0x14] sm:$0xf]
    %v266 = vld [vmem:[#allocation11 + $0x18] sm:$0xf]
    %v267 = vld [vmem:[#allocation11 + $0x1c] sm:$0xf]
    %v268 = vld [vmem:[#allocation11 + $0x20] sm:$0xf]
    %v269 = vld [vmem:[#allocation11 + $0x24] sm:$0xf]
    %v270 = vld [vmem:[#allocation11 + $0x28] sm:$0xf]
    %v271 = vld [vmem:[#allocation11 + $0x2c] sm:$0xf]
    %v272 = vld [vmem:[#allocation11 + $0x30] sm:$0xf]
    %v273 = vld [vmem:[#allocation11 + $0x34] sm:$0xf]
    %v274 = vld [vmem:[#allocation11 + $0x38] sm:$0xf]
    %v275 = vld [vmem:[#allocation11 + $0x3c] sm:$0xf]
    %v276 = vld [vmem:[#allocation11 + $0x40] sm:$0xf]
    %v277 = vld [vmem:[#allocation11 + $0x44] sm:$0xf]
    %v278 = vld [vmem:[#allocation11 + $0x48] sm:$0xf]
    %v279 = vld [vmem:[#allocation11 + $0x4c] sm:$0xf]
    %v280 = vld [vmem:[#allocation11 + $0x50] sm:$0xf]
    %v281 = vld [vmem:[#allocation11 + $0x54] sm:$0xf]
    %v282 = vld [vmem:[#allocation11 + $0x58] sm:$0xf]
    %v283 = vld [vmem:[#allocation11 + $0x5c] sm:$0xf]
    %v284 = vld [vmem:[#allocation11 + $0x60] sm:$0xf]
    %v285 = vld [vmem:[#allocation11 + $0x64] sm:$0xf]
    %v286 = vld [vmem:[#allocation11 + $0x68] sm:$0xf]
    %v287 = vld [vmem:[#allocation11 + $0x6c] sm:$0xf]
    %v288 = vld [vmem:[#allocation11 + $0x70] sm:$0xf]
    %v289 = vld [vmem:[#allocation11 + $0x74] sm:$0xf]
    %v290 = vld [vmem:[#allocation11 + $0x78] sm:$0xf]
    %v291 = vld [vmem:[#allocation11 + $0x7c] sm:$0xf]
    %v292 = vld [vmem:[%s7] sm:$0xf]
    %v293 = vpack.c.bf16 %v117, %v116
    %v294 = vpack.c.bf16 %v119, %v118
    %v295 = vpack.c.bf16 %v121, %v120
    %v296 = vpack.c.bf16 %v123, %v122
    %v297 = vpack.c.bf16 %v125, %v124
    %v298 = vpack.c.bf16 %v127, %v126
    %v299 = vpack.c.bf16 %v129, %v128
    %v300 = vpack.c.bf16 %v131, %v130
    %v333 = vunpack.c.l.b16 %v180
    %v334 = vunpack.c.h.b16 %v180
    %v335 = vunpack.c.l.b16 %v181
    %v336 = vunpack.c.l.b16 %v182
    %v337 = vunpack.c.h.b16 %v182
    %v338 = vunpack.c.l.b16 %v183
    %v339 = vunpack.c.l.b16 %v184
    %v340 = vunpack.c.h.b16 %v184
    %v341 = vunpack.c.l.b16 %v185
    %v342 = vunpack.c.l.b16 %v186
    %v343 = vunpack.c.h.b16 %v186
    %v344 = vunpack.c.l.b16 %v187
    %v345 = vunpack.c.l.b16 %v188
    %v346 = vunpack.c.h.b16 %v188
    %v347 = vunpack.c.l.b16 %v189
    %v348 = vunpack.c.l.b16 %v190
    %v349 = vunpack.c.h.b16 %v190
    %v350 = vunpack.c.l.b16 %v191
    %v351 = vunpack.c.l.b16 %v192
    %v352 = vunpack.c.h.b16 %v192
    %v353 = vunpack.c.l.b16 %v193
    %v354 = vunpack.c.l.b16 %v194
    %v355 = vunpack.c.h.b16 %v194
    %v356 = vunpack.c.l.b16 %v195
    %v357 = vunpack.c.l.b16 %v196
    %v358 = vunpack.c.h.b16 %v196
    %v359 = vunpack.c.l.b16 %v197
    %v360 = vunpack.c.l.b16 %v198
    %v361 = vunpack.c.h.b16 %v198
    %v362 = vunpack.c.l.b16 %v199
    %v363 = vunpack.c.l.b16 %v200
    %v364 = vunpack.c.h.b16 %v200
    %v365 = vunpack.c.l.b16 %v201
    %v366 = vunpack.c.l.b16 %v202
    %v367 = vunpack.c.h.b16 %v202
    %v368 = vunpack.c.l.b16 %v203
    %v369 = vunpack.c.l.b16 %v204
    %v370 = vunpack.c.h.b16 %v204
    %v371 = vunpack.c.l.b16 %v205
    %v372 = vunpack.c.l.b16 %v206
    %v373 = vunpack.c.h.b16 %v206
    %v374 = vunpack.c.l.b16 %v207
    %v375 = vunpack.c.l.b16 %v208
    %v376 = vunpack.c.h.b16 %v208
    %v377 = vunpack.c.l.b16 %v209
    %v378 = vunpack.c.l.b16 %v210
    %v379 = vunpack.c.h.b16 %v210
    %v380 = vunpack.c.l.b16 %v211
    %v381 = vpack.c.b16 %v336, %v333
    %v382 = vpack.c.b16 %v337, %v334
    %v383 = vpack.c.b16 %v338, %v335
    %v384 = vpack.c.b16 %v342, %v339
    %v385 = vpack.c.b16 %v343, %v340
    %v386 = vpack.c.b16 %v344, %v341
    %v387 = vpack.c.b16 %v348, %v345
    %v388 = vpack.c.b16 %v349, %v346
    %v389 = vpack.c.b16 %v350, %v347
    %v390 = vpack.c.b16 %v354, %v351
    %v391 = vpack.c.b16 %v355, %v352
    %v392 = vpack.c.b16 %v356, %v353
    %v393 = vpack.c.b16 %v360, %v357
    %v394 = vpack.c.b16 %v361, %v358
    %v395 = vpack.c.b16 %v362, %v359
    %v396 = vpack.c.b16 %v366, %v363
    %v397 = vpack.c.b16 %v367, %v364
    %v398 = vpack.c.b16 %v368, %v365
    %v399 = vpack.c.b16 %v372, %v369
    %v400 = vpack.c.b16 %v373, %v370
    %v401 = vpack.c.b16 %v374, %v371
    %v402 = vpack.c.b16 %v378, %v375
    %v403 = vpack.c.b16 %v379, %v376
    %v404 = vpack.c.b16 %v380, %v377
    %429 = vmatprep.subr.bf16.mxu0 %v382
    %430 = vmatpush1.bf16.msra.mxu0 %v381
    %431 = vmatprep.subr.bf16.mxu0 %v385
    %432 = vmatpush1.bf16.msra.mxu0 %v384
    %433 = vmatprep.subr.bf16.mxu0 %v388
    %434 = vmatpush1.bf16.msra.mxu0 %v387
    %435 = vmatprep.subr.bf16.mxu0 %v391
    %436 = vmatpush1.bf16.msra.mxu0 %v390
    %437 = vmatprep.subr.bf16.mxu0 %v394
    %438 = vmatpush1.bf16.msra.mxu0 %v393
    %439 = vmatprep.subr.bf16.mxu0 %v397
    %440 = vmatpush1.bf16.msra.mxu0 %v396
    %441 = vmatprep.subr.bf16.mxu0 %v400
    %442 = vmatpush1.bf16.msra.mxu0 %v399
    %443 = vmatprep.subr.bf16.mxu0 %v403
    %444 = vmatpush1.bf16.msra.mxu0 %v402
    %445 = vmatprep.subr.bf16.mxu0 0
    %446 = vmatpush1.bf16.msra.mxu0 0
    %447 = vmatprep.subr.bf16.mxu0 0
    %448 = vmatpush1.bf16.msra.mxu0 0
    %449 = vmatprep.subr.bf16.mxu0 0
    %450 = vmatpush1.bf16.msra.mxu0 0
    %451 = vmatprep.subr.bf16.mxu0 0
    %452 = vmatpush1.bf16.msra.mxu0 0
    %453 = vmatprep.subr.bf16.mxu0 0
    %454 = vmatpush1.bf16.msra.mxu0 0
    %455 = vmatprep.subr.bf16.mxu0 0
    %456 = vmatpush1.bf16.msra.mxu0 0
    %457 = vmatprep.subr.bf16.mxu0 0
    %458 = vmatpush1.bf16.msra.mxu0 0
    %459 = vmatprep.subr.bf16.mxu0 0
    %460 = vmatpush1.bf16.msra.mxu0 0
    %461 = vmatprep.mubr.bf16.mxu0 0
    %462 = vmatmul.mubr.bf16.gmra.mrb[0].mxu0 %v293
    %v463 = vpop.f32.mrb[0].mxu0
    %v464 = vadd.f32 0.0, %v463
    %v465 = vpop.f32.mrb[0].mxu0
    %v466 = vadd.f32 0.0, %v465
    %v467 = vpop.f32.mrb[0].mxu0
    %v468 = vadd.f32 0.0, %v467
    %v469 = vpop.f32.mrb[0].mxu0
    %v470 = vadd.f32 0.0, %v469
    %471 = vmatprep.mubr.bf16.mxu0 0
    %472 = vmatmul.mubr.bf16.gmra.mrb[0].mxu0 %v294
    %v473 = vpop.f32.mrb[0].mxu0
    %v474 = vadd.f32 0.0, %v473
    %v475 = vpop.f32.mrb[0].mxu0
    %v476 = vadd.f32 0.0, %v475
    %v477 = vpop.f32.mrb[0].mxu0
    %v478 = vadd.f32 0.0, %v477
    %v479 = vpop.f32.mrb[0].mxu0
    %v480 = vadd.f32 0.0, %v479
    %481 = vmatprep.mubr.bf16.mxu0 0
    %482 = vmatmul.mubr.bf16.gmra.mrb[0].mxu0 %v295
    %v483 = vpop.f32.mrb[0].mxu0
    %v484 = vadd.f32 0.0, %v483
    %v485 = vpop.f32.mrb[0].mxu0
    %v486 = vadd.f32 0.0, %v485
    %v487 = vpop.f32.mrb[0].mxu0
    %v488 = vadd.f32 0.0, %v487
    %v489 = vpop.f32.mrb[0].mxu0
    %v490 = vadd.f32 0.0, %v489
    %491 = vmatprep.mubr.bf16.mxu0 0
    %492 = vmatmul.mubr.bf16.gmra.mrb[0].mxu0 %v296
    %v493 = vpop.f32.mrb[0].mxu0
    %v494 = vadd.f32 0.0, %v493
    %v495 = vpop.f32.mrb[0].mxu0
    %v496 = vadd.f32 0.0, %v495
    %v497 = vpop.f32.mrb[0].mxu0
    %v498 = vadd.f32 0.0, %v497
    %v499 = vpop.f32.mrb[0].mxu0
    %v500 = vadd.f32 0.0, %v499
    %501 = vmatprep.mubr.bf16.mxu0 0
    %502 = vmatmul.mubr.bf16.gmra.mrb[0].mxu0 %v297
    %v503 = vpop.f32.mrb[0].mxu0
    %v504 = vadd.f32 0.0, %v503
    %v505 = vpop.f32.mrb[0].mxu0
    %v506 = vadd.f32 0.0, %v505
    %v507 = vpop.f32.mrb[0].mxu0
    %v508 = vadd.f32 0.0, %v507
    %v509 = vpop.f32.mrb[0].mxu0
    %v510 = vadd.f32 0.0, %v509
    %511 = vmatprep.mubr.bf16.mxu0 0
    %512 = vmatmul.mubr.bf16.gmra.mrb[0].mxu0 %v298
    %v513 = vpop.f32.mrb[0].mxu0
    %v514 = vadd.f32 0.0, %v513
    %v515 = vpop.f32.mrb[0].mxu0
    %v516 = vadd.f32 0.0, %v515
    %v517 = vpop.f32.mrb[0].mxu0
    %v518 = vadd.f32 0.0, %v517
    %v519 = vpop.f32.mrb[0].mxu0
    %v520 = vadd.f32 0.0, %v519
    %521 = vmatprep.mubr.bf16.mxu0 0
    %522 = vmatmul.mubr.bf16.gmra.mrb[0].mxu0 %v299
    %v523 = vpop.f32.mrb[0].mxu0
    %v524 = vadd.f32 0.0, %v523
    %v525 = vpop.f32.mrb[0].mxu0
    %v526 = vadd.f32 0.0, %v525
    %v527 = vpop.f32.mrb[0].mxu0
    %v528 = vadd.f32 0.0, %v527
    %v529 = vpop.f32.mrb[0].mxu0
    %v530 = vadd.f32 0.0, %v529
    %531 = vmatprep.mubr.bf16.mxu0 0
    %532 = vmatmul.mubr.bf16.gmra.mrb[0].mxu0 %v300
    %v533 = vpop.f32.mrb[0].mxu0
    %v534 = vadd.f32 0.0, %v533
    %v535 = vpop.f32.mrb[0].mxu0
    %v536 = vadd.f32 0.0, %v535
    %v537 = vpop.f32.mrb[0].mxu0
    %v538 = vadd.f32 0.0, %v537
    %v539 = vpop.f32.mrb[0].mxu0
    %v540 = vadd.f32 0.0, %v539
    %541 = vdwg.mxu0
    %542 = vmatprep.subr.bf16.mxu0 0
    %543 = vmatpush1.bf16.msra.mxu0 %v383
    %544 = vmatprep.subr.bf16.mxu0 0
    %545 = vmatpush1.bf16.msra.mxu0 %v386
    %546 = vmatprep.subr.bf16.mxu0 0
    %547 = vmatpush1.bf16.msra.mxu0 %v389
    %548 = vmatprep.subr.bf16.mxu0 0
    %549 = vmatpush1.bf16.msra.mxu0 %v392
    %550 = vmatprep.subr.bf16.mxu0 0
    %551 = vmatpush1.bf16.msra.mxu0 %v395
    %552 = vmatprep.subr.bf16.mxu0 0
    %553 = vmatpush1.bf16.msra.mxu0 %v398
    %554 = vmatprep.subr.bf16.mxu0 0
    %555 = vmatpush1.bf16.msra.mxu0 %v401
    %556 = vmatprep.subr.bf16.mxu0 0
    %557 = vmatpush1.bf16.msra.mxu0 %v404
    %558 = vmatprep.subr.bf16.mxu0 0
    %559 = vmatpush1.bf16.msra.mxu0 0
    %560 = vmatprep.subr.bf16.mxu0 0
    %561 = vmatpush1.bf16.msra.mxu0 0
    %562 = vmatprep.subr.bf16.mxu0 0
    %563 = vmatpush1.bf16.msra.mxu0 0
    %564 = vmatprep.subr.bf16.mxu0 0
    %565 = vmatpush1.bf16.msra.mxu0 0
    %566 = vmatprep.subr.bf16.mxu0 0
    %567 = vmatpush1.bf16.msra.mxu0 0
    %568 = vmatprep.subr.bf16.mxu0 0
    %569 = vmatpush1.bf16.msra.mxu0 0
    %570 = vmatprep.subr.bf16.mxu0 0
    %571 = vmatpush1.bf16.msra.mxu0 0
    %572 = vmatprep.subr.bf16.mxu0 0
    %573 = vmatpush1.bf16.msra.mxu0 0
    %574 = vmatprep.mubr.bf16.mxu0 0
    %575 = vmatmul.mubr.bf16.gmra.mrb[0].mxu0 %v293
    %v576 = vpop.f32.mrb[0].mxu0
    %v577 = vadd.f32 0.0, %v576
    %v578 = vpop.f32.mrb[0].mxu0
    %v579 = vpop.f32.mrb[0].mxu0
    %v580 = vadd.f32 0.0, %v579
    %v581 = vpop.f32.mrb[0].mxu0
    %582 = vmatprep.mubr.bf16.mxu0 0
    %583 = vmatmul.mubr.bf16.gmra.mrb[0].mxu0 %v294
    %v584 = vpop.f32.mrb[0].mxu0
    %v585 = vadd.f32 0.0, %v584
    %v586 = vpop.f32.mrb[0].mxu0
    %v587 = vpop.f32.mrb[0].mxu0
    %v588 = vadd.f32 0.0, %v587
    %v589 = vpop.f32.mrb[0].mxu0
    %590 = vmatprep.mubr.bf16.mxu0 0
    %591 = vmatmul.mubr.bf16.gmra.mrb[0].mxu0 %v295
    %v592 = vpop.f32.mrb[0].mxu0
    %v593 = vadd.f32 0.0, %v592
    %v594 = vpop.f32.mrb[0].mxu0
    %v595 = vpop.f32.mrb[0].mxu0
    %v596 = vadd.f32 0.0, %v595
    %v597 = vpop.f32.mrb[0].mxu0
    %598 = vmatprep.mubr.bf16.mxu0 0
    %599 = vmatmul.mubr.bf16.gmra.mrb[0].mxu0 %v296
    %v600 = vpop.f32.mrb[0].mxu0
    %v601 = vadd.f32 0.0, %v600
    %v602 = vpop.f32.mrb[0].mxu0
    %v603 = vpop.f32.mrb[0].mxu0
    %v604 = vadd.f32 0.0, %v603
    %v605 = vpop.f32.mrb[0].mxu0
    %606 = vmatprep.mubr.bf16.mxu0 0
    %607 = vmatmul.mubr.bf16.gmra.mrb[0].mxu0 %v297
    %v608 = vpop.f32.mrb[0].mxu0
    %v609 = vadd.f32 0.0, %v608
    %v610 = vpop.f32.mrb[0].mxu0
    %v611 = vpop.f32.mrb[0].mxu0
    %v612 = vadd.f32 0.0, %v611
    %v613 = vpop.f32.mrb[0].mxu0
    %614 = vmatprep.mubr.bf16.mxu0 0
    %615 = vmatmul.mubr.bf16.gmra.mrb[0].mxu0 %v298
    %v616 = vpop.f32.mrb[0].mxu0
    %v617 = vadd.f32 0.0, %v616
    %v618 = vpop.f32.mrb[0].mxu0
    %v619 = vpop.f32.mrb[0].mxu0
    %v620 = vadd.f32 0.0, %v619
    %v621 = vpop.f32.mrb[0].mxu0
    %622 = vmatprep.mubr.bf16.mxu0 0
    %623 = vmatmul.mubr.bf16.gmra.mrb[0].mxu0 %v299
    %v624 = vpop.f32.mrb[0].mxu0
    %v625 = vadd.f32 0.0, %v624
    %v626 = vpop.f32.mrb[0].mxu0
    %v627 = vpop.f32.mrb[0].mxu0
    %v628 = vadd.f32 0.0, %v627
    %v629 = vpop.f32.mrb[0].mxu0
    %630 = vmatprep.mubr.bf16.mxu0 0
    %631 = vmatmul.mubr.bf16.gmra.mrb[0].mxu0 %v300
    %v632 = vpop.f32.mrb[0].mxu0
    %v633 = vadd.f32 0.0, %v632
    %v634 = vpop.f32.mrb[0].mxu0
    %v635 = vpop.f32.mrb[0].mxu0
    %v636 = vadd.f32 0.0, %v635
    %v637 = vpop.f32.mrb[0].mxu0
    %638 = vdwg.mxu0
    %vm639 = vcmp.gt.f32.partialorder %v464, 0.0
    %vm640 = vcmp.gt.f32.partialorder %v468, 0.0
    %vm641 = vcmp.gt.f32.partialorder %v474, 0.0
    %vm642 = vcmp.gt.f32.partialorder %v478, 0.0
    %vm643 = vcmp.gt.f32.partialorder %v484, 0.0
    %vm644 = vcmp.gt.f32.partialorder %v488, 0.0
    %vm645 = vcmp.gt.f32.partialorder %v494, 0.0
    %vm646 = vcmp.gt.f32.partialorder %v498, 0.0
    %vm647 = vcmp.gt.f32.partialorder %v504, 0.0
    %vm648 = vcmp.gt.f32.partialorder %v508, 0.0
    %vm649 = vcmp.gt.f32.partialorder %v514, 0.0
    %vm650 = vcmp.gt.f32.partialorder %v518, 0.0
    %vm651 = vcmp.gt.f32.partialorder %v524, 0.0
    %vm652 = vcmp.gt.f32.partialorder %v528, 0.0
    %vm653 = vcmp.gt.f32.partialorder %v534, 0.0
    %vm654 = vcmp.gt.f32.partialorder %v538, 0.0
    %v655 = vadd.f32 %v464, 1.0
    %v656 = vadd.f32 %v468, 1.0
    %v657 = vadd.f32 %v474, 1.0
    %v658 = vadd.f32 %v478, 1.0
    %v659 = vadd.f32 %v484, 1.0
    %v660 = vadd.f32 %v488, 1.0
    %v661 = vadd.f32 %v494, 1.0
    %v662 = vadd.f32 %v498, 1.0
    %v663 = vadd.f32 %v504, 1.0
    %v664 = vadd.f32 %v508, 1.0
    %v665 = vadd.f32 %v514, 1.0
    %v666 = vadd.f32 %v518, 1.0
    %v667 = vadd.f32 %v524, 1.0
    %v668 = vadd.f32 %v528, 1.0
    %v669 = vadd.f32 %v534, 1.0
    %v670 = vadd.f32 %v538, 1.0
    %v671 = vmin.f32 %v464, 0.0
    %v672 = vmin.f32 %v468, 0.0
    %v673 = vmin.f32 %v474, 0.0
    %v674 = vmin.f32 %v478, 0.0
    %v675 = vmin.f32 %v484, 0.0
    %v676 = vmin.f32 %v488, 0.0
    %v677 = vmin.f32 %v494, 0.0
    %v678 = vmin.f32 %v498, 0.0
    %v679 = vmin.f32 %v504, 0.0
    %v680 = vmin.f32 %v508, 0.0
    %v681 = vmin.f32 %v514, 0.0
    %v682 = vmin.f32 %v518, 0.0
    %v683 = vmin.f32 %v524, 0.0
    %v684 = vmin.f32 %v528, 0.0
    %v685 = vmin.f32 %v534, 0.0
    %v686 = vmin.f32 %v538, 0.0
    %v687 = vmul.f32 %v671, 1.442695
    %v688 = vpow.pop %v687
    %v689 = vmul.f32 %v672, 1.442695
    %v690 = vpow.pop %v689
    %v691 = vmul.f32 %v673, 1.442695
    %v692 = vpow.pop %v691
    %v693 = vmul.f32 %v674, 1.442695
    %v694 = vpow.pop %v693
    %v695 = vmul.f32 %v675, 1.442695
    %v696 = vpow.pop %v695
    %v697 = vmul.f32 %v676, 1.442695
    %v698 = vpow.pop %v697
    %v699 = vmul.f32 %v677, 1.442695
    %v700 = vpow.pop %v699
    %v701 = vmul.f32 %v678, 1.442695
    %v702 = vpow.pop %v701
    %v703 = vmul.f32 %v679, 1.442695
    %v704 = vpow.pop %v703
    %v705 = vmul.f32 %v680, 1.442695
    %v706 = vpow.pop %v705
    %v707 = vmul.f32 %v681, 1.442695
    %v708 = vpow.pop %v707
    %v709 = vmul.f32 %v682, 1.442695
    %v710 = vpow.pop %v709
    %v711 = vmul.f32 %v683, 1.442695
    %v712 = vpow.pop %v711
    %v713 = vmul.f32 %v684, 1.442695
    %v714 = vpow.pop %v713
    %v715 = vmul.f32 %v685, 1.442695
    %v716 = vpow.pop %v715
    %v717 = vmul.f32 %v686, 1.442695
    %v718 = vpow.pop %v717
    %v719 = vsel %vm639, %v655, %v688
    %v720 = vsel %vm640, %v656, %v690
    %v721 = vsel %vm641, %v657, %v692
    %v722 = vsel %vm642, %v658, %v694
    %v723 = vsel %vm643, %v659, %v696
    %v724 = vsel %vm644, %v660, %v698
    %v725 = vsel %vm645, %v661, %v700
    %v726 = vsel %vm646, %v662, %v702
    %v727 = vsel %vm647, %v663, %v704
    %v728 = vsel %vm648, %v664, %v706
    %v729 = vsel %vm649, %v665, %v708
    %v730 = vsel %vm650, %v666, %v710
    %v731 = vsel %vm651, %v667, %v712
    %v732 = vsel %vm652, %v668, %v714
    %v733 = vsel %vm653, %v669, %v716
    %v734 = vsel %vm654, %v670, %v718
    %vm735 = vcmp.gt.f32.partialorder %v466, 0.0
    %vm736 = vcmp.gt.f32.partialorder %v470, 0.0
    %vm737 = vcmp.gt.f32.partialorder %v476, 0.0
    %vm738 = vcmp.gt.f32.partialorder %v480, 0.0
    %vm739 = vcmp.gt.f32.partialorder %v486, 0.0
    %vm740 = vcmp.gt.f32.partialorder %v490, 0.0
    %vm741 = vcmp.gt.f32.partialorder %v496, 0.0
    %vm742 = vcmp.gt.f32.partialorder %v500, 0.0
    %vm743 = vcmp.gt.f32.partialorder %v506, 0.0
    %vm744 = vcmp.gt.f32.partialorder %v510, 0.0
    %vm745 = vcmp.gt.f32.partialorder %v516, 0.0
    %vm746 = vcmp.gt.f32.partialorder %v520, 0.0
    %vm747 = vcmp.gt.f32.partialorder %v526, 0.0
    %vm748 = vcmp.gt.f32.partialorder %v530, 0.0
    %vm749 = vcmp.gt.f32.partialorder %v536, 0.0
    %vm750 = vcmp.gt.f32.partialorder %v540, 0.0
    %v751 = vadd.f32 %v466, 1.0
    %v752 = vadd.f32 %v470, 1.0
    %v753 = vadd.f32 %v476, 1.0
    %v754 = vadd.f32 %v480, 1.0
    %v755 = vadd.f32 %v486, 1.0
    %v756 = vadd.f32 %v490, 1.0
    %v757 = vadd.f32 %v496, 1.0
    %v758 = vadd.f32 %v500, 1.0
    %v759 = vadd.f32 %v506, 1.0
    %v760 = vadd.f32 %v510, 1.0
    %v761 = vadd.f32 %v516, 1.0
    %v762 = vadd.f32 %v520, 1.0
    %v763 = vadd.f32 %v526, 1.0
    %v764 = vadd.f32 %v530, 1.0
    %v765 = vadd.f32 %v536, 1.0
    %v766 = vadd.f32 %v540, 1.0
    %v767 = vmin.f32 %v466, 0.0
    %v768 = vmin.f32 %v470, 0.0
    %v769 = vmin.f32 %v476, 0.0
    %v770 = vmin.f32 %v480, 0.0
    %v771 = vmin.f32 %v486, 0.0
    %v772 = vmin.f32 %v490, 0.0
    %v773 = vmin.f32 %v496, 0.0
    %v774 = vmin.f32 %v500, 0.0
    %v775 = vmin.f32 %v506, 0.0
    %v776 = vmin.f32 %v510, 0.0
    %v777 = vmin.f32 %v516, 0.0
    %v778 = vmin.f32 %v520, 0.0
    %v779 = vmin.f32 %v526, 0.0
    %v780 = vmin.f32 %v530, 0.0
    %v781 = vmin.f32 %v536, 0.0
    %v782 = vmin.f32 %v540, 0.0
    %v783 = vmul.f32 %v767, 1.442695
    %v784 = vpow.pop %v783
    %v785 = vmul.f32 %v768, 1.442695
    %v786 = vpow.pop %v785
    %v787 = vmul.f32 %v769, 1.442695
    %v788 = vpow.pop %v787
    %v789 = vmul.f32 %v770, 1.442695
    %v790 = vpow.pop %v789
    %v791 = vmul.f32 %v771, 1.442695
    %v792 = vpow.pop %v791
    %v793 = vmul.f32 %v772, 1.442695
    %v794 = vpow.pop %v793
    %v795 = vmul.f32 %v773, 1.442695
    %v796 = vpow.pop %v795
    %v797 = vmul.f32 %v774, 1.442695
    %v798 = vpow.pop %v797
    %v799 = vmul.f32 %v775, 1.442695
    %v800 = vpow.pop %v799
    %v801 = vmul.f32 %v776, 1.442695
    %v802 = vpow.pop %v801
    %v803 = vmul.f32 %v777, 1.442695
    %v804 = vpow.pop %v803
    %v805 = vmul.f32 %v778, 1.442695
    %v806 = vpow.pop %v805
    %v807 = vmul.f32 %v779, 1.442695
    %v808 = vpow.pop %v807
    %v809 = vmul.f32 %v780, 1.442695
    %v810 = vpow.pop %v809
    %v811 = vmul.f32 %v781, 1.442695
    %v812 = vpow.pop %v811
    %v813 = vmul.f32 %v782, 1.442695
    %v814 = vpow.pop %v813
    %v815 = vsel %vm735, %v751, %v784
    %v816 = vsel %vm736, %v752, %v786
    %v817 = vsel %vm737, %v753, %v788
    %v818 = vsel %vm738, %v754, %v790
    %v819 = vsel %vm739, %v755, %v792
    %v820 = vsel %vm740, %v756, %v794
    %v821 = vsel %vm741, %v757, %v796
    %v822 = vsel %vm742, %v758, %v798
    %v823 = vsel %vm743, %v759, %v800
    %v824 = vsel %vm744, %v760, %v802
    %v825 = vsel %vm745, %v761, %v804
    %v826 = vsel %vm746, %v762, %v806
    %v827 = vsel %vm747, %v763, %v808
    %v828 = vsel %vm748, %v764, %v810
    %v829 = vsel %vm749, %v765, %v812
    %v830 = vsel %vm750, %v766, %v814
    %v831 = vpack.c.bf16 %v580, %v577
    %v832 = vpack.c.bf16 1.0, 1.0
    %v833 = vpack.c.bf16 %v588, %v585
    %v834 = vpack.c.bf16 %v596, %v593
    %v835 = vpack.c.bf16 %v604, %v601
    %v836 = vpack.c.bf16 %v612, %v609
    %v837 = vpack.c.bf16 %v620, %v617
    %v838 = vpack.c.bf16 %v628, %v625
    %v839 = vpack.c.bf16 %v636, %v633
    %v840 = vpack.c.bf16 %v816, %v815
    %v841 = vpack.c.bf16 %v818, %v817
    %v842 = vpack.c.bf16 %v820, %v819
    %v843 = vpack.c.bf16 %v822, %v821
    %v844 = vpack.c.bf16 %v824, %v823
    %v845 = vpack.c.bf16 %v826, %v825
    %v846 = vpack.c.bf16 %v828, %v827
    %v847 = vpack.c.bf16 %v830, %v829
    %848 = vxpose.xlu0.c.b16.start [1/8] %v840, 128
    %849 = vxpose.xlu0.c.b16.cont [2/8] %v841, 128
    %850 = vxpose.xlu0.c.b16.cont [3/8] %v842, 128
    %851 = vxpose.xlu0.c.b16.cont [4/8] %v843, 128
    %852 = vxpose.xlu0.c.b16.cont [5/8] 0, 128
    %853 = vxpose.xlu0.c.b16.cont [6/8] 0, 128
    %854 = vxpose.xlu0.c.b16.cont [7/8] 0, 128
    %855 = vxpose.xlu0.c.b16.end [8/8] 0, 128
    %v856 = vpop.trf.xlu0
    %v857 = vpop.trf.xlu0
    %v858 = vpop.trf.xlu0
    %v859 = vpop.trf.xlu0
    %v860 = vpop.trf.xlu0
    %v861 = vpop.trf.xlu0
    %v862 = vpop.trf.xlu0
    %v863 = vpop.trf.xlu0
    %vm864 = vcmask 523264
    %v866 = vsel %vm864, %v856, 0
    %v869 = vsel %vm864, %v857, 0
    %v872 = vsel %vm864, %v858, 0
    %v875 = vsel %vm864, %v859, 0
    %v878 = vsel %vm864, %v860, 0
    %v881 = vsel %vm864, %v861, 0
    %v884 = vsel %vm864, %v862, 0
    %v887 = vsel %vm864, %v863, 0
    %889 = vmatprep.subr.bf16.mxu0 %v832
    %890 = vmatpush1.bf16.msra.mxu0 %v831
    %891 = vmatprep.subr.bf16.mxu0 %v832
    %892 = vmatpush1.bf16.msra.mxu0 %v833
    %893 = vmatprep.subr.bf16.mxu0 %v832
    %894 = vmatpush1.bf16.msra.mxu0 %v834
    %895 = vmatprep.subr.bf16.mxu0 %v832
    %896 = vmatpush1.bf16.msra.mxu0 %v835
    %897 = vmatprep.subr.bf16.mxu0 0
    %898 = vmatpush1.bf16.msra.mxu0 0
    %899 = vmatprep.subr.bf16.mxu0 0
    %900 = vmatpush1.bf16.msra.mxu0 0
    %901 = vmatprep.subr.bf16.mxu0 0
    %902 = vmatpush1.bf16.msra.mxu0 0
    %903 = vmatprep.subr.bf16.mxu0 0
    %904 = vmatpush1.bf16.msra.mxu0 0
    %905 = vmatprep.subr.bf16.mxu0 0
    %906 = vmatpush1.bf16.msra.mxu0 0
    %907 = vmatprep.subr.bf16.mxu0 0
    %908 = vmatpush1.bf16.msra.mxu0 0
    %909 = vmatprep.subr.bf16.mxu0 0
    %910 = vmatpush1.bf16.msra.mxu0 0
    %911 = vmatprep.subr.bf16.mxu0 0
    %912 = vmatpush1.bf16.msra.mxu0 0
    %913 = vmatprep.subr.bf16.mxu0 0
    %914 = vmatpush1.bf16.msra.mxu0 0
    %915 = vmatprep.subr.bf16.mxu0 0
    %916 = vmatpush1.bf16.msra.mxu0 0
    %917 = vmatprep.subr.bf16.mxu0 0
    %918 = vmatpush1.bf16.msra.mxu0 0
    %919 = vmatprep.subr.bf16.mxu0 0
    %920 = vmatpush1.bf16.msra.mxu0 0
    %921 = vmatprep.mubr.bf16.mxu0 0
    %922 = vmatmul.mubr.bf16.gmra.mrb[0].mxu0 %v866
    %v923 = vpop.f32.mrb[0].mxu0
    %v924 = vadd.f32 0.0, %v923
    %v925 = vpop.f32.mrb[0].mxu0
    %v926 = vadd.f32 0.0, %v925
    %v927 = vpop.f32.mrb[0].mxu0
    %v928 = vadd.f32 0.0, %v927
    %v929 = vpop.f32.mrb[0].mxu0
    %v930 = vadd.f32 0.0, %v929
    %931 = vmatprep.mubr.bf16.mxu0 0
    %932 = vmatmul.mubr.bf16.gmra.mrb[0].mxu0 %v869
    %v933 = vpop.f32.mrb[0].mxu0
    %v934 = vadd.f32 0.0, %v933
    %v935 = vpop.f32.mrb[0].mxu0
    %v936 = vadd.f32 0.0, %v935
    %v937 = vpop.f32.mrb[0].mxu0
    %v938 = vadd.f32 0.0, %v937
    %v939 = vpop.f32.mrb[0].mxu0
    %v940 = vadd.f32 0.0, %v939
    %941 = vmatprep.mubr.bf16.mxu0 0
    %942 = vmatmul.mubr.bf16.gmra.mrb[0].mxu0 %v872
    %v943 = vpop.f32.mrb[0].mxu0
    %v944 = vadd.f32 0.0, %v943
    %v945 = vpop.f32.mrb[0].mxu0
    %v946 = vadd.f32 0.0, %v945
    %v947 = vpop.f32.mrb[0].mxu0
    %v948 = vadd.f32 0.0, %v947
    %v949 = vpop.f32.mrb[0].mxu0
    %v950 = vadd.f32 0.0, %v949
    %951 = vmatprep.mubr.bf16.mxu0 0
    %952 = vmatmul.mubr.bf16.gmra.mrb[0].mxu0 %v875
    %v953 = vpop.f32.mrb[0].mxu0
    %v954 = vadd.f32 0.0, %v953
    %v955 = vpop.f32.mrb[0].mxu0
    %v956 = vadd.f32 0.0, %v955
    %v957 = vpop.f32.mrb[0].mxu0
    %v958 = vadd.f32 0.0, %v957
    %v959 = vpop.f32.mrb[0].mxu0
    %v960 = vadd.f32 0.0, %v959
    %961 = vmatprep.mubr.bf16.mxu0 0
    %962 = vmatmul.mubr.bf16.gmra.mrb[0].mxu0 %v878
    %v963 = vpop.f32.mrb[0].mxu0
    %v964 = vadd.f32 0.0, %v963
    %v965 = vpop.f32.mrb[0].mxu0
    %v966 = vadd.f32 0.0, %v965
    %v967 = vpop.f32.mrb[0].mxu0
    %v968 = vadd.f32 0.0, %v967
    %v969 = vpop.f32.mrb[0].mxu0
    %v970 = vadd.f32 0.0, %v969
    %971 = vmatprep.mubr.bf16.mxu0 0
    %972 = vmatmul.mubr.bf16.gmra.mrb[0].mxu0 %v881
    %v973 = vpop.f32.mrb[0].mxu0
    %v974 = vadd.f32 0.0, %v973
    %v975 = vpop.f32.mrb[0].mxu0
    %v976 = vadd.f32 0.0, %v975
    %v977 = vpop.f32.mrb[0].mxu0
    %v978 = vadd.f32 0.0, %v977
    %v979 = vpop.f32.mrb[0].mxu0
    %v980 = vadd.f32 0.0, %v979
    %981 = vmatprep.mubr.bf16.mxu0 0
    %982 = vmatmul.mubr.bf16.gmra.mrb[0].mxu0 %v884
    %v983 = vpop.f32.mrb[0].mxu0
    %v984 = vadd.f32 0.0, %v983
    %v985 = vpop.f32.mrb[0].mxu0
    %v986 = vadd.f32 0.0, %v985
    %v987 = vpop.f32.mrb[0].mxu0
    %v988 = vadd.f32 0.0, %v987
    %v989 = vpop.f32.mrb[0].mxu0
    %v990 = vadd.f32 0.0, %v989
    %991 = vmatprep.mubr.bf16.mxu0 0
    %992 = vmatmul.mubr.bf16.gmra.mrb[0].mxu0 %v887
    %v993 = vpop.f32.mrb[0].mxu0
    %v994 = vadd.f32 0.0, %v993
    %v995 = vpop.f32.mrb[0].mxu0
    %v996 = vadd.f32 0.0, %v995
    %v997 = vpop.f32.mrb[0].mxu0
    %v998 = vadd.f32 0.0, %v997
    %v999 = vpop.f32.mrb[0].mxu0
    %v1000 = vadd.f32 0.0, %v999
    %1001 = vdwg.mxu0
    %1002 = vxpose.xlu0.c.b16.start [1/8] %v844, 128
    %1003 = vxpose.xlu0.c.b16.cont [2/8] %v845, 128
    %1004 = vxpose.xlu0.c.b16.cont [3/8] %v846, 128
    %1005 = vxpose.xlu0.c.b16.cont [4/8] %v847, 128
    %1006 = vxpose.xlu0.c.b16.cont [5/8] 0, 128
    %1007 = vxpose.xlu0.c.b16.cont [6/8] 0, 128
    %1008 = vxpose.xlu0.c.b16.cont [7/8] 0, 128
    %1009 = vxpose.xlu0.c.b16.end [8/8] 0, 128
    %v1010 = vpop.trf.xlu0
    %v1011 = vpop.trf.xlu0
    %v1012 = vpop.trf.xlu0
    %v1013 = vpop.trf.xlu0
    %v1014 = vpop.trf.xlu0
    %v1015 = vpop.trf.xlu0
    %v1016 = vpop.trf.xlu0
    %v1017 = vpop.trf.xlu0
    %v1019 = vsel %vm864, %v1010, 0
    %v1022 = vsel %vm864, %v1011, 0
    %v1025 = vsel %vm864, %v1012, 0
    %v1028 = vsel %vm864, %v1013, 0
    %v1031 = vsel %vm864, %v1014, 0
    %v1034 = vsel %vm864, %v1015, 0
    %v1037 = vsel %vm864, %v1016, 0
    %v1040 = vsel %vm864, %v1017, 0
    %1042 = vmatprep.subr.bf16.mxu0 %v832
    %1043 = vmatpush1.bf16.msra.mxu0 %v836
    %1044 = vmatprep.subr.bf16.mxu0 %v832
    %1045 = vmatpush1.bf16.msra.mxu0 %v837
    %1046 = vmatprep.subr.bf16.mxu0 %v832
    %1047 = vmatpush1.bf16.msra.mxu0 %v838
    %1048 = vmatprep.subr.bf16.mxu0 %v832
    %1049 = vmatpush1.bf16.msra.mxu0 %v839
    %1050 = vmatprep.subr.bf16.mxu0 0
    %1051 = vmatpush1.bf16.msra.mxu0 0
    %1052 = vmatprep.subr.bf16.mxu0 0
    %1053 = vmatpush1.bf16.msra.mxu0 0
    %1054 = vmatprep.subr.bf16.mxu0 0
    %1055 = vmatpush1.bf16.msra.mxu0 0
    %1056 = vmatprep.subr.bf16.mxu0 0
    %1057 = vmatpush1.bf16.msra.mxu0 0
    %1058 = vmatprep.subr.bf16.mxu0 0
    %1059 = vmatpush1.bf16.msra.mxu0 0
    %1060 = vmatprep.subr.bf16.mxu0 0
    %1061 = vmatpush1.bf16.msra.mxu0 0
    %1062 = vmatprep.subr.bf16.mxu0 0
    %1063 = vmatpush1.bf16.msra.mxu0 0
    %1064 = vmatprep.subr.bf16.mxu0 0
    %1065 = vmatpush1.bf16.msra.mxu0 0
    %1066 = vmatprep.subr.bf16.mxu0 0
    %1067 = vmatpush1.bf16.msra.mxu0 0
    %1068 = vmatprep.subr.bf16.mxu0 0
    %1069 = vmatpush1.bf16.msra.mxu0 0
    %1070 = vmatprep.subr.bf16.mxu0 0
    %1071 = vmatpush1.bf16.msra.mxu0 0
    %1072 = vmatprep.subr.bf16.mxu0 0
    %1073 = vmatpush1.bf16.msra.mxu0 0
    %1074 = vmatprep.mubr.bf16.mxu0 0
    %1075 = vmatmul.mubr.bf16.gmra.mrb[0].mxu0 %v1019
    %v1076 = vpop.f32.mrb[0].mxu0
    %v1077 = vadd.f32 0.0, %v1076
    %v1078 = vpop.f32.mrb[0].mxu0
    %v1079 = vadd.f32 0.0, %v1078
    %v1080 = vpop.f32.mrb[0].mxu0
    %v1081 = vadd.f32 0.0, %v1080
    %v1082 = vpop.f32.mrb[0].mxu0
    %v1083 = vadd.f32 0.0, %v1082
    %1084 = vmatprep.mubr.bf16.mxu0 0
    %1085 = vmatmul.mubr.bf16.gmra.mrb[0].mxu0 %v1022
    %v1086 = vpop.f32.mrb[0].mxu0
    %v1087 = vadd.f32 0.0, %v1086
    %v1088 = vpop.f32.mrb[0].mxu0
    %v1089 = vadd.f32 0.0, %v1088
    %v1090 = vpop.f32.mrb[0].mxu0
    %v1091 = vadd.f32 0.0, %v1090
    %v1092 = vpop.f32.mrb[0].mxu0
    %v1093 = vadd.f32 0.0, %v1092
    %1094 = vmatprep.mubr.bf16.mxu0 0
    %1095 = vmatmul.mubr.bf16.gmra.mrb[0].mxu0 %v1025
    %v1096 = vpop.f32.mrb[0].mxu0
    %v1097 = vadd.f32 0.0, %v1096
    %v1098 = vpop.f32.mrb[0].mxu0
    %v1099 = vadd.f32 0.0, %v1098
    %v1100 = vpop.f32.mrb[0].mxu0
    %v1101 = vadd.f32 0.0, %v1100
    %v1102 = vpop.f32.mrb[0].mxu0
    %v1103 = vadd.f32 0.0, %v1102
    %1104 = vmatprep.mubr.bf16.mxu0 0
    %1105 = vmatmul.mubr.bf16.gmra.mrb[0].mxu0 %v1028
    %v1106 = vpop.f32.mrb[0].mxu0
    %v1107 = vadd.f32 0.0, %v1106
    %v1108 = vpop.f32.mrb[0].mxu0
    %v1109 = vadd.f32 0.0, %v1108
    %v1110 = vpop.f32.mrb[0].mxu0
    %v1111 = vadd.f32 0.0, %v1110
    %v1112 = vpop.f32.mrb[0].mxu0
    %v1113 = vadd.f32 0.0, %v1112
    %1114 = vmatprep.mubr.bf16.mxu0 0
    %1115 = vmatmul.mubr.bf16.gmra.mrb[0].mxu0 %v1031
    %v1116 = vpop.f32.mrb[0].mxu0
    %v1117 = vadd.f32 0.0, %v1116
    %v1118 = vpop.f32.mrb[0].mxu0
    %v1119 = vadd.f32 0.0, %v1118
    %v1120 = vpop.f32.mrb[0].mxu0
    %v1121 = vadd.f32 0.0, %v1120
    %v1122 = vpop.f32.mrb[0].mxu0
    %v1123 = vadd.f32 0.0, %v1122
    %1124 = vmatprep.mubr.bf16.mxu0 0
    %1125 = vmatmul.mubr.bf16.gmra.mrb[0].mxu0 %v1034
    %v1126 = vpop.f32.mrb[0].mxu0
    %v1127 = vadd.f32 0.0, %v1126
    %v1128 = vpop.f32.mrb[0].mxu0
    %v1129 = vadd.f32 0.0, %v1128
    %v1130 = vpop.f32.mrb[0].mxu0
    %v1131 = vadd.f32 0.0, %v1130
    %v1132 = vpop.f32.mrb[0].mxu0
    %v1133 = vadd.f32 0.0, %v1132
    %1134 = vmatprep.mubr.bf16.mxu0 0
    %1135 = vmatmul.mubr.bf16.gmra.mrb[0].mxu0 %v1037
    %v1136 = vpop.f32.mrb[0].mxu0
    %v1137 = vadd.f32 0.0, %v1136
    %v1138 = vpop.f32.mrb[0].mxu0
    %v1139 = vadd.f32 0.0, %v1138
    %v1140 = vpop.f32.mrb[0].mxu0
    %v1141 = vadd.f32 0.0, %v1140
    %v1142 = vpop.f32.mrb[0].mxu0
    %v1143 = vadd.f32 0.0, %v1142
    %1144 = vmatprep.mubr.bf16.mxu0 0
    %1145 = vmatmul.mubr.bf16.gmra.mrb[0].mxu0 %v1040
    %v1146 = vpop.f32.mrb[0].mxu0
    %v1147 = vadd.f32 0.0, %v1146
    %v1148 = vpop.f32.mrb[0].mxu0
    %v1149 = vadd.f32 0.0, %v1148
    %v1150 = vpop.f32.mrb[0].mxu0
    %v1151 = vadd.f32 0.0, %v1150
    %v1152 = vpop.f32.mrb[0].mxu0
    %v1153 = vadd.f32 0.0, %v1152
    %1154 = vdwg.mxu0
    %v1155 = vmul.f32 %v924, %v148
    %v1156 = vmul.f32 %v926, %v149
    %v1157 = vmul.f32 %v928, %v150
    %v1158 = vmul.f32 %v930, %v151
    %v1159 = vmul.f32 %v934, %v152
    %v1160 = vmul.f32 %v936, %v153
    %v1161 = vmul.f32 %v938, %v154
    %v1162 = vmul.f32 %v940, %v155
    %v1163 = vmul.f32 %v944, %v156
    %v1164 = vmul.f32 %v946, %v157
    %v1165 = vmul.f32 %v948, %v158
    %v1166 = vmul.f32 %v950, %v159
    %v1167 = vmul.f32 %v954, %v160
    %v1168 = vmul.f32 %v956, %v161
    %v1169 = vmul.f32 %v958, %v162
    %v1170 = vmul.f32 %v960, %v163
    %v1171 = vmul.f32 %v964, %v164
    %v1172 = vmul.f32 %v966, %v165
    %v1173 = vmul.f32 %v968, %v166
    %v1174 = vmul.f32 %v970, %v167
    %v1175 = vmul.f32 %v974, %v168
    %v1176 = vmul.f32 %v976, %v169
    %v1177 = vmul.f32 %v978, %v170
    %v1178 = vmul.f32 %v980, %v171
    %v1179 = vmul.f32 %v984, %v172
    %v1180 = vmul.f32 %v986, %v173
    %v1181 = vmul.f32 %v988, %v174
    %v1182 = vmul.f32 %v990, %v175
    %v1183 = vmul.f32 %v994, %v176
    %v1184 = vmul.f32 %v996, %v177
    %v1185 = vmul.f32 %v998, %v178
    %v1186 = vmul.f32 %v1000, %v179
    %v1187 = vmul.f32 %v1077, %v148
    %v1188 = vmul.f32 %v1079, %v149
    %v1189 = vmul.f32 %v1081, %v150
    %v1190 = vmul.f32 %v1083, %v151
    %v1191 = vmul.f32 %v1087, %v152
    %v1192 = vmul.f32 %v1089, %v153
    %v1193 = vmul.f32 %v1091, %v154
    %v1194 = vmul.f32 %v1093, %v155
    %v1195 = vmul.f32 %v1097, %v156
    %v1196 = vmul.f32 %v1099, %v157
    %v1197 = vmul.f32 %v1101, %v158
    %v1198 = vmul.f32 %v1103, %v159
    %v1199 = vmul.f32 %v1107, %v160
    %v1200 = vmul.f32 %v1109, %v161
    %v1201 = vmul.f32 %v1111, %v162
    %v1202 = vmul.f32 %v1113, %v163
    %v1203 = vmul.f32 %v1117, %v164
    %v1204 = vmul.f32 %v1119, %v165
    %v1205 = vmul.f32 %v1121, %v166
    %v1206 = vmul.f32 %v1123, %v167
    %v1207 = vmul.f32 %v1127, %v168
    %v1208 = vmul.f32 %v1129, %v169
    %v1209 = vmul.f32 %v1131, %v170
    %v1210 = vmul.f32 %v1133, %v171
    %v1211 = vmul.f32 %v1137, %v172
    %v1212 = vmul.f32 %v1139, %v173
    %v1213 = vmul.f32 %v1141, %v174
    %v1214 = vmul.f32 %v1143, %v175
    %v1215 = vmul.f32 %v1147, %v176
    %v1216 = vmul.f32 %v1149, %v177
    %v1217 = vmul.f32 %v1151, %v178
    %v1218 = vmul.f32 %v1153, %v179
    %v1219 = vpack.c.bf16 %v1157, %v1155
    %v1220 = vpack.c.bf16 %v1158, %v1156
    %v1221 = vpack.c.bf16 %v1161, %v1159
    %v1222 = vpack.c.bf16 %v1162, %v1160
    %v1223 = vpack.c.bf16 %v1165, %v1163
    %v1224 = vpack.c.bf16 %v1166, %v1164
    %v1225 = vpack.c.bf16 %v1169, %v1167
    %v1226 = vpack.c.bf16 %v1170, %v1168
    %v1227 = vpack.c.bf16 %v1173, %v1171
    %v1228 = vpack.c.bf16 %v1174, %v1172
    %v1229 = vpack.c.bf16 %v1177, %v1175
    %v1230 = vpack.c.bf16 %v1178, %v1176
    %v1231 = vpack.c.bf16 %v1181, %v1179
    %v1232 = vpack.c.bf16 %v1182, %v1180
    %v1233 = vpack.c.bf16 %v1185, %v1183
    %v1234 = vpack.c.bf16 %v1186, %v1184
    %v1235 = vpack.c.bf16 %v1189, %v1187
    %v1236 = vpack.c.bf16 %v1190, %v1188
    %v1237 = vpack.c.bf16 %v1193, %v1191
    %v1238 = vpack.c.bf16 %v1194, %v1192
    %v1239 = vpack.c.bf16 %v1197, %v1195
    %v1240 = vpack.c.bf16 %v1198, %v1196
    %v1241 = vpack.c.bf16 %v1201, %v1199
    %v1242 = vpack.c.bf16 %v1202, %v1200
    %v1243 = vpack.c.bf16 %v1205, %v1203
    %v1244 = vpack.c.bf16 %v1206, %v1204
    %v1245 = vpack.c.bf16 %v1209, %v1207
    %v1246 = vpack.c.bf16 %v1210, %v1208
    %v1247 = vpack.c.bf16 %v1213, %v1211
    %v1248 = vpack.c.bf16 %v1214, %v1212
    %v1249 = vpack.c.bf16 %v1217, %v1215
    %v1250 = vpack.c.bf16 %v1218, %v1216
    %v1251 = vpack.c.bf16 %v720, %v719
    %v1252 = vpack.c.bf16 %v722, %v721
    %v1253 = vpack.c.bf16 %v724, %v723
    %v1254 = vpack.c.bf16 %v726, %v725
    %v1255 = vpack.c.bf16 %v728, %v727
    %v1256 = vpack.c.bf16 %v730, %v729
    %v1257 = vpack.c.bf16 %v732, %v731
    %v1258 = vpack.c.bf16 %v734, %v733
    %1259 = vmatprep.subr.bf16.mxu0 %v1220
    %1260 = vmatpush1.bf16.msra.mxu0 %v1219
    %1261 = vmatprep.subr.bf16.mxu0 %v1222
    %1262 = vmatpush1.bf16.msra.mxu0 %v1221
    %1263 = vmatprep.subr.bf16.mxu0 %v1224
    %1264 = vmatpush1.bf16.msra.mxu0 %v1223
    %1265 = vmatprep.subr.bf16.mxu0 %v1226
    %1266 = vmatpush1.bf16.msra.mxu0 %v1225
    %1267 = vmatprep.subr.bf16.mxu0 %v1228
    %1268 = vmatpush1.bf16.msra.mxu0 %v1227
    %1269 = vmatprep.subr.bf16.mxu0 %v1230
    %1270 = vmatpush1.bf16.msra.mxu0 %v1229
    %1271 = vmatprep.subr.bf16.mxu0 %v1232
    %1272 = vmatpush1.bf16.msra.mxu0 %v1231
    %1273 = vmatprep.subr.bf16.mxu0 %v1234
    %1274 = vmatpush1.bf16.msra.mxu0 %v1233
    %1275 = vmatprep.subr.bf16.mxu0 0
    %1276 = vmatpush1.bf16.msra.mxu0 0
    %1277 = vmatprep.subr.bf16.mxu0 0
    %1278 = vmatpush1.bf16.msra.mxu0 0
    %1279 = vmatprep.subr.bf16.mxu0 0
    %1280 = vmatpush1.bf16.msra.mxu0 0
    %1281 = vmatprep.subr.bf16.mxu0 0
    %1282 = vmatpush1.bf16.msra.mxu0 0
    %1283 = vmatprep.subr.bf16.mxu0 0
    %1284 = vmatpush1.bf16.msra.mxu0 0
    %1285 = vmatprep.subr.bf16.mxu0 0
    %1286 = vmatpush1.bf16.msra.mxu0 0
    %1287 = vmatprep.subr.bf16.mxu0 0
    %1288 = vmatpush1.bf16.msra.mxu0 0
    %1289 = vmatprep.subr.bf16.mxu0 0
    %1290 = vmatpush1.bf16.msra.mxu0 0
    %1291 = vmatprep.mubr.bf16.mxu0 0
    %1292 = vmatmul.mubr.bf16.gmra.mrb[0].mxu0 %v1251
    %v1293 = vpop.f32.mrb[0].mxu0
    %v1294 = vadd.f32 0.0, %v1293
    %v1295 = vpop.f32.mrb[0].mxu0
    %v1296 = vadd.f32 0.0, %v1295
    %v1297 = vpop.f32.mrb[0].mxu0
    %v1298 = vadd.f32 0.0, %v1297
    %v1299 = vpop.f32.mrb[0].mxu0
    %v1300 = vadd.f32 0.0, %v1299
    %1301 = vmatprep.mubr.bf16.mxu0 0
    %1302 = vmatmul.mubr.bf16.gmra.mrb[0].mxu0 %v1252
    %v1303 = vpop.f32.mrb[0].mxu0
    %v1304 = vadd.f32 0.0, %v1303
    %v1305 = vpop.f32.mrb[0].mxu0
    %v1306 = vadd.f32 0.0, %v1305
    %v1307 = vpop.f32.mrb[0].mxu0
    %v1308 = vadd.f32 0.0, %v1307
    %v1309 = vpop.f32.mrb[0].mxu0
    %v1310 = vadd.f32 0.0, %v1309
    %1311 = vmatprep.mubr.bf16.mxu0 0
    %1312 = vmatmul.mubr.bf16.gmra.mrb[0].mxu0 %v1253
    %v1313 = vpop.f32.mrb[0].mxu0
    %v1314 = vadd.f32 0.0, %v1313
    %v1315 = vpop.f32.mrb[0].mxu0
    %v1316 = vadd.f32 0.0, %v1315
    %v1317 = vpop.f32.mrb[0].mxu0
    %v1318 = vadd.f32 0.0, %v1317
    %v1319 = vpop.f32.mrb[0].mxu0
    %v1320 = vadd.f32 0.0, %v1319
    %1321 = vmatprep.mubr.bf16.mxu0 0
    %1322 = vmatmul.mubr.bf16.gmra.mrb[0].mxu0 %v1254
    %v1323 = vpop.f32.mrb[0].mxu0
    %v1324 = vadd.f32 0.0, %v1323
    %v1325 = vpop.f32.mrb[0].mxu0
    %v1326 = vadd.f32 0.0, %v1325
    %v1327 = vpop.f32.mrb[0].mxu0
    %v1328 = vadd.f32 0.0, %v1327
    %v1329 = vpop.f32.mrb[0].mxu0
    %v1330 = vadd.f32 0.0, %v1329
    %1331 = vdwg.mxu0
    %1332 = vmatprep.subr.bf16.mxu0 %v1236
    %1333 = vmatpush1.bf16.msra.mxu0 %v1235
    %1334 = vmatprep.subr.bf16.mxu0 %v1238
    %1335 = vmatpush1.bf16.msra.mxu0 %v1237
    %1336 = vmatprep.subr.bf16.mxu0 %v1240
    %1337 = vmatpush1.bf16.msra.mxu0 %v1239
    %1338 = vmatprep.subr.bf16.mxu0 %v1242
    %1339 = vmatpush1.bf16.msra.mxu0 %v1241
    %1340 = vmatprep.subr.bf16.mxu0 %v1244
    %1341 = vmatpush1.bf16.msra.mxu0 %v1243
    %1342 = vmatprep.subr.bf16.mxu0 %v1246
    %1343 = vmatpush1.bf16.msra.mxu0 %v1245
    %1344 = vmatprep.subr.bf16.mxu0 %v1248
    %1345 = vmatpush1.bf16.msra.mxu0 %v1247
    %1346 = vmatprep.subr.bf16.mxu0 %v1250
    %1347 = vmatpush1.bf16.msra.mxu0 %v1249
    %1348 = vmatprep.subr.bf16.mxu0 0
    %1349 = vmatpush1.bf16.msra.mxu0 0
    %1350 = vmatprep.subr.bf16.mxu0 0
    %1351 = vmatpush1.bf16.msra.mxu0 0
    %1352 = vmatprep.subr.bf16.mxu0 0
    %1353 = vmatpush1.bf16.msra.mxu0 0
    %1354 = vmatprep.subr.bf16.mxu0 0
    %1355 = vmatpush1.bf16.msra.mxu0 0
    %1356 = vmatprep.subr.bf16.mxu0 0
    %1357 = vmatpush1.bf16.msra.mxu0 0
    %1358 = vmatprep.subr.bf16.mxu0 0
    %1359 = vmatpush1.bf16.msra.mxu0 0
    %1360 = vmatprep.subr.bf16.mxu0 0
    %1361 = vmatpush1.bf16.msra.mxu0 0
    %1362 = vmatprep.subr.bf16.mxu0 0
    %1363 = vmatpush1.bf16.msra.mxu0 0
    %1364 = vmatprep.mubr.bf16.mxu0 0
    %1365 = vmatmul.mubr.bf16.gmra.mrb[0].mxu0 %v1255
    %v1366 = vpop.f32.mrb[0].mxu0
    %v1367 = vadd.f32 0.0, %v1366
    %v1368 = vpop.f32.mrb[0].mxu0
    %v1369 = vadd.f32 0.0, %v1368
    %v1370 = vpop.f32.mrb[0].mxu0
    %v1371 = vadd.f32 0.0, %v1370
    %v1372 = vpop.f32.mrb[0].mxu0
    %v1373 = vadd.f32 0.0, %v1372
    %1374 = vmatprep.mubr.bf16.mxu0 0
    %1375 = vmatmul.mubr.bf16.gmra.mrb[0].mxu0 %v1256
    %v1376 = vpop.f32.mrb[0].mxu0
    %v1377 = vadd.f32 0.0, %v1376
    %v1378 = vpop.f32.mrb[0].mxu0
    %v1379 = vadd.f32 0.0, %v1378
    %v1380 = vpop.f32.mrb[0].mxu0
    %v1381 = vadd.f32 0.0, %v1380
    %v1382 = vpop.f32.mrb[0].mxu0
    %v1383 = vadd.f32 0.0, %v1382
    %1384 = vmatprep.mubr.bf16.mxu0 0
    %1385 = vmatmul.mubr.bf16.gmra.mrb[0].mxu0 %v1257
    %v1386 = vpop.f32.mrb[0].mxu0
    %v1387 = vadd.f32 0.0, %v1386
    %v1388 = vpop.f32.mrb[0].mxu0
    %v1389 = vadd.f32 0.0, %v1388
    %v1390 = vpop.f32.mrb[0].mxu0
    %v1391 = vadd.f32 0.0, %v1390
    %v1392 = vpop.f32.mrb[0].mxu0
    %v1393 = vadd.f32 0.0, %v1392
    %1394 = vmatprep.mubr.bf16.mxu0 0
    %1395 = vmatmul.mubr.bf16.gmra.mrb[0].mxu0 %v1258
    %v1396 = vpop.f32.mrb[0].mxu0
    %v1397 = vadd.f32 0.0, %v1396
    %v1398 = vpop.f32.mrb[0].mxu0
    %v1399 = vadd.f32 0.0, %v1398
    %v1400 = vpop.f32.mrb[0].mxu0
    %v1401 = vadd.f32 0.0, %v1400
    %v1402 = vpop.f32.mrb[0].mxu0
    %v1403 = vadd.f32 0.0, %v1402
    %1404 = vdwg.mxu0
    %v1405 = vadd.f32 %v1296, 1e-06
    %v1406 = vadd.f32 %v1300, 1e-06
    %v1407 = vadd.f32 %v1306, 1e-06
    %v1408 = vadd.f32 %v1310, 1e-06
    %v1409 = vadd.f32 %v1316, 1e-06
    %v1410 = vadd.f32 %v1320, 1e-06
    %v1411 = vadd.f32 %v1326, 1e-06
    %v1412 = vadd.f32 %v1330, 1e-06
    %v1413 = vadd.f32 %v1369, 1e-06
    %v1414 = vadd.f32 %v1373, 1e-06
    %v1415 = vadd.f32 %v1379, 1e-06
    %v1416 = vadd.f32 %v1383, 1e-06
    %v1417 = vadd.f32 %v1389, 1e-06
    %v1418 = vadd.f32 %v1393, 1e-06
    %v1419 = vadd.f32 %v1399, 1e-06
    %v1420 = vadd.f32 %v1403, 1e-06
    %v1421 = vrcp.pop %v1405
    %v1422 = vrcp.pop %v1406
    %v1423 = vrcp.pop %v1407
    %v1424 = vrcp.pop %v1408
    %v1425 = vrcp.pop %v1409
    %v1426 = vrcp.pop %v1410
    %v1427 = vrcp.pop %v1411
    %v1428 = vrcp.pop %v1412
    %v1429 = vrcp.pop %v1413
    %v1430 = vrcp.pop %v1414
    %v1431 = vrcp.pop %v1415
    %v1432 = vrcp.pop %v1416
    %v1433 = vrcp.pop %v1417
    %v1434 = vrcp.pop %v1418
    %v1435 = vrcp.pop %v1419
    %v1436 = vrcp.pop %v1420
    %v1437 = vmul.f32 %v1294, %v1421
    %v1438 = vmul.f32 %v1298, %v1422
    %v1439 = vmul.f32 %v1304, %v1423
    %v1440 = vmul.f32 %v1308, %v1424
    %v1441 = vmul.f32 %v1314, %v1425
    %v1442 = vmul.f32 %v1318, %v1426
    %v1443 = vmul.f32 %v1324, %v1427
    %v1444 = vmul.f32 %v1328, %v1428
    %v1445 = vmul.f32 %v1367, %v1429
    %v1446 = vmul.f32 %v1371, %v1430
    %v1447 = vmul.f32 %v1377, %v1431
    %v1448 = vmul.f32 %v1381, %v1432
    %v1449 = vmul.f32 %v1387, %v1433
    %v1450 = vmul.f32 %v1391, %v1434
    %v1451 = vmul.f32 %v1397, %v1435
    %v1452 = vmul.f32 %v1401, %v1436
    %v1453 = vpack.c.bf16 %v1438, %v1437
    %v1454 = vpack.c.bf16 %v1440, %v1439
    %v1455 = vpack.c.bf16 %v1442, %v1441
    %v1456 = vpack.c.bf16 %v1444, %v1443
    %v1457 = vpack.c.bf16 %v1446, %v1445
    %v1458 = vpack.c.bf16 %v1448, %v1447
    %v1459 = vpack.c.bf16 %v1450, %v1449
    %v1460 = vpack.c.bf16 %v1452, %v1451
    %v1477 = vunpack.c.l.b16 %v212
    %v1478 = vunpack.c.l.b16 %v213
    %v1479 = vunpack.c.l.b16 %v214
    %v1480 = vunpack.c.l.b16 %v215
    %v1481 = vunpack.c.l.b16 %v216
    %v1482 = vunpack.c.l.b16 %v217
    %v1483 = vunpack.c.l.b16 %v218
    %v1484 = vunpack.c.l.b16 %v219
    %v1485 = vunpack.c.l.b16 %v220
    %v1486 = vunpack.c.l.b16 %v221
    %v1487 = vunpack.c.l.b16 %v222
    %v1488 = vunpack.c.l.b16 %v223
    %v1489 = vunpack.c.l.b16 %v224
    %v1490 = vunpack.c.l.b16 %v225
    %v1491 = vunpack.c.l.b16 %v226
    %v1492 = vunpack.c.l.b16 %v227
    %v1493 = vpack.c.b16 %v1478, %v1477
    %v1494 = vpack.c.b16 %v1480, %v1479
    %v1495 = vpack.c.b16 %v1482, %v1481
    %v1496 = vpack.c.b16 %v1484, %v1483
    %v1497 = vpack.c.b16 %v1486, %v1485
    %v1498 = vpack.c.b16 %v1488, %v1487
    %v1499 = vpack.c.b16 %v1490, %v1489
    %v1500 = vpack.c.b16 %v1492, %v1491
    %1509 = vmatprep.subr.bf16.mxu0 0
    %1510 = vmatpush1.bf16.msra.mxu0 %v1493
    %1511 = vmatprep.subr.bf16.mxu0 0
    %1512 = vmatpush1.bf16.msra.mxu0 %v1494
    %1513 = vmatprep.subr.bf16.mxu0 0
    %1514 = vmatpush1.bf16.msra.mxu0 %v1495
    %1515 = vmatprep.subr.bf16.mxu0 0
    %1516 = vmatpush1.bf16.msra.mxu0 %v1496
    %1517 = vmatprep.subr.bf16.mxu0 0
    %1518 = vmatpush1.bf16.msra.mxu0 %v1497
    %1519 = vmatprep.subr.bf16.mxu0 0
    %1520 = vmatpush1.bf16.msra.mxu0 %v1498
    %1521 = vmatprep.subr.bf16.mxu0 0
    %1522 = vmatpush1.bf16.msra.mxu0 %v1499
    %1523 = vmatprep.subr.bf16.mxu0 0
    %1524 = vmatpush1.bf16.msra.mxu0 %v1500
    %1525 = vmatprep.subr.bf16.mxu0 0
    %1526 = vmatpush1.bf16.msra.mxu0 0
    %1527 = vmatprep.subr.bf16.mxu0 0
    %1528 = vmatpush1.bf16.msra.mxu0 0
    %1529 = vmatprep.subr.bf16.mxu0 0
    %1530 = vmatpush1.bf16.msra.mxu0 0
    %1531 = vmatprep.subr.bf16.mxu0 0
    %1532 = vmatpush1.bf16.msra.mxu0 0
    %1533 = vmatprep.subr.bf16.mxu0 0
    %1534 = vmatpush1.bf16.msra.mxu0 0
    %1535 = vmatprep.subr.bf16.mxu0 0
    %1536 = vmatpush1.bf16.msra.mxu0 0
    %1537 = vmatprep.subr.bf16.mxu0 0
    %1538 = vmatpush1.bf16.msra.mxu0 0
    %1539 = vmatprep.subr.bf16.mxu0 0
    %1540 = vmatpush1.bf16.msra.mxu0 0
    %1541 = vmatprep.mubr.bf16.mxu0 0
    %1542 = vmatmul.mubr.bf16.gmra.mrb[0].mxu0 %v1453
    %v1543 = vpop.f32.mrb[0].mxu0
    %v1544 = vadd.f32 0.0, %v1543
    %v1545 = vpop.f32.mrb[0].mxu0
    %v1546 = vpop.f32.mrb[0].mxu0
    %v1547 = vadd.f32 0.0, %v1546
    %v1548 = vpop.f32.mrb[0].mxu0
    %1549 = vmatprep.mubr.bf16.mxu0 0
    %1550 = vmatmul.mubr.bf16.gmra.mrb[0].mxu0 %v1454
    %v1551 = vpop.f32.mrb[0].mxu0
    %v1552 = vadd.f32 0.0, %v1551
    %v1553 = vpop.f32.mrb[0].mxu0
    %v1554 = vpop.f32.mrb[0].mxu0
    %v1555 = vadd.f32 0.0, %v1554
    %v1556 = vpop.f32.mrb[0].mxu0
    %1557 = vmatprep.mubr.bf16.mxu0 0
    %1558 = vmatmul.mubr.bf16.gmra.mrb[0].mxu0 %v1455
    %v1559 = vpop.f32.mrb[0].mxu0
    %v1560 = vadd.f32 0.0, %v1559
    %v1561 = vpop.f32.mrb[0].mxu0
    %v1562 = vpop.f32.mrb[0].mxu0
    %v1563 = vadd.f32 0.0, %v1562
    %v1564 = vpop.f32.mrb[0].mxu0
    %1565 = vmatprep.mubr.bf16.mxu0 0
    %1566 = vmatmul.mubr.bf16.gmra.mrb[0].mxu0 %v1456
    %v1567 = vpop.f32.mrb[0].mxu0
    %v1568 = vadd.f32 0.0, %v1567
    %v1569 = vpop.f32.mrb[0].mxu0
    %v1570 = vpop.f32.mrb[0].mxu0
    %v1571 = vadd.f32 0.0, %v1570
    %v1572 = vpop.f32.mrb[0].mxu0
    %1573 = vmatprep.mubr.bf16.mxu0 0
    %1574 = vmatmul.mubr.bf16.gmra.mrb[0].mxu0 %v1457
    %v1575 = vpop.f32.mrb[0].mxu0
    %v1576 = vadd.f32 0.0, %v1575
    %v1577 = vpop.f32.mrb[0].mxu0
    %v1578 = vpop.f32.mrb[0].mxu0
    %v1579 = vadd.f32 0.0, %v1578
    %v1580 = vpop.f32.mrb[0].mxu0
    %1581 = vmatprep.mubr.bf16.mxu0 0
    %1582 = vmatmul.mubr.bf16.gmra.mrb[0].mxu0 %v1458
    %v1583 = vpop.f32.mrb[0].mxu0
    %v1584 = vadd.f32 0.0, %v1583
    %v1585 = vpop.f32.mrb[0].mxu0
    %v1586 = vpop.f32.mrb[0].mxu0
    %v1587 = vadd.f32 0.0, %v1586
    %v1588 = vpop.f32.mrb[0].mxu0
    %1589 = vmatprep.mubr.bf16.mxu0 0
    %1590 = vmatmul.mubr.bf16.gmra.mrb[0].mxu0 %v1459
    %v1591 = vpop.f32.mrb[0].mxu0
    %v1592 = vadd.f32 0.0, %v1591
    %v1593 = vpop.f32.mrb[0].mxu0
    %v1594 = vpop.f32.mrb[0].mxu0
    %v1595 = vadd.f32 0.0, %v1594
    %v1596 = vpop.f32.mrb[0].mxu0
    %1597 = vmatprep.mubr.bf16.mxu0 0
    %1598 = vmatmul.mubr.bf16.gmra.mrb[0].mxu0 %v1460
    %v1599 = vpop.f32.mrb[0].mxu0
    %v1600 = vadd.f32 0.0, %v1599
    %v1601 = vpop.f32.mrb[0].mxu0
    %v1602 = vpop.f32.mrb[0].mxu0
    %v1603 = vadd.f32 0.0, %v1602
    %v1604 = vpop.f32.mrb[0].mxu0
    %1605 = vdwg.mxu0
    %1606 = vadd.xlane.f32.xlu0 %v1544
    %v1607 = vpop.xlane.xlu0 %1606
    %1608 = vadd.xlane.f32.xlu0 %v1547
    %v1609 = vpop.xlane.xlu0 %1608
    %1610 = vadd.xlane.f32.xlu0 %v1552
    %v1611 = vpop.xlane.xlu0 %1610
    %1612 = vadd.xlane.f32.xlu0 %v1555
    %v1613 = vpop.xlane.xlu0 %1612
    %1614 = vadd.xlane.f32.xlu0 %v1560
    %v1615 = vpop.xlane.xlu0 %1614
    %1616 = vadd.xlane.f32.xlu0 %v1563
    %v1617 = vpop.xlane.xlu0 %1616
    %1618 = vadd.xlane.f32.xlu0 %v1568
    %v1619 = vpop.xlane.xlu0 %1618
    %1620 = vadd.xlane.f32.xlu0 %v1571
    %v1621 = vpop.xlane.xlu0 %1620
    %1622 = vadd.xlane.f32.xlu0 %v1576
    %v1623 = vpop.xlane.xlu0 %1622
    %1624 = vadd.xlane.f32.xlu0 %v1579
    %v1625 = vpop.xlane.xlu0 %1624
    %1626 = vadd.xlane.f32.xlu0 %v1584
    %v1627 = vpop.xlane.xlu0 %1626
    %1628 = vadd.xlane.f32.xlu0 %v1587
    %v1629 = vpop.xlane.xlu0 %1628
    %1630 = vadd.xlane.f32.xlu0 %v1592
    %v1631 = vpop.xlane.xlu0 %1630
    %1632 = vadd.xlane.f32.xlu0 %v1595
    %v1633 = vpop.xlane.xlu0 %1632
    %1634 = vadd.xlane.f32.xlu0 %v1600
    %v1635 = vpop.xlane.xlu0 %1634
    %1636 = vadd.xlane.f32.xlu0 %v1603
    %v1637 = vpop.xlane.xlu0 %1636
    %v1638 = vrcp.pop 128.0
    %v1639 = vmul.f32 %v1607, %v1638
    %v1640 = vmul.f32 %v1609, %v1638
    %v1641 = vmul.f32 %v1611, %v1638
    %v1642 = vmul.f32 %v1613, %v1638
    %v1643 = vmul.f32 %v1615, %v1638
    %v1644 = vmul.f32 %v1617, %v1638
    %v1645 = vmul.f32 %v1619, %v1638
    %v1646 = vmul.f32 %v1621, %v1638
    %v1647 = vmul.f32 %v1623, %v1638
    %v1648 = vmul.f32 %v1625, %v1638
    %v1649 = vmul.f32 %v1627, %v1638
    %v1650 = vmul.f32 %v1629, %v1638
    %v1651 = vmul.f32 %v1631, %v1638
    %v1652 = vmul.f32 %v1633, %v1638
    %v1653 = vmul.f32 %v1635, %v1638
    %v1654 = vmul.f32 %v1637, %v1638
    %v1655 = vmul.f32 %v1544, %v1544
    %v1656 = vmul.f32 %v1547, %v1547
    %v1657 = vmul.f32 %v1552, %v1552
    %v1658 = vmul.f32 %v1555, %v1555
    %v1659 = vmul.f32 %v1560, %v1560
    %v1660 = vmul.f32 %v1563, %v1563
    %v1661 = vmul.f32 %v1568, %v1568
    %v1662 = vmul.f32 %v1571, %v1571
    %v1663 = vmul.f32 %v1576, %v1576
    %v1664 = vmul.f32 %v1579, %v1579
    %v1665 = vmul.f32 %v1584, %v1584
    %v1666 = vmul.f32 %v1587, %v1587
    %v1667 = vmul.f32 %v1592, %v1592
    %v1668 = vmul.f32 %v1595, %v1595
    %v1669 = vmul.f32 %v1600, %v1600
    %v1670 = vmul.f32 %v1603, %v1603
    %1671 = vadd.xlane.f32.xlu0 %v1655
    %v1672 = vpop.xlane.xlu0 %1671
    %1673 = vadd.xlane.f32.xlu0 %v1656
    %v1674 = vpop.xlane.xlu0 %1673
    %1675 = vadd.xlane.f32.xlu0 %v1657
    %v1676 = vpop.xlane.xlu0 %1675
    %1677 = vadd.xlane.f32.xlu0 %v1658
    %v1678 = vpop.xlane.xlu0 %1677
    %1679 = vadd.xlane.f32.xlu0 %v1659
    %v1680 = vpop.xlane.xlu0 %1679
    %1681 = vadd.xlane.f32.xlu0 %v1660
    %v1682 = vpop.xlane.xlu0 %1681
    %1683 = vadd.xlane.f32.xlu0 %v1661
    %v1684 = vpop.xlane.xlu0 %1683
    %1685 = vadd.xlane.f32.xlu0 %v1662
    %v1686 = vpop.xlane.xlu0 %1685
    %1687 = vadd.xlane.f32.xlu0 %v1663
    %v1688 = vpop.xlane.xlu0 %1687
    %1689 = vadd.xlane.f32.xlu0 %v1664
    %v1690 = vpop.xlane.xlu0 %1689
    %1691 = vadd.xlane.f32.xlu0 %v1665
    %v1692 = vpop.xlane.xlu0 %1691
    %1693 = vadd.xlane.f32.xlu0 %v1666
    %v1694 = vpop.xlane.xlu0 %1693
    %1695 = vadd.xlane.f32.xlu0 %v1667
    %v1696 = vpop.xlane.xlu0 %1695
    %1697 = vadd.xlane.f32.xlu0 %v1668
    %v1698 = vpop.xlane.xlu0 %1697
    %1699 = vadd.xlane.f32.xlu0 %v1669
    %v1700 = vpop.xlane.xlu0 %1699
    %1701 = vadd.xlane.f32.xlu0 %v1670
    %v1702 = vpop.xlane.xlu0 %1701
    %v1703 = vmul.f32 %v1672, %v1638
    %v1704 = vmul.f32 %v1674, %v1638
    %v1705 = vmul.f32 %v1676, %v1638
    %v1706 = vmul.f32 %v1678, %v1638
    %v1707 = vmul.f32 %v1680, %v1638
    %v1708 = vmul.f32 %v1682, %v1638
    %v1709 = vmul.f32 %v1684, %v1638
    %v1710 = vmul.f32 %v1686, %v1638
    %v1711 = vmul.f32 %v1688, %v1638
    %v1712 = vmul.f32 %v1690, %v1638
    %v1713 = vmul.f32 %v1692, %v1638
    %v1714 = vmul.f32 %v1694, %v1638
    %v1715 = vmul.f32 %v1696, %v1638
    %v1716 = vmul.f32 %v1698, %v1638
    %v1717 = vmul.f32 %v1700, %v1638
    %v1718 = vmul.f32 %v1702, %v1638
    %v1719 = vmul.f32 %v1639, %v1639
    %v1720 = vmul.f32 %v1640, %v1640
    %v1721 = vmul.f32 %v1641, %v1641
    %v1722 = vmul.f32 %v1642, %v1642
    %v1723 = vmul.f32 %v1643, %v1643
    %v1724 = vmul.f32 %v1644, %v1644
    %v1725 = vmul.f32 %v1645, %v1645
    %v1726 = vmul.f32 %v1646, %v1646
    %v1727 = vmul.f32 %v1647, %v1647
    %v1728 = vmul.f32 %v1648, %v1648
    %v1729 = vmul.f32 %v1649, %v1649
    %v1730 = vmul.f32 %v1650, %v1650
    %v1731 = vmul.f32 %v1651, %v1651
    %v1732 = vmul.f32 %v1652, %v1652
    %v1733 = vmul.f32 %v1653, %v1653
    %v1734 = vmul.f32 %v1654, %v1654
    %v1735 = vsub.f32 %v1703, %v1719
    %v1736 = vsub.f32 %v1704, %v1720
    %v1737 = vsub.f32 %v1705, %v1721
    %v1738 = vsub.f32 %v1706, %v1722
    %v1739 = vsub.f32 %v1707, %v1723
    %v1740 = vsub.f32 %v1708, %v1724
    %v1741 = vsub.f32 %v1709, %v1725
    %v1742 = vsub.f32 %v1710, %v1726
    %v1743 = vsub.f32 %v1711, %v1727
    %v1744 = vsub.f32 %v1712, %v1728
    %v1745 = vsub.f32 %v1713, %v1729
    %v1746 = vsub.f32 %v1714, %v1730
    %v1747 = vsub.f32 %v1715, %v1731
    %v1748 = vsub.f32 %v1716, %v1732
    %v1749 = vsub.f32 %v1717, %v1733
    %v1750 = vsub.f32 %v1718, %v1734
    %v1751 = vmax.f32 %v1735, 0.0
    %v1752 = vmax.f32 %v1736, 0.0
    %v1753 = vmax.f32 %v1737, 0.0
    %v1754 = vmax.f32 %v1738, 0.0
    %v1755 = vmax.f32 %v1739, 0.0
    %v1756 = vmax.f32 %v1740, 0.0
    %v1757 = vmax.f32 %v1741, 0.0
    %v1758 = vmax.f32 %v1742, 0.0
    %v1759 = vmax.f32 %v1743, 0.0
    %v1760 = vmax.f32 %v1744, 0.0
    %v1761 = vmax.f32 %v1745, 0.0
    %v1762 = vmax.f32 %v1746, 0.0
    %v1763 = vmax.f32 %v1747, 0.0
    %v1764 = vmax.f32 %v1748, 0.0
    %v1765 = vmax.f32 %v1749, 0.0
    %v1766 = vmax.f32 %v1750, 0.0
    %v1767 = vsub.f32 %v1544, %v1639
    %v1768 = vsub.f32 %v1547, %v1640
    %v1769 = vsub.f32 %v1552, %v1641
    %v1770 = vsub.f32 %v1555, %v1642
    %v1771 = vsub.f32 %v1560, %v1643
    %v1772 = vsub.f32 %v1563, %v1644
    %v1773 = vsub.f32 %v1568, %v1645
    %v1774 = vsub.f32 %v1571, %v1646
    %v1775 = vsub.f32 %v1576, %v1647
    %v1776 = vsub.f32 %v1579, %v1648
    %v1777 = vsub.f32 %v1584, %v1649
    %v1778 = vsub.f32 %v1587, %v1650
    %v1779 = vsub.f32 %v1592, %v1651
    %v1780 = vsub.f32 %v1595, %v1652
    %v1781 = vsub.f32 %v1600, %v1653
    %v1782 = vsub.f32 %v1603, %v1654
    %v1783 = vadd.f32 %v1751, 1e-05
    %v1784 = vadd.f32 %v1752, 1e-05
    %v1785 = vadd.f32 %v1753, 1e-05
    %v1786 = vadd.f32 %v1754, 1e-05
    %v1787 = vadd.f32 %v1755, 1e-05
    %v1788 = vadd.f32 %v1756, 1e-05
    %v1789 = vadd.f32 %v1757, 1e-05
    %v1790 = vadd.f32 %v1758, 1e-05
    %v1791 = vadd.f32 %v1759, 1e-05
    %v1792 = vadd.f32 %v1760, 1e-05
    %v1793 = vadd.f32 %v1761, 1e-05
    %v1794 = vadd.f32 %v1762, 1e-05
    %v1795 = vadd.f32 %v1763, 1e-05
    %v1796 = vadd.f32 %v1764, 1e-05
    %v1797 = vadd.f32 %v1765, 1e-05
    %v1798 = vadd.f32 %v1766, 1e-05
    %v1799 = vrsqrt.pop %v1783
    %v1800 = vrsqrt.pop %v1784
    %v1801 = vrsqrt.pop %v1785
    %v1802 = vrsqrt.pop %v1786
    %v1803 = vrsqrt.pop %v1787
    %v1804 = vrsqrt.pop %v1788
    %v1805 = vrsqrt.pop %v1789
    %v1806 = vrsqrt.pop %v1790
    %v1807 = vrsqrt.pop %v1791
    %v1808 = vrsqrt.pop %v1792
    %v1809 = vrsqrt.pop %v1793
    %v1810 = vrsqrt.pop %v1794
    %v1811 = vrsqrt.pop %v1795
    %v1812 = vrsqrt.pop %v1796
    %v1813 = vrsqrt.pop %v1797
    %v1814 = vrsqrt.pop %v1798
    %v1815 = vmul.f32 %v1767, %v1799
    %v1816 = vmul.f32 %v1768, %v1800
    %v1817 = vmul.f32 %v1769, %v1801
    %v1818 = vmul.f32 %v1770, %v1802
    %v1819 = vmul.f32 %v1771, %v1803
    %v1820 = vmul.f32 %v1772, %v1804
    %v1821 = vmul.f32 %v1773, %v1805
    %v1822 = vmul.f32 %v1774, %v1806
    %v1823 = vmul.f32 %v1775, %v1807
    %v1824 = vmul.f32 %v1776, %v1808
    %v1825 = vmul.f32 %v1777, %v1809
    %v1826 = vmul.f32 %v1778, %v1810
    %v1827 = vmul.f32 %v1779, %v1811
    %v1828 = vmul.f32 %v1780, %v1812
    %v1829 = vmul.f32 %v1781, %v1813
    %v1830 = vmul.f32 %v1782, %v1814
    %v1831 = vlaneseq
    %v1832 = vshrl.u32 %v1831, 7
    %v1833 = vsub.s32 0, %v1832
    %v1834 = vrot.slane %v292, %v1833
    %v1835 = vmul.f32 %v1815, %v1834
    %v1836 = vmul.f32 %v1816, %v1834
    %v1837 = vmul.f32 %v1817, %v1834
    %v1838 = vmul.f32 %v1818, %v1834
    %v1839 = vmul.f32 %v1819, %v1834
    %v1840 = vmul.f32 %v1820, %v1834
    %v1841 = vmul.f32 %v1821, %v1834
    %v1842 = vmul.f32 %v1822, %v1834
    %v1843 = vmul.f32 %v1823, %v1834
    %v1844 = vmul.f32 %v1824, %v1834
    %v1845 = vmul.f32 %v1825, %v1834
    %v1846 = vmul.f32 %v1826, %v1834
    %v1847 = vmul.f32 %v1827, %v1834
    %v1848 = vmul.f32 %v1828, %v1834
    %v1849 = vmul.f32 %v1829, %v1834
    %v1850 = vmul.f32 %v1830, %v1834
    %v1851 = vlaneseq
    %v1852 = vshrl.u32 %v1851, 7
    %v1853 = vsub.s32 1, %v1852
    %v1854 = vrot.slane %v292, %v1853
    %v1855 = vadd.f32 %v1835, %v1854
    %v1856 = vadd.f32 %v1836, %v1854
    %v1857 = vadd.f32 %v1837, %v1854
    %v1858 = vadd.f32 %v1838, %v1854
    %v1859 = vadd.f32 %v1839, %v1854
    %v1860 = vadd.f32 %v1840, %v1854
    %v1861 = vadd.f32 %v1841, %v1854
    %v1862 = vadd.f32 %v1842, %v1854
    %v1863 = vadd.f32 %v1843, %v1854
    %v1864 = vadd.f32 %v1844, %v1854
    %v1865 = vadd.f32 %v1845, %v1854
    %v1866 = vadd.f32 %v1846, %v1854
    %v1867 = vadd.f32 %v1847, %v1854
    %v1868 = vadd.f32 %v1848, %v1854
    %v1869 = vadd.f32 %v1849, %v1854
    %v1870 = vadd.f32 %v1850, %v1854
    %v1871 = vpack.c.bf16 %v1856, %v1855
    %v1872 = vpack.c.bf16 %v1858, %v1857
    %v1873 = vpack.c.bf16 %v1860, %v1859
    %v1874 = vpack.c.bf16 %v1862, %v1861
    %v1875 = vpack.c.bf16 %v1864, %v1863
    %v1876 = vpack.c.bf16 %v1866, %v1865
    %v1877 = vpack.c.bf16 %v1868, %v1867
    %v1878 = vpack.c.bf16 %v1870, %v1869
    %v1895 = vunpack.c.l.b16 %v244
    %v1896 = vunpack.c.h.b16 %v244
    %v1897 = vunpack.c.l.b16 %v245
    %v1898 = vunpack.c.h.b16 %v245
    %v1899 = vunpack.c.l.b16 %v246
    %v1900 = vunpack.c.h.b16 %v246
    %v1901 = vunpack.c.l.b16 %v247
    %v1902 = vunpack.c.h.b16 %v247
    %v1903 = vunpack.c.l.b16 %v248
    %v1904 = vunpack.c.h.b16 %v248
    %v1905 = vunpack.c.l.b16 %v249
    %v1906 = vunpack.c.h.b16 %v249
    %v1907 = vunpack.c.l.b16 %v250
    %v1908 = vunpack.c.h.b16 %v250
    %v1909 = vunpack.c.l.b16 %v251
    %v1910 = vunpack.c.h.b16 %v251
    %v1911 = vunpack.c.l.b16 %v252
    %v1912 = vunpack.c.h.b16 %v252
    %v1913 = vunpack.c.l.b16 %v253
    %v1914 = vunpack.c.h.b16 %v253
    %v1915 = vunpack.c.l.b16 %v254
    %v1916 = vunpack.c.h.b16 %v254
    %v1917 = vunpack.c.l.b16 %v255
    %v1918 = vunpack.c.h.b16 %v255
    %v1919 = vunpack.c.l.b16 %v256
    %v1920 = vunpack.c.h.b16 %v256
    %v1921 = vunpack.c.l.b16 %v257
    %v1922 = vunpack.c.h.b16 %v257
    %v1923 = vunpack.c.l.b16 %v258
    %v1924 = vunpack.c.h.b16 %v258
    %v1925 = vunpack.c.l.b16 %v259
    %v1926 = vunpack.c.h.b16 %v259
    %v1927 = vpack.c.b16 %v1897, %v1895
    %v1928 = vpack.c.b16 %v1898, %v1896
    %v1929 = vpack.c.b16 %v1901, %v1899
    %v1930 = vpack.c.b16 %v1902, %v1900
    %v1931 = vpack.c.b16 %v1905, %v1903
    %v1932 = vpack.c.b16 %v1906, %v1904
    %v1933 = vpack.c.b16 %v1909, %v1907
    %v1934 = vpack.c.b16 %v1910, %v1908
    %v1935 = vpack.c.b16 %v1913, %v1911
    %v1936 = vpack.c.b16 %v1914, %v1912
    %v1937 = vpack.c.b16 %v1917, %v1915
    %v1938 = vpack.c.b16 %v1918, %v1916
    %v1939 = vpack.c.b16 %v1921, %v1919
    %v1940 = vpack.c.b16 %v1922, %v1920
    %v1941 = vpack.c.b16 %v1925, %v1923
    %v1942 = vpack.c.b16 %v1926, %v1924
    %1959 = vmatprep.subr.bf16.mxu0 %v1928
    %1960 = vmatpush1.bf16.msra.mxu0 %v1927
    %1961 = vmatprep.subr.bf16.mxu0 %v1930
    %1962 = vmatpush1.bf16.msra.mxu0 %v1929
    %1963 = vmatprep.subr.bf16.mxu0 %v1932
    %1964 = vmatpush1.bf16.msra.mxu0 %v1931
    %1965 = vmatprep.subr.bf16.mxu0 %v1934
    %1966 = vmatpush1.bf16.msra.mxu0 %v1933
    %1967 = vmatprep.subr.bf16.mxu0 %v1936
    %1968 = vmatpush1.bf16.msra.mxu0 %v1935
    %1969 = vmatprep.subr.bf16.mxu0 %v1938
    %1970 = vmatpush1.bf16.msra.mxu0 %v1937
    %1971 = vmatprep.subr.bf16.mxu0 %v1940
    %1972 = vmatpush1.bf16.msra.mxu0 %v1939
    %1973 = vmatprep.subr.bf16.mxu0 %v1942
    %1974 = vmatpush1.bf16.msra.mxu0 %v1941
    %1975 = vmatprep.subr.bf16.mxu0 0
    %1976 = vmatpush1.bf16.msra.mxu0 0
    %1977 = vmatprep.subr.bf16.mxu0 0
    %1978 = vmatpush1.bf16.msra.mxu0 0
    %1979 = vmatprep.subr.bf16.mxu0 0
    %1980 = vmatpush1.bf16.msra.mxu0 0
    %1981 = vmatprep.subr.bf16.mxu0 0
    %1982 = vmatpush1.bf16.msra.mxu0 0
    %1983 = vmatprep.subr.bf16.mxu0 0
    %1984 = vmatpush1.bf16.msra.mxu0 0
    %1985 = vmatprep.subr.bf16.mxu0 0
    %1986 = vmatpush1.bf16.msra.mxu0 0
    %1987 = vmatprep.subr.bf16.mxu0 0
    %1988 = vmatpush1.bf16.msra.mxu0 0
    %1989 = vmatprep.subr.bf16.mxu0 0
    %1990 = vmatpush1.bf16.msra.mxu0 0
    %1991 = vmatprep.mubr.bf16.mxu0 0
    %1992 = vmatmul.mubr.bf16.gmra.mrb[0].mxu0 %v1871
    %v1993 = vpop.f32.mrb[0].mxu0
    %v1994 = vadd.f32 0.0, %v1993
    %v1995 = vpop.f32.mrb[0].mxu0
    %v1996 = vadd.f32 0.0, %v1995
    %v1997 = vpop.f32.mrb[0].mxu0
    %v1998 = vadd.f32 0.0, %v1997
    %v1999 = vpop.f32.mrb[0].mxu0
    %v2000 = vadd.f32 0.0, %v1999
    %2001 = vmatprep.mubr.bf16.mxu0 0
    %2002 = vmatmul.mubr.bf16.gmra.mrb[0].mxu0 %v1872
    %v2003 = vpop.f32.mrb[0].mxu0
    %v2004 = vadd.f32 0.0, %v2003
    %v2005 = vpop.f32.mrb[0].mxu0
    %v2006 = vadd.f32 0.0, %v2005
    %v2007 = vpop.f32.mrb[0].mxu0
    %v2008 = vadd.f32 0.0, %v2007
    %v2009 = vpop.f32.mrb[0].mxu0
    %v2010 = vadd.f32 0.0, %v2009
    %2011 = vmatprep.mubr.bf16.mxu0 0
    %2012 = vmatmul.mubr.bf16.gmra.mrb[0].mxu0 %v1873
    %v2013 = vpop.f32.mrb[0].mxu0
    %v2014 = vadd.f32 0.0, %v2013
    %v2015 = vpop.f32.mrb[0].mxu0
    %v2016 = vadd.f32 0.0, %v2015
    %v2017 = vpop.f32.mrb[0].mxu0
    %v2018 = vadd.f32 0.0, %v2017
    %v2019 = vpop.f32.mrb[0].mxu0
    %v2020 = vadd.f32 0.0, %v2019
    %2021 = vmatprep.mubr.bf16.mxu0 0
    %2022 = vmatmul.mubr.bf16.gmra.mrb[0].mxu0 %v1874
    %v2023 = vpop.f32.mrb[0].mxu0
    %v2024 = vadd.f32 0.0, %v2023
    %v2025 = vpop.f32.mrb[0].mxu0
    %v2026 = vadd.f32 0.0, %v2025
    %v2027 = vpop.f32.mrb[0].mxu0
    %v2028 = vadd.f32 0.0, %v2027
    %v2029 = vpop.f32.mrb[0].mxu0
    %v2030 = vadd.f32 0.0, %v2029
    %2031 = vmatprep.mubr.bf16.mxu0 0
    %2032 = vmatmul.mubr.bf16.gmra.mrb[0].mxu0 %v1875
    %v2033 = vpop.f32.mrb[0].mxu0
    %v2034 = vadd.f32 0.0, %v2033
    %v2035 = vpop.f32.mrb[0].mxu0
    %v2036 = vadd.f32 0.0, %v2035
    %v2037 = vpop.f32.mrb[0].mxu0
    %v2038 = vadd.f32 0.0, %v2037
    %v2039 = vpop.f32.mrb[0].mxu0
    %v2040 = vadd.f32 0.0, %v2039
    %2041 = vmatprep.mubr.bf16.mxu0 0
    %2042 = vmatmul.mubr.bf16.gmra.mrb[0].mxu0 %v1876
    %v2043 = vpop.f32.mrb[0].mxu0
    %v2044 = vadd.f32 0.0, %v2043
    %v2045 = vpop.f32.mrb[0].mxu0
    %v2046 = vadd.f32 0.0, %v2045
    %v2047 = vpop.f32.mrb[0].mxu0
    %v2048 = vadd.f32 0.0, %v2047
    %v2049 = vpop.f32.mrb[0].mxu0
    %v2050 = vadd.f32 0.0, %v2049
    %2051 = vmatprep.mubr.bf16.mxu0 0
    %2052 = vmatmul.mubr.bf16.gmra.mrb[0].mxu0 %v1877
    %v2053 = vpop.f32.mrb[0].mxu0
    %v2054 = vadd.f32 0.0, %v2053
    %v2055 = vpop.f32.mrb[0].mxu0
    %v2056 = vadd.f32 0.0, %v2055
    %v2057 = vpop.f32.mrb[0].mxu0
    %v2058 = vadd.f32 0.0, %v2057
    %v2059 = vpop.f32.mrb[0].mxu0
    %v2060 = vadd.f32 0.0, %v2059
    %2061 = vmatprep.mubr.bf16.mxu0 0
    %2062 = vmatmul.mubr.bf16.gmra.mrb[0].mxu0 %v1878
    %v2063 = vpop.f32.mrb[0].mxu0
    %v2064 = vadd.f32 0.0, %v2063
    %v2065 = vpop.f32.mrb[0].mxu0
    %v2066 = vadd.f32 0.0, %v2065
    %v2067 = vpop.f32.mrb[0].mxu0
    %v2068 = vadd.f32 0.0, %v2067
    %v2069 = vpop.f32.mrb[0].mxu0
    %v2070 = vadd.f32 0.0, %v2069
    %2071 = vdwg.mxu0
    %v2088 = vunpack.c.l.b16 %v228
    %v2089 = vunpack.c.h.b16 %v228
    %v2090 = vunpack.c.l.b16 %v229
    %v2091 = vunpack.c.h.b16 %v229
    %v2092 = vunpack.c.l.b16 %v230
    %v2093 = vunpack.c.h.b16 %v230
    %v2094 = vunpack.c.l.b16 %v231
    %v2095 = vunpack.c.h.b16 %v231
    %v2096 = vunpack.c.l.b16 %v232
    %v2097 = vunpack.c.h.b16 %v232
    %v2098 = vunpack.c.l.b16 %v233
    %v2099 = vunpack.c.h.b16 %v233
    %v2100 = vunpack.c.l.b16 %v234
    %v2101 = vunpack.c.h.b16 %v234
    %v2102 = vunpack.c.l.b16 %v235
    %v2103 = vunpack.c.h.b16 %v235
    %v2104 = vunpack.c.l.b16 %v236
    %v2105 = vunpack.c.h.b16 %v236
    %v2106 = vunpack.c.l.b16 %v237
    %v2107 = vunpack.c.h.b16 %v237
    %v2108 = vunpack.c.l.b16 %v238
    %v2109 = vunpack.c.h.b16 %v238
    %v2110 = vunpack.c.l.b16 %v239
    %v2111 = vunpack.c.h.b16 %v239
    %v2112 = vunpack.c.l.b16 %v240
    %v2113 = vunpack.c.h.b16 %v240
    %v2114 = vunpack.c.l.b16 %v241
    %v2115 = vunpack.c.h.b16 %v241
    %v2116 = vunpack.c.l.b16 %v242
    %v2117 = vunpack.c.h.b16 %v242
    %v2118 = vunpack.c.l.b16 %v243
    %v2119 = vunpack.c.h.b16 %v243
    %v2120 = vpack.c.b16 %v2090, %v2088
    %v2121 = vpack.c.b16 %v2091, %v2089
    %v2122 = vpack.c.b16 %v2094, %v2092
    %v2123 = vpack.c.b16 %v2095, %v2093
    %v2124 = vpack.c.b16 %v2098, %v2096
    %v2125 = vpack.c.b16 %v2099, %v2097
    %v2126 = vpack.c.b16 %v2102, %v2100
    %v2127 = vpack.c.b16 %v2103, %v2101
    %v2128 = vpack.c.b16 %v2106, %v2104
    %v2129 = vpack.c.b16 %v2107, %v2105
    %v2130 = vpack.c.b16 %v2110, %v2108
    %v2131 = vpack.c.b16 %v2111, %v2109
    %v2132 = vpack.c.b16 %v2114, %v2112
    %v2133 = vpack.c.b16 %v2115, %v2113
    %v2134 = vpack.c.b16 %v2118, %v2116
    %v2135 = vpack.c.b16 %v2119, %v2117
    %2152 = vmatprep.subr.bf16.mxu0 %v2121
    %2153 = vmatpush1.bf16.msra.mxu0 %v2120
    %2154 = vmatprep.subr.bf16.mxu0 %v2123
    %2155 = vmatpush1.bf16.msra.mxu0 %v2122
    %2156 = vmatprep.subr.bf16.mxu0 %v2125
    %2157 = vmatpush1.bf16.msra.mxu0 %v2124
    %2158 = vmatprep.subr.bf16.mxu0 %v2127
    %2159 = vmatpush1.bf16.msra.mxu0 %v2126
    %2160 = vmatprep.subr.bf16.mxu0 %v2129
    %2161 = vmatpush1.bf16.msra.mxu0 %v2128
    %2162 = vmatprep.subr.bf16.mxu0 %v2131
    %2163 = vmatpush1.bf16.msra.mxu0 %v2130
    %2164 = vmatprep.subr.bf16.mxu0 %v2133
    %2165 = vmatpush1.bf16.msra.mxu0 %v2132
    %2166 = vmatprep.subr.bf16.mxu0 %v2135
    %2167 = vmatpush1.bf16.msra.mxu0 %v2134
    %2168 = vmatprep.subr.bf16.mxu0 0
    %2169 = vmatpush1.bf16.msra.mxu0 0
    %2170 = vmatprep.subr.bf16.mxu0 0
    %2171 = vmatpush1.bf16.msra.mxu0 0
    %2172 = vmatprep.subr.bf16.mxu0 0
    %2173 = vmatpush1.bf16.msra.mxu0 0
    %2174 = vmatprep.subr.bf16.mxu0 0
    %2175 = vmatpush1.bf16.msra.mxu0 0
    %2176 = vmatprep.subr.bf16.mxu0 0
    %2177 = vmatpush1.bf16.msra.mxu0 0
    %2178 = vmatprep.subr.bf16.mxu0 0
    %2179 = vmatpush1.bf16.msra.mxu0 0
    %2180 = vmatprep.subr.bf16.mxu0 0
    %2181 = vmatpush1.bf16.msra.mxu0 0
    %2182 = vmatprep.subr.bf16.mxu0 0
    %2183 = vmatpush1.bf16.msra.mxu0 0
    %2184 = vmatprep.mubr.bf16.mxu0 0
    %2185 = vmatmul.mubr.bf16.gmra.mrb[0].mxu0 %v293
    %v2186 = vpop.f32.mrb[0].mxu0
    %v2187 = vadd.f32 %v1994, %v2186
    %v2188 = vpop.f32.mrb[0].mxu0
    %v2189 = vadd.f32 %v1996, %v2188
    %v2190 = vpop.f32.mrb[0].mxu0
    %v2191 = vadd.f32 %v1998, %v2190
    %v2192 = vpop.f32.mrb[0].mxu0
    %v2193 = vadd.f32 %v2000, %v2192
    %2194 = vmatprep.mubr.bf16.mxu0 0
    %2195 = vmatmul.mubr.bf16.gmra.mrb[0].mxu0 %v294
    %v2196 = vpop.f32.mrb[0].mxu0
    %v2197 = vadd.f32 %v2004, %v2196
    %v2198 = vpop.f32.mrb[0].mxu0
    %v2199 = vadd.f32 %v2006, %v2198
    %v2200 = vpop.f32.mrb[0].mxu0
    %v2201 = vadd.f32 %v2008, %v2200
    %v2202 = vpop.f32.mrb[0].mxu0
    %v2203 = vadd.f32 %v2010, %v2202
    %2204 = vmatprep.mubr.bf16.mxu0 0
    %2205 = vmatmul.mubr.bf16.gmra.mrb[0].mxu0 %v295
    %v2206 = vpop.f32.mrb[0].mxu0
    %v2207 = vadd.f32 %v2014, %v2206
    %v2208 = vpop.f32.mrb[0].mxu0
    %v2209 = vadd.f32 %v2016, %v2208
    %v2210 = vpop.f32.mrb[0].mxu0
    %v2211 = vadd.f32 %v2018, %v2210
    %v2212 = vpop.f32.mrb[0].mxu0
    %v2213 = vadd.f32 %v2020, %v2212
    %2214 = vmatprep.mubr.bf16.mxu0 0
    %2215 = vmatmul.mubr.bf16.gmra.mrb[0].mxu0 %v296
    %v2216 = vpop.f32.mrb[0].mxu0
    %v2217 = vadd.f32 %v2024, %v2216
    %v2218 = vpop.f32.mrb[0].mxu0
    %v2219 = vadd.f32 %v2026, %v2218
    %v2220 = vpop.f32.mrb[0].mxu0
    %v2221 = vadd.f32 %v2028, %v2220
    %v2222 = vpop.f32.mrb[0].mxu0
    %v2223 = vadd.f32 %v2030, %v2222
    %2224 = vmatprep.mubr.bf16.mxu0 0
    %2225 = vmatmul.mubr.bf16.gmra.mrb[0].mxu0 %v297
    %v2226 = vpop.f32.mrb[0].mxu0
    %v2227 = vadd.f32 %v2034, %v2226
    %v2228 = vpop.f32.mrb[0].mxu0
    %v2229 = vadd.f32 %v2036, %v2228
    %v2230 = vpop.f32.mrb[0].mxu0
    %v2231 = vadd.f32 %v2038, %v2230
    %v2232 = vpop.f32.mrb[0].mxu0
    %v2233 = vadd.f32 %v2040, %v2232
    %2234 = vmatprep.mubr.bf16.mxu0 0
    %2235 = vmatmul.mubr.bf16.gmra.mrb[0].mxu0 %v298
    %v2236 = vpop.f32.mrb[0].mxu0
    %v2237 = vadd.f32 %v2044, %v2236
    %v2238 = vpop.f32.mrb[0].mxu0
    %v2239 = vadd.f32 %v2046, %v2238
    %v2240 = vpop.f32.mrb[0].mxu0
    %v2241 = vadd.f32 %v2048, %v2240
    %v2242 = vpop.f32.mrb[0].mxu0
    %v2243 = vadd.f32 %v2050, %v2242
    %2244 = vmatprep.mubr.bf16.mxu0 0
    %2245 = vmatmul.mubr.bf16.gmra.mrb[0].mxu0 %v299
    %v2246 = vpop.f32.mrb[0].mxu0
    %v2247 = vadd.f32 %v2054, %v2246
    %v2248 = vpop.f32.mrb[0].mxu0
    %v2249 = vadd.f32 %v2056, %v2248
    %v2250 = vpop.f32.mrb[0].mxu0
    %v2251 = vadd.f32 %v2058, %v2250
    %v2252 = vpop.f32.mrb[0].mxu0
    %v2253 = vadd.f32 %v2060, %v2252
    %2254 = vmatprep.mubr.bf16.mxu0 0
    %2255 = vmatmul.mubr.bf16.gmra.mrb[0].mxu0 %v300
    %v2256 = vpop.f32.mrb[0].mxu0
    %v2257 = vadd.f32 %v2064, %v2256
    %v2258 = vpop.f32.mrb[0].mxu0
    %v2259 = vadd.f32 %v2066, %v2258
    %v2260 = vpop.f32.mrb[0].mxu0
    %v2261 = vadd.f32 %v2068, %v2260
    %v2262 = vpop.f32.mrb[0].mxu0
    %v2263 = vadd.f32 %v2070, %v2262
    %2264 = vdwg.mxu0
    %v2265 = vmax.f32 %v2187, 0.0
    %v2266 = vmax.f32 %v2189, 0.0
    %v2267 = vmax.f32 %v2191, 0.0
    %v2268 = vmax.f32 %v2193, 0.0
    %v2269 = vmax.f32 %v2197, 0.0
    %v2270 = vmax.f32 %v2199, 0.0
    %v2271 = vmax.f32 %v2201, 0.0
    %v2272 = vmax.f32 %v2203, 0.0
    %v2273 = vmax.f32 %v2207, 0.0
    %v2274 = vmax.f32 %v2209, 0.0
    %v2275 = vmax.f32 %v2211, 0.0
    %v2276 = vmax.f32 %v2213, 0.0
    %v2277 = vmax.f32 %v2217, 0.0
    %v2278 = vmax.f32 %v2219, 0.0
    %v2279 = vmax.f32 %v2221, 0.0
    %v2280 = vmax.f32 %v2223, 0.0
    %v2281 = vmax.f32 %v2227, 0.0
    %v2282 = vmax.f32 %v2229, 0.0
    %v2283 = vmax.f32 %v2231, 0.0
    %v2284 = vmax.f32 %v2233, 0.0
    %v2285 = vmax.f32 %v2237, 0.0
    %v2286 = vmax.f32 %v2239, 0.0
    %v2287 = vmax.f32 %v2241, 0.0
    %v2288 = vmax.f32 %v2243, 0.0
    %v2289 = vmax.f32 %v2247, 0.0
    %v2290 = vmax.f32 %v2249, 0.0
    %v2291 = vmax.f32 %v2251, 0.0
    %v2292 = vmax.f32 %v2253, 0.0
    %v2293 = vmax.f32 %v2257, 0.0
    %v2294 = vmax.f32 %v2259, 0.0
    %v2295 = vmax.f32 %v2261, 0.0
    %v2296 = vmax.f32 %v2263, 0.0
    %v2297 = vpack.c.bf16 %v2267, %v2265
    %v2298 = vpack.c.bf16 %v2268, %v2266
    %v2299 = vpack.c.bf16 %v2271, %v2269
    %v2300 = vpack.c.bf16 %v2272, %v2270
    %v2301 = vpack.c.bf16 %v2275, %v2273
    %v2302 = vpack.c.bf16 %v2276, %v2274
    %v2303 = vpack.c.bf16 %v2279, %v2277
    %v2304 = vpack.c.bf16 %v2280, %v2278
    %v2305 = vpack.c.bf16 %v2283, %v2281
    %v2306 = vpack.c.bf16 %v2284, %v2282
    %v2307 = vpack.c.bf16 %v2287, %v2285
    %v2308 = vpack.c.bf16 %v2288, %v2286
    %v2309 = vpack.c.bf16 %v2291, %v2289
    %v2310 = vpack.c.bf16 %v2292, %v2290
    %v2311 = vpack.c.bf16 %v2295, %v2293
    %v2312 = vpack.c.bf16 %v2296, %v2294
    %v2345 = vunpack.c.l.b16 %v260
    %v2346 = vunpack.c.l.b16 %v261
    %v2347 = vunpack.c.l.b16 %v262
    %v2348 = vunpack.c.l.b16 %v263
    %v2349 = vunpack.c.l.b16 %v264
    %v2350 = vunpack.c.l.b16 %v265
    %v2351 = vunpack.c.l.b16 %v266
    %v2352 = vunpack.c.l.b16 %v267
    %v2353 = vunpack.c.l.b16 %v268
    %v2354 = vunpack.c.l.b16 %v269
    %v2355 = vunpack.c.l.b16 %v270
    %v2356 = vunpack.c.l.b16 %v271
    %v2357 = vunpack.c.l.b16 %v272
    %v2358 = vunpack.c.l.b16 %v273
    %v2359 = vunpack.c.l.b16 %v274
    %v2360 = vunpack.c.l.b16 %v275
    %v2361 = vunpack.c.l.b16 %v276
    %v2362 = vunpack.c.l.b16 %v277
    %v2363 = vunpack.c.l.b16 %v278
    %v2364 = vunpack.c.l.b16 %v279
    %v2365 = vunpack.c.l.b16 %v280
    %v2366 = vunpack.c.l.b16 %v281
    %v2367 = vunpack.c.l.b16 %v282
    %v2368 = vunpack.c.l.b16 %v283
    %v2369 = vunpack.c.l.b16 %v284
    %v2370 = vunpack.c.l.b16 %v285
    %v2371 = vunpack.c.l.b16 %v286
    %v2372 = vunpack.c.l.b16 %v287
    %v2373 = vunpack.c.l.b16 %v288
    %v2374 = vunpack.c.l.b16 %v289
    %v2375 = vunpack.c.l.b16 %v290
    %v2376 = vunpack.c.l.b16 %v291
    %v2377 = vpack.c.b16 %v2346, %v2345
    %v2378 = vpack.c.b16 %v2348, %v2347
    %v2379 = vpack.c.b16 %v2350, %v2349
    %v2380 = vpack.c.b16 %v2352, %v2351
    %v2381 = vpack.c.b16 %v2354, %v2353
    %v2382 = vpack.c.b16 %v2356, %v2355
    %v2383 = vpack.c.b16 %v2358, %v2357
    %v2384 = vpack.c.b16 %v2360, %v2359
    %v2385 = vpack.c.b16 %v2362, %v2361
    %v2386 = vpack.c.b16 %v2364, %v2363
    %v2387 = vpack.c.b16 %v2366, %v2365
    %v2388 = vpack.c.b16 %v2368, %v2367
    %v2389 = vpack.c.b16 %v2370, %v2369
    %v2390 = vpack.c.b16 %v2372, %v2371
    %v2391 = vpack.c.b16 %v2374, %v2373
    %v2392 = vpack.c.b16 %v2376, %v2375
    %2409 = vmatprep.subr.bf16.mxu0 0
    %2410 = vmatpush1.bf16.msra.mxu0 %v2377
    %2411 = vmatprep.subr.bf16.mxu0 0
    %2412 = vmatpush1.bf16.msra.mxu0 %v2378
    %2413 = vmatprep.subr.bf16.mxu0 0
    %2414 = vmatpush1.bf16.msra.mxu0 %v2379
    %2415 = vmatprep.subr.bf16.mxu0 0
    %2416 = vmatpush1.bf16.msra.mxu0 %v2380
    %2417 = vmatprep.subr.bf16.mxu0 0
    %2418 = vmatpush1.bf16.msra.mxu0 %v2381
    %2419 = vmatprep.subr.bf16.mxu0 0
    %2420 = vmatpush1.bf16.msra.mxu0 %v2382
    %2421 = vmatprep.subr.bf16.mxu0 0
    %2422 = vmatpush1.bf16.msra.mxu0 %v2383
    %2423 = vmatprep.subr.bf16.mxu0 0
    %2424 = vmatpush1.bf16.msra.mxu0 %v2384
    %2425 = vmatprep.subr.bf16.mxu0 0
    %2426 = vmatpush1.bf16.msra.mxu0 %v2385
    %2427 = vmatprep.subr.bf16.mxu0 0
    %2428 = vmatpush1.bf16.msra.mxu0 %v2386
    %2429 = vmatprep.subr.bf16.mxu0 0
    %2430 = vmatpush1.bf16.msra.mxu0 %v2387
    %2431 = vmatprep.subr.bf16.mxu0 0
    %2432 = vmatpush1.bf16.msra.mxu0 %v2388
    %2433 = vmatprep.subr.bf16.mxu0 0
    %2434 = vmatpush1.bf16.msra.mxu0 %v2389
    %2435 = vmatprep.subr.bf16.mxu0 0
    %2436 = vmatpush1.bf16.msra.mxu0 %v2390
    %2437 = vmatprep.subr.bf16.mxu0 0
    %2438 = vmatpush1.bf16.msra.mxu0 %v2391
    %2439 = vmatprep.subr.bf16.mxu0 0
    %2440 = vmatpush1.bf16.msra.mxu0 %v2392
    %2441 = vmatprep.mubr.bf16.mxu0 %v2298
    %2442 = vmatmul.mubr.bf16.gmra.mrb[0].mxu0 %v2297
    %v2443 = vpop.f32.mrb[0].mxu0
    %v2444 = vadd.f32 0.0, %v2443
    %v2445 = vpop.f32.mrb[0].mxu0
    %v2446 = vpop.f32.mrb[0].mxu0
    %v2447 = vadd.f32 0.0, %v2446
    %v2448 = vpop.f32.mrb[0].mxu0
    %2449 = vmatprep.mubr.bf16.mxu0 %v2300
    %2450 = vmatmul.mubr.bf16.gmra.mrb[0].mxu0 %v2299
    %v2451 = vpop.f32.mrb[0].mxu0
    %v2452 = vadd.f32 0.0, %v2451
    %v2453 = vpop.f32.mrb[0].mxu0
    %v2454 = vpop.f32.mrb[0].mxu0
    %v2455 = vadd.f32 0.0, %v2454
    %v2456 = vpop.f32.mrb[0].mxu0
    %2457 = vmatprep.mubr.bf16.mxu0 %v2302
    %2458 = vmatmul.mubr.bf16.gmra.mrb[0].mxu0 %v2301
    %v2459 = vpop.f32.mrb[0].mxu0
    %v2460 = vadd.f32 0.0, %v2459
    %v2461 = vpop.f32.mrb[0].mxu0
    %v2462 = vpop.f32.mrb[0].mxu0
    %v2463 = vadd.f32 0.0, %v2462
    %v2464 = vpop.f32.mrb[0].mxu0
    %2465 = vmatprep.mubr.bf16.mxu0 %v2304
    %2466 = vmatmul.mubr.bf16.gmra.mrb[0].mxu0 %v2303
    %v2467 = vpop.f32.mrb[0].mxu0
    %v2468 = vadd.f32 0.0, %v2467
    %v2469 = vpop.f32.mrb[0].mxu0
    %v2470 = vpop.f32.mrb[0].mxu0
    %v2471 = vadd.f32 0.0, %v2470
    %v2472 = vpop.f32.mrb[0].mxu0
    %2473 = vmatprep.mubr.bf16.mxu0 %v2306
    %2474 = vmatmul.mubr.bf16.gmra.mrb[0].mxu0 %v2305
    %v2475 = vpop.f32.mrb[0].mxu0
    %v2476 = vadd.f32 0.0, %v2475
    %v2477 = vpop.f32.mrb[0].mxu0
    %v2478 = vpop.f32.mrb[0].mxu0
    %v2479 = vadd.f32 0.0, %v2478
    %v2480 = vpop.f32.mrb[0].mxu0
    %2481 = vmatprep.mubr.bf16.mxu0 %v2308
    %2482 = vmatmul.mubr.bf16.gmra.mrb[0].mxu0 %v2307
    %v2483 = vpop.f32.mrb[0].mxu0
    %v2484 = vadd.f32 0.0, %v2483
    %v2485 = vpop.f32.mrb[0].mxu0
    %v2486 = vpop.f32.mrb[0].mxu0
    %v2487 = vadd.f32 0.0, %v2486
    %v2488 = vpop.f32.mrb[0].mxu0
    %2489 = vmatprep.mubr.bf16.mxu0 %v2310
    %2490 = vmatmul.mubr.bf16.gmra.mrb[0].mxu0 %v2309
    %v2491 = vpop.f32.mrb[0].mxu0
    %v2492 = vadd.f32 0.0, %v2491
    %v2493 = vpop.f32.mrb[0].mxu0
    %v2494 = vpop.f32.mrb[0].mxu0
    %v2495 = vadd.f32 0.0, %v2494
    %v2496 = vpop.f32.mrb[0].mxu0
    %2497 = vmatprep.mubr.bf16.mxu0 %v2312
    %2498 = vmatmul.mubr.bf16.gmra.mrb[0].mxu0 %v2311
    %v2499 = vpop.f32.mrb[0].mxu0
    %v2500 = vadd.f32 0.0, %v2499
    %v2501 = vpop.f32.mrb[0].mxu0
    %v2502 = vpop.f32.mrb[0].mxu0
    %v2503 = vadd.f32 0.0, %v2502
    %v2504 = vpop.f32.mrb[0].mxu0
    %2505 = vdwg.mxu0
    %2506 = vadd.xlane.f32.xlu0 %v2444
    %v2507 = vpop.xlane.xlu0 %2506
    %2508 = vadd.xlane.f32.xlu0 %v2447
    %v2509 = vpop.xlane.xlu0 %2508
    %2510 = vadd.xlane.f32.xlu0 %v2452
    %v2511 = vpop.xlane.xlu0 %2510
    %2512 = vadd.xlane.f32.xlu0 %v2455
    %v2513 = vpop.xlane.xlu0 %2512
    %2514 = vadd.xlane.f32.xlu0 %v2460
    %v2515 = vpop.xlane.xlu0 %2514
    %2516 = vadd.xlane.f32.xlu0 %v2463
    %v2517 = vpop.xlane.xlu0 %2516
    %2518 = vadd.xlane.f32.xlu0 %v2468
    %v2519 = vpop.xlane.xlu0 %2518
    %2520 = vadd.xlane.f32.xlu0 %v2471
    %v2521 = vpop.xlane.xlu0 %2520
    %2522 = vadd.xlane.f32.xlu0 %v2476
    %v2523 = vpop.xlane.xlu0 %2522
    %2524 = vadd.xlane.f32.xlu0 %v2479
    %v2525 = vpop.xlane.xlu0 %2524
    %2526 = vadd.xlane.f32.xlu0 %v2484
    %v2527 = vpop.xlane.xlu0 %2526
    %2528 = vadd.xlane.f32.xlu0 %v2487
    %v2529 = vpop.xlane.xlu0 %2528
    %2530 = vadd.xlane.f32.xlu0 %v2492
    %v2531 = vpop.xlane.xlu0 %2530
    %2532 = vadd.xlane.f32.xlu0 %v2495
    %v2533 = vpop.xlane.xlu0 %2532
    %2534 = vadd.xlane.f32.xlu0 %v2500
    %v2535 = vpop.xlane.xlu0 %2534
    %2536 = vadd.xlane.f32.xlu0 %v2503
    %v2537 = vpop.xlane.xlu0 %2536
    %v2538 = vmul.f32 %v2507, %v1638
    %v2539 = vmul.f32 %v2509, %v1638
    %v2540 = vmul.f32 %v2511, %v1638
    %v2541 = vmul.f32 %v2513, %v1638
    %v2542 = vmul.f32 %v2515, %v1638
    %v2543 = vmul.f32 %v2517, %v1638
    %v2544 = vmul.f32 %v2519, %v1638
    %v2545 = vmul.f32 %v2521, %v1638
    %v2546 = vmul.f32 %v2523, %v1638
    %v2547 = vmul.f32 %v2525, %v1638
    %v2548 = vmul.f32 %v2527, %v1638
    %v2549 = vmul.f32 %v2529, %v1638
    %v2550 = vmul.f32 %v2531, %v1638
    %v2551 = vmul.f32 %v2533, %v1638
    %v2552 = vmul.f32 %v2535, %v1638
    %v2553 = vmul.f32 %v2537, %v1638
    %v2554 = vmul.f32 %v2444, %v2444
    %v2555 = vmul.f32 %v2447, %v2447
    %v2556 = vmul.f32 %v2452, %v2452
    %v2557 = vmul.f32 %v2455, %v2455
    %v2558 = vmul.f32 %v2460, %v2460
    %v2559 = vmul.f32 %v2463, %v2463
    %v2560 = vmul.f32 %v2468, %v2468
    %v2561 = vmul.f32 %v2471, %v2471
    %v2562 = vmul.f32 %v2476, %v2476
    %v2563 = vmul.f32 %v2479, %v2479
    %v2564 = vmul.f32 %v2484, %v2484
    %v2565 = vmul.f32 %v2487, %v2487
    %v2566 = vmul.f32 %v2492, %v2492
    %v2567 = vmul.f32 %v2495, %v2495
    %v2568 = vmul.f32 %v2500, %v2500
    %v2569 = vmul.f32 %v2503, %v2503
    %2570 = vadd.xlane.f32.xlu0 %v2554
    %v2571 = vpop.xlane.xlu0 %2570
    %2572 = vadd.xlane.f32.xlu0 %v2555
    %v2573 = vpop.xlane.xlu0 %2572
    %2574 = vadd.xlane.f32.xlu0 %v2556
    %v2575 = vpop.xlane.xlu0 %2574
    %2576 = vadd.xlane.f32.xlu0 %v2557
    %v2577 = vpop.xlane.xlu0 %2576
    %2578 = vadd.xlane.f32.xlu0 %v2558
    %v2579 = vpop.xlane.xlu0 %2578
    %2580 = vadd.xlane.f32.xlu0 %v2559
    %v2581 = vpop.xlane.xlu0 %2580
    %2582 = vadd.xlane.f32.xlu0 %v2560
    %v2583 = vpop.xlane.xlu0 %2582
    %2584 = vadd.xlane.f32.xlu0 %v2561
    %v2585 = vpop.xlane.xlu0 %2584
    %2586 = vadd.xlane.f32.xlu0 %v2562
    %v2587 = vpop.xlane.xlu0 %2586
    %2588 = vadd.xlane.f32.xlu0 %v2563
    %v2589 = vpop.xlane.xlu0 %2588
    %2590 = vadd.xlane.f32.xlu0 %v2564
    %v2591 = vpop.xlane.xlu0 %2590
    %2592 = vadd.xlane.f32.xlu0 %v2565
    %v2593 = vpop.xlane.xlu0 %2592
    %2594 = vadd.xlane.f32.xlu0 %v2566
    %v2595 = vpop.xlane.xlu0 %2594
    %2596 = vadd.xlane.f32.xlu0 %v2567
    %v2597 = vpop.xlane.xlu0 %2596
    %2598 = vadd.xlane.f32.xlu0 %v2568
    %v2599 = vpop.xlane.xlu0 %2598
    %2600 = vadd.xlane.f32.xlu0 %v2569
    %v2601 = vpop.xlane.xlu0 %2600
    %v2602 = vmul.f32 %v2571, %v1638
    %v2603 = vmul.f32 %v2573, %v1638
    %v2604 = vmul.f32 %v2575, %v1638
    %v2605 = vmul.f32 %v2577, %v1638
    %v2606 = vmul.f32 %v2579, %v1638
    %v2607 = vmul.f32 %v2581, %v1638
    %v2608 = vmul.f32 %v2583, %v1638
    %v2609 = vmul.f32 %v2585, %v1638
    %v2610 = vmul.f32 %v2587, %v1638
    %v2611 = vmul.f32 %v2589, %v1638
    %v2612 = vmul.f32 %v2591, %v1638
    %v2613 = vmul.f32 %v2593, %v1638
    %v2614 = vmul.f32 %v2595, %v1638
    %v2615 = vmul.f32 %v2597, %v1638
    %v2616 = vmul.f32 %v2599, %v1638
    %v2617 = vmul.f32 %v2601, %v1638
    %v2618 = vmul.f32 %v2538, %v2538
    %v2619 = vmul.f32 %v2539, %v2539
    %v2620 = vmul.f32 %v2540, %v2540
    %v2621 = vmul.f32 %v2541, %v2541
    %v2622 = vmul.f32 %v2542, %v2542
    %v2623 = vmul.f32 %v2543, %v2543
    %v2624 = vmul.f32 %v2544, %v2544
    %v2625 = vmul.f32 %v2545, %v2545
    %v2626 = vmul.f32 %v2546, %v2546
    %v2627 = vmul.f32 %v2547, %v2547
    %v2628 = vmul.f32 %v2548, %v2548
    %v2629 = vmul.f32 %v2549, %v2549
    %v2630 = vmul.f32 %v2550, %v2550
    %v2631 = vmul.f32 %v2551, %v2551
    %v2632 = vmul.f32 %v2552, %v2552
    %v2633 = vmul.f32 %v2553, %v2553
    %v2634 = vsub.f32 %v2602, %v2618
    %v2635 = vsub.f32 %v2603, %v2619
    %v2636 = vsub.f32 %v2604, %v2620
    %v2637 = vsub.f32 %v2605, %v2621
    %v2638 = vsub.f32 %v2606, %v2622
    %v2639 = vsub.f32 %v2607, %v2623
    %v2640 = vsub.f32 %v2608, %v2624
    %v2641 = vsub.f32 %v2609, %v2625
    %v2642 = vsub.f32 %v2610, %v2626
    %v2643 = vsub.f32 %v2611, %v2627
    %v2644 = vsub.f32 %v2612, %v2628
    %v2645 = vsub.f32 %v2613, %v2629
    %v2646 = vsub.f32 %v2614, %v2630
    %v2647 = vsub.f32 %v2615, %v2631
    %v2648 = vsub.f32 %v2616, %v2632
    %v2649 = vsub.f32 %v2617, %v2633
    %v2650 = vmax.f32 %v2634, 0.0
    %v2651 = vmax.f32 %v2635, 0.0
    %v2652 = vmax.f32 %v2636, 0.0
    %v2653 = vmax.f32 %v2637, 0.0
    %v2654 = vmax.f32 %v2638, 0.0
    %v2655 = vmax.f32 %v2639, 0.0
    %v2656 = vmax.f32 %v2640, 0.0
    %v2657 = vmax.f32 %v2641, 0.0
    %v2658 = vmax.f32 %v2642, 0.0
    %v2659 = vmax.f32 %v2643, 0.0
    %v2660 = vmax.f32 %v2644, 0.0
    %v2661 = vmax.f32 %v2645, 0.0
    %v2662 = vmax.f32 %v2646, 0.0
    %v2663 = vmax.f32 %v2647, 0.0
    %v2664 = vmax.f32 %v2648, 0.0
    %v2665 = vmax.f32 %v2649, 0.0
    %v2666 = vsub.f32 %v2444, %v2538
    %v2667 = vsub.f32 %v2447, %v2539
    %v2668 = vsub.f32 %v2452, %v2540
    %v2669 = vsub.f32 %v2455, %v2541
    %v2670 = vsub.f32 %v2460, %v2542
    %v2671 = vsub.f32 %v2463, %v2543
    %v2672 = vsub.f32 %v2468, %v2544
    %v2673 = vsub.f32 %v2471, %v2545
    %v2674 = vsub.f32 %v2476, %v2546
    %v2675 = vsub.f32 %v2479, %v2547
    %v2676 = vsub.f32 %v2484, %v2548
    %v2677 = vsub.f32 %v2487, %v2549
    %v2678 = vsub.f32 %v2492, %v2550
    %v2679 = vsub.f32 %v2495, %v2551
    %v2680 = vsub.f32 %v2500, %v2552
    %v2681 = vsub.f32 %v2503, %v2553
    %v2682 = vadd.f32 %v2650, 1e-05
    %v2683 = vadd.f32 %v2651, 1e-05
    %v2684 = vadd.f32 %v2652, 1e-05
    %v2685 = vadd.f32 %v2653, 1e-05
    %v2686 = vadd.f32 %v2654, 1e-05
    %v2687 = vadd.f32 %v2655, 1e-05
    %v2688 = vadd.f32 %v2656, 1e-05
    %v2689 = vadd.f32 %v2657, 1e-05
    %v2690 = vadd.f32 %v2658, 1e-05
    %v2691 = vadd.f32 %v2659, 1e-05
    %v2692 = vadd.f32 %v2660, 1e-05
    %v2693 = vadd.f32 %v2661, 1e-05
    %v2694 = vadd.f32 %v2662, 1e-05
    %v2695 = vadd.f32 %v2663, 1e-05
    %v2696 = vadd.f32 %v2664, 1e-05
    %v2697 = vadd.f32 %v2665, 1e-05
    %v2698 = vrsqrt.pop %v2682
    %v2699 = vrsqrt.pop %v2683
    %v2700 = vrsqrt.pop %v2684
    %v2701 = vrsqrt.pop %v2685
    %v2702 = vrsqrt.pop %v2686
    %v2703 = vrsqrt.pop %v2687
    %v2704 = vrsqrt.pop %v2688
    %v2705 = vrsqrt.pop %v2689
    %v2706 = vrsqrt.pop %v2690
    %v2707 = vrsqrt.pop %v2691
    %v2708 = vrsqrt.pop %v2692
    %v2709 = vrsqrt.pop %v2693
    %v2710 = vrsqrt.pop %v2694
    %v2711 = vrsqrt.pop %v2695
    %v2712 = vrsqrt.pop %v2696
    %v2713 = vrsqrt.pop %v2697
    %v2714 = vmul.f32 %v2666, %v2698
    %v2715 = vmul.f32 %v2667, %v2699
    %v2716 = vmul.f32 %v2668, %v2700
    %v2717 = vmul.f32 %v2669, %v2701
    %v2718 = vmul.f32 %v2670, %v2702
    %v2719 = vmul.f32 %v2671, %v2703
    %v2720 = vmul.f32 %v2672, %v2704
    %v2721 = vmul.f32 %v2673, %v2705
    %v2722 = vmul.f32 %v2674, %v2706
    %v2723 = vmul.f32 %v2675, %v2707
    %v2724 = vmul.f32 %v2676, %v2708
    %v2725 = vmul.f32 %v2677, %v2709
    %v2726 = vmul.f32 %v2678, %v2710
    %v2727 = vmul.f32 %v2679, %v2711
    %v2728 = vmul.f32 %v2680, %v2712
    %v2729 = vmul.f32 %v2681, %v2713
    %v2730 = vlaneseq
    %v2731 = vshrl.u32 %v2730, 7
    %v2732 = vsub.s32 2, %v2731
    %v2733 = vrot.slane %v292, %v2732
    %v2734 = vmul.f32 %v2714, %v2733
    %v2735 = vmul.f32 %v2715, %v2733
    %v2736 = vmul.f32 %v2716, %v2733
    %v2737 = vmul.f32 %v2717, %v2733
    %v2738 = vmul.f32 %v2718, %v2733
    %v2739 = vmul.f32 %v2719, %v2733
    %v2740 = vmul.f32 %v2720, %v2733
    %v2741 = vmul.f32 %v2721, %v2733
    %v2742 = vmul.f32 %v2722, %v2733
    %v2743 = vmul.f32 %v2723, %v2733
    %v2744 = vmul.f32 %v2724, %v2733
    %v2745 = vmul.f32 %v2725, %v2733
    %v2746 = vmul.f32 %v2726, %v2733
    %v2747 = vmul.f32 %v2727, %v2733
    %v2748 = vmul.f32 %v2728, %v2733
    %v2749 = vmul.f32 %v2729, %v2733
    %v2750 = vlaneseq
    %v2751 = vshrl.u32 %v2750, 7
    %v2752 = vsub.s32 3, %v2751
    %v2753 = vrot.slane %v292, %v2752
    %v2754 = vadd.f32 %v2734, %v2753
    %v2755 = vadd.f32 %v2735, %v2753
    %v2756 = vadd.f32 %v2736, %v2753
    %v2757 = vadd.f32 %v2737, %v2753
    %v2758 = vadd.f32 %v2738, %v2753
    %v2759 = vadd.f32 %v2739, %v2753
    %v2760 = vadd.f32 %v2740, %v2753
    %v2761 = vadd.f32 %v2741, %v2753
    %v2762 = vadd.f32 %v2742, %v2753
    %v2763 = vadd.f32 %v2743, %v2753
    %v2764 = vadd.f32 %v2744, %v2753
    %v2765 = vadd.f32 %v2745, %v2753
    %v2766 = vadd.f32 %v2746, %v2753
    %v2767 = vadd.f32 %v2747, %v2753
    %v2768 = vadd.f32 %v2748, %v2753
    %v2769 = vadd.f32 %v2749, %v2753
    %v2770 = vadd.f32 %v116, %v2754
    %v2771 = vadd.f32 %v117, %v2755
    %v2772 = vadd.f32 %v118, %v2756
    %v2773 = vadd.f32 %v119, %v2757
    %v2774 = vadd.f32 %v120, %v2758
    %v2775 = vadd.f32 %v121, %v2759
    %v2776 = vadd.f32 %v122, %v2760
    %v2777 = vadd.f32 %v123, %v2761
    %v2778 = vadd.f32 %v124, %v2762
    %v2779 = vadd.f32 %v125, %v2763
    %v2780 = vadd.f32 %v126, %v2764
    %v2781 = vadd.f32 %v127, %v2765
    %v2782 = vadd.f32 %v128, %v2766
    %v2783 = vadd.f32 %v129, %v2767
    %v2784 = vadd.f32 %v130, %v2768
    %v2785 = vadd.f32 %v131, %v2769
    %v2786 = vld [vmem:[#allocation8] sm:$0xff]
    %v2787 = vld [vmem:[#allocation8 + $0x8] sm:$0xf]
    %v2788 = vld [vmem:[#allocation8 + $0xc] sm:$0xff]
    %v2789 = vld [vmem:[#allocation8 + $0x14] sm:$0xf]
    %v2790 = vld [vmem:[#allocation8 + $0x18] sm:$0xff]
    %v2791 = vld [vmem:[#allocation8 + $0x20] sm:$0xf]
    %v2792 = vld [vmem:[#allocation8 + $0x24] sm:$0xff]
    %v2793 = vld [vmem:[#allocation8 + $0x2c] sm:$0xf]
    %v2794 = vld [vmem:[#allocation8 + $0x30] sm:$0xff]
    %v2795 = vld [vmem:[#allocation8 + $0x38] sm:$0xf]
    %v2796 = vld [vmem:[#allocation8 + $0x3c] sm:$0xff]
    %v2797 = vld [vmem:[#allocation8 + $0x44] sm:$0xf]
    %v2798 = vld [vmem:[#allocation8 + $0x48] sm:$0xff]
    %v2799 = vld [vmem:[#allocation8 + $0x50] sm:$0xf]
    %v2800 = vld [vmem:[#allocation8 + $0x54] sm:$0xff]
    %v2801 = vld [vmem:[#allocation8 + $0x5c] sm:$0xf]
    %v2802 = vld [vmem:[#allocation8 + $0x60] sm:$0xff]
    %v2803 = vld [vmem:[#allocation8 + $0x68] sm:$0xf]
    %v2804 = vld [vmem:[#allocation8 + $0x6c] sm:$0xff]
    %v2805 = vld [vmem:[#allocation8 + $0x74] sm:$0xf]
    %v2806 = vld [vmem:[#allocation8 + $0x78] sm:$0xff]
    %v2807 = vld [vmem:[#allocation8 + $0x80] sm:$0xf]
    %v2808 = vld [vmem:[#allocation8 + $0x84] sm:$0xff]
    %v2809 = vld [vmem:[#allocation8 + $0x8c] sm:$0xf]
    %v2810 = vld [vmem:[#allocation8 + $0x90] sm:$0xff]
    %v2811 = vld [vmem:[#allocation8 + $0x98] sm:$0xf]
    %v2812 = vld [vmem:[#allocation8 + $0x9c] sm:$0xff]
    %v2813 = vld [vmem:[#allocation8 + $0xa4] sm:$0xf]
    %v2814 = vld [vmem:[#allocation8 + $0xa8] sm:$0xff]
    %v2815 = vld [vmem:[#allocation8 + $0xb0] sm:$0xf]
    %v2816 = vld [vmem:[#allocation8 + $0xb4] sm:$0xff]
    %v2817 = vld [vmem:[#allocation8 + $0xbc] sm:$0xf]
    %v2818 = vld [vmem:[#allocation10] sm:$0xf]
    %v2819 = vld [vmem:[#allocation10 + $0x4] sm:$0xf]
    %v2820 = vld [vmem:[#allocation10 + $0x8] sm:$0xf]
    %v2821 = vld [vmem:[#allocation10 + $0xc] sm:$0xf]
    %v2822 = vld [vmem:[#allocation10 + $0x10] sm:$0xf]
    %v2823 = vld [vmem:[#allocation10 + $0x14] sm:$0xf]
    %v2824 = vld [vmem:[#allocation10 + $0x18] sm:$0xf]
    %v2825 = vld [vmem:[#allocation10 + $0x1c] sm:$0xf]
    %v2826 = vld [vmem:[#allocation10 + $0x20] sm:$0xf]
    %v2827 = vld [vmem:[#allocation10 + $0x24] sm:$0xf]
    %v2828 = vld [vmem:[#allocation10 + $0x28] sm:$0xf]
    %v2829 = vld [vmem:[#allocation10 + $0x2c] sm:$0xf]
    %v2830 = vld [vmem:[#allocation10 + $0x30] sm:$0xf]
    %v2831 = vld [vmem:[#allocation10 + $0x34] sm:$0xf]
    %v2832 = vld [vmem:[#allocation10 + $0x38] sm:$0xf]
    %v2833 = vld [vmem:[#allocation10 + $0x3c] sm:$0xf]
    %v2834 = vld [vmem:[%s5] sm:$0xff]
    %v2835 = vld [vmem:[%s5 + $0x8] sm:$0xff]
    %v2836 = vld [vmem:[%s5 + $0x10] sm:$0xff]
    %v2837 = vld [vmem:[%s5 + $0x18] sm:$0xff]
    %v2838 = vld [vmem:[%s5 + $0x20] sm:$0xff]
    %v2839 = vld [vmem:[%s5 + $0x28] sm:$0xff]
    %v2840 = vld [vmem:[%s5 + $0x30] sm:$0xff]
    %v2841 = vld [vmem:[%s5 + $0x38] sm:$0xff]
    %v2842 = vld [vmem:[%s5 + $0x40] sm:$0xff]
    %v2843 = vld [vmem:[%s5 + $0x48] sm:$0xff]
    %v2844 = vld [vmem:[%s5 + $0x50] sm:$0xff]
    %v2845 = vld [vmem:[%s5 + $0x58] sm:$0xff]
    %v2846 = vld [vmem:[%s5 + $0x60] sm:$0xff]
    %v2847 = vld [vmem:[%s5 + $0x68] sm:$0xff]
    %v2848 = vld [vmem:[%s5 + $0x70] sm:$0xff]
    %v2849 = vld [vmem:[%s5 + $0x78] sm:$0xff]
    %v2850 = vld [vmem:[%s5 + $0x80] sm:$0xff]
    %v2851 = vld [vmem:[%s5 + $0x88] sm:$0xff]
    %v2852 = vld [vmem:[%s5 + $0x90] sm:$0xff]
    %v2853 = vld [vmem:[%s5 + $0x98] sm:$0xff]
    %v2854 = vld [vmem:[%s5 + $0xa0] sm:$0xff]
    %v2855 = vld [vmem:[%s5 + $0xa8] sm:$0xff]
    %v2856 = vld [vmem:[%s5 + $0xb0] sm:$0xff]
    %v2857 = vld [vmem:[%s5 + $0xb8] sm:$0xff]
    %v2858 = vld [vmem:[%s5 + $0xc0] sm:$0xff]
    %v2859 = vld [vmem:[%s5 + $0xc8] sm:$0xff]
    %v2860 = vld [vmem:[%s5 + $0xd0] sm:$0xff]
    %v2861 = vld [vmem:[%s5 + $0xd8] sm:$0xff]
    %v2862 = vld [vmem:[%s5 + $0xe0] sm:$0xff]
    %v2863 = vld [vmem:[%s5 + $0xe8] sm:$0xff]
    %v2864 = vld [vmem:[%s5 + $0xf0] sm:$0xff]
    %v2865 = vld [vmem:[%s5 + $0xf8] sm:$0xff]
    %v2866 = vld [vmem:[#allocation11] sm:$0xf]
    %v2867 = vld [vmem:[#allocation11 + $0x4] sm:$0xf]
    %v2868 = vld [vmem:[#allocation11 + $0x8] sm:$0xf]
    %v2869 = vld [vmem:[#allocation11 + $0xc] sm:$0xf]
    %v2870 = vld [vmem:[#allocation11 + $0x10] sm:$0xf]
    %v2871 = vld [vmem:[#allocation11 + $0x14] sm:$0xf]
    %v2872 = vld [vmem:[#allocation11 + $0x18] sm:$0xf]
    %v2873 = vld [vmem:[#allocation11 + $0x1c] sm:$0xf]
    %v2874 = vld [vmem:[#allocation11 + $0x20] sm:$0xf]
    %v2875 = vld [vmem:[#allocation11 + $0x24] sm:$0xf]
    %v2876 = vld [vmem:[#allocation11 + $0x28] sm:$0xf]
    %v2877 = vld [vmem:[#allocation11 + $0x2c] sm:$0xf]
    %v2878 = vld [vmem:[#allocation11 + $0x30] sm:$0xf]
    %v2879 = vld [vmem:[#allocation11 + $0x34] sm:$0xf]
    %v2880 = vld [vmem:[#allocation11 + $0x38] sm:$0xf]
    %v2881 = vld [vmem:[#allocation11 + $0x3c] sm:$0xf]
    %v2882 = vld [vmem:[#allocation11 + $0x40] sm:$0xf]
    %v2883 = vld [vmem:[#allocation11 + $0x44] sm:$0xf]
    %v2884 = vld [vmem:[#allocation11 + $0x48] sm:$0xf]
    %v2885 = vld [vmem:[#allocation11 + $0x4c] sm:$0xf]
    %v2886 = vld [vmem:[#allocation11 + $0x50] sm:$0xf]
    %v2887 = vld [vmem:[#allocation11 + $0x54] sm:$0xf]
    %v2888 = vld [vmem:[#allocation11 + $0x58] sm:$0xf]
    %v2889 = vld [vmem:[#allocation11 + $0x5c] sm:$0xf]
    %v2890 = vld [vmem:[#allocation11 + $0x60] sm:$0xf]
    %v2891 = vld [vmem:[#allocation11 + $0x64] sm:$0xf]
    %v2892 = vld [vmem:[#allocation11 + $0x68] sm:$0xf]
    %v2893 = vld [vmem:[#allocation11 + $0x6c] sm:$0xf]
    %v2894 = vld [vmem:[#allocation11 + $0x70] sm:$0xf]
    %v2895 = vld [vmem:[#allocation11 + $0x74] sm:$0xf]
    %v2896 = vld [vmem:[#allocation11 + $0x78] sm:$0xf]
    %v2897 = vld [vmem:[#allocation11 + $0x7c] sm:$0xf]
    %v2898 = vld [vmem:[%s7] sm:$0xf]
    %v2899 = vpack.c.bf16 %v133, %v132
    %v2900 = vpack.c.bf16 %v135, %v134
    %v2901 = vpack.c.bf16 %v137, %v136
    %v2902 = vpack.c.bf16 %v139, %v138
    %v2903 = vpack.c.bf16 %v141, %v140
    %v2904 = vpack.c.bf16 %v143, %v142
    %v2905 = vpack.c.bf16 %v145, %v144
    %v2906 = vpack.c.bf16 %v147, %v146
    %v2939 = vunpack.c.l.b16 %v2786
    %v2940 = vunpack.c.h.b16 %v2786
    %v2941 = vunpack.c.l.b16 %v2787
    %v2942 = vunpack.c.l.b16 %v2788
    %v2943 = vunpack.c.h.b16 %v2788
    %v2944 = vunpack.c.l.b16 %v2789
    %v2945 = vunpack.c.l.b16 %v2790
    %v2946 = vunpack.c.h.b16 %v2790
    %v2947 = vunpack.c.l.b16 %v2791
    %v2948 = vunpack.c.l.b16 %v2792
    %v2949 = vunpack.c.h.b16 %v2792
    %v2950 = vunpack.c.l.b16 %v2793
    %v2951 = vunpack.c.l.b16 %v2794
    %v2952 = vunpack.c.h.b16 %v2794
    %v2953 = vunpack.c.l.b16 %v2795
    %v2954 = vunpack.c.l.b16 %v2796
    %v2955 = vunpack.c.h.b16 %v2796
    %v2956 = vunpack.c.l.b16 %v2797
    %v2957 = vunpack.c.l.b16 %v2798
    %v2958 = vunpack.c.h.b16 %v2798
    %v2959 = vunpack.c.l.b16 %v2799
    %v2960 = vunpack.c.l.b16 %v2800
    %v2961 = vunpack.c.h.b16 %v2800
    %v2962 = vunpack.c.l.b16 %v2801
    %v2963 = vunpack.c.l.b16 %v2802
    %v2964 = vunpack.c.h.b16 %v2802
    %v2965 = vunpack.c.l.b16 %v2803
    %v2966 = vunpack.c.l.b16 %v2804
    %v2967 = vunpack.c.h.b16 %v2804
    %v2968 = vunpack.c.l.b16 %v2805
    %v2969 = vunpack.c.l.b16 %v2806
    %v2970 = vunpack.c.h.b16 %v2806
    %v2971 = vunpack.c.l.b16 %v2807
    %v2972 = vunpack.c.l.b16 %v2808
    %v2973 = vunpack.c.h.b16 %v2808
    %v2974 = vunpack.c.l.b16 %v2809
    %v2975 = vunpack.c.l.b16 %v2810
    %v2976 = vunpack.c.h.b16 %v2810
    %v2977 = vunpack.c.l.b16 %v2811
    %v2978 = vunpack.c.l.b16 %v2812
    %v2979 = vunpack.c.h.b16 %v2812
    %v2980 = vunpack.c.l.b16 %v2813
    %v2981 = vunpack.c.l.b16 %v2814
    %v2982 = vunpack.c.h.b16 %v2814
    %v2983 = vunpack.c.l.b16 %v2815
    %v2984 = vunpack.c.l.b16 %v2816
    %v2985 = vunpack.c.h.b16 %v2816
    %v2986 = vunpack.c.l.b16 %v2817
    %v2987 = vpack.c.b16 %v2942, %v2939
    %v2988 = vpack.c.b16 %v2943, %v2940
    %v2989 = vpack.c.b16 %v2944, %v2941
    %v2990 = vpack.c.b16 %v2948, %v2945
    %v2991 = vpack.c.b16 %v2949, %v2946
    %v2992 = vpack.c.b16 %v2950, %v2947
    %v2993 = vpack.c.b16 %v2954, %v2951
    %v2994 = vpack.c.b16 %v2955, %v2952
    %v2995 = vpack.c.b16 %v2956, %v2953
    %v2996 = vpack.c.b16 %v2960, %v2957
    %v2997 = vpack.c.b16 %v2961, %v2958
    %v2998 = vpack.c.b16 %v2962, %v2959
    %v2999 = vpack.c.b16 %v2966, %v2963
    %v3000 = vpack.c.b16 %v2967, %v2964
    %v3001 = vpack.c.b16 %v2968, %v2965
    %v3002 = vpack.c.b16 %v2972, %v2969
    %v3003 = vpack.c.b16 %v2973, %v2970
    %v3004 = vpack.c.b16 %v2974, %v2971
    %v3005 = vpack.c.b16 %v2978, %v2975
    %v3006 = vpack.c.b16 %v2979, %v2976
    %v3007 = vpack.c.b16 %v2980, %v2977
    %v3008 = vpack.c.b16 %v2984, %v2981
    %v3009 = vpack.c.b16 %v2985, %v2982
    %v3010 = vpack.c.b16 %v2986, %v2983
    %3035 = vmatprep.subr.bf16.mxu0 %v2988
    %3036 = vmatpush1.bf16.msra.mxu0 %v2987
    %3037 = vmatprep.subr.bf16.mxu0 %v2991
    %3038 = vmatpush1.bf16.msra.mxu0 %v2990
    %3039 = vmatprep.subr.bf16.mxu0 %v2994
    %3040 = vmatpush1.bf16.msra.mxu0 %v2993
    %3041 = vmatprep.subr.bf16.mxu0 %v2997
    %3042 = vmatpush1.bf16.msra.mxu0 %v2996
    %3043 = vmatprep.subr.bf16.mxu0 %v3000
    %3044 = vmatpush1.bf16.msra.mxu0 %v2999
    %3045 = vmatprep.subr.bf16.mxu0 %v3003
    %3046 = vmatpush1.bf16.msra.mxu0 %v3002
    %3047 = vmatprep.subr.bf16.mxu0 %v3006
    %3048 = vmatpush1.bf16.msra.mxu0 %v3005
    %3049 = vmatprep.subr.bf16.mxu0 %v3009
    %3050 = vmatpush1.bf16.msra.mxu0 %v3008
    %3051 = vmatprep.subr.bf16.mxu0 0
    %3052 = vmatpush1.bf16.msra.mxu0 0
    %3053 = vmatprep.subr.bf16.mxu0 0
    %3054 = vmatpush1.bf16.msra.mxu0 0
    %3055 = vmatprep.subr.bf16.mxu0 0
    %3056 = vmatpush1.bf16.msra.mxu0 0
    %3057 = vmatprep.subr.bf16.mxu0 0
    %3058 = vmatpush1.bf16.msra.mxu0 0
    %3059 = vmatprep.subr.bf16.mxu0 0
    %3060 = vmatpush1.bf16.msra.mxu0 0
    %3061 = vmatprep.subr.bf16.mxu0 0
    %3062 = vmatpush1.bf16.msra.mxu0 0
    %3063 = vmatprep.subr.bf16.mxu0 0
    %3064 = vmatpush1.bf16.msra.mxu0 0
    %3065 = vmatprep.subr.bf16.mxu0 0
    %3066 = vmatpush1.bf16.msra.mxu0 0
    %3067 = vmatprep.mubr.bf16.mxu0 0
    %3068 = vmatmul.mubr.bf16.gmra.mrb[0].mxu0 %v2899
    %v3069 = vpop.f32.mrb[0].mxu0
    %v3070 = vadd.f32 0.0, %v3069
    %v3071 = vpop.f32.mrb[0].mxu0
    %v3072 = vadd.f32 0.0, %v3071
    %v3073 = vpop.f32.mrb[0].mxu0
    %v3074 = vadd.f32 0.0, %v3073
    %v3075 = vpop.f32.mrb[0].mxu0
    %v3076 = vadd.f32 0.0, %v3075
    %3077 = vmatprep.mubr.bf16.mxu0 0
    %3078 = vmatmul.mubr.bf16.gmra.mrb[0].mxu0 %v2900
    %v3079 = vpop.f32.mrb[0].mxu0
    %v3080 = vadd.f32 0.0, %v3079
    %v3081 = vpop.f32.mrb[0].mxu0
    %v3082 = vadd.f32 0.0, %v3081
    %v3083 = vpop.f32.mrb[0].mxu0
    %v3084 = vadd.f32 0.0, %v3083
    %v3085 = vpop.f32.mrb[0].mxu0
    %v3086 = vadd.f32 0.0, %v3085
    %3087 = vmatprep.mubr.bf16.mxu0 0
    %3088 = vmatmul.mubr.bf16.gmra.mrb[0].mxu0 %v2901
    %v3089 = vpop.f32.mrb[0].mxu0
    %v3090 = vadd.f32 0.0, %v3089
    %v3091 = vpop.f32.mrb[0].mxu0
    %v3092 = vadd.f32 0.0, %v3091
    %v3093 = vpop.f32.mrb[0].mxu0
    %v3094 = vadd.f32 0.0, %v3093
    %v3095 = vpop.f32.mrb[0].mxu0
    %v3096 = vadd.f32 0.0, %v3095
    %3097 = vmatprep.mubr.bf16.mxu0 0
    %3098 = vmatmul.mubr.bf16.gmra.mrb[0].mxu0 %v2902
    %v3099 = vpop.f32.mrb[0].mxu0
    %v3100 = vadd.f32 0.0, %v3099
    %v3101 = vpop.f32.mrb[0].mxu0
    %v3102 = vadd.f32 0.0, %v3101
    %v3103 = vpop.f32.mrb[0].mxu0
    %v3104 = vadd.f32 0.0, %v3103
    %v3105 = vpop.f32.mrb[0].mxu0
    %v3106 = vadd.f32 0.0, %v3105
    %3107 = vmatprep.mubr.bf16.mxu0 0
    %3108 = vmatmul.mubr.bf16.gmra.mrb[0].mxu0 %v2903
    %v3109 = vpop.f32.mrb[0].mxu0
    %v3110 = vadd.f32 0.0, %v3109
    %v3111 = vpop.f32.mrb[0].mxu0
    %v3112 = vadd.f32 0.0, %v3111
    %v3113 = vpop.f32.mrb[0].mxu0
    %v3114 = vadd.f32 0.0, %v3113
    %v3115 = vpop.f32.mrb[0].mxu0
    %v3116 = vadd.f32 0.0, %v3115
    %3117 = vmatprep.mubr.bf16.mxu0 0
    %3118 = vmatmul.mubr.bf16.gmra.mrb[0].mxu0 %v2904
    %v3119 = vpop.f32.mrb[0].mxu0
    %v3120 = vadd.f32 0.0, %v3119
    %v3121 = vpop.f32.mrb[0].mxu0
    %v3122 = vadd.f32 0.0, %v3121
    %v3123 = vpop.f32.mrb[0].mxu0
    %v3124 = vadd.f32 0.0, %v3123
    %v3125 = vpop.f32.mrb[0].mxu0
    %v3126 = vadd.f32 0.0, %v3125
    %3127 = vmatprep.mubr.bf16.mxu0 0
    %3128 = vmatmul.mubr.bf16.gmra.mrb[0].mxu0 %v2905
    %v3129 = vpop.f32.mrb[0].mxu0
    %v3130 = vadd.f32 0.0, %v3129
    %v3131 = vpop.f32.mrb[0].mxu0
    %v3132 = vadd.f32 0.0, %v3131
    %v3133 = vpop.f32.mrb[0].mxu0
    %v3134 = vadd.f32 0.0, %v3133
    %v3135 = vpop.f32.mrb[0].mxu0
    %v3136 = vadd.f32 0.0, %v3135
    %3137 = vmatprep.mubr.bf16.mxu0 0
    %3138 = vmatmul.mubr.bf16.gmra.mrb[0].mxu0 %v2906
    %v3139 = vpop.f32.mrb[0].mxu0
    %v3140 = vadd.f32 0.0, %v3139
    %v3141 = vpop.f32.mrb[0].mxu0
    %v3142 = vadd.f32 0.0, %v3141
    %v3143 = vpop.f32.mrb[0].mxu0
    %v3144 = vadd.f32 0.0, %v3143
    %v3145 = vpop.f32.mrb[0].mxu0
    %v3146 = vadd.f32 0.0, %v3145
    %3147 = vdwg.mxu0
    %3148 = vmatprep.subr.bf16.mxu0 0
    %3149 = vmatpush1.bf16.msra.mxu0 %v2989
    %3150 = vmatprep.subr.bf16.mxu0 0
    %3151 = vmatpush1.bf16.msra.mxu0 %v2992
    %3152 = vmatprep.subr.bf16.mxu0 0
    %3153 = vmatpush1.bf16.msra.mxu0 %v2995
    %3154 = vmatprep.subr.bf16.mxu0 0
    %3155 = vmatpush1.bf16.msra.mxu0 %v2998
    %3156 = vmatprep.subr.bf16.mxu0 0
    %3157 = vmatpush1.bf16.msra.mxu0 %v3001
    %3158 = vmatprep.subr.bf16.mxu0 0
    %3159 = vmatpush1.bf16.msra.mxu0 %v3004
    %3160 = vmatprep.subr.bf16.mxu0 0
    %3161 = vmatpush1.bf16.msra.mxu0 %v3007
    %3162 = vmatprep.subr.bf16.mxu0 0
    %3163 = vmatpush1.bf16.msra.mxu0 %v3010
    %3164 = vmatprep.subr.bf16.mxu0 0
    %3165 = vmatpush1.bf16.msra.mxu0 0
    %3166 = vmatprep.subr.bf16.mxu0 0
    %3167 = vmatpush1.bf16.msra.mxu0 0
    %3168 = vmatprep.subr.bf16.mxu0 0
    %3169 = vmatpush1.bf16.msra.mxu0 0
    %3170 = vmatprep.subr.bf16.mxu0 0
    %3171 = vmatpush1.bf16.msra.mxu0 0
    %3172 = vmatprep.subr.bf16.mxu0 0
    %3173 = vmatpush1.bf16.msra.mxu0 0
    %3174 = vmatprep.subr.bf16.mxu0 0
    %3175 = vmatpush1.bf16.msra.mxu0 0
    %3176 = vmatprep.subr.bf16.mxu0 0
    %3177 = vmatpush1.bf16.msra.mxu0 0
    %3178 = vmatprep.subr.bf16.mxu0 0
    %3179 = vmatpush1.bf16.msra.mxu0 0
    %3180 = vmatprep.mubr.bf16.mxu0 0
    %3181 = vmatmul.mubr.bf16.gmra.mrb[0].mxu0 %v2899
    %v3182 = vpop.f32.mrb[0].mxu0
    %v3183 = vadd.f32 0.0, %v3182
    %v3184 = vpop.f32.mrb[0].mxu0
    %v3185 = vpop.f32.mrb[0].mxu0
    %v3186 = vadd.f32 0.0, %v3185
    %v3187 = vpop.f32.mrb[0].mxu0
    %3188 = vmatprep.mubr.bf16.mxu0 0
    %3189 = vmatmul.mubr.bf16.gmra.mrb[0].mxu0 %v2900
    %v3190 = vpop.f32.mrb[0].mxu0
    %v3191 = vadd.f32 0.0, %v3190
    %v3192 = vpop.f32.mrb[0].mxu0
    %v3193 = vpop.f32.mrb[0].mxu0
    %v3194 = vadd.f32 0.0, %v3193
    %v3195 = vpop.f32.mrb[0].mxu0
    %3196 = vmatprep.mubr.bf16.mxu0 0
    %3197 = vmatmul.mubr.bf16.gmra.mrb[0].mxu0 %v2901
    %v3198 = vpop.f32.mrb[0].mxu0
    %v3199 = vadd.f32 0.0, %v3198
    %v3200 = vpop.f32.mrb[0].mxu0
    %v3201 = vpop.f32.mrb[0].mxu0
    %v3202 = vadd.f32 0.0, %v3201
    %v3203 = vpop.f32.mrb[0].mxu0
    %3204 = vmatprep.mubr.bf16.mxu0 0
    %3205 = vmatmul.mubr.bf16.gmra.mrb[0].mxu0 %v2902
    %v3206 = vpop.f32.mrb[0].mxu0
    %v3207 = vadd.f32 0.0, %v3206
    %v3208 = vpop.f32.mrb[0].mxu0
    %v3209 = vpop.f32.mrb[0].mxu0
    %v3210 = vadd.f32 0.0, %v3209
    %v3211 = vpop.f32.mrb[0].mxu0
    %3212 = vmatprep.mubr.bf16.mxu0 0
    %3213 = vmatmul.mubr.bf16.gmra.mrb[0].mxu0 %v2903
    %v3214 = vpop.f32.mrb[0].mxu0
    %v3215 = vadd.f32 0.0, %v3214
    %v3216 = vpop.f32.mrb[0].mxu0
    %v3217 = vpop.f32.mrb[0].mxu0
    %v3218 = vadd.f32 0.0, %v3217
    %v3219 = vpop.f32.mrb[0].mxu0
    %3220 = vmatprep.mubr.bf16.mxu0 0
    %3221 = vmatmul.mubr.bf16.gmra.mrb[0].mxu0 %v2904
    %v3222 = vpop.f32.mrb[0].mxu0
    %v3223 = vadd.f32 0.0, %v3222
    %v3224 = vpop.f32.mrb[0].mxu0
    %v3225 = vpop.f32.mrb[0].mxu0
    %v3226 = vadd.f32 0.0, %v3225
    %v3227 = vpop.f32.mrb[0].mxu0
    %3228 = vmatprep.mubr.bf16.mxu0 0
    %3229 = vmatmul.mubr.bf16.gmra.mrb[0].mxu0 %v2905
    %v3230 = vpop.f32.mrb[0].mxu0
    %v3231 = vadd.f32 0.0, %v3230
    %v3232 = vpop.f32.mrb[0].mxu0
    %v3233 = vpop.f32.mrb[0].mxu0
    %v3234 = vadd.f32 0.0, %v3233
    %v3235 = vpop.f32.mrb[0].mxu0
    %3236 = vmatprep.mubr.bf16.mxu0 0
    %3237 = vmatmul.mubr.bf16.gmra.mrb[0].mxu0 %v2906
    %v3238 = vpop.f32.mrb[0].mxu0
    %v3239 = vadd.f32 0.0, %v3238
    %v3240 = vpop.f32.mrb[0].mxu0
    %v3241 = vpop.f32.mrb[0].mxu0
    %v3242 = vadd.f32 0.0, %v3241
    %v3243 = vpop.f32.mrb[0].mxu0
    %3244 = vdwg.mxu0
    %vm3245 = vcmp.gt.f32.partialorder %v3070, 0.0
    %vm3246 = vcmp.gt.f32.partialorder %v3074, 0.0
    %vm3247 = vcmp.gt.f32.partialorder %v3080, 0.0
    %vm3248 = vcmp.gt.f32.partialorder %v3084, 0.0
    %vm3249 = vcmp.gt.f32.partialorder %v3090, 0.0
    %vm3250 = vcmp.gt.f32.partialorder %v3094, 0.0
    %vm3251 = vcmp.gt.f32.partialorder %v3100, 0.0
    %vm3252 = vcmp.gt.f32.partialorder %v3104, 0.0
    %vm3253 = vcmp.gt.f32.partialorder %v3110, 0.0
    %vm3254 = vcmp.gt.f32.partialorder %v3114, 0.0
    %vm3255 = vcmp.gt.f32.partialorder %v3120, 0.0
    %vm3256 = vcmp.gt.f32.partialorder %v3124, 0.0
    %vm3257 = vcmp.gt.f32.partialorder %v3130, 0.0
    %vm3258 = vcmp.gt.f32.partialorder %v3134, 0.0
    %vm3259 = vcmp.gt.f32.partialorder %v3140, 0.0
    %vm3260 = vcmp.gt.f32.partialorder %v3144, 0.0
    %v3261 = vadd.f32 %v3070, 1.0
    %v3262 = vadd.f32 %v3074, 1.0
    %v3263 = vadd.f32 %v3080, 1.0
    %v3264 = vadd.f32 %v3084, 1.0
    %v3265 = vadd.f32 %v3090, 1.0
    %v3266 = vadd.f32 %v3094, 1.0
    %v3267 = vadd.f32 %v3100, 1.0
    %v3268 = vadd.f32 %v3104, 1.0
    %v3269 = vadd.f32 %v3110, 1.0
    %v3270 = vadd.f32 %v3114, 1.0
    %v3271 = vadd.f32 %v3120, 1.0
    %v3272 = vadd.f32 %v3124, 1.0
    %v3273 = vadd.f32 %v3130, 1.0
    %v3274 = vadd.f32 %v3134, 1.0
    %v3275 = vadd.f32 %v3140, 1.0
    %v3276 = vadd.f32 %v3144, 1.0
    %v3277 = vmin.f32 %v3070, 0.0
    %v3278 = vmin.f32 %v3074, 0.0
    %v3279 = vmin.f32 %v3080, 0.0
    %v3280 = vmin.f32 %v3084, 0.0
    %v3281 = vmin.f32 %v3090, 0.0
    %v3282 = vmin.f32 %v3094, 0.0
    %v3283 = vmin.f32 %v3100, 0.0
    %v3284 = vmin.f32 %v3104, 0.0
    %v3285 = vmin.f32 %v3110, 0.0
    %v3286 = vmin.f32 %v3114, 0.0
    %v3287 = vmin.f32 %v3120, 0.0
    %v3288 = vmin.f32 %v3124, 0.0
    %v3289 = vmin.f32 %v3130, 0.0
    %v3290 = vmin.f32 %v3134, 0.0
    %v3291 = vmin.f32 %v3140, 0.0
    %v3292 = vmin.f32 %v3144, 0.0
    %v3293 = vmul.f32 %v3277, 1.442695
    %v3294 = vpow.pop %v3293
    %v3295 = vmul.f32 %v3278, 1.442695
    %v3296 = vpow.pop %v3295
    %v3297 = vmul.f32 %v3279, 1.442695
    %v3298 = vpow.pop %v3297
    %v3299 = vmul.f32 %v3280, 1.442695
    %v3300 = vpow.pop %v3299
    %v3301 = vmul.f32 %v3281, 1.442695
    %v3302 = vpow.pop %v3301
    %v3303 = vmul.f32 %v3282, 1.442695
    %v3304 = vpow.pop %v3303
    %v3305 = vmul.f32 %v3283, 1.442695
    %v3306 = vpow.pop %v3305
    %v3307 = vmul.f32 %v3284, 1.442695
    %v3308 = vpow.pop %v3307
    %v3309 = vmul.f32 %v3285, 1.442695
    %v3310 = vpow.pop %v3309
    %v3311 = vmul.f32 %v3286, 1.442695
    %v3312 = vpow.pop %v3311
    %v3313 = vmul.f32 %v3287, 1.442695
    %v3314 = vpow.pop %v3313
    %v3315 = vmul.f32 %v3288, 1.442695
    %v3316 = vpow.pop %v3315
    %v3317 = vmul.f32 %v3289, 1.442695
    %v3318 = vpow.pop %v3317
    %v3319 = vmul.f32 %v3290, 1.442695
    %v3320 = vpow.pop %v3319
    %v3321 = vmul.f32 %v3291, 1.442695
    %v3322 = vpow.pop %v3321
    %v3323 = vmul.f32 %v3292, 1.442695
    %v3324 = vpow.pop %v3323
    %v3325 = vsel %vm3245, %v3261, %v3294
    %v3326 = vsel %vm3246, %v3262, %v3296
    %v3327 = vsel %vm3247, %v3263, %v3298
    %v3328 = vsel %vm3248, %v3264, %v3300
    %v3329 = vsel %vm3249, %v3265, %v3302
    %v3330 = vsel %vm3250, %v3266, %v3304
    %v3331 = vsel %vm3251, %v3267, %v3306
    %v3332 = vsel %vm3252, %v3268, %v3308
    %v3333 = vsel %vm3253, %v3269, %v3310
    %v3334 = vsel %vm3254, %v3270, %v3312
    %v3335 = vsel %vm3255, %v3271, %v3314
    %v3336 = vsel %vm3256, %v3272, %v3316
    %v3337 = vsel %vm3257, %v3273, %v3318
    %v3338 = vsel %vm3258, %v3274, %v3320
    %v3339 = vsel %vm3259, %v3275, %v3322
    %v3340 = vsel %vm3260, %v3276, %v3324
    %vm3341 = vcmp.gt.f32.partialorder %v3072, 0.0
    %vm3342 = vcmp.gt.f32.partialorder %v3076, 0.0
    %vm3343 = vcmp.gt.f32.partialorder %v3082, 0.0
    %vm3344 = vcmp.gt.f32.partialorder %v3086, 0.0
    %vm3345 = vcmp.gt.f32.partialorder %v3092, 0.0
    %vm3346 = vcmp.gt.f32.partialorder %v3096, 0.0
    %vm3347 = vcmp.gt.f32.partialorder %v3102, 0.0
    %vm3348 = vcmp.gt.f32.partialorder %v3106, 0.0
    %vm3349 = vcmp.gt.f32.partialorder %v3112, 0.0
    %vm3350 = vcmp.gt.f32.partialorder %v3116, 0.0
    %vm3351 = vcmp.gt.f32.partialorder %v3122, 0.0
    %vm3352 = vcmp.gt.f32.partialorder %v3126, 0.0
    %vm3353 = vcmp.gt.f32.partialorder %v3132, 0.0
    %vm3354 = vcmp.gt.f32.partialorder %v3136, 0.0
    %vm3355 = vcmp.gt.f32.partialorder %v3142, 0.0
    %vm3356 = vcmp.gt.f32.partialorder %v3146, 0.0
    %v3357 = vadd.f32 %v3072, 1.0
    %v3358 = vadd.f32 %v3076, 1.0
    %v3359 = vadd.f32 %v3082, 1.0
    %v3360 = vadd.f32 %v3086, 1.0
    %v3361 = vadd.f32 %v3092, 1.0
    %v3362 = vadd.f32 %v3096, 1.0
    %v3363 = vadd.f32 %v3102, 1.0
    %v3364 = vadd.f32 %v3106, 1.0
    %v3365 = vadd.f32 %v3112, 1.0
    %v3366 = vadd.f32 %v3116, 1.0
    %v3367 = vadd.f32 %v3122, 1.0
    %v3368 = vadd.f32 %v3126, 1.0
    %v3369 = vadd.f32 %v3132, 1.0
    %v3370 = vadd.f32 %v3136, 1.0
    %v3371 = vadd.f32 %v3142, 1.0
    %v3372 = vadd.f32 %v3146, 1.0
    %v3373 = vmin.f32 %v3072, 0.0
    %v3374 = vmin.f32 %v3076, 0.0
    %v3375 = vmin.f32 %v3082, 0.0
    %v3376 = vmin.f32 %v3086, 0.0
    %v3377 = vmin.f32 %v3092, 0.0
    %v3378 = vmin.f32 %v3096, 0.0
    %v3379 = vmin.f32 %v3102, 0.0
    %v3380 = vmin.f32 %v3106, 0.0
    %v3381 = vmin.f32 %v3112, 0.0
    %v3382 = vmin.f32 %v3116, 0.0
    %v3383 = vmin.f32 %v3122, 0.0
    %v3384 = vmin.f32 %v3126, 0.0
    %v3385 = vmin.f32 %v3132, 0.0
    %v3386 = vmin.f32 %v3136, 0.0
    %v3387 = vmin.f32 %v3142, 0.0
    %v3388 = vmin.f32 %v3146, 0.0
    %v3389 = vmul.f32 %v3373, 1.442695
    %v3390 = vpow.pop %v3389
    %v3391 = vmul.f32 %v3374, 1.442695
    %v3392 = vpow.pop %v3391
    %v3393 = vmul.f32 %v3375, 1.442695
    %v3394 = vpow.pop %v3393
    %v3395 = vmul.f32 %v3376, 1.442695
    %v3396 = vpow.pop %v3395
    %v3397 = vmul.f32 %v3377, 1.442695
    %v3398 = vpow.pop %v3397
    %v3399 = vmul.f32 %v3378, 1.442695
    %v3400 = vpow.pop %v3399
    %v3401 = vmul.f32 %v3379, 1.442695
    %v3402 = vpow.pop %v3401
    %v3403 = vmul.f32 %v3380, 1.442695
    %v3404 = vpow.pop %v3403
    %v3405 = vmul.f32 %v3381, 1.442695
    %v3406 = vpow.pop %v3405
    %v3407 = vmul.f32 %v3382, 1.442695
    %v3408 = vpow.pop %v3407
    %v3409 = vmul.f32 %v3383, 1.442695
    %v3410 = vpow.pop %v3409
    %v3411 = vmul.f32 %v3384, 1.442695
    %v3412 = vpow.pop %v3411
    %v3413 = vmul.f32 %v3385, 1.442695
    %v3414 = vpow.pop %v3413
    %v3415 = vmul.f32 %v3386, 1.442695
    %v3416 = vpow.pop %v3415
    %v3417 = vmul.f32 %v3387, 1.442695
    %v3418 = vpow.pop %v3417
    %v3419 = vmul.f32 %v3388, 1.442695
    %v3420 = vpow.pop %v3419
    %v3421 = vsel %vm3341, %v3357, %v3390
    %v3422 = vsel %vm3342, %v3358, %v3392
    %v3423 = vsel %vm3343, %v3359, %v3394
    %v3424 = vsel %vm3344, %v3360, %v3396
    %v3425 = vsel %vm3345, %v3361, %v3398
    %v3426 = vsel %vm3346, %v3362, %v3400
    %v3427 = vsel %vm3347, %v3363, %v3402
    %v3428 = vsel %vm3348, %v3364, %v3404
    %v3429 = vsel %vm3349, %v3365, %v3406
    %v3430 = vsel %vm3350, %v3366, %v3408
    %v3431 = vsel %vm3351, %v3367, %v3410
    %v3432 = vsel %vm3352, %v3368, %v3412
    %v3433 = vsel %vm3353, %v3369, %v3414
    %v3434 = vsel %vm3354, %v3370, %v3416
    %v3435 = vsel %vm3355, %v3371, %v3418
    %v3436 = vsel %vm3356, %v3372, %v3420
    %v3437 = vpack.c.bf16 %v3186, %v3183
    %v3438 = vpack.c.bf16 %v3194, %v3191
    %v3439 = vpack.c.bf16 %v3202, %v3199
    %v3440 = vpack.c.bf16 %v3210, %v3207
    %v3441 = vpack.c.bf16 %v3218, %v3215
    %v3442 = vpack.c.bf16 %v3226, %v3223
    %v3443 = vpack.c.bf16 %v3234, %v3231
    %v3444 = vpack.c.bf16 %v3242, %v3239
    %v3445 = vpack.c.bf16 %v3422, %v3421
    %v3446 = vpack.c.bf16 %v3424, %v3423
    %v3447 = vpack.c.bf16 %v3426, %v3425
    %v3448 = vpack.c.bf16 %v3428, %v3427
    %v3449 = vpack.c.bf16 %v3430, %v3429
    %v3450 = vpack.c.bf16 %v3432, %v3431
    %v3451 = vpack.c.bf16 %v3434, %v3433
    %v3452 = vpack.c.bf16 %v3436, %v3435
    %3453 = vxpose.xlu0.c.b16.start [1/8] %v3445, 128
    %3454 = vxpose.xlu0.c.b16.cont [2/8] %v3446, 128
    %3455 = vxpose.xlu0.c.b16.cont [3/8] %v3447, 128
    %3456 = vxpose.xlu0.c.b16.cont [4/8] %v3448, 128
    %3457 = vxpose.xlu0.c.b16.cont [5/8] 0, 128
    %3458 = vxpose.xlu0.c.b16.cont [6/8] 0, 128
    %3459 = vxpose.xlu0.c.b16.cont [7/8] 0, 128
    %3460 = vxpose.xlu0.c.b16.end [8/8] 0, 128
    %v3461 = vpop.trf.xlu0
    %v3462 = vpop.trf.xlu0
    %v3463 = vpop.trf.xlu0
    %v3464 = vpop.trf.xlu0
    %v3465 = vpop.trf.xlu0
    %v3466 = vpop.trf.xlu0
    %v3467 = vpop.trf.xlu0
    %v3468 = vpop.trf.xlu0
    %v3470 = vsel %vm864, %v3461, 0
    %v3473 = vsel %vm864, %v3462, 0
    %v3476 = vsel %vm864, %v3463, 0
    %v3479 = vsel %vm864, %v3464, 0
    %v3482 = vsel %vm864, %v3465, 0
    %v3485 = vsel %vm864, %v3466, 0
    %v3488 = vsel %vm864, %v3467, 0
    %v3491 = vsel %vm864, %v3468, 0
    %3493 = vmatprep.subr.bf16.mxu0 %v832
    %3494 = vmatpush1.bf16.msra.mxu0 %v3437
    %3495 = vmatprep.subr.bf16.mxu0 %v832
    %3496 = vmatpush1.bf16.msra.mxu0 %v3438
    %3497 = vmatprep.subr.bf16.mxu0 %v832
    %3498 = vmatpush1.bf16.msra.mxu0 %v3439
    %3499 = vmatprep.subr.bf16.mxu0 %v832
    %3500 = vmatpush1.bf16.msra.mxu0 %v3440
    %3501 = vmatprep.subr.bf16.mxu0 0
    %3502 = vmatpush1.bf16.msra.mxu0 0
    %3503 = vmatprep.subr.bf16.mxu0 0
    %3504 = vmatpush1.bf16.msra.mxu0 0
    %3505 = vmatprep.subr.bf16.mxu0 0
    %3506 = vmatpush1.bf16.msra.mxu0 0
    %3507 = vmatprep.subr.bf16.mxu0 0
    %3508 = vmatpush1.bf16.msra.mxu0 0
    %3509 = vmatprep.subr.bf16.mxu0 0
    %3510 = vmatpush1.bf16.msra.mxu0 0
    %3511 = vmatprep.subr.bf16.mxu0 0
    %3512 = vmatpush1.bf16.msra.mxu0 0
    %3513 = vmatprep.subr.bf16.mxu0 0
    %3514 = vmatpush1.bf16.msra.mxu0 0
    %3515 = vmatprep.subr.bf16.mxu0 0
    %3516 = vmatpush1.bf16.msra.mxu0 0
    %3517 = vmatprep.subr.bf16.mxu0 0
    %3518 = vmatpush1.bf16.msra.mxu0 0
    %3519 = vmatprep.subr.bf16.mxu0 0
    %3520 = vmatpush1.bf16.msra.mxu0 0
    %3521 = vmatprep.subr.bf16.mxu0 0
    %3522 = vmatpush1.bf16.msra.mxu0 0
    %3523 = vmatprep.subr.bf16.mxu0 0
    %3524 = vmatpush1.bf16.msra.mxu0 0
    %3525 = vmatprep.mubr.bf16.mxu0 0
    %3526 = vmatmul.mubr.bf16.gmra.mrb[0].mxu0 %v3470
    %v3527 = vpop.f32.mrb[0].mxu0
    %v3528 = vadd.f32 0.0, %v3527
    %v3529 = vpop.f32.mrb[0].mxu0
    %v3530 = vadd.f32 0.0, %v3529
    %v3531 = vpop.f32.mrb[0].mxu0
    %v3532 = vadd.f32 0.0, %v3531
    %v3533 = vpop.f32.mrb[0].mxu0
    %v3534 = vadd.f32 0.0, %v3533
    %3535 = vmatprep.mubr.bf16.mxu0 0
    %3536 = vmatmul.mubr.bf16.gmra.mrb[0].mxu0 %v3473
    %v3537 = vpop.f32.mrb[0].mxu0
    %v3538 = vadd.f32 0.0, %v3537
    %v3539 = vpop.f32.mrb[0].mxu0
    %v3540 = vadd.f32 0.0, %v3539
    %v3541 = vpop.f32.mrb[0].mxu0
    %v3542 = vadd.f32 0.0, %v3541
    %v3543 = vpop.f32.mrb[0].mxu0
    %v3544 = vadd.f32 0.0, %v3543
    %3545 = vmatprep.mubr.bf16.mxu0 0
    %3546 = vmatmul.mubr.bf16.gmra.mrb[0].mxu0 %v3476
    %v3547 = vpop.f32.mrb[0].mxu0
    %v3548 = vadd.f32 0.0, %v3547
    %v3549 = vpop.f32.mrb[0].mxu0
    %v3550 = vadd.f32 0.0, %v3549
    %v3551 = vpop.f32.mrb[0].mxu0
    %v3552 = vadd.f32 0.0, %v3551
    %v3553 = vpop.f32.mrb[0].mxu0
    %v3554 = vadd.f32 0.0, %v3553
    %3555 = vmatprep.mubr.bf16.mxu0 0
    %3556 = vmatmul.mubr.bf16.gmra.mrb[0].mxu0 %v3479
    %v3557 = vpop.f32.mrb[0].mxu0
    %v3558 = vadd.f32 0.0, %v3557
    %v3559 = vpop.f32.mrb[0].mxu0
    %v3560 = vadd.f32 0.0, %v3559
    %v3561 = vpop.f32.mrb[0].mxu0
    %v3562 = vadd.f32 0.0, %v3561
    %v3563 = vpop.f32.mrb[0].mxu0
    %v3564 = vadd.f32 0.0, %v3563
    %3565 = vmatprep.mubr.bf16.mxu0 0
    %3566 = vmatmul.mubr.bf16.gmra.mrb[0].mxu0 %v3482
    %v3567 = vpop.f32.mrb[0].mxu0
    %v3568 = vadd.f32 0.0, %v3567
    %v3569 = vpop.f32.mrb[0].mxu0
    %v3570 = vadd.f32 0.0, %v3569
    %v3571 = vpop.f32.mrb[0].mxu0
    %v3572 = vadd.f32 0.0, %v3571
    %v3573 = vpop.f32.mrb[0].mxu0
    %v3574 = vadd.f32 0.0, %v3573
    %3575 = vmatprep.mubr.bf16.mxu0 0
    %3576 = vmatmul.mubr.bf16.gmra.mrb[0].mxu0 %v3485
    %v3577 = vpop.f32.mrb[0].mxu0
    %v3578 = vadd.f32 0.0, %v3577
    %v3579 = vpop.f32.mrb[0].mxu0
    %v3580 = vadd.f32 0.0, %v3579
    %v3581 = vpop.f32.mrb[0].mxu0
    %v3582 = vadd.f32 0.0, %v3581
    %v3583 = vpop.f32.mrb[0].mxu0
    %v3584 = vadd.f32 0.0, %v3583
    %3585 = vmatprep.mubr.bf16.mxu0 0
    %3586 = vmatmul.mubr.bf16.gmra.mrb[0].mxu0 %v3488
    %v3587 = vpop.f32.mrb[0].mxu0
    %v3588 = vadd.f32 0.0, %v3587
    %v3589 = vpop.f32.mrb[0].mxu0
    %v3590 = vadd.f32 0.0, %v3589
    %v3591 = vpop.f32.mrb[0].mxu0
    %v3592 = vadd.f32 0.0, %v3591
    %v3593 = vpop.f32.mrb[0].mxu0
    %v3594 = vadd.f32 0.0, %v3593
    %3595 = vmatprep.mubr.bf16.mxu0 0
    %3596 = vmatmul.mubr.bf16.gmra.mrb[0].mxu0 %v3491
    %v3597 = vpop.f32.mrb[0].mxu0
    %v3598 = vadd.f32 0.0, %v3597
    %v3599 = vpop.f32.mrb[0].mxu0
    %v3600 = vadd.f32 0.0, %v3599
    %v3601 = vpop.f32.mrb[0].mxu0
    %v3602 = vadd.f32 0.0, %v3601
    %v3603 = vpop.f32.mrb[0].mxu0
    %v3604 = vadd.f32 0.0, %v3603
    %3605 = vdwg.mxu0
    %3606 = vxpose.xlu0.c.b16.start [1/8] %v3449, 128
    %3607 = vxpose.xlu0.c.b16.cont [2/8] %v3450, 128
    %3608 = vxpose.xlu0.c.b16.cont [3/8] %v3451, 128
    %3609 = vxpose.xlu0.c.b16.cont [4/8] %v3452, 128
    %3610 = vxpose.xlu0.c.b16.cont [5/8] 0, 128
    %3611 = vxpose.xlu0.c.b16.cont [6/8] 0, 128
    %3612 = vxpose.xlu0.c.b16.cont [7/8] 0, 128
    %3613 = vxpose.xlu0.c.b16.end [8/8] 0, 128
    %v3614 = vpop.trf.xlu0
    %v3615 = vpop.trf.xlu0
    %v3616 = vpop.trf.xlu0
    %v3617 = vpop.trf.xlu0
    %v3618 = vpop.trf.xlu0
    %v3619 = vpop.trf.xlu0
    %v3620 = vpop.trf.xlu0
    %v3621 = vpop.trf.xlu0
    %v3623 = vsel %vm864, %v3614, 0
    %v3626 = vsel %vm864, %v3615, 0
    %v3629 = vsel %vm864, %v3616, 0
    %v3632 = vsel %vm864, %v3617, 0
    %v3635 = vsel %vm864, %v3618, 0
    %v3638 = vsel %vm864, %v3619, 0
    %v3641 = vsel %vm864, %v3620, 0
    %v3644 = vsel %vm864, %v3621, 0
    %3646 = vmatprep.subr.bf16.mxu0 %v832
    %3647 = vmatpush1.bf16.msra.mxu0 %v3441
    %3648 = vmatprep.subr.bf16.mxu0 %v832
    %3649 = vmatpush1.bf16.msra.mxu0 %v3442
    %3650 = vmatprep.subr.bf16.mxu0 %v832
    %3651 = vmatpush1.bf16.msra.mxu0 %v3443
    %3652 = vmatprep.subr.bf16.mxu0 %v832
    %3653 = vmatpush1.bf16.msra.mxu0 %v3444
    %3654 = vmatprep.subr.bf16.mxu0 0
    %3655 = vmatpush1.bf16.msra.mxu0 0
    %3656 = vmatprep.subr.bf16.mxu0 0
    %3657 = vmatpush1.bf16.msra.mxu0 0
    %3658 = vmatprep.subr.bf16.mxu0 0
    %3659 = vmatpush1.bf16.msra.mxu0 0
    %3660 = vmatprep.subr.bf16.mxu0 0
    %3661 = vmatpush1.bf16.msra.mxu0 0
    %3662 = vmatprep.subr.bf16.mxu0 0
    %3663 = vmatpush1.bf16.msra.mxu0 0
    %3664 = vmatprep.subr.bf16.mxu0 0
    %3665 = vmatpush1.bf16.msra.mxu0 0
    %3666 = vmatprep.subr.bf16.mxu0 0
    %3667 = vmatpush1.bf16.msra.mxu0 0
    %3668 = vmatprep.subr.bf16.mxu0 0
    %3669 = vmatpush1.bf16.msra.mxu0 0
    %3670 = vmatprep.subr.bf16.mxu0 0
    %3671 = vmatpush1.bf16.msra.mxu0 0
    %3672 = vmatprep.subr.bf16.mxu0 0
    %3673 = vmatpush1.bf16.msra.mxu0 0
    %3674 = vmatprep.subr.bf16.mxu0 0
    %3675 = vmatpush1.bf16.msra.mxu0 0
    %3676 = vmatprep.subr.bf16.mxu0 0
    %3677 = vmatpush1.bf16.msra.mxu0 0
    %3678 = vmatprep.mubr.bf16.mxu0 0
    %3679 = vmatmul.mubr.bf16.gmra.mrb[0].mxu0 %v3623
    %v3680 = vpop.f32.mrb[0].mxu0
    %v3681 = vadd.f32 0.0, %v3680
    %v3682 = vpop.f32.mrb[0].mxu0
    %v3683 = vadd.f32 0.0, %v3682
    %v3684 = vpop.f32.mrb[0].mxu0
    %v3685 = vadd.f32 0.0, %v3684
    %v3686 = vpop.f32.mrb[0].mxu0
    %v3687 = vadd.f32 0.0, %v3686
    %3688 = vmatprep.mubr.bf16.mxu0 0
    %3689 = vmatmul.mubr.bf16.gmra.mrb[0].mxu0 %v3626
    %v3690 = vpop.f32.mrb[0].mxu0
    %v3691 = vadd.f32 0.0, %v3690
    %v3692 = vpop.f32.mrb[0].mxu0
    %v3693 = vadd.f32 0.0, %v3692
    %v3694 = vpop.f32.mrb[0].mxu0
    %v3695 = vadd.f32 0.0, %v3694
    %v3696 = vpop.f32.mrb[0].mxu0
    %v3697 = vadd.f32 0.0, %v3696
    %3698 = vmatprep.mubr.bf16.mxu0 0
    %3699 = vmatmul.mubr.bf16.gmra.mrb[0].mxu0 %v3629
    %v3700 = vpop.f32.mrb[0].mxu0
    %v3701 = vadd.f32 0.0, %v3700
    %v3702 = vpop.f32.mrb[0].mxu0
    %v3703 = vadd.f32 0.0, %v3702
    %v3704 = vpop.f32.mrb[0].mxu0
    %v3705 = vadd.f32 0.0, %v3704
    %v3706 = vpop.f32.mrb[0].mxu0
    %v3707 = vadd.f32 0.0, %v3706
    %3708 = vmatprep.mubr.bf16.mxu0 0
    %3709 = vmatmul.mubr.bf16.gmra.mrb[0].mxu0 %v3632
    %v3710 = vpop.f32.mrb[0].mxu0
    %v3711 = vadd.f32 0.0, %v3710
    %v3712 = vpop.f32.mrb[0].mxu0
    %v3713 = vadd.f32 0.0, %v3712
    %v3714 = vpop.f32.mrb[0].mxu0
    %v3715 = vadd.f32 0.0, %v3714
    %v3716 = vpop.f32.mrb[0].mxu0
    %v3717 = vadd.f32 0.0, %v3716
    %3718 = vmatprep.mubr.bf16.mxu0 0
    %3719 = vmatmul.mubr.bf16.gmra.mrb[0].mxu0 %v3635
    %v3720 = vpop.f32.mrb[0].mxu0
    %v3721 = vadd.f32 0.0, %v3720
    %v3722 = vpop.f32.mrb[0].mxu0
    %v3723 = vadd.f32 0.0, %v3722
    %v3724 = vpop.f32.mrb[0].mxu0
    %v3725 = vadd.f32 0.0, %v3724
    %v3726 = vpop.f32.mrb[0].mxu0
    %v3727 = vadd.f32 0.0, %v3726
    %3728 = vmatprep.mubr.bf16.mxu0 0
    %3729 = vmatmul.mubr.bf16.gmra.mrb[0].mxu0 %v3638
    %v3730 = vpop.f32.mrb[0].mxu0
    %v3731 = vadd.f32 0.0, %v3730
    %v3732 = vpop.f32.mrb[0].mxu0
    %v3733 = vadd.f32 0.0, %v3732
    %v3734 = vpop.f32.mrb[0].mxu0
    %v3735 = vadd.f32 0.0, %v3734
    %v3736 = vpop.f32.mrb[0].mxu0
    %v3737 = vadd.f32 0.0, %v3736
    %3738 = vmatprep.mubr.bf16.mxu0 0
    %3739 = vmatmul.mubr.bf16.gmra.mrb[0].mxu0 %v3641
    %v3740 = vpop.f32.mrb[0].mxu0
    %v3741 = vadd.f32 0.0, %v3740
    %v3742 = vpop.f32.mrb[0].mxu0
    %v3743 = vadd.f32 0.0, %v3742
    %v3744 = vpop.f32.mrb[0].mxu0
    %v3745 = vadd.f32 0.0, %v3744
    %v3746 = vpop.f32.mrb[0].mxu0
    %v3747 = vadd.f32 0.0, %v3746
    %3748 = vmatprep.mubr.bf16.mxu0 0
    %3749 = vmatmul.mubr.bf16.gmra.mrb[0].mxu0 %v3644
    %v3750 = vpop.f32.mrb[0].mxu0
    %v3751 = vadd.f32 0.0, %v3750
    %v3752 = vpop.f32.mrb[0].mxu0
    %v3753 = vadd.f32 0.0, %v3752
    %v3754 = vpop.f32.mrb[0].mxu0
    %v3755 = vadd.f32 0.0, %v3754
    %v3756 = vpop.f32.mrb[0].mxu0
    %v3757 = vadd.f32 0.0, %v3756
    %3758 = vdwg.mxu0
    %v3759 = vmul.f32 %v3528, %v148
    %v3760 = vmul.f32 %v3530, %v149
    %v3761 = vmul.f32 %v3532, %v150
    %v3762 = vmul.f32 %v3534, %v151
    %v3763 = vmul.f32 %v3538, %v152
    %v3764 = vmul.f32 %v3540, %v153
    %v3765 = vmul.f32 %v3542, %v154
    %v3766 = vmul.f32 %v3544, %v155
    %v3767 = vmul.f32 %v3548, %v156
    %v3768 = vmul.f32 %v3550, %v157
    %v3769 = vmul.f32 %v3552, %v158
    %v3770 = vmul.f32 %v3554, %v159
    %v3771 = vmul.f32 %v3558, %v160
    %v3772 = vmul.f32 %v3560, %v161
    %v3773 = vmul.f32 %v3562, %v162
    %v3774 = vmul.f32 %v3564, %v163
    %v3775 = vmul.f32 %v3568, %v164
    %v3776 = vmul.f32 %v3570, %v165
    %v3777 = vmul.f32 %v3572, %v166
    %v3778 = vmul.f32 %v3574, %v167
    %v3779 = vmul.f32 %v3578, %v168
    %v3780 = vmul.f32 %v3580, %v169
    %v3781 = vmul.f32 %v3582, %v170
    %v3782 = vmul.f32 %v3584, %v171
    %v3783 = vmul.f32 %v3588, %v172
    %v3784 = vmul.f32 %v3590, %v173
    %v3785 = vmul.f32 %v3592, %v174
    %v3786 = vmul.f32 %v3594, %v175
    %v3787 = vmul.f32 %v3598, %v176
    %v3788 = vmul.f32 %v3600, %v177
    %v3789 = vmul.f32 %v3602, %v178
    %v3790 = vmul.f32 %v3604, %v179
    %v3791 = vmul.f32 %v3681, %v148
    %v3792 = vmul.f32 %v3683, %v149
    %v3793 = vmul.f32 %v3685, %v150
    %v3794 = vmul.f32 %v3687, %v151
    %v3795 = vmul.f32 %v3691, %v152
    %v3796 = vmul.f32 %v3693, %v153
    %v3797 = vmul.f32 %v3695, %v154
    %v3798 = vmul.f32 %v3697, %v155
    %v3799 = vmul.f32 %v3701, %v156
    %v3800 = vmul.f32 %v3703, %v157
    %v3801 = vmul.f32 %v3705, %v158
    %v3802 = vmul.f32 %v3707, %v159
    %v3803 = vmul.f32 %v3711, %v160
    %v3804 = vmul.f32 %v3713, %v161
    %v3805 = vmul.f32 %v3715, %v162
    %v3806 = vmul.f32 %v3717, %v163
    %v3807 = vmul.f32 %v3721, %v164
    %v3808 = vmul.f32 %v3723, %v165
    %v3809 = vmul.f32 %v3725, %v166
    %v3810 = vmul.f32 %v3727, %v167
    %v3811 = vmul.f32 %v3731, %v168
    %v3812 = vmul.f32 %v3733, %v169
    %v3813 = vmul.f32 %v3735, %v170
    %v3814 = vmul.f32 %v3737, %v171
    %v3815 = vmul.f32 %v3741, %v172
    %v3816 = vmul.f32 %v3743, %v173
    %v3817 = vmul.f32 %v3745, %v174
    %v3818 = vmul.f32 %v3747, %v175
    %v3819 = vmul.f32 %v3751, %v176
    %v3820 = vmul.f32 %v3753, %v177
    %v3821 = vmul.f32 %v3755, %v178
    %v3822 = vmul.f32 %v3757, %v179
    %v3823 = vpack.c.bf16 %v3761, %v3759
    %v3824 = vpack.c.bf16 %v3762, %v3760
    %v3825 = vpack.c.bf16 %v3765, %v3763
    %v3826 = vpack.c.bf16 %v3766, %v3764
    %v3827 = vpack.c.bf16 %v3769, %v3767
    %v3828 = vpack.c.bf16 %v3770, %v3768
    %v3829 = vpack.c.bf16 %v3773, %v3771
    %v3830 = vpack.c.bf16 %v3774, %v3772
    %v3831 = vpack.c.bf16 %v3777, %v3775
    %v3832 = vpack.c.bf16 %v3778, %v3776
    %v3833 = vpack.c.bf16 %v3781, %v3779
    %v3834 = vpack.c.bf16 %v3782, %v3780
    %v3835 = vpack.c.bf16 %v3785, %v3783
    %v3836 = vpack.c.bf16 %v3786, %v3784
    %v3837 = vpack.c.bf16 %v3789, %v3787
    %v3838 = vpack.c.bf16 %v3790, %v3788
    %v3839 = vpack.c.bf16 %v3793, %v3791
    %v3840 = vpack.c.bf16 %v3794, %v3792
    %v3841 = vpack.c.bf16 %v3797, %v3795
    %v3842 = vpack.c.bf16 %v3798, %v3796
    %v3843 = vpack.c.bf16 %v3801, %v3799
    %v3844 = vpack.c.bf16 %v3802, %v3800
    %v3845 = vpack.c.bf16 %v3805, %v3803
    %v3846 = vpack.c.bf16 %v3806, %v3804
    %v3847 = vpack.c.bf16 %v3809, %v3807
    %v3848 = vpack.c.bf16 %v3810, %v3808
    %v3849 = vpack.c.bf16 %v3813, %v3811
    %v3850 = vpack.c.bf16 %v3814, %v3812
    %v3851 = vpack.c.bf16 %v3817, %v3815
    %v3852 = vpack.c.bf16 %v3818, %v3816
    %v3853 = vpack.c.bf16 %v3821, %v3819
    %v3854 = vpack.c.bf16 %v3822, %v3820
    %v3855 = vpack.c.bf16 %v3326, %v3325
    %v3856 = vpack.c.bf16 %v3328, %v3327
    %v3857 = vpack.c.bf16 %v3330, %v3329
    %v3858 = vpack.c.bf16 %v3332, %v3331
    %v3859 = vpack.c.bf16 %v3334, %v3333
    %v3860 = vpack.c.bf16 %v3336, %v3335
    %v3861 = vpack.c.bf16 %v3338, %v3337
    %v3862 = vpack.c.bf16 %v3340, %v3339
    %3863 = vmatprep.subr.bf16.mxu0 %v3824
    %3864 = vmatpush1.bf16.msra.mxu0 %v3823
    %3865 = vmatprep.subr.bf16.mxu0 %v3826
    %3866 = vmatpush1.bf16.msra.mxu0 %v3825
    %3867 = vmatprep.subr.bf16.mxu0 %v3828
    %3868 = vmatpush1.bf16.msra.mxu0 %v3827
    %3869 = vmatprep.subr.bf16.mxu0 %v3830
    %3870 = vmatpush1.bf16.msra.mxu0 %v3829
    %3871 = vmatprep.subr.bf16.mxu0 %v3832
    %3872 = vmatpush1.bf16.msra.mxu0 %v3831
    %3873 = vmatprep.subr.bf16.mxu0 %v3834
    %3874 = vmatpush1.bf16.msra.mxu0 %v3833
    %3875 = vmatprep.subr.bf16.mxu0 %v3836
    %3876 = vmatpush1.bf16.msra.mxu0 %v3835
    %3877 = vmatprep.subr.bf16.mxu0 %v3838
    %3878 = vmatpush1.bf16.msra.mxu0 %v3837
    %3879 = vmatprep.subr.bf16.mxu0 0
    %3880 = vmatpush1.bf16.msra.mxu0 0
    %3881 = vmatprep.subr.bf16.mxu0 0
    %3882 = vmatpush1.bf16.msra.mxu0 0
    %3883 = vmatprep.subr.bf16.mxu0 0
    %3884 = vmatpush1.bf16.msra.mxu0 0
    %3885 = vmatprep.subr.bf16.mxu0 0
    %3886 = vmatpush1.bf16.msra.mxu0 0
    %3887 = vmatprep.subr.bf16.mxu0 0
    %3888 = vmatpush1.bf16.msra.mxu0 0
    %3889 = vmatprep.subr.bf16.mxu0 0
    %3890 = vmatpush1.bf16.msra.mxu0 0
    %3891 = vmatprep.subr.bf16.mxu0 0
    %3892 = vmatpush1.bf16.msra.mxu0 0
    %3893 = vmatprep.subr.bf16.mxu0 0
    %3894 = vmatpush1.bf16.msra.mxu0 0
    %3895 = vmatprep.mubr.bf16.mxu0 0
    %3896 = vmatmul.mubr.bf16.gmra.mrb[0].mxu0 %v3855
    %v3897 = vpop.f32.mrb[0].mxu0
    %v3898 = vadd.f32 0.0, %v3897
    %v3899 = vpop.f32.mrb[0].mxu0
    %v3900 = vadd.f32 0.0, %v3899
    %v3901 = vpop.f32.mrb[0].mxu0
    %v3902 = vadd.f32 0.0, %v3901
    %v3903 = vpop.f32.mrb[0].mxu0
    %v3904 = vadd.f32 0.0, %v3903
    %3905 = vmatprep.mubr.bf16.mxu0 0
    %3906 = vmatmul.mubr.bf16.gmra.mrb[0].mxu0 %v3856
    %v3907 = vpop.f32.mrb[0].mxu0
    %v3908 = vadd.f32 0.0, %v3907
    %v3909 = vpop.f32.mrb[0].mxu0
    %v3910 = vadd.f32 0.0, %v3909
    %v3911 = vpop.f32.mrb[0].mxu0
    %v3912 = vadd.f32 0.0, %v3911
    %v3913 = vpop.f32.mrb[0].mxu0
    %v3914 = vadd.f32 0.0, %v3913
    %3915 = vmatprep.mubr.bf16.mxu0 0
    %3916 = vmatmul.mubr.bf16.gmra.mrb[0].mxu0 %v3857
    %v3917 = vpop.f32.mrb[0].mxu0
    %v3918 = vadd.f32 0.0, %v3917
    %v3919 = vpop.f32.mrb[0].mxu0
    %v3920 = vadd.f32 0.0, %v3919
    %v3921 = vpop.f32.mrb[0].mxu0
    %v3922 = vadd.f32 0.0, %v3921
    %v3923 = vpop.f32.mrb[0].mxu0
    %v3924 = vadd.f32 0.0, %v3923
    %3925 = vmatprep.mubr.bf16.mxu0 0
    %3926 = vmatmul.mubr.bf16.gmra.mrb[0].mxu0 %v3858
    %v3927 = vpop.f32.mrb[0].mxu0
    %v3928 = vadd.f32 0.0, %v3927
    %v3929 = vpop.f32.mrb[0].mxu0
    %v3930 = vadd.f32 0.0, %v3929
    %v3931 = vpop.f32.mrb[0].mxu0
    %v3932 = vadd.f32 0.0, %v3931
    %v3933 = vpop.f32.mrb[0].mxu0
    %v3934 = vadd.f32 0.0, %v3933
    %3935 = vdwg.mxu0
    %3936 = vmatprep.subr.bf16.mxu0 %v3840
    %3937 = vmatpush1.bf16.msra.mxu0 %v3839
    %3938 = vmatprep.subr.bf16.mxu0 %v3842
    %3939 = vmatpush1.bf16.msra.mxu0 %v3841
    %3940 = vmatprep.subr.bf16.mxu0 %v3844
    %3941 = vmatpush1.bf16.msra.mxu0 %v3843
    %3942 = vmatprep.subr.bf16.mxu0 %v3846
    %3943 = vmatpush1.bf16.msra.mxu0 %v3845
    %3944 = vmatprep.subr.bf16.mxu0 %v3848
    %3945 = vmatpush1.bf16.msra.mxu0 %v3847
    %3946 = vmatprep.subr.bf16.mxu0 %v3850
    %3947 = vmatpush1.bf16.msra.mxu0 %v3849
    %3948 = vmatprep.subr.bf16.mxu0 %v3852
    %3949 = vmatpush1.bf16.msra.mxu0 %v3851
    %3950 = vmatprep.subr.bf16.mxu0 %v3854
    %3951 = vmatpush1.bf16.msra.mxu0 %v3853
    %3952 = vmatprep.subr.bf16.mxu0 0
    %3953 = vmatpush1.bf16.msra.mxu0 0
    %3954 = vmatprep.subr.bf16.mxu0 0
    %3955 = vmatpush1.bf16.msra.mxu0 0
    %3956 = vmatprep.subr.bf16.mxu0 0
    %3957 = vmatpush1.bf16.msra.mxu0 0
    %3958 = vmatprep.subr.bf16.mxu0 0
    %3959 = vmatpush1.bf16.msra.mxu0 0
    %3960 = vmatprep.subr.bf16.mxu0 0
    %3961 = vmatpush1.bf16.msra.mxu0 0
    %3962 = vmatprep.subr.bf16.mxu0 0
    %3963 = vmatpush1.bf16.msra.mxu0 0
    %3964 = vmatprep.subr.bf16.mxu0 0
    %3965 = vmatpush1.bf16.msra.mxu0 0
    %3966 = vmatprep.subr.bf16.mxu0 0
    %3967 = vmatpush1.bf16.msra.mxu0 0
    %3968 = vmatprep.mubr.bf16.mxu0 0
    %3969 = vmatmul.mubr.bf16.gmra.mrb[0].mxu0 %v3859
    %v3970 = vpop.f32.mrb[0].mxu0
    %v3971 = vadd.f32 0.0, %v3970
    %v3972 = vpop.f32.mrb[0].mxu0
    %v3973 = vadd.f32 0.0, %v3972
    %v3974 = vpop.f32.mrb[0].mxu0
    %v3975 = vadd.f32 0.0, %v3974
    %v3976 = vpop.f32.mrb[0].mxu0
    %v3977 = vadd.f32 0.0, %v3976
    %3978 = vmatprep.mubr.bf16.mxu0 0
    %3979 = vmatmul.mubr.bf16.gmra.mrb[0].mxu0 %v3860
    %v3980 = vpop.f32.mrb[0].mxu0
    %v3981 = vadd.f32 0.0, %v3980
    %v3982 = vpop.f32.mrb[0].mxu0
    %v3983 = vadd.f32 0.0, %v3982
    %v3984 = vpop.f32.mrb[0].mxu0
    %v3985 = vadd.f32 0.0, %v3984
    %v3986 = vpop.f32.mrb[0].mxu0
    %v3987 = vadd.f32 0.0, %v3986
    %3988 = vmatprep.mubr.bf16.mxu0 0
    %3989 = vmatmul.mubr.bf16.gmra.mrb[0].mxu0 %v3861
    %v3990 = vpop.f32.mrb[0].mxu0
    %v3991 = vadd.f32 0.0, %v3990
    %v3992 = vpop.f32.mrb[0].mxu0
    %v3993 = vadd.f32 0.0, %v3992
    %v3994 = vpop.f32.mrb[0].mxu0
    %v3995 = vadd.f32 0.0, %v3994
    %v3996 = vpop.f32.mrb[0].mxu0
    %v3997 = vadd.f32 0.0, %v3996
    %3998 = vmatprep.mubr.bf16.mxu0 0
    %3999 = vmatmul.mubr.bf16.gmra.mrb[0].mxu0 %v3862
    %v4000 = vpop.f32.mrb[0].mxu0
    %v4001 = vadd.f32 0.0, %v4000
    %v4002 = vpop.f32.mrb[0].mxu0
    %v4003 = vadd.f32 0.0, %v4002
    %v4004 = vpop.f32.mrb[0].mxu0
    %v4005 = vadd.f32 0.0, %v4004
    %v4006 = vpop.f32.mrb[0].mxu0
    %v4007 = vadd.f32 0.0, %v4006
    %4008 = vdwg.mxu0
    %v4009 = vadd.f32 %v3900, 1e-06
    %v4010 = vadd.f32 %v3904, 1e-06
    %v4011 = vadd.f32 %v3910, 1e-06
    %v4012 = vadd.f32 %v3914, 1e-06
    %v4013 = vadd.f32 %v3920, 1e-06
    %v4014 = vadd.f32 %v3924, 1e-06
    %v4015 = vadd.f32 %v3930, 1e-06
    %v4016 = vadd.f32 %v3934, 1e-06
    %v4017 = vadd.f32 %v3973, 1e-06
    %v4018 = vadd.f32 %v3977, 1e-06
    %v4019 = vadd.f32 %v3983, 1e-06
    %v4020 = vadd.f32 %v3987, 1e-06
    %v4021 = vadd.f32 %v3993, 1e-06
    %v4022 = vadd.f32 %v3997, 1e-06
    %v4023 = vadd.f32 %v4003, 1e-06
    %v4024 = vadd.f32 %v4007, 1e-06
    %v4025 = vrcp.pop %v4009
    %v4026 = vrcp.pop %v4010
    %v4027 = vrcp.pop %v4011
    %v4028 = vrcp.pop %v4012
    %v4029 = vrcp.pop %v4013
    %v4030 = vrcp.pop %v4014
    %v4031 = vrcp.pop %v4015
    %v4032 = vrcp.pop %v4016
    %v4033 = vrcp.pop %v4017
    %v4034 = vrcp.pop %v4018
    %v4035 = vrcp.pop %v4019
    %v4036 = vrcp.pop %v4020
    %v4037 = vrcp.pop %v4021
    %v4038 = vrcp.pop %v4022
    %v4039 = vrcp.pop %v4023
    %v4040 = vrcp.pop %v4024
    %v4041 = vmul.f32 %v3898, %v4025
    %v4042 = vmul.f32 %v3902, %v4026
    %v4043 = vmul.f32 %v3908, %v4027
    %v4044 = vmul.f32 %v3912, %v4028
    %v4045 = vmul.f32 %v3918, %v4029
    %v4046 = vmul.f32 %v3922, %v4030
    %v4047 = vmul.f32 %v3928, %v4031
    %v4048 = vmul.f32 %v3932, %v4032
    %v4049 = vmul.f32 %v3971, %v4033
    %v4050 = vmul.f32 %v3975, %v4034
    %v4051 = vmul.f32 %v3981, %v4035
    %v4052 = vmul.f32 %v3985, %v4036
    %v4053 = vmul.f32 %v3991, %v4037
    %v4054 = vmul.f32 %v3995, %v4038
    %v4055 = vmul.f32 %v4001, %v4039
    %v4056 = vmul.f32 %v4005, %v4040
    %v4057 = vpack.c.bf16 %v4042, %v4041
    %v4058 = vpack.c.bf16 %v4044, %v4043
    %v4059 = vpack.c.bf16 %v4046, %v4045
    %v4060 = vpack.c.bf16 %v4048, %v4047
    %v4061 = vpack.c.bf16 %v4050, %v4049
    %v4062 = vpack.c.bf16 %v4052, %v4051
    %v4063 = vpack.c.bf16 %v4054, %v4053
    %v4064 = vpack.c.bf16 %v4056, %v4055
    %v4081 = vunpack.c.l.b16 %v2818
    %v4082 = vunpack.c.l.b16 %v2819
    %v4083 = vunpack.c.l.b16 %v2820
    %v4084 = vunpack.c.l.b16 %v2821
    %v4085 = vunpack.c.l.b16 %v2822
    %v4086 = vunpack.c.l.b16 %v2823
    %v4087 = vunpack.c.l.b16 %v2824
    %v4088 = vunpack.c.l.b16 %v2825
    %v4089 = vunpack.c.l.b16 %v2826
    %v4090 = vunpack.c.l.b16 %v2827
    %v4091 = vunpack.c.l.b16 %v2828
    %v4092 = vunpack.c.l.b16 %v2829
    %v4093 = vunpack.c.l.b16 %v2830
    %v4094 = vunpack.c.l.b16 %v2831
    %v4095 = vunpack.c.l.b16 %v2832
    %v4096 = vunpack.c.l.b16 %v2833
    %v4097 = vpack.c.b16 %v4082, %v4081
    %v4098 = vpack.c.b16 %v4084, %v4083
    %v4099 = vpack.c.b16 %v4086, %v4085
    %v4100 = vpack.c.b16 %v4088, %v4087
    %v4101 = vpack.c.b16 %v4090, %v4089
    %v4102 = vpack.c.b16 %v4092, %v4091
    %v4103 = vpack.c.b16 %v4094, %v4093
    %v4104 = vpack.c.b16 %v4096, %v4095
    %4113 = vmatprep.subr.bf16.mxu0 0
    %4114 = vmatpush1.bf16.msra.mxu0 %v4097
    %4115 = vmatprep.subr.bf16.mxu0 0
    %4116 = vmatpush1.bf16.msra.mxu0 %v4098
    %4117 = vmatprep.subr.bf16.mxu0 0
    %4118 = vmatpush1.bf16.msra.mxu0 %v4099
    %4119 = vmatprep.subr.bf16.mxu0 0
    %4120 = vmatpush1.bf16.msra.mxu0 %v4100
    %4121 = vmatprep.subr.bf16.mxu0 0
    %4122 = vmatpush1.bf16.msra.mxu0 %v4101
    %4123 = vmatprep.subr.bf16.mxu0 0
    %4124 = vmatpush1.bf16.msra.mxu0 %v4102
    %4125 = vmatprep.subr.bf16.mxu0 0
    %4126 = vmatpush1.bf16.msra.mxu0 %v4103
    %4127 = vmatprep.subr.bf16.mxu0 0
    %4128 = vmatpush1.bf16.msra.mxu0 %v4104
    %4129 = vmatprep.subr.bf16.mxu0 0
    %4130 = vmatpush1.bf16.msra.mxu0 0
    %4131 = vmatprep.subr.bf16.mxu0 0
    %4132 = vmatpush1.bf16.msra.mxu0 0
    %4133 = vmatprep.subr.bf16.mxu0 0
    %4134 = vmatpush1.bf16.msra.mxu0 0
    %4135 = vmatprep.subr.bf16.mxu0 0
    %4136 = vmatpush1.bf16.msra.mxu0 0
    %4137 = vmatprep.subr.bf16.mxu0 0
    %4138 = vmatpush1.bf16.msra.mxu0 0
    %4139 = vmatprep.subr.bf16.mxu0 0
    %4140 = vmatpush1.bf16.msra.mxu0 0
    %4141 = vmatprep.subr.bf16.mxu0 0
    %4142 = vmatpush1.bf16.msra.mxu0 0
    %4143 = vmatprep.subr.bf16.mxu0 0
    %4144 = vmatpush1.bf16.msra.mxu0 0
    %4145 = vmatprep.mubr.bf16.mxu0 0
    %4146 = vmatmul.mubr.bf16.gmra.mrb[0].mxu0 %v4057
    %v4147 = vpop.f32.mrb[0].mxu0
    %v4148 = vadd.f32 0.0, %v4147
    %v4149 = vpop.f32.mrb[0].mxu0
    %v4150 = vpop.f32.mrb[0].mxu0
    %v4151 = vadd.f32 0.0, %v4150
    %v4152 = vpop.f32.mrb[0].mxu0
    %4153 = vmatprep.mubr.bf16.mxu0 0
    %4154 = vmatmul.mubr.bf16.gmra.mrb[0].mxu0 %v4058
    %v4155 = vpop.f32.mrb[0].mxu0
    %v4156 = vadd.f32 0.0, %v4155
    %v4157 = vpop.f32.mrb[0].mxu0
    %v4158 = vpop.f32.mrb[0].mxu0
    %v4159 = vadd.f32 0.0, %v4158
    %v4160 = vpop.f32.mrb[0].mxu0
    %4161 = vmatprep.mubr.bf16.mxu0 0
    %4162 = vmatmul.mubr.bf16.gmra.mrb[0].mxu0 %v4059
    %v4163 = vpop.f32.mrb[0].mxu0
    %v4164 = vadd.f32 0.0, %v4163
    %v4165 = vpop.f32.mrb[0].mxu0
    %v4166 = vpop.f32.mrb[0].mxu0
    %v4167 = vadd.f32 0.0, %v4166
    %v4168 = vpop.f32.mrb[0].mxu0
    %4169 = vmatprep.mubr.bf16.mxu0 0
    %4170 = vmatmul.mubr.bf16.gmra.mrb[0].mxu0 %v4060
    %v4171 = vpop.f32.mrb[0].mxu0
    %v4172 = vadd.f32 0.0, %v4171
    %v4173 = vpop.f32.mrb[0].mxu0
    %v4174 = vpop.f32.mrb[0].mxu0
    %v4175 = vadd.f32 0.0, %v4174
    %v4176 = vpop.f32.mrb[0].mxu0
    %4177 = vmatprep.mubr.bf16.mxu0 0
    %4178 = vmatmul.mubr.bf16.gmra.mrb[0].mxu0 %v4061
    %v4179 = vpop.f32.mrb[0].mxu0
    %v4180 = vadd.f32 0.0, %v4179
    %v4181 = vpop.f32.mrb[0].mxu0
    %v4182 = vpop.f32.mrb[0].mxu0
    %v4183 = vadd.f32 0.0, %v4182
    %v4184 = vpop.f32.mrb[0].mxu0
    %4185 = vmatprep.mubr.bf16.mxu0 0
    %4186 = vmatmul.mubr.bf16.gmra.mrb[0].mxu0 %v4062
    %v4187 = vpop.f32.mrb[0].mxu0
    %v4188 = vadd.f32 0.0, %v4187
    %v4189 = vpop.f32.mrb[0].mxu0
    %v4190 = vpop.f32.mrb[0].mxu0
    %v4191 = vadd.f32 0.0, %v4190
    %v4192 = vpop.f32.mrb[0].mxu0
    %4193 = vmatprep.mubr.bf16.mxu0 0
    %4194 = vmatmul.mubr.bf16.gmra.mrb[0].mxu0 %v4063
    %v4195 = vpop.f32.mrb[0].mxu0
    %v4196 = vadd.f32 0.0, %v4195
    %v4197 = vpop.f32.mrb[0].mxu0
    %v4198 = vpop.f32.mrb[0].mxu0
    %v4199 = vadd.f32 0.0, %v4198
    %v4200 = vpop.f32.mrb[0].mxu0
    %4201 = vmatprep.mubr.bf16.mxu0 0
    %4202 = vmatmul.mubr.bf16.gmra.mrb[0].mxu0 %v4064
    %v4203 = vpop.f32.mrb[0].mxu0
    %v4204 = vadd.f32 0.0, %v4203
    %v4205 = vpop.f32.mrb[0].mxu0
    %v4206 = vpop.f32.mrb[0].mxu0
    %v4207 = vadd.f32 0.0, %v4206
    %v4208 = vpop.f32.mrb[0].mxu0
    %4209 = vdwg.mxu0
    %4210 = vadd.xlane.f32.xlu0 %v4148
    %v4211 = vpop.xlane.xlu0 %4210
    %4212 = vadd.xlane.f32.xlu0 %v4151
    %v4213 = vpop.xlane.xlu0 %4212
    %4214 = vadd.xlane.f32.xlu0 %v4156
    %v4215 = vpop.xlane.xlu0 %4214
    %4216 = vadd.xlane.f32.xlu0 %v4159
    %v4217 = vpop.xlane.xlu0 %4216
    %4218 = vadd.xlane.f32.xlu0 %v4164
    %v4219 = vpop.xlane.xlu0 %4218
    %4220 = vadd.xlane.f32.xlu0 %v4167
    %v4221 = vpop.xlane.xlu0 %4220
    %4222 = vadd.xlane.f32.xlu0 %v4172
    %v4223 = vpop.xlane.xlu0 %4222
    %4224 = vadd.xlane.f32.xlu0 %v4175
    %v4225 = vpop.xlane.xlu0 %4224
    %4226 = vadd.xlane.f32.xlu0 %v4180
    %v4227 = vpop.xlane.xlu0 %4226
    %4228 = vadd.xlane.f32.xlu0 %v4183
    %v4229 = vpop.xlane.xlu0 %4228
    %4230 = vadd.xlane.f32.xlu0 %v4188
    %v4231 = vpop.xlane.xlu0 %4230
    %4232 = vadd.xlane.f32.xlu0 %v4191
    %v4233 = vpop.xlane.xlu0 %4232
    %4234 = vadd.xlane.f32.xlu0 %v4196
    %v4235 = vpop.xlane.xlu0 %4234
    %4236 = vadd.xlane.f32.xlu0 %v4199
    %v4237 = vpop.xlane.xlu0 %4236
    %4238 = vadd.xlane.f32.xlu0 %v4204
    %v4239 = vpop.xlane.xlu0 %4238
    %4240 = vadd.xlane.f32.xlu0 %v4207
    %v4241 = vpop.xlane.xlu0 %4240
    %v4242 = vmul.f32 %v4211, %v1638
    %v4243 = vmul.f32 %v4213, %v1638
    %v4244 = vmul.f32 %v4215, %v1638
    %v4245 = vmul.f32 %v4217, %v1638
    %v4246 = vmul.f32 %v4219, %v1638
    %v4247 = vmul.f32 %v4221, %v1638
    %v4248 = vmul.f32 %v4223, %v1638
    %v4249 = vmul.f32 %v4225, %v1638
    %v4250 = vmul.f32 %v4227, %v1638
    %v4251 = vmul.f32 %v4229, %v1638
    %v4252 = vmul.f32 %v4231, %v1638
    %v4253 = vmul.f32 %v4233, %v1638
    %v4254 = vmul.f32 %v4235, %v1638
    %v4255 = vmul.f32 %v4237, %v1638
    %v4256 = vmul.f32 %v4239, %v1638
    %v4257 = vmul.f32 %v4241, %v1638
    %v4258 = vmul.f32 %v4148, %v4148
    %v4259 = vmul.f32 %v4151, %v4151
    %v4260 = vmul.f32 %v4156, %v4156
    %v4261 = vmul.f32 %v4159, %v4159
    %v4262 = vmul.f32 %v4164, %v4164
    %v4263 = vmul.f32 %v4167, %v4167
    %v4264 = vmul.f32 %v4172, %v4172
    %v4265 = vmul.f32 %v4175, %v4175
    %v4266 = vmul.f32 %v4180, %v4180
    %v4267 = vmul.f32 %v4183, %v4183
    %v4268 = vmul.f32 %v4188, %v4188
    %v4269 = vmul.f32 %v4191, %v4191
    %v4270 = vmul.f32 %v4196, %v4196
    %v4271 = vmul.f32 %v4199, %v4199
    %v4272 = vmul.f32 %v4204, %v4204
    %v4273 = vmul.f32 %v4207, %v4207
    %4274 = vadd.xlane.f32.xlu0 %v4258
    %v4275 = vpop.xlane.xlu0 %4274
    %4276 = vadd.xlane.f32.xlu0 %v4259
    %v4277 = vpop.xlane.xlu0 %4276
    %4278 = vadd.xlane.f32.xlu0 %v4260
    %v4279 = vpop.xlane.xlu0 %4278
    %4280 = vadd.xlane.f32.xlu0 %v4261
    %v4281 = vpop.xlane.xlu0 %4280
    %4282 = vadd.xlane.f32.xlu0 %v4262
    %v4283 = vpop.xlane.xlu0 %4282
    %4284 = vadd.xlane.f32.xlu0 %v4263
    %v4285 = vpop.xlane.xlu0 %4284
    %4286 = vadd.xlane.f32.xlu0 %v4264
    %v4287 = vpop.xlane.xlu0 %4286
    %4288 = vadd.xlane.f32.xlu0 %v4265
    %v4289 = vpop.xlane.xlu0 %4288
    %4290 = vadd.xlane.f32.xlu0 %v4266
    %v4291 = vpop.xlane.xlu0 %4290
    %4292 = vadd.xlane.f32.xlu0 %v4267
    %v4293 = vpop.xlane.xlu0 %4292
    %4294 = vadd.xlane.f32.xlu0 %v4268
    %v4295 = vpop.xlane.xlu0 %4294
    %4296 = vadd.xlane.f32.xlu0 %v4269
    %v4297 = vpop.xlane.xlu0 %4296
    %4298 = vadd.xlane.f32.xlu0 %v4270
    %v4299 = vpop.xlane.xlu0 %4298
    %4300 = vadd.xlane.f32.xlu0 %v4271
    %v4301 = vpop.xlane.xlu0 %4300
    %4302 = vadd.xlane.f32.xlu0 %v4272
    %v4303 = vpop.xlane.xlu0 %4302
    %4304 = vadd.xlane.f32.xlu0 %v4273
    %v4305 = vpop.xlane.xlu0 %4304
    %v4306 = vmul.f32 %v4275, %v1638
    %v4307 = vmul.f32 %v4277, %v1638
    %v4308 = vmul.f32 %v4279, %v1638
    %v4309 = vmul.f32 %v4281, %v1638
    %v4310 = vmul.f32 %v4283, %v1638
    %v4311 = vmul.f32 %v4285, %v1638
    %v4312 = vmul.f32 %v4287, %v1638
    %v4313 = vmul.f32 %v4289, %v1638
    %v4314 = vmul.f32 %v4291, %v1638
    %v4315 = vmul.f32 %v4293, %v1638
    %v4316 = vmul.f32 %v4295, %v1638
    %v4317 = vmul.f32 %v4297, %v1638
    %v4318 = vmul.f32 %v4299, %v1638
    %v4319 = vmul.f32 %v4301, %v1638
    %v4320 = vmul.f32 %v4303, %v1638
    %v4321 = vmul.f32 %v4305, %v1638
    %v4322 = vmul.f32 %v4242, %v4242
    %v4323 = vmul.f32 %v4243, %v4243
    %v4324 = vmul.f32 %v4244, %v4244
    %v4325 = vmul.f32 %v4245, %v4245
    %v4326 = vmul.f32 %v4246, %v4246
    %v4327 = vmul.f32 %v4247, %v4247
    %v4328 = vmul.f32 %v4248, %v4248
    %v4329 = vmul.f32 %v4249, %v4249
    %v4330 = vmul.f32 %v4250, %v4250
    %v4331 = vmul.f32 %v4251, %v4251
    %v4332 = vmul.f32 %v4252, %v4252
    %v4333 = vmul.f32 %v4253, %v4253
    %v4334 = vmul.f32 %v4254, %v4254
    %v4335 = vmul.f32 %v4255, %v4255
    %v4336 = vmul.f32 %v4256, %v4256
    %v4337 = vmul.f32 %v4257, %v4257
    %v4338 = vsub.f32 %v4306, %v4322
    %v4339 = vsub.f32 %v4307, %v4323
    %v4340 = vsub.f32 %v4308, %v4324
    %v4341 = vsub.f32 %v4309, %v4325
    %v4342 = vsub.f32 %v4310, %v4326
    %v4343 = vsub.f32 %v4311, %v4327
    %v4344 = vsub.f32 %v4312, %v4328
    %v4345 = vsub.f32 %v4313, %v4329
    %v4346 = vsub.f32 %v4314, %v4330
    %v4347 = vsub.f32 %v4315, %v4331
    %v4348 = vsub.f32 %v4316, %v4332
    %v4349 = vsub.f32 %v4317, %v4333
    %v4350 = vsub.f32 %v4318, %v4334
    %v4351 = vsub.f32 %v4319, %v4335
    %v4352 = vsub.f32 %v4320, %v4336
    %v4353 = vsub.f32 %v4321, %v4337
    %v4354 = vmax.f32 %v4338, 0.0
    %v4355 = vmax.f32 %v4339, 0.0
    %v4356 = vmax.f32 %v4340, 0.0
    %v4357 = vmax.f32 %v4341, 0.0
    %v4358 = vmax.f32 %v4342, 0.0
    %v4359 = vmax.f32 %v4343, 0.0
    %v4360 = vmax.f32 %v4344, 0.0
    %v4361 = vmax.f32 %v4345, 0.0
    %v4362 = vmax.f32 %v4346, 0.0
    %v4363 = vmax.f32 %v4347, 0.0
    %v4364 = vmax.f32 %v4348, 0.0
    %v4365 = vmax.f32 %v4349, 0.0
    %v4366 = vmax.f32 %v4350, 0.0
    %v4367 = vmax.f32 %v4351, 0.0
    %v4368 = vmax.f32 %v4352, 0.0
    %v4369 = vmax.f32 %v4353, 0.0
    %v4370 = vsub.f32 %v4148, %v4242
    %v4371 = vsub.f32 %v4151, %v4243
    %v4372 = vsub.f32 %v4156, %v4244
    %v4373 = vsub.f32 %v4159, %v4245
    %v4374 = vsub.f32 %v4164, %v4246
    %v4375 = vsub.f32 %v4167, %v4247
    %v4376 = vsub.f32 %v4172, %v4248
    %v4377 = vsub.f32 %v4175, %v4249
    %v4378 = vsub.f32 %v4180, %v4250
    %v4379 = vsub.f32 %v4183, %v4251
    %v4380 = vsub.f32 %v4188, %v4252
    %v4381 = vsub.f32 %v4191, %v4253
    %v4382 = vsub.f32 %v4196, %v4254
    %v4383 = vsub.f32 %v4199, %v4255
    %v4384 = vsub.f32 %v4204, %v4256
    %v4385 = vsub.f32 %v4207, %v4257
    %v4386 = vadd.f32 %v4354, 1e-05
    %v4387 = vadd.f32 %v4355, 1e-05
    %v4388 = vadd.f32 %v4356, 1e-05
    %v4389 = vadd.f32 %v4357, 1e-05
    %v4390 = vadd.f32 %v4358, 1e-05
    %v4391 = vadd.f32 %v4359, 1e-05
    %v4392 = vadd.f32 %v4360, 1e-05
    %v4393 = vadd.f32 %v4361, 1e-05
    %v4394 = vadd.f32 %v4362, 1e-05
    %v4395 = vadd.f32 %v4363, 1e-05
    %v4396 = vadd.f32 %v4364, 1e-05
    %v4397 = vadd.f32 %v4365, 1e-05
    %v4398 = vadd.f32 %v4366, 1e-05
    %v4399 = vadd.f32 %v4367, 1e-05
    %v4400 = vadd.f32 %v4368, 1e-05
    %v4401 = vadd.f32 %v4369, 1e-05
    %v4402 = vrsqrt.pop %v4386
    %v4403 = vrsqrt.pop %v4387
    %v4404 = vrsqrt.pop %v4388
    %v4405 = vrsqrt.pop %v4389
    %v4406 = vrsqrt.pop %v4390
    %v4407 = vrsqrt.pop %v4391
    %v4408 = vrsqrt.pop %v4392
    %v4409 = vrsqrt.pop %v4393
    %v4410 = vrsqrt.pop %v4394
    %v4411 = vrsqrt.pop %v4395
    %v4412 = vrsqrt.pop %v4396
    %v4413 = vrsqrt.pop %v4397
    %v4414 = vrsqrt.pop %v4398
    %v4415 = vrsqrt.pop %v4399
    %v4416 = vrsqrt.pop %v4400
    %v4417 = vrsqrt.pop %v4401
    %v4418 = vmul.f32 %v4370, %v4402
    %v4419 = vmul.f32 %v4371, %v4403
    %v4420 = vmul.f32 %v4372, %v4404
    %v4421 = vmul.f32 %v4373, %v4405
    %v4422 = vmul.f32 %v4374, %v4406
    %v4423 = vmul.f32 %v4375, %v4407
    %v4424 = vmul.f32 %v4376, %v4408
    %v4425 = vmul.f32 %v4377, %v4409
    %v4426 = vmul.f32 %v4378, %v4410
    %v4427 = vmul.f32 %v4379, %v4411
    %v4428 = vmul.f32 %v4380, %v4412
    %v4429 = vmul.f32 %v4381, %v4413
    %v4430 = vmul.f32 %v4382, %v4414
    %v4431 = vmul.f32 %v4383, %v4415
    %v4432 = vmul.f32 %v4384, %v4416
    %v4433 = vmul.f32 %v4385, %v4417
    %v4434 = vlaneseq
    %v4435 = vshrl.u32 %v4434, 7
    %v4436 = vsub.s32 0, %v4435
    %v4437 = vrot.slane %v2898, %v4436
    %v4438 = vmul.f32 %v4418, %v4437
    %v4439 = vmul.f32 %v4419, %v4437
    %v4440 = vmul.f32 %v4420, %v4437
    %v4441 = vmul.f32 %v4421, %v4437
    %v4442 = vmul.f32 %v4422, %v4437
    %v4443 = vmul.f32 %v4423, %v4437
    %v4444 = vmul.f32 %v4424, %v4437
    %v4445 = vmul.f32 %v4425, %v4437
    %v4446 = vmul.f32 %v4426, %v4437
    %v4447 = vmul.f32 %v4427, %v4437
    %v4448 = vmul.f32 %v4428, %v4437
    %v4449 = vmul.f32 %v4429, %v4437
    %v4450 = vmul.f32 %v4430, %v4437
    %v4451 = vmul.f32 %v4431, %v4437
    %v4452 = vmul.f32 %v4432, %v4437
    %v4453 = vmul.f32 %v4433, %v4437
    %v4454 = vlaneseq
    %v4455 = vshrl.u32 %v4454, 7
    %v4456 = vsub.s32 1, %v4455
    %v4457 = vrot.slane %v2898, %v4456
    %v4458 = vadd.f32 %v4438, %v4457
    %v4459 = vadd.f32 %v4439, %v4457
    %v4460 = vadd.f32 %v4440, %v4457
    %v4461 = vadd.f32 %v4441, %v4457
    %v4462 = vadd.f32 %v4442, %v4457
    %v4463 = vadd.f32 %v4443, %v4457
    %v4464 = vadd.f32 %v4444, %v4457
    %v4465 = vadd.f32 %v4445, %v4457
    %v4466 = vadd.f32 %v4446, %v4457
    %v4467 = vadd.f32 %v4447, %v4457
    %v4468 = vadd.f32 %v4448, %v4457
    %v4469 = vadd.f32 %v4449, %v4457
    %v4470 = vadd.f32 %v4450, %v4457
    %v4471 = vadd.f32 %v4451, %v4457
    %v4472 = vadd.f32 %v4452, %v4457
    %v4473 = vadd.f32 %v4453, %v4457
    %v4474 = vpack.c.bf16 %v4459, %v4458
    %v4475 = vpack.c.bf16 %v4461, %v4460
    %v4476 = vpack.c.bf16 %v4463, %v4462
    %v4477 = vpack.c.bf16 %v4465, %v4464
    %v4478 = vpack.c.bf16 %v4467, %v4466
    %v4479 = vpack.c.bf16 %v4469, %v4468
    %v4480 = vpack.c.bf16 %v4471, %v4470
    %v4481 = vpack.c.bf16 %v4473, %v4472
    %v4498 = vunpack.c.l.b16 %v2850
    %v4499 = vunpack.c.h.b16 %v2850
    %v4500 = vunpack.c.l.b16 %v2851
    %v4501 = vunpack.c.h.b16 %v2851
    %v4502 = vunpack.c.l.b16 %v2852
    %v4503 = vunpack.c.h.b16 %v2852
    %v4504 = vunpack.c.l.b16 %v2853
    %v4505 = vunpack.c.h.b16 %v2853
    %v4506 = vunpack.c.l.b16 %v2854
    %v4507 = vunpack.c.h.b16 %v2854
    %v4508 = vunpack.c.l.b16 %v2855
    %v4509 = vunpack.c.h.b16 %v2855
    %v4510 = vunpack.c.l.b16 %v2856
    %v4511 = vunpack.c.h.b16 %v2856
    %v4512 = vunpack.c.l.b16 %v2857
    %v4513 = vunpack.c.h.b16 %v2857
    %v4514 = vunpack.c.l.b16 %v2858
    %v4515 = vunpack.c.h.b16 %v2858
    %v4516 = vunpack.c.l.b16 %v2859
    %v4517 = vunpack.c.h.b16 %v2859
    %v4518 = vunpack.c.l.b16 %v2860
    %v4519 = vunpack.c.h.b16 %v2860
    %v4520 = vunpack.c.l.b16 %v2861
    %v4521 = vunpack.c.h.b16 %v2861
    %v4522 = vunpack.c.l.b16 %v2862
    %v4523 = vunpack.c.h.b16 %v2862
    %v4524 = vunpack.c.l.b16 %v2863
    %v4525 = vunpack.c.h.b16 %v2863
    %v4526 = vunpack.c.l.b16 %v2864
    %v4527 = vunpack.c.h.b16 %v2864
    %v4528 = vunpack.c.l.b16 %v2865
    %v4529 = vunpack.c.h.b16 %v2865
    %v4530 = vpack.c.b16 %v4500, %v4498
    %v4531 = vpack.c.b16 %v4501, %v4499
    %v4532 = vpack.c.b16 %v4504, %v4502
    %v4533 = vpack.c.b16 %v4505, %v4503
    %v4534 = vpack.c.b16 %v4508, %v4506
    %v4535 = vpack.c.b16 %v4509, %v4507
    %v4536 = vpack.c.b16 %v4512, %v4510
    %v4537 = vpack.c.b16 %v4513, %v4511
    %v4538 = vpack.c.b16 %v4516, %v4514
    %v4539 = vpack.c.b16 %v4517, %v4515
    %v4540 = vpack.c.b16 %v4520, %v4518
    %v4541 = vpack.c.b16 %v4521, %v4519
    %v4542 = vpack.c.b16 %v4524, %v4522
    %v4543 = vpack.c.b16 %v4525, %v4523
    %v4544 = vpack.c.b16 %v4528, %v4526
    %v4545 = vpack.c.b16 %v4529, %v4527
    %4562 = vmatprep.subr.bf16.mxu0 %v4531
    %4563 = vmatpush1.bf16.msra.mxu0 %v4530
    %4564 = vmatprep.subr.bf16.mxu0 %v4533
    %4565 = vmatpush1.bf16.msra.mxu0 %v4532
    %4566 = vmatprep.subr.bf16.mxu0 %v4535
    %4567 = vmatpush1.bf16.msra.mxu0 %v4534
    %4568 = vmatprep.subr.bf16.mxu0 %v4537
    %4569 = vmatpush1.bf16.msra.mxu0 %v4536
    %4570 = vmatprep.subr.bf16.mxu0 %v4539
    %4571 = vmatpush1.bf16.msra.mxu0 %v4538
    %4572 = vmatprep.subr.bf16.mxu0 %v4541
    %4573 = vmatpush1.bf16.msra.mxu0 %v4540
    %4574 = vmatprep.subr.bf16.mxu0 %v4543
    %4575 = vmatpush1.bf16.msra.mxu0 %v4542
    %4576 = vmatprep.subr.bf16.mxu0 %v4545
    %4577 = vmatpush1.bf16.msra.mxu0 %v4544
    %4578 = vmatprep.subr.bf16.mxu0 0
    %4579 = vmatpush1.bf16.msra.mxu0 0
    %4580 = vmatprep.subr.bf16.mxu0 0
    %4581 = vmatpush1.bf16.msra.mxu0 0
    %4582 = vmatprep.subr.bf16.mxu0 0
    %4583 = vmatpush1.bf16.msra.mxu0 0
    %4584 = vmatprep.subr.bf16.mxu0 0
    %4585 = vmatpush1.bf16.msra.mxu0 0
    %4586 = vmatprep.subr.bf16.mxu0 0
    %4587 = vmatpush1.bf16.msra.mxu0 0
    %4588 = vmatprep.subr.bf16.mxu0 0
    %4589 = vmatpush1.bf16.msra.mxu0 0
    %4590 = vmatprep.subr.bf16.mxu0 0
    %4591 = vmatpush1.bf16.msra.mxu0 0
    %4592 = vmatprep.subr.bf16.mxu0 0
    %4593 = vmatpush1.bf16.msra.mxu0 0
    %4594 = vmatprep.mubr.bf16.mxu0 0
    %4595 = vmatmul.mubr.bf16.gmra.mrb[0].mxu0 %v4474
    %v4596 = vpop.f32.mrb[0].mxu0
    %v4597 = vadd.f32 0.0, %v4596
    %v4598 = vpop.f32.mrb[0].mxu0
    %v4599 = vadd.f32 0.0, %v4598
    %v4600 = vpop.f32.mrb[0].mxu0
    %v4601 = vadd.f32 0.0, %v4600
    %v4602 = vpop.f32.mrb[0].mxu0
    %v4603 = vadd.f32 0.0, %v4602
    %4604 = vmatprep.mubr.bf16.mxu0 0
    %4605 = vmatmul.mubr.bf16.gmra.mrb[0].mxu0 %v4475
    %v4606 = vpop.f32.mrb[0].mxu0
    %v4607 = vadd.f32 0.0, %v4606
    %v4608 = vpop.f32.mrb[0].mxu0
    %v4609 = vadd.f32 0.0, %v4608
    %v4610 = vpop.f32.mrb[0].mxu0
    %v4611 = vadd.f32 0.0, %v4610
    %v4612 = vpop.f32.mrb[0].mxu0
    %v4613 = vadd.f32 0.0, %v4612
    %4614 = vmatprep.mubr.bf16.mxu0 0
    %4615 = vmatmul.mubr.bf16.gmra.mrb[0].mxu0 %v4476
    %v4616 = vpop.f32.mrb[0].mxu0
    %v4617 = vadd.f32 0.0, %v4616
    %v4618 = vpop.f32.mrb[0].mxu0
    %v4619 = vadd.f32 0.0, %v4618
    %v4620 = vpop.f32.mrb[0].mxu0
    %v4621 = vadd.f32 0.0, %v4620
    %v4622 = vpop.f32.mrb[0].mxu0
    %v4623 = vadd.f32 0.0, %v4622
    %4624 = vmatprep.mubr.bf16.mxu0 0
    %4625 = vmatmul.mubr.bf16.gmra.mrb[0].mxu0 %v4477
    %v4626 = vpop.f32.mrb[0].mxu0
    %v4627 = vadd.f32 0.0, %v4626
    %v4628 = vpop.f32.mrb[0].mxu0
    %v4629 = vadd.f32 0.0, %v4628
    %v4630 = vpop.f32.mrb[0].mxu0
    %v4631 = vadd.f32 0.0, %v4630
    %v4632 = vpop.f32.mrb[0].mxu0
    %v4633 = vadd.f32 0.0, %v4632
    %4634 = vmatprep.mubr.bf16.mxu0 0
    %4635 = vmatmul.mubr.bf16.gmra.mrb[0].mxu0 %v4478
    %v4636 = vpop.f32.mrb[0].mxu0
    %v4637 = vadd.f32 0.0, %v4636
    %v4638 = vpop.f32.mrb[0].mxu0
    %v4639 = vadd.f32 0.0, %v4638
    %v4640 = vpop.f32.mrb[0].mxu0
    %v4641 = vadd.f32 0.0, %v4640
    %v4642 = vpop.f32.mrb[0].mxu0
    %v4643 = vadd.f32 0.0, %v4642
    %4644 = vmatprep.mubr.bf16.mxu0 0
    %4645 = vmatmul.mubr.bf16.gmra.mrb[0].mxu0 %v4479
    %v4646 = vpop.f32.mrb[0].mxu0
    %v4647 = vadd.f32 0.0, %v4646
    %v4648 = vpop.f32.mrb[0].mxu0
    %v4649 = vadd.f32 0.0, %v4648
    %v4650 = vpop.f32.mrb[0].mxu0
    %v4651 = vadd.f32 0.0, %v4650
    %v4652 = vpop.f32.mrb[0].mxu0
    %v4653 = vadd.f32 0.0, %v4652
    %4654 = vmatprep.mubr.bf16.mxu0 0
    %4655 = vmatmul.mubr.bf16.gmra.mrb[0].mxu0 %v4480
    %v4656 = vpop.f32.mrb[0].mxu0
    %v4657 = vadd.f32 0.0, %v4656
    %v4658 = vpop.f32.mrb[0].mxu0
    %v4659 = vadd.f32 0.0, %v4658
    %v4660 = vpop.f32.mrb[0].mxu0
    %v4661 = vadd.f32 0.0, %v4660
    %v4662 = vpop.f32.mrb[0].mxu0
    %v4663 = vadd.f32 0.0, %v4662
    %4664 = vmatprep.mubr.bf16.mxu0 0
    %4665 = vmatmul.mubr.bf16.gmra.mrb[0].mxu0 %v4481
    %v4666 = vpop.f32.mrb[0].mxu0
    %v4667 = vadd.f32 0.0, %v4666
    %v4668 = vpop.f32.mrb[0].mxu0
    %v4669 = vadd.f32 0.0, %v4668
    %v4670 = vpop.f32.mrb[0].mxu0
    %v4671 = vadd.f32 0.0, %v4670
    %v4672 = vpop.f32.mrb[0].mxu0
    %v4673 = vadd.f32 0.0, %v4672
    %4674 = vdwg.mxu0
    %v4691 = vunpack.c.l.b16 %v2834
    %v4692 = vunpack.c.h.b16 %v2834
    %v4693 = vunpack.c.l.b16 %v2835
    %v4694 = vunpack.c.h.b16 %v2835
    %v4695 = vunpack.c.l.b16 %v2836
    %v4696 = vunpack.c.h.b16 %v2836
    %v4697 = vunpack.c.l.b16 %v2837
    %v4698 = vunpack.c.h.b16 %v2837
    %v4699 = vunpack.c.l.b16 %v2838
    %v4700 = vunpack.c.h.b16 %v2838
    %v4701 = vunpack.c.l.b16 %v2839
    %v4702 = vunpack.c.h.b16 %v2839
    %v4703 = vunpack.c.l.b16 %v2840
    %v4704 = vunpack.c.h.b16 %v2840
    %v4705 = vunpack.c.l.b16 %v2841
    %v4706 = vunpack.c.h.b16 %v2841
    %v4707 = vunpack.c.l.b16 %v2842
    %v4708 = vunpack.c.h.b16 %v2842
    %v4709 = vunpack.c.l.b16 %v2843
    %v4710 = vunpack.c.h.b16 %v2843
    %v4711 = vunpack.c.l.b16 %v2844
    %v4712 = vunpack.c.h.b16 %v2844
    %v4713 = vunpack.c.l.b16 %v2845
    %v4714 = vunpack.c.h.b16 %v2845
    %v4715 = vunpack.c.l.b16 %v2846
    %v4716 = vunpack.c.h.b16 %v2846
    %v4717 = vunpack.c.l.b16 %v2847
    %v4718 = vunpack.c.h.b16 %v2847
    %v4719 = vunpack.c.l.b16 %v2848
    %v4720 = vunpack.c.h.b16 %v2848
    %v4721 = vunpack.c.l.b16 %v2849
    %v4722 = vunpack.c.h.b16 %v2849
    %v4723 = vpack.c.b16 %v4693, %v4691
    %v4724 = vpack.c.b16 %v4694, %v4692
    %v4725 = vpack.c.b16 %v4697, %v4695
    %v4726 = vpack.c.b16 %v4698, %v4696
    %v4727 = vpack.c.b16 %v4701, %v4699
    %v4728 = vpack.c.b16 %v4702, %v4700
    %v4729 = vpack.c.b16 %v4705, %v4703
    %v4730 = vpack.c.b16 %v4706, %v4704
    %v4731 = vpack.c.b16 %v4709, %v4707
    %v4732 = vpack.c.b16 %v4710, %v4708
    %v4733 = vpack.c.b16 %v4713, %v4711
    %v4734 = vpack.c.b16 %v4714, %v4712
    %v4735 = vpack.c.b16 %v4717, %v4715
    %v4736 = vpack.c.b16 %v4718, %v4716
    %v4737 = vpack.c.b16 %v4721, %v4719
    %v4738 = vpack.c.b16 %v4722, %v4720
    %4755 = vmatprep.subr.bf16.mxu0 %v4724
    %4756 = vmatpush1.bf16.msra.mxu0 %v4723
    %4757 = vmatprep.subr.bf16.mxu0 %v4726
    %4758 = vmatpush1.bf16.msra.mxu0 %v4725
    %4759 = vmatprep.subr.bf16.mxu0 %v4728
    %4760 = vmatpush1.bf16.msra.mxu0 %v4727
    %4761 = vmatprep.subr.bf16.mxu0 %v4730
    %4762 = vmatpush1.bf16.msra.mxu0 %v4729
    %4763 = vmatprep.subr.bf16.mxu0 %v4732
    %4764 = vmatpush1.bf16.msra.mxu0 %v4731
    %4765 = vmatprep.subr.bf16.mxu0 %v4734
    %4766 = vmatpush1.bf16.msra.mxu0 %v4733
    %4767 = vmatprep.subr.bf16.mxu0 %v4736
    %4768 = vmatpush1.bf16.msra.mxu0 %v4735
    %4769 = vmatprep.subr.bf16.mxu0 %v4738
    %4770 = vmatpush1.bf16.msra.mxu0 %v4737
    %4771 = vmatprep.subr.bf16.mxu0 0
    %4772 = vmatpush1.bf16.msra.mxu0 0
    %4773 = vmatprep.subr.bf16.mxu0 0
    %4774 = vmatpush1.bf16.msra.mxu0 0
    %4775 = vmatprep.subr.bf16.mxu0 0
    %4776 = vmatpush1.bf16.msra.mxu0 0
    %4777 = vmatprep.subr.bf16.mxu0 0
    %4778 = vmatpush1.bf16.msra.mxu0 0
    %4779 = vmatprep.subr.bf16.mxu0 0
    %4780 = vmatpush1.bf16.msra.mxu0 0
    %4781 = vmatprep.subr.bf16.mxu0 0
    %4782 = vmatpush1.bf16.msra.mxu0 0
    %4783 = vmatprep.subr.bf16.mxu0 0
    %4784 = vmatpush1.bf16.msra.mxu0 0
    %4785 = vmatprep.subr.bf16.mxu0 0
    %4786 = vmatpush1.bf16.msra.mxu0 0
    %4787 = vmatprep.mubr.bf16.mxu0 0
    %4788 = vmatmul.mubr.bf16.gmra.mrb[0].mxu0 %v2899
    %v4789 = vpop.f32.mrb[0].mxu0
    %v4790 = vadd.f32 %v4597, %v4789
    %v4791 = vpop.f32.mrb[0].mxu0
    %v4792 = vadd.f32 %v4599, %v4791
    %v4793 = vpop.f32.mrb[0].mxu0
    %v4794 = vadd.f32 %v4601, %v4793
    %v4795 = vpop.f32.mrb[0].mxu0
    %v4796 = vadd.f32 %v4603, %v4795
    %4797 = vmatprep.mubr.bf16.mxu0 0
    %4798 = vmatmul.mubr.bf16.gmra.mrb[0].mxu0 %v2900
    %v4799 = vpop.f32.mrb[0].mxu0
    %v4800 = vadd.f32 %v4607, %v4799
    %v4801 = vpop.f32.mrb[0].mxu0
    %v4802 = vadd.f32 %v4609, %v4801
    %v4803 = vpop.f32.mrb[0].mxu0
    %v4804 = vadd.f32 %v4611, %v4803
    %v4805 = vpop.f32.mrb[0].mxu0
    %v4806 = vadd.f32 %v4613, %v4805
    %4807 = vmatprep.mubr.bf16.mxu0 0
    %4808 = vmatmul.mubr.bf16.gmra.mrb[0].mxu0 %v2901
    %v4809 = vpop.f32.mrb[0].mxu0
    %v4810 = vadd.f32 %v4617, %v4809
    %v4811 = vpop.f32.mrb[0].mxu0
    %v4812 = vadd.f32 %v4619, %v4811
    %v4813 = vpop.f32.mrb[0].mxu0
    %v4814 = vadd.f32 %v4621, %v4813
    %v4815 = vpop.f32.mrb[0].mxu0
    %v4816 = vadd.f32 %v4623, %v4815
    %4817 = vmatprep.mubr.bf16.mxu0 0
    %4818 = vmatmul.mubr.bf16.gmra.mrb[0].mxu0 %v2902
    %v4819 = vpop.f32.mrb[0].mxu0
    %v4820 = vadd.f32 %v4627, %v4819
    %v4821 = vpop.f32.mrb[0].mxu0
    %v4822 = vadd.f32 %v4629, %v4821
    %v4823 = vpop.f32.mrb[0].mxu0
    %v4824 = vadd.f32 %v4631, %v4823
    %v4825 = vpop.f32.mrb[0].mxu0
    %v4826 = vadd.f32 %v4633, %v4825
    %4827 = vmatprep.mubr.bf16.mxu0 0
    %4828 = vmatmul.mubr.bf16.gmra.mrb[0].mxu0 %v2903
    %v4829 = vpop.f32.mrb[0].mxu0
    %v4830 = vadd.f32 %v4637, %v4829
    %v4831 = vpop.f32.mrb[0].mxu0
    %v4832 = vadd.f32 %v4639, %v4831
    %v4833 = vpop.f32.mrb[0].mxu0
    %v4834 = vadd.f32 %v4641, %v4833
    %v4835 = vpop.f32.mrb[0].mxu0
    %v4836 = vadd.f32 %v4643, %v4835
    %4837 = vmatprep.mubr.bf16.mxu0 0
    %4838 = vmatmul.mubr.bf16.gmra.mrb[0].mxu0 %v2904
    %v4839 = vpop.f32.mrb[0].mxu0
    %v4840 = vadd.f32 %v4647, %v4839
    %v4841 = vpop.f32.mrb[0].mxu0
    %v4842 = vadd.f32 %v4649, %v4841
    %v4843 = vpop.f32.mrb[0].mxu0
    %v4844 = vadd.f32 %v4651, %v4843
    %v4845 = vpop.f32.mrb[0].mxu0
    %v4846 = vadd.f32 %v4653, %v4845
    %4847 = vmatprep.mubr.bf16.mxu0 0
    %4848 = vmatmul.mubr.bf16.gmra.mrb[0].mxu0 %v2905
    %v4849 = vpop.f32.mrb[0].mxu0
    %v4850 = vadd.f32 %v4657, %v4849
    %v4851 = vpop.f32.mrb[0].mxu0
    %v4852 = vadd.f32 %v4659, %v4851
    %v4853 = vpop.f32.mrb[0].mxu0
    %v4854 = vadd.f32 %v4661, %v4853
    %v4855 = vpop.f32.mrb[0].mxu0
    %v4856 = vadd.f32 %v4663, %v4855
    %4857 = vmatprep.mubr.bf16.mxu0 0
    %4858 = vmatmul.mubr.bf16.gmra.mrb[0].mxu0 %v2906
    %v4859 = vpop.f32.mrb[0].mxu0
    %v4860 = vadd.f32 %v4667, %v4859
    %v4861 = vpop.f32.mrb[0].mxu0
    %v4862 = vadd.f32 %v4669, %v4861
    %v4863 = vpop.f32.mrb[0].mxu0
    %v4864 = vadd.f32 %v4671, %v4863
    %v4865 = vpop.f32.mrb[0].mxu0
    %v4866 = vadd.f32 %v4673, %v4865
    %4867 = vdwg.mxu0
    %v4868 = vmax.f32 %v4790, 0.0
    %v4869 = vmax.f32 %v4792, 0.0
    %v4870 = vmax.f32 %v4794, 0.0
    %v4871 = vmax.f32 %v4796, 0.0
    %v4872 = vmax.f32 %v4800, 0.0
    %v4873 = vmax.f32 %v4802, 0.0
    %v4874 = vmax.f32 %v4804, 0.0
    %v4875 = vmax.f32 %v4806, 0.0
    %v4876 = vmax.f32 %v4810, 0.0
    %v4877 = vmax.f32 %v4812, 0.0
    %v4878 = vmax.f32 %v4814, 0.0
    %v4879 = vmax.f32 %v4816, 0.0
    %v4880 = vmax.f32 %v4820, 0.0
    %v4881 = vmax.f32 %v4822, 0.0
    %v4882 = vmax.f32 %v4824, 0.0
    %v4883 = vmax.f32 %v4826, 0.0
    %v4884 = vmax.f32 %v4830, 0.0
    %v4885 = vmax.f32 %v4832, 0.0
    %v4886 = vmax.f32 %v4834, 0.0
    %v4887 = vmax.f32 %v4836, 0.0
    %v4888 = vmax.f32 %v4840, 0.0
    %v4889 = vmax.f32 %v4842, 0.0
    %v4890 = vmax.f32 %v4844, 0.0
    %v4891 = vmax.f32 %v4846, 0.0
    %v4892 = vmax.f32 %v4850, 0.0
    %v4893 = vmax.f32 %v4852, 0.0
    %v4894 = vmax.f32 %v4854, 0.0
    %v4895 = vmax.f32 %v4856, 0.0
    %v4896 = vmax.f32 %v4860, 0.0
    %v4897 = vmax.f32 %v4862, 0.0
    %v4898 = vmax.f32 %v4864, 0.0
    %v4899 = vmax.f32 %v4866, 0.0
    %v4900 = vpack.c.bf16 %v4870, %v4868
    %v4901 = vpack.c.bf16 %v4871, %v4869
    %v4902 = vpack.c.bf16 %v4874, %v4872
    %v4903 = vpack.c.bf16 %v4875, %v4873
    %v4904 = vpack.c.bf16 %v4878, %v4876
    %v4905 = vpack.c.bf16 %v4879, %v4877
    %v4906 = vpack.c.bf16 %v4882, %v4880
    %v4907 = vpack.c.bf16 %v4883, %v4881
    %v4908 = vpack.c.bf16 %v4886, %v4884
    %v4909 = vpack.c.bf16 %v4887, %v4885
    %v4910 = vpack.c.bf16 %v4890, %v4888
    %v4911 = vpack.c.bf16 %v4891, %v4889
    %v4912 = vpack.c.bf16 %v4894, %v4892
    %v4913 = vpack.c.bf16 %v4895, %v4893
    %v4914 = vpack.c.bf16 %v4898, %v4896
    %v4915 = vpack.c.bf16 %v4899, %v4897
    %v4948 = vunpack.c.l.b16 %v2866
    %v4949 = vunpack.c.l.b16 %v2867
    %v4950 = vunpack.c.l.b16 %v2868
    %v4951 = vunpack.c.l.b16 %v2869
    %v4952 = vunpack.c.l.b16 %v2870
    %v4953 = vunpack.c.l.b16 %v2871
    %v4954 = vunpack.c.l.b16 %v2872
    %v4955 = vunpack.c.l.b16 %v2873
    %v4956 = vunpack.c.l.b16 %v2874
    %v4957 = vunpack.c.l.b16 %v2875
    %v4958 = vunpack.c.l.b16 %v2876
    %v4959 = vunpack.c.l.b16 %v2877
    %v4960 = vunpack.c.l.b16 %v2878
    %v4961 = vunpack.c.l.b16 %v2879
    %v4962 = vunpack.c.l.b16 %v2880
    %v4963 = vunpack.c.l.b16 %v2881
    %v4964 = vunpack.c.l.b16 %v2882
    %v4965 = vunpack.c.l.b16 %v2883
    %v4966 = vunpack.c.l.b16 %v2884
    %v4967 = vunpack.c.l.b16 %v2885
    %v4968 = vunpack.c.l.b16 %v2886
    %v4969 = vunpack.c.l.b16 %v2887
    %v4970 = vunpack.c.l.b16 %v2888
    %v4971 = vunpack.c.l.b16 %v2889
    %v4972 = vunpack.c.l.b16 %v2890
    %v4973 = vunpack.c.l.b16 %v2891
    %v4974 = vunpack.c.l.b16 %v2892
    %v4975 = vunpack.c.l.b16 %v2893
    %v4976 = vunpack.c.l.b16 %v2894
    %v4977 = vunpack.c.l.b16 %v2895
    %v4978 = vunpack.c.l.b16 %v2896
    %v4979 = vunpack.c.l.b16 %v2897
    %v4980 = vpack.c.b16 %v4949, %v4948
    %v4981 = vpack.c.b16 %v4951, %v4950
    %v4982 = vpack.c.b16 %v4953, %v4952
    %v4983 = vpack.c.b16 %v4955, %v4954
    %v4984 = vpack.c.b16 %v4957, %v4956
    %v4985 = vpack.c.b16 %v4959, %v4958
    %v4986 = vpack.c.b16 %v4961, %v4960
    %v4987 = vpack.c.b16 %v4963, %v4962
    %v4988 = vpack.c.b16 %v4965, %v4964
    %v4989 = vpack.c.b16 %v4967, %v4966
    %v4990 = vpack.c.b16 %v4969, %v4968
    %v4991 = vpack.c.b16 %v4971, %v4970
    %v4992 = vpack.c.b16 %v4973, %v4972
    %v4993 = vpack.c.b16 %v4975, %v4974
    %v4994 = vpack.c.b16 %v4977, %v4976
    %v4995 = vpack.c.b16 %v4979, %v4978
    %5012 = vmatprep.subr.bf16.mxu0 0
    %5013 = vmatpush1.bf16.msra.mxu0 %v4980
    %5014 = vmatprep.subr.bf16.mxu0 0
    %5015 = vmatpush1.bf16.msra.mxu0 %v4981
    %5016 = vmatprep.subr.bf16.mxu0 0
    %5017 = vmatpush1.bf16.msra.mxu0 %v4982
    %5018 = vmatprep.subr.bf16.mxu0 0
    %5019 = vmatpush1.bf16.msra.mxu0 %v4983
    %5020 = vmatprep.subr.bf16.mxu0 0
    %5021 = vmatpush1.bf16.msra.mxu0 %v4984
    %5022 = vmatprep.subr.bf16.mxu0 0
    %5023 = vmatpush1.bf16.msra.mxu0 %v4985
    %5024 = vmatprep.subr.bf16.mxu0 0
    %5025 = vmatpush1.bf16.msra.mxu0 %v4986
    %5026 = vmatprep.subr.bf16.mxu0 0
    %5027 = vmatpush1.bf16.msra.mxu0 %v4987
    %5028 = vmatprep.subr.bf16.mxu0 0
    %5029 = vmatpush1.bf16.msra.mxu0 %v4988
    %5030 = vmatprep.subr.bf16.mxu0 0
    %5031 = vmatpush1.bf16.msra.mxu0 %v4989
    %5032 = vmatprep.subr.bf16.mxu0 0
    %5033 = vmatpush1.bf16.msra.mxu0 %v4990
    %5034 = vmatprep.subr.bf16.mxu0 0
    %5035 = vmatpush1.bf16.msra.mxu0 %v4991
    %5036 = vmatprep.subr.bf16.mxu0 0
    %5037 = vmatpush1.bf16.msra.mxu0 %v4992
    %5038 = vmatprep.subr.bf16.mxu0 0
    %5039 = vmatpush1.bf16.msra.mxu0 %v4993
    %5040 = vmatprep.subr.bf16.mxu0 0
    %5041 = vmatpush1.bf16.msra.mxu0 %v4994
    %5042 = vmatprep.subr.bf16.mxu0 0
    %5043 = vmatpush1.bf16.msra.mxu0 %v4995
    %5044 = vmatprep.mubr.bf16.mxu0 %v4901
    %5045 = vmatmul.mubr.bf16.gmra.mrb[0].mxu0 %v4900
    %v5046 = vpop.f32.mrb[0].mxu0
    %v5047 = vadd.f32 0.0, %v5046
    %v5048 = vpop.f32.mrb[0].mxu0
    %v5049 = vpop.f32.mrb[0].mxu0
    %v5050 = vadd.f32 0.0, %v5049
    %v5051 = vpop.f32.mrb[0].mxu0
    %5052 = vmatprep.mubr.bf16.mxu0 %v4903
    %5053 = vmatmul.mubr.bf16.gmra.mrb[0].mxu0 %v4902
    %v5054 = vpop.f32.mrb[0].mxu0
    %v5055 = vadd.f32 0.0, %v5054
    %v5056 = vpop.f32.mrb[0].mxu0
    %v5057 = vpop.f32.mrb[0].mxu0
    %v5058 = vadd.f32 0.0, %v5057
    %v5059 = vpop.f32.mrb[0].mxu0
    %5060 = vmatprep.mubr.bf16.mxu0 %v4905
    %5061 = vmatmul.mubr.bf16.gmra.mrb[0].mxu0 %v4904
    %v5062 = vpop.f32.mrb[0].mxu0
    %v5063 = vadd.f32 0.0, %v5062
    %v5064 = vpop.f32.mrb[0].mxu0
    %v5065 = vpop.f32.mrb[0].mxu0
    %v5066 = vadd.f32 0.0, %v5065
    %v5067 = vpop.f32.mrb[0].mxu0
    %5068 = vmatprep.mubr.bf16.mxu0 %v4907
    %5069 = vmatmul.mubr.bf16.gmra.mrb[0].mxu0 %v4906
    %v5070 = vpop.f32.mrb[0].mxu0
    %v5071 = vadd.f32 0.0, %v5070
    %v5072 = vpop.f32.mrb[0].mxu0
    %v5073 = vpop.f32.mrb[0].mxu0
    %v5074 = vadd.f32 0.0, %v5073
    %v5075 = vpop.f32.mrb[0].mxu0
    %5076 = vmatprep.mubr.bf16.mxu0 %v4909
    %5077 = vmatmul.mubr.bf16.gmra.mrb[0].mxu0 %v4908
    %v5078 = vpop.f32.mrb[0].mxu0
    %v5079 = vadd.f32 0.0, %v5078
    %v5080 = vpop.f32.mrb[0].mxu0
    %v5081 = vpop.f32.mrb[0].mxu0
    %v5082 = vadd.f32 0.0, %v5081
    %v5083 = vpop.f32.mrb[0].mxu0
    %5084 = vmatprep.mubr.bf16.mxu0 %v4911
    %5085 = vmatmul.mubr.bf16.gmra.mrb[0].mxu0 %v4910
    %v5086 = vpop.f32.mrb[0].mxu0
    %v5087 = vadd.f32 0.0, %v5086
    %v5088 = vpop.f32.mrb[0].mxu0
    %v5089 = vpop.f32.mrb[0].mxu0
    %v5090 = vadd.f32 0.0, %v5089
    %v5091 = vpop.f32.mrb[0].mxu0
    %5092 = vmatprep.mubr.bf16.mxu0 %v4913
    %5093 = vmatmul.mubr.bf16.gmra.mrb[0].mxu0 %v4912
    %v5094 = vpop.f32.mrb[0].mxu0
    %v5095 = vadd.f32 0.0, %v5094
    %v5096 = vpop.f32.mrb[0].mxu0
    %v5097 = vpop.f32.mrb[0].mxu0
    %v5098 = vadd.f32 0.0, %v5097
    %v5099 = vpop.f32.mrb[0].mxu0
    %5100 = vmatprep.mubr.bf16.mxu0 %v4915
    %5101 = vmatmul.mubr.bf16.gmra.mrb[0].mxu0 %v4914
    %v5102 = vpop.f32.mrb[0].mxu0
    %v5103 = vadd.f32 0.0, %v5102
    %v5104 = vpop.f32.mrb[0].mxu0
    %v5105 = vpop.f32.mrb[0].mxu0
    %v5106 = vadd.f32 0.0, %v5105
    %v5107 = vpop.f32.mrb[0].mxu0
    %5108 = vdwg.mxu0
    %5109 = vadd.xlane.f32.xlu0 %v5047
    %v5110 = vpop.xlane.xlu0 %5109
    %5111 = vadd.xlane.f32.xlu0 %v5050
    %v5112 = vpop.xlane.xlu0 %5111
    %5113 = vadd.xlane.f32.xlu0 %v5055
    %v5114 = vpop.xlane.xlu0 %5113
    %5115 = vadd.xlane.f32.xlu0 %v5058
    %v5116 = vpop.xlane.xlu0 %5115
    %5117 = vadd.xlane.f32.xlu0 %v5063
    %v5118 = vpop.xlane.xlu0 %5117
    %5119 = vadd.xlane.f32.xlu0 %v5066
    %v5120 = vpop.xlane.xlu0 %5119
    %5121 = vadd.xlane.f32.xlu0 %v5071
    %v5122 = vpop.xlane.xlu0 %5121
    %5123 = vadd.xlane.f32.xlu0 %v5074
    %v5124 = vpop.xlane.xlu0 %5123
    %5125 = vadd.xlane.f32.xlu0 %v5079
    %v5126 = vpop.xlane.xlu0 %5125
    %5127 = vadd.xlane.f32.xlu0 %v5082
    %v5128 = vpop.xlane.xlu0 %5127
    %5129 = vadd.xlane.f32.xlu0 %v5087
    %v5130 = vpop.xlane.xlu0 %5129
    %5131 = vadd.xlane.f32.xlu0 %v5090
    %v5132 = vpop.xlane.xlu0 %5131
    %5133 = vadd.xlane.f32.xlu0 %v5095
    %v5134 = vpop.xlane.xlu0 %5133
    %5135 = vadd.xlane.f32.xlu0 %v5098
    %v5136 = vpop.xlane.xlu0 %5135
    %5137 = vadd.xlane.f32.xlu0 %v5103
    %v5138 = vpop.xlane.xlu0 %5137
    %5139 = vadd.xlane.f32.xlu0 %v5106
    %v5140 = vpop.xlane.xlu0 %5139
    %v5141 = vmul.f32 %v5110, %v1638
    %v5142 = vmul.f32 %v5112, %v1638
    %v5143 = vmul.f32 %v5114, %v1638
    %v5144 = vmul.f32 %v5116, %v1638
    %v5145 = vmul.f32 %v5118, %v1638
    %v5146 = vmul.f32 %v5120, %v1638
    %v5147 = vmul.f32 %v5122, %v1638
    %v5148 = vmul.f32 %v5124, %v1638
    %v5149 = vmul.f32 %v5126, %v1638
    %v5150 = vmul.f32 %v5128, %v1638
    %v5151 = vmul.f32 %v5130, %v1638
    %v5152 = vmul.f32 %v5132, %v1638
    %v5153 = vmul.f32 %v5134, %v1638
    %v5154 = vmul.f32 %v5136, %v1638
    %v5155 = vmul.f32 %v5138, %v1638
    %v5156 = vmul.f32 %v5140, %v1638
    %v5157 = vmul.f32 %v5047, %v5047
    %v5158 = vmul.f32 %v5050, %v5050
    %v5159 = vmul.f32 %v5055, %v5055
    %v5160 = vmul.f32 %v5058, %v5058
    %v5161 = vmul.f32 %v5063, %v5063
    %v5162 = vmul.f32 %v5066, %v5066
    %v5163 = vmul.f32 %v5071, %v5071
    %v5164 = vmul.f32 %v5074, %v5074
    %v5165 = vmul.f32 %v5079, %v5079
    %v5166 = vmul.f32 %v5082, %v5082
    %v5167 = vmul.f32 %v5087, %v5087
    %v5168 = vmul.f32 %v5090, %v5090
    %v5169 = vmul.f32 %v5095, %v5095
    %v5170 = vmul.f32 %v5098, %v5098
    %v5171 = vmul.f32 %v5103, %v5103
    %v5172 = vmul.f32 %v5106, %v5106
    %5173 = vadd.xlane.f32.xlu0 %v5157
    %v5174 = vpop.xlane.xlu0 %5173
    %5175 = vadd.xlane.f32.xlu0 %v5158
    %v5176 = vpop.xlane.xlu0 %5175
    %5177 = vadd.xlane.f32.xlu0 %v5159
    %v5178 = vpop.xlane.xlu0 %5177
    %5179 = vadd.xlane.f32.xlu0 %v5160
    %v5180 = vpop.xlane.xlu0 %5179
    %5181 = vadd.xlane.f32.xlu0 %v5161
    %v5182 = vpop.xlane.xlu0 %5181
    %5183 = vadd.xlane.f32.xlu0 %v5162
    %v5184 = vpop.xlane.xlu0 %5183
    %5185 = vadd.xlane.f32.xlu0 %v5163
    %v5186 = vpop.xlane.xlu0 %5185
    %5187 = vadd.xlane.f32.xlu0 %v5164
    %v5188 = vpop.xlane.xlu0 %5187
    %5189 = vadd.xlane.f32.xlu0 %v5165
    %v5190 = vpop.xlane.xlu0 %5189
    %5191 = vadd.xlane.f32.xlu0 %v5166
    %v5192 = vpop.xlane.xlu0 %5191
    %5193 = vadd.xlane.f32.xlu0 %v5167
    %v5194 = vpop.xlane.xlu0 %5193
    %5195 = vadd.xlane.f32.xlu0 %v5168
    %v5196 = vpop.xlane.xlu0 %5195
    %5197 = vadd.xlane.f32.xlu0 %v5169
    %v5198 = vpop.xlane.xlu0 %5197
    %5199 = vadd.xlane.f32.xlu0 %v5170
    %v5200 = vpop.xlane.xlu0 %5199
    %5201 = vadd.xlane.f32.xlu0 %v5171
    %v5202 = vpop.xlane.xlu0 %5201
    %5203 = vadd.xlane.f32.xlu0 %v5172
    %v5204 = vpop.xlane.xlu0 %5203
    %v5205 = vmul.f32 %v5174, %v1638
    %v5206 = vmul.f32 %v5176, %v1638
    %v5207 = vmul.f32 %v5178, %v1638
    %v5208 = vmul.f32 %v5180, %v1638
    %v5209 = vmul.f32 %v5182, %v1638
    %v5210 = vmul.f32 %v5184, %v1638
    %v5211 = vmul.f32 %v5186, %v1638
    %v5212 = vmul.f32 %v5188, %v1638
    %v5213 = vmul.f32 %v5190, %v1638
    %v5214 = vmul.f32 %v5192, %v1638
    %v5215 = vmul.f32 %v5194, %v1638
    %v5216 = vmul.f32 %v5196, %v1638
    %v5217 = vmul.f32 %v5198, %v1638
    %v5218 = vmul.f32 %v5200, %v1638
    %v5219 = vmul.f32 %v5202, %v1638
    %v5220 = vmul.f32 %v5204, %v1638
    %v5221 = vmul.f32 %v5141, %v5141
    %v5222 = vmul.f32 %v5142, %v5142
    %v5223 = vmul.f32 %v5143, %v5143
    %v5224 = vmul.f32 %v5144, %v5144
    %v5225 = vmul.f32 %v5145, %v5145
    %v5226 = vmul.f32 %v5146, %v5146
    %v5227 = vmul.f32 %v5147, %v5147
    %v5228 = vmul.f32 %v5148, %v5148
    %v5229 = vmul.f32 %v5149, %v5149
    %v5230 = vmul.f32 %v5150, %v5150
    %v5231 = vmul.f32 %v5151, %v5151
    %v5232 = vmul.f32 %v5152, %v5152
    %v5233 = vmul.f32 %v5153, %v5153
    %v5234 = vmul.f32 %v5154, %v5154
    %v5235 = vmul.f32 %v5155, %v5155
    %v5236 = vmul.f32 %v5156, %v5156
    %v5237 = vsub.f32 %v5205, %v5221
    %v5238 = vsub.f32 %v5206, %v5222
    %v5239 = vsub.f32 %v5207, %v5223
    %v5240 = vsub.f32 %v5208, %v5224
    %v5241 = vsub.f32 %v5209, %v5225
    %v5242 = vsub.f32 %v5210, %v5226
    %v5243 = vsub.f32 %v5211, %v5227
    %v5244 = vsub.f32 %v5212, %v5228
    %v5245 = vsub.f32 %v5213, %v5229
    %v5246 = vsub.f32 %v5214, %v5230
    %v5247 = vsub.f32 %v5215, %v5231
    %v5248 = vsub.f32 %v5216, %v5232
    %v5249 = vsub.f32 %v5217, %v5233
    %v5250 = vsub.f32 %v5218, %v5234
    %v5251 = vsub.f32 %v5219, %v5235
    %v5252 = vsub.f32 %v5220, %v5236
    %v5253 = vmax.f32 %v5237, 0.0
    %v5254 = vmax.f32 %v5238, 0.0
    %v5255 = vmax.f32 %v5239, 0.0
    %v5256 = vmax.f32 %v5240, 0.0
    %v5257 = vmax.f32 %v5241, 0.0
    %v5258 = vmax.f32 %v5242, 0.0
    %v5259 = vmax.f32 %v5243, 0.0
    %v5260 = vmax.f32 %v5244, 0.0
    %v5261 = vmax.f32 %v5245, 0.0
    %v5262 = vmax.f32 %v5246, 0.0
    %v5263 = vmax.f32 %v5247, 0.0
    %v5264 = vmax.f32 %v5248, 0.0
    %v5265 = vmax.f32 %v5249, 0.0
    %v5266 = vmax.f32 %v5250, 0.0
    %v5267 = vmax.f32 %v5251, 0.0
    %v5268 = vmax.f32 %v5252, 0.0
    %v5269 = vsub.f32 %v5047, %v5141
    %v5270 = vsub.f32 %v5050, %v5142
    %v5271 = vsub.f32 %v5055, %v5143
    %v5272 = vsub.f32 %v5058, %v5144
    %v5273 = vsub.f32 %v5063, %v5145
    %v5274 = vsub.f32 %v5066, %v5146
    %v5275 = vsub.f32 %v5071, %v5147
    %v5276 = vsub.f32 %v5074, %v5148
    %v5277 = vsub.f32 %v5079, %v5149
    %v5278 = vsub.f32 %v5082, %v5150
    %v5279 = vsub.f32 %v5087, %v5151
    %v5280 = vsub.f32 %v5090, %v5152
    %v5281 = vsub.f32 %v5095, %v5153
    %v5282 = vsub.f32 %v5098, %v5154
    %v5283 = vsub.f32 %v5103, %v5155
    %v5284 = vsub.f32 %v5106, %v5156
    %v5285 = vadd.f32 %v5253, 1e-05
    %v5286 = vadd.f32 %v5254, 1e-05
    %v5287 = vadd.f32 %v5255, 1e-05
    %v5288 = vadd.f32 %v5256, 1e-05
    %v5289 = vadd.f32 %v5257, 1e-05
    %v5290 = vadd.f32 %v5258, 1e-05
    %v5291 = vadd.f32 %v5259, 1e-05
    %v5292 = vadd.f32 %v5260, 1e-05
    %v5293 = vadd.f32 %v5261, 1e-05
    %v5294 = vadd.f32 %v5262, 1e-05
    %v5295 = vadd.f32 %v5263, 1e-05
    %v5296 = vadd.f32 %v5264, 1e-05
    %v5297 = vadd.f32 %v5265, 1e-05
    %v5298 = vadd.f32 %v5266, 1e-05
    %v5299 = vadd.f32 %v5267, 1e-05
    %v5300 = vadd.f32 %v5268, 1e-05
    %v5301 = vrsqrt.pop %v5285
    %v5302 = vrsqrt.pop %v5286
    %v5303 = vrsqrt.pop %v5287
    %v5304 = vrsqrt.pop %v5288
    %v5305 = vrsqrt.pop %v5289
    %v5306 = vrsqrt.pop %v5290
    %v5307 = vrsqrt.pop %v5291
    %v5308 = vrsqrt.pop %v5292
    %v5309 = vrsqrt.pop %v5293
    %v5310 = vrsqrt.pop %v5294
    %v5311 = vrsqrt.pop %v5295
    %v5312 = vrsqrt.pop %v5296
    %v5313 = vrsqrt.pop %v5297
    %v5314 = vrsqrt.pop %v5298
    %v5315 = vrsqrt.pop %v5299
    %v5316 = vrsqrt.pop %v5300
    %v5317 = vmul.f32 %v5269, %v5301
    %v5318 = vmul.f32 %v5270, %v5302
    %v5319 = vmul.f32 %v5271, %v5303
    %v5320 = vmul.f32 %v5272, %v5304
    %v5321 = vmul.f32 %v5273, %v5305
    %v5322 = vmul.f32 %v5274, %v5306
    %v5323 = vmul.f32 %v5275, %v5307
    %v5324 = vmul.f32 %v5276, %v5308
    %v5325 = vmul.f32 %v5277, %v5309
    %v5326 = vmul.f32 %v5278, %v5310
    %v5327 = vmul.f32 %v5279, %v5311
    %v5328 = vmul.f32 %v5280, %v5312
    %v5329 = vmul.f32 %v5281, %v5313
    %v5330 = vmul.f32 %v5282, %v5314
    %v5331 = vmul.f32 %v5283, %v5315
    %v5332 = vmul.f32 %v5284, %v5316
    %v5333 = vlaneseq
    %v5334 = vshrl.u32 %v5333, 7
    %v5335 = vsub.s32 2, %v5334
    %v5336 = vrot.slane %v2898, %v5335
    %v5337 = vmul.f32 %v5317, %v5336
    %v5338 = vmul.f32 %v5318, %v5336
    %v5339 = vmul.f32 %v5319, %v5336
    %v5340 = vmul.f32 %v5320, %v5336
    %v5341 = vmul.f32 %v5321, %v5336
    %v5342 = vmul.f32 %v5322, %v5336
    %v5343 = vmul.f32 %v5323, %v5336
    %v5344 = vmul.f32 %v5324, %v5336
    %v5345 = vmul.f32 %v5325, %v5336
    %v5346 = vmul.f32 %v5326, %v5336
    %v5347 = vmul.f32 %v5327, %v5336
    %v5348 = vmul.f32 %v5328, %v5336
    %v5349 = vmul.f32 %v5329, %v5336
    %v5350 = vmul.f32 %v5330, %v5336
    %v5351 = vmul.f32 %v5331, %v5336
    %v5352 = vmul.f32 %v5332, %v5336
    %v5353 = vlaneseq
    %v5354 = vshrl.u32 %v5353, 7
    %v5355 = vsub.s32 3, %v5354
    %v5356 = vrot.slane %v2898, %v5355
    %v5357 = vadd.f32 %v5337, %v5356
    %v5358 = vadd.f32 %v5338, %v5356
    %v5359 = vadd.f32 %v5339, %v5356
    %v5360 = vadd.f32 %v5340, %v5356
    %v5361 = vadd.f32 %v5341, %v5356
    %v5362 = vadd.f32 %v5342, %v5356
    %v5363 = vadd.f32 %v5343, %v5356
    %v5364 = vadd.f32 %v5344, %v5356
    %v5365 = vadd.f32 %v5345, %v5356
    %v5366 = vadd.f32 %v5346, %v5356
    %v5367 = vadd.f32 %v5347, %v5356
    %v5368 = vadd.f32 %v5348, %v5356
    %v5369 = vadd.f32 %v5349, %v5356
    %v5370 = vadd.f32 %v5350, %v5356
    %v5371 = vadd.f32 %v5351, %v5356
    %v5372 = vadd.f32 %v5352, %v5356
    %v5373 = vadd.f32 %v132, %v5357
    %v5374 = vadd.f32 %v133, %v5358
    %v5375 = vadd.f32 %v134, %v5359
    %v5376 = vadd.f32 %v135, %v5360
    %v5377 = vadd.f32 %v136, %v5361
    %v5378 = vadd.f32 %v137, %v5362
    %v5379 = vadd.f32 %v138, %v5363
    %v5380 = vadd.f32 %v139, %v5364
    %v5381 = vadd.f32 %v140, %v5365
    %v5382 = vadd.f32 %v141, %v5366
    %v5383 = vadd.f32 %v142, %v5367
    %v5384 = vadd.f32 %v143, %v5368
    %v5385 = vadd.f32 %v144, %v5369
    %v5386 = vadd.f32 %v145, %v5370
    %v5387 = vadd.f32 %v146, %v5371
    %v5388 = vadd.f32 %v147, %v5372
    %s5389 = scalar_lea.vmem [#allocation8], 192
    %v5390 = vld [vmem:[%s5389] sm:$0xff]
    %v5391 = vld [vmem:[%s5389 + $0x8] sm:$0xf]
    %v5392 = vld [vmem:[%s5389 + $0xc] sm:$0xff]
    %v5393 = vld [vmem:[%s5389 + $0x14] sm:$0xf]
    %v5394 = vld [vmem:[%s5389 + $0x18] sm:$0xff]
    %v5395 = vld [vmem:[%s5389 + $0x20] sm:$0xf]
    %v5396 = vld [vmem:[%s5389 + $0x24] sm:$0xff]
    %v5397 = vld [vmem:[%s5389 + $0x2c] sm:$0xf]
    %v5398 = vld [vmem:[%s5389 + $0x30] sm:$0xff]
    %v5399 = vld [vmem:[%s5389 + $0x38] sm:$0xf]
    %v5400 = vld [vmem:[%s5389 + $0x3c] sm:$0xff]
    %v5401 = vld [vmem:[%s5389 + $0x44] sm:$0xf]
    %v5402 = vld [vmem:[%s5389 + $0x48] sm:$0xff]
    %v5403 = vld [vmem:[%s5389 + $0x50] sm:$0xf]
    %v5404 = vld [vmem:[%s5389 + $0x54] sm:$0xff]
    %v5405 = vld [vmem:[%s5389 + $0x5c] sm:$0xf]
    %v5406 = vld [vmem:[%s5389 + $0x60] sm:$0xff]
    %v5407 = vld [vmem:[%s5389 + $0x68] sm:$0xf]
    %v5408 = vld [vmem:[%s5389 + $0x6c] sm:$0xff]
    %v5409 = vld [vmem:[%s5389 + $0x74] sm:$0xf]
    %v5410 = vld [vmem:[%s5389 + $0x78] sm:$0xff]
    %v5411 = vld [vmem:[%s5389 + $0x80] sm:$0xf]
    %v5412 = vld [vmem:[%s5389 + $0x84] sm:$0xff]
    %v5413 = vld [vmem:[%s5389 + $0x8c] sm:$0xf]
    %v5414 = vld [vmem:[%s5389 + $0x90] sm:$0xff]
    %v5415 = vld [vmem:[%s5389 + $0x98] sm:$0xf]
    %v5416 = vld [vmem:[%s5389 + $0x9c] sm:$0xff]
    %v5417 = vld [vmem:[%s5389 + $0xa4] sm:$0xf]
    %v5418 = vld [vmem:[%s5389 + $0xa8] sm:$0xff]
    %v5419 = vld [vmem:[%s5389 + $0xb0] sm:$0xf]
    %v5420 = vld [vmem:[%s5389 + $0xb4] sm:$0xff]
    %v5421 = vld [vmem:[%s5389 + $0xbc] sm:$0xf]
    %s5422 = scalar_lea.vmem [#allocation10], 64
    %v5423 = vld [vmem:[%s5422] sm:$0xf]
    %v5424 = vld [vmem:[%s5422 + $0x4] sm:$0xf]
    %v5425 = vld [vmem:[%s5422 + $0x8] sm:$0xf]
    %v5426 = vld [vmem:[%s5422 + $0xc] sm:$0xf]
    %v5427 = vld [vmem:[%s5422 + $0x10] sm:$0xf]
    %v5428 = vld [vmem:[%s5422 + $0x14] sm:$0xf]
    %v5429 = vld [vmem:[%s5422 + $0x18] sm:$0xf]
    %v5430 = vld [vmem:[%s5422 + $0x1c] sm:$0xf]
    %v5431 = vld [vmem:[%s5422 + $0x20] sm:$0xf]
    %v5432 = vld [vmem:[%s5422 + $0x24] sm:$0xf]
    %v5433 = vld [vmem:[%s5422 + $0x28] sm:$0xf]
    %v5434 = vld [vmem:[%s5422 + $0x2c] sm:$0xf]
    %v5435 = vld [vmem:[%s5422 + $0x30] sm:$0xf]
    %v5436 = vld [vmem:[%s5422 + $0x34] sm:$0xf]
    %v5437 = vld [vmem:[%s5422 + $0x38] sm:$0xf]
    %v5438 = vld [vmem:[%s5422 + $0x3c] sm:$0xf]
    %s5439 = scalar_lea.vmem %s5, 256
    %v5440 = vld [vmem:[%s5439] sm:$0xff]
    %v5441 = vld [vmem:[%s5439 + $0x8] sm:$0xff]
    %v5442 = vld [vmem:[%s5439 + $0x10] sm:$0xff]
    %v5443 = vld [vmem:[%s5439 + $0x18] sm:$0xff]
    %v5444 = vld [vmem:[%s5439 + $0x20] sm:$0xff]
    %v5445 = vld [vmem:[%s5439 + $0x28] sm:$0xff]
    %v5446 = vld [vmem:[%s5439 + $0x30] sm:$0xff]
    %v5447 = vld [vmem:[%s5439 + $0x38] sm:$0xff]
    %v5448 = vld [vmem:[%s5439 + $0x40] sm:$0xff]
    %v5449 = vld [vmem:[%s5439 + $0x48] sm:$0xff]
    %v5450 = vld [vmem:[%s5439 + $0x50] sm:$0xff]
    %v5451 = vld [vmem:[%s5439 + $0x58] sm:$0xff]
    %v5452 = vld [vmem:[%s5439 + $0x60] sm:$0xff]
    %v5453 = vld [vmem:[%s5439 + $0x68] sm:$0xff]
    %v5454 = vld [vmem:[%s5439 + $0x70] sm:$0xff]
    %v5455 = vld [vmem:[%s5439 + $0x78] sm:$0xff]
    %v5456 = vld [vmem:[%s5439 + $0x80] sm:$0xff]
    %v5457 = vld [vmem:[%s5439 + $0x88] sm:$0xff]
    %v5458 = vld [vmem:[%s5439 + $0x90] sm:$0xff]
    %v5459 = vld [vmem:[%s5439 + $0x98] sm:$0xff]
    %v5460 = vld [vmem:[%s5439 + $0xa0] sm:$0xff]
    %v5461 = vld [vmem:[%s5439 + $0xa8] sm:$0xff]
    %v5462 = vld [vmem:[%s5439 + $0xb0] sm:$0xff]
    %v5463 = vld [vmem:[%s5439 + $0xb8] sm:$0xff]
    %v5464 = vld [vmem:[%s5439 + $0xc0] sm:$0xff]
    %v5465 = vld [vmem:[%s5439 + $0xc8] sm:$0xff]
    %v5466 = vld [vmem:[%s5439 + $0xd0] sm:$0xff]
    %v5467 = vld [vmem:[%s5439 + $0xd8] sm:$0xff]
    %v5468 = vld [vmem:[%s5439 + $0xe0] sm:$0xff]
    %v5469 = vld [vmem:[%s5439 + $0xe8] sm:$0xff]
    %v5470 = vld [vmem:[%s5439 + $0xf0] sm:$0xff]
    %v5471 = vld [vmem:[%s5439 + $0xf8] sm:$0xff]
    %s5472 = scalar_lea.vmem [#allocation11], 128
    %v5473 = vld [vmem:[%s5472] sm:$0xf]
    %v5474 = vld [vmem:[%s5472 + $0x4] sm:$0xf]
    %v5475 = vld [vmem:[%s5472 + $0x8] sm:$0xf]
    %v5476 = vld [vmem:[%s5472 + $0xc] sm:$0xf]
    %v5477 = vld [vmem:[%s5472 + $0x10] sm:$0xf]
    %v5478 = vld [vmem:[%s5472 + $0x14] sm:$0xf]
    %v5479 = vld [vmem:[%s5472 + $0x18] sm:$0xf]
    %v5480 = vld [vmem:[%s5472 + $0x1c] sm:$0xf]
    %v5481 = vld [vmem:[%s5472 + $0x20] sm:$0xf]
    %v5482 = vld [vmem:[%s5472 + $0x24] sm:$0xf]
    %v5483 = vld [vmem:[%s5472 + $0x28] sm:$0xf]
    %v5484 = vld [vmem:[%s5472 + $0x2c] sm:$0xf]
    %v5485 = vld [vmem:[%s5472 + $0x30] sm:$0xf]
    %v5486 = vld [vmem:[%s5472 + $0x34] sm:$0xf]
    %v5487 = vld [vmem:[%s5472 + $0x38] sm:$0xf]
    %v5488 = vld [vmem:[%s5472 + $0x3c] sm:$0xf]
    %v5489 = vld [vmem:[%s5472 + $0x40] sm:$0xf]
    %v5490 = vld [vmem:[%s5472 + $0x44] sm:$0xf]
    %v5491 = vld [vmem:[%s5472 + $0x48] sm:$0xf]
    %v5492 = vld [vmem:[%s5472 + $0x4c] sm:$0xf]
    %v5493 = vld [vmem:[%s5472 + $0x50] sm:$0xf]
    %v5494 = vld [vmem:[%s5472 + $0x54] sm:$0xf]
    %v5495 = vld [vmem:[%s5472 + $0x58] sm:$0xf]
    %v5496 = vld [vmem:[%s5472 + $0x5c] sm:$0xf]
    %v5497 = vld [vmem:[%s5472 + $0x60] sm:$0xf]
    %v5498 = vld [vmem:[%s5472 + $0x64] sm:$0xf]
    %v5499 = vld [vmem:[%s5472 + $0x68] sm:$0xf]
    %v5500 = vld [vmem:[%s5472 + $0x6c] sm:$0xf]
    %v5501 = vld [vmem:[%s5472 + $0x70] sm:$0xf]
    %v5502 = vld [vmem:[%s5472 + $0x74] sm:$0xf]
    %v5503 = vld [vmem:[%s5472 + $0x78] sm:$0xf]
    %v5504 = vld [vmem:[%s5472 + $0x7c] sm:$0xf]
    %s5505 = scalar_lea.vmem %s7, 4
    %v5506 = vld [vmem:[%s5505] sm:$0xf]
    %v5507 = vpack.c.bf16 %v2771, %v2770
    %v5508 = vpack.c.bf16 %v2773, %v2772
    %v5509 = vpack.c.bf16 %v2775, %v2774
    %v5510 = vpack.c.bf16 %v2777, %v2776
    %v5511 = vpack.c.bf16 %v2779, %v2778
    %v5512 = vpack.c.bf16 %v2781, %v2780
    %v5513 = vpack.c.bf16 %v2783, %v2782
    %v5514 = vpack.c.bf16 %v2785, %v2784
    %v5515 = vpack.c.bf16 %v5374, %v5373
    %v5516 = vpack.c.bf16 %v5376, %v5375
    %v5517 = vpack.c.bf16 %v5378, %v5377
    %v5518 = vpack.c.bf16 %v5380, %v5379
    %v5519 = vpack.c.bf16 %v5382, %v5381
    %v5520 = vpack.c.bf16 %v5384, %v5383
    %v5521 = vpack.c.bf16 %v5386, %v5385
    %v5522 = vpack.c.bf16 %v5388, %v5387
    %v5539 = vunpack.c.l.b16 %v5390
    %v5540 = vunpack.c.l.b16 %v5392
    %v5541 = vunpack.c.l.b16 %v5394
    %v5542 = vunpack.c.l.b16 %v5396
    %v5543 = vunpack.c.l.b16 %v5398
    %v5544 = vunpack.c.l.b16 %v5400
    %v5545 = vunpack.c.l.b16 %v5402
    %v5546 = vunpack.c.l.b16 %v5404
    %v5547 = vunpack.c.l.b16 %v5406
    %v5548 = vunpack.c.l.b16 %v5408
    %v5549 = vunpack.c.l.b16 %v5410
    %v5550 = vunpack.c.l.b16 %v5412
    %v5551 = vunpack.c.l.b16 %v5414
    %v5552 = vunpack.c.l.b16 %v5416
    %v5553 = vunpack.c.l.b16 %v5418
    %v5554 = vunpack.c.l.b16 %v5420
    %v5555 = vpack.c.b16 %v5540, %v5539
    %v5556 = vpack.c.b16 %v5542, %v5541
    %v5557 = vpack.c.b16 %v5544, %v5543
    %v5558 = vpack.c.b16 %v5546, %v5545
    %v5559 = vpack.c.b16 %v5548, %v5547
    %v5560 = vpack.c.b16 %v5550, %v5549
    %v5561 = vpack.c.b16 %v5552, %v5551
    %v5562 = vpack.c.b16 %v5554, %v5553
    %5571 = vmatprep.subr.bf16.mxu0 0
    %5572 = vmatpush1.bf16.msra.mxu0 %v5555
    %5573 = vmatprep.subr.bf16.mxu0 0
    %5574 = vmatpush1.bf16.msra.mxu0 %v5556
    %5575 = vmatprep.subr.bf16.mxu0 0
    %5576 = vmatpush1.bf16.msra.mxu0 %v5557
    %5577 = vmatprep.subr.bf16.mxu0 0
    %5578 = vmatpush1.bf16.msra.mxu0 %v5558
    %5579 = vmatprep.subr.bf16.mxu0 0
    %5580 = vmatpush1.bf16.msra.mxu0 %v5559
    %5581 = vmatprep.subr.bf16.mxu0 0
    %5582 = vmatpush1.bf16.msra.mxu0 %v5560
    %5583 = vmatprep.subr.bf16.mxu0 0
    %5584 = vmatpush1.bf16.msra.mxu0 %v5561
    %5585 = vmatprep.subr.bf16.mxu0 0
    %5586 = vmatpush1.bf16.msra.mxu0 %v5562
    %5587 = vmatprep.subr.bf16.mxu0 0
    %5588 = vmatpush1.bf16.msra.mxu0 0
    %5589 = vmatprep.subr.bf16.mxu0 0
    %5590 = vmatpush1.bf16.msra.mxu0 0
    %5591 = vmatprep.subr.bf16.mxu0 0
    %5592 = vmatpush1.bf16.msra.mxu0 0
    %5593 = vmatprep.subr.bf16.mxu0 0
    %5594 = vmatpush1.bf16.msra.mxu0 0
    %5595 = vmatprep.subr.bf16.mxu0 0
    %5596 = vmatpush1.bf16.msra.mxu0 0
    %5597 = vmatprep.subr.bf16.mxu0 0
    %5598 = vmatpush1.bf16.msra.mxu0 0
    %5599 = vmatprep.subr.bf16.mxu0 0
    %5600 = vmatpush1.bf16.msra.mxu0 0
    %5601 = vmatprep.subr.bf16.mxu0 0
    %5602 = vmatpush1.bf16.msra.mxu0 0
    %5603 = vmatprep.mubr.bf16.mxu0 0
    %5604 = vmatmul.mubr.bf16.gmra.mrb[0].mxu0 %v5507
    %v5605 = vpop.f32.mrb[0].mxu0
    %v5606 = vadd.f32 0.0, %v5605
    %v5607 = vpop.f32.mrb[0].mxu0
    %v5608 = vpop.f32.mrb[0].mxu0
    %v5609 = vadd.f32 0.0, %v5608
    %v5610 = vpop.f32.mrb[0].mxu0
    %5611 = vmatprep.mubr.bf16.mxu0 0
    %5612 = vmatmul.mubr.bf16.gmra.mrb[0].mxu0 %v5508
    %v5613 = vpop.f32.mrb[0].mxu0
    %v5614 = vadd.f32 0.0, %v5613
    %v5615 = vpop.f32.mrb[0].mxu0
    %v5616 = vpop.f32.mrb[0].mxu0
    %v5617 = vadd.f32 0.0, %v5616
    %v5618 = vpop.f32.mrb[0].mxu0
    %5619 = vmatprep.mubr.bf16.mxu0 0
    %5620 = vmatmul.mubr.bf16.gmra.mrb[0].mxu0 %v5509
    %v5621 = vpop.f32.mrb[0].mxu0
    %v5622 = vadd.f32 0.0, %v5621
    %v5623 = vpop.f32.mrb[0].mxu0
    %v5624 = vpop.f32.mrb[0].mxu0
    %v5625 = vadd.f32 0.0, %v5624
    %v5626 = vpop.f32.mrb[0].mxu0
    %5627 = vmatprep.mubr.bf16.mxu0 0
    %5628 = vmatmul.mubr.bf16.gmra.mrb[0].mxu0 %v5510
    %v5629 = vpop.f32.mrb[0].mxu0
    %v5630 = vadd.f32 0.0, %v5629
    %v5631 = vpop.f32.mrb[0].mxu0
    %v5632 = vpop.f32.mrb[0].mxu0
    %v5633 = vadd.f32 0.0, %v5632
    %v5634 = vpop.f32.mrb[0].mxu0
    %5635 = vmatprep.mubr.bf16.mxu0 0
    %5636 = vmatmul.mubr.bf16.gmra.mrb[0].mxu0 %v5511
    %v5637 = vpop.f32.mrb[0].mxu0
    %v5638 = vadd.f32 0.0, %v5637
    %v5639 = vpop.f32.mrb[0].mxu0
    %v5640 = vpop.f32.mrb[0].mxu0
    %v5641 = vadd.f32 0.0, %v5640
    %v5642 = vpop.f32.mrb[0].mxu0
    %5643 = vmatprep.mubr.bf16.mxu0 0
    %5644 = vmatmul.mubr.bf16.gmra.mrb[0].mxu0 %v5512
    %v5645 = vpop.f32.mrb[0].mxu0
    %v5646 = vadd.f32 0.0, %v5645
    %v5647 = vpop.f32.mrb[0].mxu0
    %v5648 = vpop.f32.mrb[0].mxu0
    %v5649 = vadd.f32 0.0, %v5648
    %v5650 = vpop.f32.mrb[0].mxu0
    %5651 = vmatprep.mubr.bf16.mxu0 0
    %5652 = vmatmul.mubr.bf16.gmra.mrb[0].mxu0 %v5513
    %v5653 = vpop.f32.mrb[0].mxu0
    %v5654 = vadd.f32 0.0, %v5653
    %v5655 = vpop.f32.mrb[0].mxu0
    %v5656 = vpop.f32.mrb[0].mxu0
    %v5657 = vadd.f32 0.0, %v5656
    %v5658 = vpop.f32.mrb[0].mxu0
    %5659 = vmatprep.mubr.bf16.mxu0 0
    %5660 = vmatmul.mubr.bf16.gmra.mrb[0].mxu0 %v5514
    %v5661 = vpop.f32.mrb[0].mxu0
    %v5662 = vadd.f32 0.0, %v5661
    %v5663 = vpop.f32.mrb[0].mxu0
    %v5664 = vpop.f32.mrb[0].mxu0
    %v5665 = vadd.f32 0.0, %v5664
    %v5666 = vpop.f32.mrb[0].mxu0
    %5667 = vdwg.mxu0
    %v5684 = vunpack.c.h.b16 %v5390
    %v5685 = vunpack.c.l.b16 %v5391
    %v5686 = vunpack.c.h.b16 %v5392
    %v5687 = vunpack.c.l.b16 %v5393
    %v5688 = vunpack.c.h.b16 %v5394
    %v5689 = vunpack.c.l.b16 %v5395
    %v5690 = vunpack.c.h.b16 %v5396
    %v5691 = vunpack.c.l.b16 %v5397
    %v5692 = vunpack.c.h.b16 %v5398
    %v5693 = vunpack.c.l.b16 %v5399
    %v5694 = vunpack.c.h.b16 %v5400
    %v5695 = vunpack.c.l.b16 %v5401
    %v5696 = vunpack.c.h.b16 %v5402
    %v5697 = vunpack.c.l.b16 %v5403
    %v5698 = vunpack.c.h.b16 %v5404
    %v5699 = vunpack.c.l.b16 %v5405
    %v5700 = vunpack.c.h.b16 %v5406
    %v5701 = vunpack.c.l.b16 %v5407
    %v5702 = vunpack.c.h.b16 %v5408
    %v5703 = vunpack.c.l.b16 %v5409
    %v5704 = vunpack.c.h.b16 %v5410
    %v5705 = vunpack.c.l.b16 %v5411
    %v5706 = vunpack.c.h.b16 %v5412
    %v5707 = vunpack.c.l.b16 %v5413
    %v5708 = vunpack.c.h.b16 %v5414
    %v5709 = vunpack.c.l.b16 %v5415
    %v5710 = vunpack.c.h.b16 %v5416
    %v5711 = vunpack.c.l.b16 %v5417
    %v5712 = vunpack.c.h.b16 %v5418
    %v5713 = vunpack.c.l.b16 %v5419
    %v5714 = vunpack.c.h.b16 %v5420
    %v5715 = vunpack.c.l.b16 %v5421
    %v5716 = vpack.c.b16 %v5686, %v5684
    %v5717 = vpack.c.b16 %v5687, %v5685
    %v5718 = vpack.c.b16 %v5690, %v5688
    %v5719 = vpack.c.b16 %v5691, %v5689
    %v5720 = vpack.c.b16 %v5694, %v5692
    %v5721 = vpack.c.b16 %v5695, %v5693
    %v5722 = vpack.c.b16 %v5698, %v5696
    %v5723 = vpack.c.b16 %v5699, %v5697
    %v5724 = vpack.c.b16 %v5702, %v5700
    %v5725 = vpack.c.b16 %v5703, %v5701
    %v5726 = vpack.c.b16 %v5706, %v5704
    %v5727 = vpack.c.b16 %v5707, %v5705
    %v5728 = vpack.c.b16 %v5710, %v5708
    %v5729 = vpack.c.b16 %v5711, %v5709
    %v5730 = vpack.c.b16 %v5714, %v5712
    %v5731 = vpack.c.b16 %v5715, %v5713
    %5748 = vmatprep.subr.bf16.mxu0 %v5717
    %5749 = vmatpush1.bf16.msra.mxu0 %v5716
    %5750 = vmatprep.subr.bf16.mxu0 %v5719
    %5751 = vmatpush1.bf16.msra.mxu0 %v5718
    %5752 = vmatprep.subr.bf16.mxu0 %v5721
    %5753 = vmatpush1.bf16.msra.mxu0 %v5720
    %5754 = vmatprep.subr.bf16.mxu0 %v5723
    %5755 = vmatpush1.bf16.msra.mxu0 %v5722
    %5756 = vmatprep.subr.bf16.mxu0 %v5725
    %5757 = vmatpush1.bf16.msra.mxu0 %v5724
    %5758 = vmatprep.subr.bf16.mxu0 %v5727
    %5759 = vmatpush1.bf16.msra.mxu0 %v5726
    %5760 = vmatprep.subr.bf16.mxu0 %v5729
    %5761 = vmatpush1.bf16.msra.mxu0 %v5728
    %5762 = vmatprep.subr.bf16.mxu0 %v5731
    %5763 = vmatpush1.bf16.msra.mxu0 %v5730
    %5764 = vmatprep.subr.bf16.mxu0 0
    %5765 = vmatpush1.bf16.msra.mxu0 0
    %5766 = vmatprep.subr.bf16.mxu0 0
    %5767 = vmatpush1.bf16.msra.mxu0 0
    %5768 = vmatprep.subr.bf16.mxu0 0
    %5769 = vmatpush1.bf16.msra.mxu0 0
    %5770 = vmatprep.subr.bf16.mxu0 0
    %5771 = vmatpush1.bf16.msra.mxu0 0
    %5772 = vmatprep.subr.bf16.mxu0 0
    %5773 = vmatpush1.bf16.msra.mxu0 0
    %5774 = vmatprep.subr.bf16.mxu0 0
    %5775 = vmatpush1.bf16.msra.mxu0 0
    %5776 = vmatprep.subr.bf16.mxu0 0
    %5777 = vmatpush1.bf16.msra.mxu0 0
    %5778 = vmatprep.subr.bf16.mxu0 0
    %5779 = vmatpush1.bf16.msra.mxu0 0
    %5780 = vmatprep.mubr.bf16.mxu0 0
    %5781 = vmatmul.mubr.bf16.gmra.mrb[0].mxu0 %v5515
    %v5782 = vpop.f32.mrb[0].mxu0
    %v5783 = vadd.f32 0.0, %v5782
    %v5784 = vpop.f32.mrb[0].mxu0
    %v5785 = vadd.f32 0.0, %v5784
    %v5786 = vpop.f32.mrb[0].mxu0
    %v5787 = vadd.f32 0.0, %v5786
    %v5788 = vpop.f32.mrb[0].mxu0
    %v5789 = vadd.f32 0.0, %v5788
    %5790 = vmatprep.mubr.bf16.mxu0 0
    %5791 = vmatmul.mubr.bf16.gmra.mrb[0].mxu0 %v5516
    %v5792 = vpop.f32.mrb[0].mxu0
    %v5793 = vadd.f32 0.0, %v5792
    %v5794 = vpop.f32.mrb[0].mxu0
    %v5795 = vadd.f32 0.0, %v5794
    %v5796 = vpop.f32.mrb[0].mxu0
    %v5797 = vadd.f32 0.0, %v5796
    %v5798 = vpop.f32.mrb[0].mxu0
    %v5799 = vadd.f32 0.0, %v5798
    %5800 = vmatprep.mubr.bf16.mxu0 0
    %5801 = vmatmul.mubr.bf16.gmra.mrb[0].mxu0 %v5517
    %v5802 = vpop.f32.mrb[0].mxu0
    %v5803 = vadd.f32 0.0, %v5802
    %v5804 = vpop.f32.mrb[0].mxu0
    %v5805 = vadd.f32 0.0, %v5804
    %v5806 = vpop.f32.mrb[0].mxu0
    %v5807 = vadd.f32 0.0, %v5806
    %v5808 = vpop.f32.mrb[0].mxu0
    %v5809 = vadd.f32 0.0, %v5808
    %5810 = vmatprep.mubr.bf16.mxu0 0
    %5811 = vmatmul.mubr.bf16.gmra.mrb[0].mxu0 %v5518
    %v5812 = vpop.f32.mrb[0].mxu0
    %v5813 = vadd.f32 0.0, %v5812
    %v5814 = vpop.f32.mrb[0].mxu0
    %v5815 = vadd.f32 0.0, %v5814
    %v5816 = vpop.f32.mrb[0].mxu0
    %v5817 = vadd.f32 0.0, %v5816
    %v5818 = vpop.f32.mrb[0].mxu0
    %v5819 = vadd.f32 0.0, %v5818
    %5820 = vmatprep.mubr.bf16.mxu0 0
    %5821 = vmatmul.mubr.bf16.gmra.mrb[0].mxu0 %v5519
    %v5822 = vpop.f32.mrb[0].mxu0
    %v5823 = vadd.f32 0.0, %v5822
    %v5824 = vpop.f32.mrb[0].mxu0
    %v5825 = vadd.f32 0.0, %v5824
    %v5826 = vpop.f32.mrb[0].mxu0
    %v5827 = vadd.f32 0.0, %v5826
    %v5828 = vpop.f32.mrb[0].mxu0
    %v5829 = vadd.f32 0.0, %v5828
    %5830 = vmatprep.mubr.bf16.mxu0 0
    %5831 = vmatmul.mubr.bf16.gmra.mrb[0].mxu0 %v5520
    %v5832 = vpop.f32.mrb[0].mxu0
    %v5833 = vadd.f32 0.0, %v5832
    %v5834 = vpop.f32.mrb[0].mxu0
    %v5835 = vadd.f32 0.0, %v5834
    %v5836 = vpop.f32.mrb[0].mxu0
    %v5837 = vadd.f32 0.0, %v5836
    %v5838 = vpop.f32.mrb[0].mxu0
    %v5839 = vadd.f32 0.0, %v5838
    %5840 = vmatprep.mubr.bf16.mxu0 0
    %5841 = vmatmul.mubr.bf16.gmra.mrb[0].mxu0 %v5521
    %v5842 = vpop.f32.mrb[0].mxu0
    %v5843 = vadd.f32 0.0, %v5842
    %v5844 = vpop.f32.mrb[0].mxu0
    %v5845 = vadd.f32 0.0, %v5844
    %v5846 = vpop.f32.mrb[0].mxu0
    %v5847 = vadd.f32 0.0, %v5846
    %v5848 = vpop.f32.mrb[0].mxu0
    %v5849 = vadd.f32 0.0, %v5848
    %5850 = vmatprep.mubr.bf16.mxu0 0
    %5851 = vmatmul.mubr.bf16.gmra.mrb[0].mxu0 %v5522
    %v5852 = vpop.f32.mrb[0].mxu0
    %v5853 = vadd.f32 0.0, %v5852
    %v5854 = vpop.f32.mrb[0].mxu0
    %v5855 = vadd.f32 0.0, %v5854
    %v5856 = vpop.f32.mrb[0].mxu0
    %v5857 = vadd.f32 0.0, %v5856
    %v5858 = vpop.f32.mrb[0].mxu0
    %v5859 = vadd.f32 0.0, %v5858
    %5860 = vdwg.mxu0
    %vm5861 = vcmp.gt.f32.partialorder %v5606, 0.0
    %vm5862 = vcmp.gt.f32.partialorder %v5609, 0.0
    %vm5863 = vcmp.gt.f32.partialorder %v5614, 0.0
    %vm5864 = vcmp.gt.f32.partialorder %v5617, 0.0
    %vm5865 = vcmp.gt.f32.partialorder %v5622, 0.0
    %vm5866 = vcmp.gt.f32.partialorder %v5625, 0.0
    %vm5867 = vcmp.gt.f32.partialorder %v5630, 0.0
    %vm5868 = vcmp.gt.f32.partialorder %v5633, 0.0
    %vm5869 = vcmp.gt.f32.partialorder %v5638, 0.0
    %vm5870 = vcmp.gt.f32.partialorder %v5641, 0.0
    %vm5871 = vcmp.gt.f32.partialorder %v5646, 0.0
    %vm5872 = vcmp.gt.f32.partialorder %v5649, 0.0
    %vm5873 = vcmp.gt.f32.partialorder %v5654, 0.0
    %vm5874 = vcmp.gt.f32.partialorder %v5657, 0.0
    %vm5875 = vcmp.gt.f32.partialorder %v5662, 0.0
    %vm5876 = vcmp.gt.f32.partialorder %v5665, 0.0
    %v5877 = vadd.f32 %v5606, 1.0
    %v5878 = vadd.f32 %v5609, 1.0
    %v5879 = vadd.f32 %v5614, 1.0
    %v5880 = vadd.f32 %v5617, 1.0
    %v5881 = vadd.f32 %v5622, 1.0
    %v5882 = vadd.f32 %v5625, 1.0
    %v5883 = vadd.f32 %v5630, 1.0
    %v5884 = vadd.f32 %v5633, 1.0
    %v5885 = vadd.f32 %v5638, 1.0
    %v5886 = vadd.f32 %v5641, 1.0
    %v5887 = vadd.f32 %v5646, 1.0
    %v5888 = vadd.f32 %v5649, 1.0
    %v5889 = vadd.f32 %v5654, 1.0
    %v5890 = vadd.f32 %v5657, 1.0
    %v5891 = vadd.f32 %v5662, 1.0
    %v5892 = vadd.f32 %v5665, 1.0
    %v5893 = vmin.f32 %v5606, 0.0
    %v5894 = vmin.f32 %v5609, 0.0
    %v5895 = vmin.f32 %v5614, 0.0
    %v5896 = vmin.f32 %v5617, 0.0
    %v5897 = vmin.f32 %v5622, 0.0
    %v5898 = vmin.f32 %v5625, 0.0
    %v5899 = vmin.f32 %v5630, 0.0
    %v5900 = vmin.f32 %v5633, 0.0
    %v5901 = vmin.f32 %v5638, 0.0
    %v5902 = vmin.f32 %v5641, 0.0
    %v5903 = vmin.f32 %v5646, 0.0
    %v5904 = vmin.f32 %v5649, 0.0
    %v5905 = vmin.f32 %v5654, 0.0
    %v5906 = vmin.f32 %v5657, 0.0
    %v5907 = vmin.f32 %v5662, 0.0
    %v5908 = vmin.f32 %v5665, 0.0
    %v5909 = vmul.f32 %v5893, 1.442695
    %v5910 = vpow.pop %v5909
    %v5911 = vmul.f32 %v5894, 1.442695
    %v5912 = vpow.pop %v5911
    %v5913 = vmul.f32 %v5895, 1.442695
    %v5914 = vpow.pop %v5913
    %v5915 = vmul.f32 %v5896, 1.442695
    %v5916 = vpow.pop %v5915
    %v5917 = vmul.f32 %v5897, 1.442695
    %v5918 = vpow.pop %v5917
    %v5919 = vmul.f32 %v5898, 1.442695
    %v5920 = vpow.pop %v5919
    %v5921 = vmul.f32 %v5899, 1.442695
    %v5922 = vpow.pop %v5921
    %v5923 = vmul.f32 %v5900, 1.442695
    %v5924 = vpow.pop %v5923
    %v5925 = vmul.f32 %v5901, 1.442695
    %v5926 = vpow.pop %v5925
    %v5927 = vmul.f32 %v5902, 1.442695
    %v5928 = vpow.pop %v5927
    %v5929 = vmul.f32 %v5903, 1.442695
    %v5930 = vpow.pop %v5929
    %v5931 = vmul.f32 %v5904, 1.442695
    %v5932 = vpow.pop %v5931
    %v5933 = vmul.f32 %v5905, 1.442695
    %v5934 = vpow.pop %v5933
    %v5935 = vmul.f32 %v5906, 1.442695
    %v5936 = vpow.pop %v5935
    %v5937 = vmul.f32 %v5907, 1.442695
    %v5938 = vpow.pop %v5937
    %v5939 = vmul.f32 %v5908, 1.442695
    %v5940 = vpow.pop %v5939
    %v5941 = vsel %vm5861, %v5877, %v5910
    %v5942 = vsel %vm5862, %v5878, %v5912
    %v5943 = vsel %vm5863, %v5879, %v5914
    %v5944 = vsel %vm5864, %v5880, %v5916
    %v5945 = vsel %vm5865, %v5881, %v5918
    %v5946 = vsel %vm5866, %v5882, %v5920
    %v5947 = vsel %vm5867, %v5883, %v5922
    %v5948 = vsel %vm5868, %v5884, %v5924
    %v5949 = vsel %vm5869, %v5885, %v5926
    %v5950 = vsel %vm5870, %v5886, %v5928
    %v5951 = vsel %vm5871, %v5887, %v5930
    %v5952 = vsel %vm5872, %v5888, %v5932
    %v5953 = vsel %vm5873, %v5889, %v5934
    %v5954 = vsel %vm5874, %v5890, %v5936
    %v5955 = vsel %vm5875, %v5891, %v5938
    %v5956 = vsel %vm5876, %v5892, %v5940
    %vm5957 = vcmp.gt.f32.partialorder %v5783, 0.0
    %vm5958 = vcmp.gt.f32.partialorder %v5787, 0.0
    %vm5959 = vcmp.gt.f32.partialorder %v5793, 0.0
    %vm5960 = vcmp.gt.f32.partialorder %v5797, 0.0
    %vm5961 = vcmp.gt.f32.partialorder %v5803, 0.0
    %vm5962 = vcmp.gt.f32.partialorder %v5807, 0.0
    %vm5963 = vcmp.gt.f32.partialorder %v5813, 0.0
    %vm5964 = vcmp.gt.f32.partialorder %v5817, 0.0
    %vm5965 = vcmp.gt.f32.partialorder %v5823, 0.0
    %vm5966 = vcmp.gt.f32.partialorder %v5827, 0.0
    %vm5967 = vcmp.gt.f32.partialorder %v5833, 0.0
    %vm5968 = vcmp.gt.f32.partialorder %v5837, 0.0
    %vm5969 = vcmp.gt.f32.partialorder %v5843, 0.0
    %vm5970 = vcmp.gt.f32.partialorder %v5847, 0.0
    %vm5971 = vcmp.gt.f32.partialorder %v5853, 0.0
    %vm5972 = vcmp.gt.f32.partialorder %v5857, 0.0
    %v5973 = vadd.f32 %v5783, 1.0
    %v5974 = vadd.f32 %v5787, 1.0
    %v5975 = vadd.f32 %v5793, 1.0
    %v5976 = vadd.f32 %v5797, 1.0
    %v5977 = vadd.f32 %v5803, 1.0
    %v5978 = vadd.f32 %v5807, 1.0
    %v5979 = vadd.f32 %v5813, 1.0
    %v5980 = vadd.f32 %v5817, 1.0
    %v5981 = vadd.f32 %v5823, 1.0
    %v5982 = vadd.f32 %v5827, 1.0
    %v5983 = vadd.f32 %v5833, 1.0
    %v5984 = vadd.f32 %v5837, 1.0
    %v5985 = vadd.f32 %v5843, 1.0
    %v5986 = vadd.f32 %v5847, 1.0
    %v5987 = vadd.f32 %v5853, 1.0
    %v5988 = vadd.f32 %v5857, 1.0
    %v5989 = vmin.f32 %v5783, 0.0
    %v5990 = vmin.f32 %v5787, 0.0
    %v5991 = vmin.f32 %v5793, 0.0
    %v5992 = vmin.f32 %v5797, 0.0
    %v5993 = vmin.f32 %v5803, 0.0
    %v5994 = vmin.f32 %v5807, 0.0
    %v5995 = vmin.f32 %v5813, 0.0
    %v5996 = vmin.f32 %v5817, 0.0
    %v5997 = vmin.f32 %v5823, 0.0
    %v5998 = vmin.f32 %v5827, 0.0
    %v5999 = vmin.f32 %v5833, 0.0
    %v6000 = vmin.f32 %v5837, 0.0
    %v6001 = vmin.f32 %v5843, 0.0
    %v6002 = vmin.f32 %v5847, 0.0
    %v6003 = vmin.f32 %v5853, 0.0
    %v6004 = vmin.f32 %v5857, 0.0
    %v6005 = vmul.f32 %v5989, 1.442695
    %v6006 = vpow.pop %v6005
    %v6007 = vmul.f32 %v5990, 1.442695
    %v6008 = vpow.pop %v6007
    %v6009 = vmul.f32 %v5991, 1.442695
    %v6010 = vpow.pop %v6009
    %v6011 = vmul.f32 %v5992, 1.442695
    %v6012 = vpow.pop %v6011
    %v6013 = vmul.f32 %v5993, 1.442695
    %v6014 = vpow.pop %v6013
    %v6015 = vmul.f32 %v5994, 1.442695
    %v6016 = vpow.pop %v6015
    %v6017 = vmul.f32 %v5995, 1.442695
    %v6018 = vpow.pop %v6017
    %v6019 = vmul.f32 %v5996, 1.442695
    %v6020 = vpow.pop %v6019
    %v6021 = vmul.f32 %v5997, 1.442695
    %v6022 = vpow.pop %v6021
    %v6023 = vmul.f32 %v5998, 1.442695
    %v6024 = vpow.pop %v6023
    %v6025 = vmul.f32 %v5999, 1.442695
    %v6026 = vpow.pop %v6025
    %v6027 = vmul.f32 %v6000, 1.442695
    %v6028 = vpow.pop %v6027
    %v6029 = vmul.f32 %v6001, 1.442695
    %v6030 = vpow.pop %v6029
    %v6031 = vmul.f32 %v6002, 1.442695
    %v6032 = vpow.pop %v6031
    %v6033 = vmul.f32 %v6003, 1.442695
    %v6034 = vpow.pop %v6033
    %v6035 = vmul.f32 %v6004, 1.442695
    %v6036 = vpow.pop %v6035
    %v6037 = vsel %vm5957, %v5973, %v6006
    %v6038 = vsel %vm5958, %v5974, %v6008
    %v6039 = vsel %vm5959, %v5975, %v6010
    %v6040 = vsel %vm5960, %v5976, %v6012
    %v6041 = vsel %vm5961, %v5977, %v6014
    %v6042 = vsel %vm5962, %v5978, %v6016
    %v6043 = vsel %vm5963, %v5979, %v6018
    %v6044 = vsel %vm5964, %v5980, %v6020
    %v6045 = vsel %vm5965, %v5981, %v6022
    %v6046 = vsel %vm5966, %v5982, %v6024
    %v6047 = vsel %vm5967, %v5983, %v6026
    %v6048 = vsel %vm5968, %v5984, %v6028
    %v6049 = vsel %vm5969, %v5985, %v6030
    %v6050 = vsel %vm5970, %v5986, %v6032
    %v6051 = vsel %vm5971, %v5987, %v6034
    %v6052 = vsel %vm5972, %v5988, %v6036
    %v6053 = vpack.c.bf16 %v5789, %v5785
    %v6054 = vpack.c.bf16 %v5799, %v5795
    %v6055 = vpack.c.bf16 %v5809, %v5805
    %v6056 = vpack.c.bf16 %v5819, %v5815
    %v6057 = vpack.c.bf16 %v5829, %v5825
    %v6058 = vpack.c.bf16 %v5839, %v5835
    %v6059 = vpack.c.bf16 %v5849, %v5845
    %v6060 = vpack.c.bf16 %v5859, %v5855
    %v6061 = vpack.c.bf16 %v6038, %v6037
    %v6062 = vpack.c.bf16 %v6040, %v6039
    %v6063 = vpack.c.bf16 %v6042, %v6041
    %v6064 = vpack.c.bf16 %v6044, %v6043
    %v6065 = vpack.c.bf16 %v6046, %v6045
    %v6066 = vpack.c.bf16 %v6048, %v6047
    %v6067 = vpack.c.bf16 %v6050, %v6049
    %v6068 = vpack.c.bf16 %v6052, %v6051
    %6069 = vxpose.xlu0.c.b16.start [1/8] %v6061, 128
    %6070 = vxpose.xlu0.c.b16.cont [2/8] %v6062, 128
    %6071 = vxpose.xlu0.c.b16.cont [3/8] %v6063, 128
    %6072 = vxpose.xlu0.c.b16.cont [4/8] %v6064, 128
    %6073 = vxpose.xlu0.c.b16.cont [5/8] 0, 128
    %6074 = vxpose.xlu0.c.b16.cont [6/8] 0, 128
    %6075 = vxpose.xlu0.c.b16.cont [7/8] 0, 128
    %6076 = vxpose.xlu0.c.b16.end [8/8] 0, 128
    %v6077 = vpop.trf.xlu0
    %v6078 = vpop.trf.xlu0
    %v6079 = vpop.trf.xlu0
    %v6080 = vpop.trf.xlu0
    %v6081 = vpop.trf.xlu0
    %v6082 = vpop.trf.xlu0
    %v6083 = vpop.trf.xlu0
    %v6084 = vpop.trf.xlu0
    %v6086 = vsel %vm864, %v6077, 0
    %v6089 = vsel %vm864, %v6078, 0
    %v6092 = vsel %vm864, %v6079, 0
    %v6095 = vsel %vm864, %v6080, 0
    %v6098 = vsel %vm864, %v6081, 0
    %v6101 = vsel %vm864, %v6082, 0
    %v6104 = vsel %vm864, %v6083, 0
    %v6107 = vsel %vm864, %v6084, 0
    %6109 = vmatprep.subr.bf16.mxu0 %v832
    %6110 = vmatpush1.bf16.msra.mxu0 %v6053
    %6111 = vmatprep.subr.bf16.mxu0 %v832
    %6112 = vmatpush1.bf16.msra.mxu0 %v6054
    %6113 = vmatprep.subr.bf16.mxu0 %v832
    %6114 = vmatpush1.bf16.msra.mxu0 %v6055
    %6115 = vmatprep.subr.bf16.mxu0 %v832
    %6116 = vmatpush1.bf16.msra.mxu0 %v6056
    %6117 = vmatprep.subr.bf16.mxu0 0
    %6118 = vmatpush1.bf16.msra.mxu0 0
    %6119 = vmatprep.subr.bf16.mxu0 0
    %6120 = vmatpush1.bf16.msra.mxu0 0
    %6121 = vmatprep.subr.bf16.mxu0 0
    %6122 = vmatpush1.bf16.msra.mxu0 0
    %6123 = vmatprep.subr.bf16.mxu0 0
    %6124 = vmatpush1.bf16.msra.mxu0 0
    %6125 = vmatprep.subr.bf16.mxu0 0
    %6126 = vmatpush1.bf16.msra.mxu0 0
    %6127 = vmatprep.subr.bf16.mxu0 0
    %6128 = vmatpush1.bf16.msra.mxu0 0
    %6129 = vmatprep.subr.bf16.mxu0 0
    %6130 = vmatpush1.bf16.msra.mxu0 0
    %6131 = vmatprep.subr.bf16.mxu0 0
    %6132 = vmatpush1.bf16.msra.mxu0 0
    %6133 = vmatprep.subr.bf16.mxu0 0
    %6134 = vmatpush1.bf16.msra.mxu0 0
    %6135 = vmatprep.subr.bf16.mxu0 0
    %6136 = vmatpush1.bf16.msra.mxu0 0
    %6137 = vmatprep.subr.bf16.mxu0 0
    %6138 = vmatpush1.bf16.msra.mxu0 0
    %6139 = vmatprep.subr.bf16.mxu0 0
    %6140 = vmatpush1.bf16.msra.mxu0 0
    %6141 = vmatprep.mubr.bf16.mxu0 0
    %6142 = vmatmul.mubr.bf16.gmra.mrb[0].mxu0 %v6086
    %v6143 = vpop.f32.mrb[0].mxu0
    %v6144 = vadd.f32 0.0, %v6143
    %v6145 = vpop.f32.mrb[0].mxu0
    %v6146 = vadd.f32 0.0, %v6145
    %v6147 = vpop.f32.mrb[0].mxu0
    %v6148 = vadd.f32 0.0, %v6147
    %v6149 = vpop.f32.mrb[0].mxu0
    %v6150 = vadd.f32 0.0, %v6149
    %6151 = vmatprep.mubr.bf16.mxu0 0
    %6152 = vmatmul.mubr.bf16.gmra.mrb[0].mxu0 %v6089
    %v6153 = vpop.f32.mrb[0].mxu0
    %v6154 = vadd.f32 0.0, %v6153
    %v6155 = vpop.f32.mrb[0].mxu0
    %v6156 = vadd.f32 0.0, %v6155
    %v6157 = vpop.f32.mrb[0].mxu0
    %v6158 = vadd.f32 0.0, %v6157
    %v6159 = vpop.f32.mrb[0].mxu0
    %v6160 = vadd.f32 0.0, %v6159
    %6161 = vmatprep.mubr.bf16.mxu0 0
    %6162 = vmatmul.mubr.bf16.gmra.mrb[0].mxu0 %v6092
    %v6163 = vpop.f32.mrb[0].mxu0
    %v6164 = vadd.f32 0.0, %v6163
    %v6165 = vpop.f32.mrb[0].mxu0
    %v6166 = vadd.f32 0.0, %v6165
    %v6167 = vpop.f32.mrb[0].mxu0
    %v6168 = vadd.f32 0.0, %v6167
    %v6169 = vpop.f32.mrb[0].mxu0
    %v6170 = vadd.f32 0.0, %v6169
    %6171 = vmatprep.mubr.bf16.mxu0 0
    %6172 = vmatmul.mubr.bf16.gmra.mrb[0].mxu0 %v6095
    %v6173 = vpop.f32.mrb[0].mxu0
    %v6174 = vadd.f32 0.0, %v6173
    %v6175 = vpop.f32.mrb[0].mxu0
    %v6176 = vadd.f32 0.0, %v6175
    %v6177 = vpop.f32.mrb[0].mxu0
    %v6178 = vadd.f32 0.0, %v6177
    %v6179 = vpop.f32.mrb[0].mxu0
    %v6180 = vadd.f32 0.0, %v6179
    %6181 = vmatprep.mubr.bf16.mxu0 0
    %6182 = vmatmul.mubr.bf16.gmra.mrb[0].mxu0 %v6098
    %v6183 = vpop.f32.mrb[0].mxu0
    %v6184 = vadd.f32 0.0, %v6183
    %v6185 = vpop.f32.mrb[0].mxu0
    %v6186 = vadd.f32 0.0, %v6185
    %v6187 = vpop.f32.mrb[0].mxu0
    %v6188 = vadd.f32 0.0, %v6187
    %v6189 = vpop.f32.mrb[0].mxu0
    %v6190 = vadd.f32 0.0, %v6189
    %6191 = vmatprep.mubr.bf16.mxu0 0
    %6192 = vmatmul.mubr.bf16.gmra.mrb[0].mxu0 %v6101
    %v6193 = vpop.f32.mrb[0].mxu0
    %v6194 = vadd.f32 0.0, %v6193
    %v6195 = vpop.f32.mrb[0].mxu0
    %v6196 = vadd.f32 0.0, %v6195
    %v6197 = vpop.f32.mrb[0].mxu0
    %v6198 = vadd.f32 0.0, %v6197
    %v6199 = vpop.f32.mrb[0].mxu0
    %v6200 = vadd.f32 0.0, %v6199
    %6201 = vmatprep.mubr.bf16.mxu0 0
    %6202 = vmatmul.mubr.bf16.gmra.mrb[0].mxu0 %v6104
    %v6203 = vpop.f32.mrb[0].mxu0
    %v6204 = vadd.f32 0.0, %v6203
    %v6205 = vpop.f32.mrb[0].mxu0
    %v6206 = vadd.f32 0.0, %v6205
    %v6207 = vpop.f32.mrb[0].mxu0
    %v6208 = vadd.f32 0.0, %v6207
    %v6209 = vpop.f32.mrb[0].mxu0
    %v6210 = vadd.f32 0.0, %v6209
    %6211 = vmatprep.mubr.bf16.mxu0 0
    %6212 = vmatmul.mubr.bf16.gmra.mrb[0].mxu0 %v6107
    %v6213 = vpop.f32.mrb[0].mxu0
    %v6214 = vadd.f32 0.0, %v6213
    %v6215 = vpop.f32.mrb[0].mxu0
    %v6216 = vadd.f32 0.0, %v6215
    %v6217 = vpop.f32.mrb[0].mxu0
    %v6218 = vadd.f32 0.0, %v6217
    %v6219 = vpop.f32.mrb[0].mxu0
    %v6220 = vadd.f32 0.0, %v6219
    %6221 = vdwg.mxu0
    %6222 = vxpose.xlu0.c.b16.start [1/8] %v6065, 128
    %6223 = vxpose.xlu0.c.b16.cont [2/8] %v6066, 128
    %6224 = vxpose.xlu0.c.b16.cont [3/8] %v6067, 128
    %6225 = vxpose.xlu0.c.b16.cont [4/8] %v6068, 128
    %6226 = vxpose.xlu0.c.b16.cont [5/8] 0, 128
    %6227 = vxpose.xlu0.c.b16.cont [6/8] 0, 128
    %6228 = vxpose.xlu0.c.b16.cont [7/8] 0, 128
    %6229 = vxpose.xlu0.c.b16.end [8/8] 0, 128
    %v6230 = vpop.trf.xlu0
    %v6231 = vpop.trf.xlu0
    %v6232 = vpop.trf.xlu0
    %v6233 = vpop.trf.xlu0
    %v6234 = vpop.trf.xlu0
    %v6235 = vpop.trf.xlu0
    %v6236 = vpop.trf.xlu0
    %v6237 = vpop.trf.xlu0
    %v6239 = vsel %vm864, %v6230, 0
    %v6242 = vsel %vm864, %v6231, 0
    %v6245 = vsel %vm864, %v6232, 0
    %v6248 = vsel %vm864, %v6233, 0
    %v6251 = vsel %vm864, %v6234, 0
    %v6254 = vsel %vm864, %v6235, 0
    %v6257 = vsel %vm864, %v6236, 0
    %v6260 = vsel %vm864, %v6237, 0
    %6262 = vmatprep.subr.bf16.mxu0 %v832
    %6263 = vmatpush1.bf16.msra.mxu0 %v6057
    %6264 = vmatprep.subr.bf16.mxu0 %v832
    %6265 = vmatpush1.bf16.msra.mxu0 %v6058
    %6266 = vmatprep.subr.bf16.mxu0 %v832
    %6267 = vmatpush1.bf16.msra.mxu0 %v6059
    %6268 = vmatprep.subr.bf16.mxu0 %v832
    %6269 = vmatpush1.bf16.msra.mxu0 %v6060
    %6270 = vmatprep.subr.bf16.mxu0 0
    %6271 = vmatpush1.bf16.msra.mxu0 0
    %6272 = vmatprep.subr.bf16.mxu0 0
    %6273 = vmatpush1.bf16.msra.mxu0 0
    %6274 = vmatprep.subr.bf16.mxu0 0
    %6275 = vmatpush1.bf16.msra.mxu0 0
    %6276 = vmatprep.subr.bf16.mxu0 0
    %6277 = vmatpush1.bf16.msra.mxu0 0
    %6278 = vmatprep.subr.bf16.mxu0 0
    %6279 = vmatpush1.bf16.msra.mxu0 0
    %6280 = vmatprep.subr.bf16.mxu0 0
    %6281 = vmatpush1.bf16.msra.mxu0 0
    %6282 = vmatprep.subr.bf16.mxu0 0
    %6283 = vmatpush1.bf16.msra.mxu0 0
    %6284 = vmatprep.subr.bf16.mxu0 0
    %6285 = vmatpush1.bf16.msra.mxu0 0
    %6286 = vmatprep.subr.bf16.mxu0 0
    %6287 = vmatpush1.bf16.msra.mxu0 0
    %6288 = vmatprep.subr.bf16.mxu0 0
    %6289 = vmatpush1.bf16.msra.mxu0 0
    %6290 = vmatprep.subr.bf16.mxu0 0
    %6291 = vmatpush1.bf16.msra.mxu0 0
    %6292 = vmatprep.subr.bf16.mxu0 0
    %6293 = vmatpush1.bf16.msra.mxu0 0
    %6294 = vmatprep.mubr.bf16.mxu0 0
    %6295 = vmatmul.mubr.bf16.gmra.mrb[0].mxu0 %v6239
    %v6296 = vpop.f32.mrb[0].mxu0
    %v6297 = vadd.f32 0.0, %v6296
    %v6298 = vpop.f32.mrb[0].mxu0
    %v6299 = vadd.f32 0.0, %v6298
    %v6300 = vpop.f32.mrb[0].mxu0
    %v6301 = vadd.f32 0.0, %v6300
    %v6302 = vpop.f32.mrb[0].mxu0
    %v6303 = vadd.f32 0.0, %v6302
    %6304 = vmatprep.mubr.bf16.mxu0 0
    %6305 = vmatmul.mubr.bf16.gmra.mrb[0].mxu0 %v6242
    %v6306 = vpop.f32.mrb[0].mxu0
    %v6307 = vadd.f32 0.0, %v6306
    %v6308 = vpop.f32.mrb[0].mxu0
    %v6309 = vadd.f32 0.0, %v6308
    %v6310 = vpop.f32.mrb[0].mxu0
    %v6311 = vadd.f32 0.0, %v6310
    %v6312 = vpop.f32.mrb[0].mxu0
    %v6313 = vadd.f32 0.0, %v6312
    %6314 = vmatprep.mubr.bf16.mxu0 0
    %6315 = vmatmul.mubr.bf16.gmra.mrb[0].mxu0 %v6245
    %v6316 = vpop.f32.mrb[0].mxu0
    %v6317 = vadd.f32 0.0, %v6316
    %v6318 = vpop.f32.mrb[0].mxu0
    %v6319 = vadd.f32 0.0, %v6318
    %v6320 = vpop.f32.mrb[0].mxu0
    %v6321 = vadd.f32 0.0, %v6320
    %v6322 = vpop.f32.mrb[0].mxu0
    %v6323 = vadd.f32 0.0, %v6322
    %6324 = vmatprep.mubr.bf16.mxu0 0
    %6325 = vmatmul.mubr.bf16.gmra.mrb[0].mxu0 %v6248
    %v6326 = vpop.f32.mrb[0].mxu0
    %v6327 = vadd.f32 0.0, %v6326
    %v6328 = vpop.f32.mrb[0].mxu0
    %v6329 = vadd.f32 0.0, %v6328
    %v6330 = vpop.f32.mrb[0].mxu0
    %v6331 = vadd.f32 0.0, %v6330
    %v6332 = vpop.f32.mrb[0].mxu0
    %v6333 = vadd.f32 0.0, %v6332
    %6334 = vmatprep.mubr.bf16.mxu0 0
    %6335 = vmatmul.mubr.bf16.gmra.mrb[0].mxu0 %v6251
    %v6336 = vpop.f32.mrb[0].mxu0
    %v6337 = vadd.f32 0.0, %v6336
    %v6338 = vpop.f32.mrb[0].mxu0
    %v6339 = vadd.f32 0.0, %v6338
    %v6340 = vpop.f32.mrb[0].mxu0
    %v6341 = vadd.f32 0.0, %v6340
    %v6342 = vpop.f32.mrb[0].mxu0
    %v6343 = vadd.f32 0.0, %v6342
    %6344 = vmatprep.mubr.bf16.mxu0 0
    %6345 = vmatmul.mubr.bf16.gmra.mrb[0].mxu0 %v6254
    %v6346 = vpop.f32.mrb[0].mxu0
    %v6347 = vadd.f32 0.0, %v6346
    %v6348 = vpop.f32.mrb[0].mxu0
    %v6349 = vadd.f32 0.0, %v6348
    %v6350 = vpop.f32.mrb[0].mxu0
    %v6351 = vadd.f32 0.0, %v6350
    %v6352 = vpop.f32.mrb[0].mxu0
    %v6353 = vadd.f32 0.0, %v6352
    %6354 = vmatprep.mubr.bf16.mxu0 0
    %6355 = vmatmul.mubr.bf16.gmra.mrb[0].mxu0 %v6257
    %v6356 = vpop.f32.mrb[0].mxu0
    %v6357 = vadd.f32 0.0, %v6356
    %v6358 = vpop.f32.mrb[0].mxu0
    %v6359 = vadd.f32 0.0, %v6358
    %v6360 = vpop.f32.mrb[0].mxu0
    %v6361 = vadd.f32 0.0, %v6360
    %v6362 = vpop.f32.mrb[0].mxu0
    %v6363 = vadd.f32 0.0, %v6362
    %6364 = vmatprep.mubr.bf16.mxu0 0
    %6365 = vmatmul.mubr.bf16.gmra.mrb[0].mxu0 %v6260
    %v6366 = vpop.f32.mrb[0].mxu0
    %v6367 = vadd.f32 0.0, %v6366
    %v6368 = vpop.f32.mrb[0].mxu0
    %v6369 = vadd.f32 0.0, %v6368
    %v6370 = vpop.f32.mrb[0].mxu0
    %v6371 = vadd.f32 0.0, %v6370
    %v6372 = vpop.f32.mrb[0].mxu0
    %v6373 = vadd.f32 0.0, %v6372
    %6374 = vdwg.mxu0
    %v6375 = vmul.f32 %v6144, %v148
    %v6376 = vmul.f32 %v6146, %v149
    %v6377 = vmul.f32 %v6148, %v150
    %v6378 = vmul.f32 %v6150, %v151
    %v6379 = vmul.f32 %v6154, %v152
    %v6380 = vmul.f32 %v6156, %v153
    %v6381 = vmul.f32 %v6158, %v154
    %v6382 = vmul.f32 %v6160, %v155
    %v6383 = vmul.f32 %v6164, %v156
    %v6384 = vmul.f32 %v6166, %v157
    %v6385 = vmul.f32 %v6168, %v158
    %v6386 = vmul.f32 %v6170, %v159
    %v6387 = vmul.f32 %v6174, %v160
    %v6388 = vmul.f32 %v6176, %v161
    %v6389 = vmul.f32 %v6178, %v162
    %v6390 = vmul.f32 %v6180, %v163
    %v6391 = vmul.f32 %v6184, %v164
    %v6392 = vmul.f32 %v6186, %v165
    %v6393 = vmul.f32 %v6188, %v166
    %v6394 = vmul.f32 %v6190, %v167
    %v6395 = vmul.f32 %v6194, %v168
    %v6396 = vmul.f32 %v6196, %v169
    %v6397 = vmul.f32 %v6198, %v170
    %v6398 = vmul.f32 %v6200, %v171
    %v6399 = vmul.f32 %v6204, %v172
    %v6400 = vmul.f32 %v6206, %v173
    %v6401 = vmul.f32 %v6208, %v174
    %v6402 = vmul.f32 %v6210, %v175
    %v6403 = vmul.f32 %v6214, %v176
    %v6404 = vmul.f32 %v6216, %v177
    %v6405 = vmul.f32 %v6218, %v178
    %v6406 = vmul.f32 %v6220, %v179
    %v6407 = vmul.f32 %v6297, %v148
    %v6408 = vmul.f32 %v6299, %v149
    %v6409 = vmul.f32 %v6301, %v150
    %v6410 = vmul.f32 %v6303, %v151
    %v6411 = vmul.f32 %v6307, %v152
    %v6412 = vmul.f32 %v6309, %v153
    %v6413 = vmul.f32 %v6311, %v154
    %v6414 = vmul.f32 %v6313, %v155
    %v6415 = vmul.f32 %v6317, %v156
    %v6416 = vmul.f32 %v6319, %v157
    %v6417 = vmul.f32 %v6321, %v158
    %v6418 = vmul.f32 %v6323, %v159
    %v6419 = vmul.f32 %v6327, %v160
    %v6420 = vmul.f32 %v6329, %v161
    %v6421 = vmul.f32 %v6331, %v162
    %v6422 = vmul.f32 %v6333, %v163
    %v6423 = vmul.f32 %v6337, %v164
    %v6424 = vmul.f32 %v6339, %v165
    %v6425 = vmul.f32 %v6341, %v166
    %v6426 = vmul.f32 %v6343, %v167
    %v6427 = vmul.f32 %v6347, %v168
    %v6428 = vmul.f32 %v6349, %v169
    %v6429 = vmul.f32 %v6351, %v170
    %v6430 = vmul.f32 %v6353, %v171
    %v6431 = vmul.f32 %v6357, %v172
    %v6432 = vmul.f32 %v6359, %v173
    %v6433 = vmul.f32 %v6361, %v174
    %v6434 = vmul.f32 %v6363, %v175
    %v6435 = vmul.f32 %v6367, %v176
    %v6436 = vmul.f32 %v6369, %v177
    %v6437 = vmul.f32 %v6371, %v178
    %v6438 = vmul.f32 %v6373, %v179
    %v6439 = vpack.c.bf16 %v6377, %v6375
    %v6440 = vpack.c.bf16 %v6378, %v6376
    %v6441 = vpack.c.bf16 %v6381, %v6379
    %v6442 = vpack.c.bf16 %v6382, %v6380
    %v6443 = vpack.c.bf16 %v6385, %v6383
    %v6444 = vpack.c.bf16 %v6386, %v6384
    %v6445 = vpack.c.bf16 %v6389, %v6387
    %v6446 = vpack.c.bf16 %v6390, %v6388
    %v6447 = vpack.c.bf16 %v6393, %v6391
    %v6448 = vpack.c.bf16 %v6394, %v6392
    %v6449 = vpack.c.bf16 %v6397, %v6395
    %v6450 = vpack.c.bf16 %v6398, %v6396
    %v6451 = vpack.c.bf16 %v6401, %v6399
    %v6452 = vpack.c.bf16 %v6402, %v6400
    %v6453 = vpack.c.bf16 %v6405, %v6403
    %v6454 = vpack.c.bf16 %v6406, %v6404
    %v6455 = vpack.c.bf16 %v6409, %v6407
    %v6456 = vpack.c.bf16 %v6410, %v6408
    %v6457 = vpack.c.bf16 %v6413, %v6411
    %v6458 = vpack.c.bf16 %v6414, %v6412
    %v6459 = vpack.c.bf16 %v6417, %v6415
    %v6460 = vpack.c.bf16 %v6418, %v6416
    %v6461 = vpack.c.bf16 %v6421, %v6419
    %v6462 = vpack.c.bf16 %v6422, %v6420
    %v6463 = vpack.c.bf16 %v6425, %v6423
    %v6464 = vpack.c.bf16 %v6426, %v6424
    %v6465 = vpack.c.bf16 %v6429, %v6427
    %v6466 = vpack.c.bf16 %v6430, %v6428
    %v6467 = vpack.c.bf16 %v6433, %v6431
    %v6468 = vpack.c.bf16 %v6434, %v6432
    %v6469 = vpack.c.bf16 %v6437, %v6435
    %v6470 = vpack.c.bf16 %v6438, %v6436
    %v6471 = vpack.c.bf16 %v5942, %v5941
    %v6472 = vpack.c.bf16 %v5944, %v5943
    %v6473 = vpack.c.bf16 %v5946, %v5945
    %v6474 = vpack.c.bf16 %v5948, %v5947
    %v6475 = vpack.c.bf16 %v5950, %v5949
    %v6476 = vpack.c.bf16 %v5952, %v5951
    %v6477 = vpack.c.bf16 %v5954, %v5953
    %v6478 = vpack.c.bf16 %v5956, %v5955
    %6479 = vmatprep.subr.bf16.mxu0 %v6440
    %6480 = vmatpush1.bf16.msra.mxu0 %v6439
    %6481 = vmatprep.subr.bf16.mxu0 %v6442
    %6482 = vmatpush1.bf16.msra.mxu0 %v6441
    %6483 = vmatprep.subr.bf16.mxu0 %v6444
    %6484 = vmatpush1.bf16.msra.mxu0 %v6443
    %6485 = vmatprep.subr.bf16.mxu0 %v6446
    %6486 = vmatpush1.bf16.msra.mxu0 %v6445
    %6487 = vmatprep.subr.bf16.mxu0 %v6448
    %6488 = vmatpush1.bf16.msra.mxu0 %v6447
    %6489 = vmatprep.subr.bf16.mxu0 %v6450
    %6490 = vmatpush1.bf16.msra.mxu0 %v6449
    %6491 = vmatprep.subr.bf16.mxu0 %v6452
    %6492 = vmatpush1.bf16.msra.mxu0 %v6451
    %6493 = vmatprep.subr.bf16.mxu0 %v6454
    %6494 = vmatpush1.bf16.msra.mxu0 %v6453
    %6495 = vmatprep.subr.bf16.mxu0 0
    %6496 = vmatpush1.bf16.msra.mxu0 0
    %6497 = vmatprep.subr.bf16.mxu0 0
    %6498 = vmatpush1.bf16.msra.mxu0 0
    %6499 = vmatprep.subr.bf16.mxu0 0
    %6500 = vmatpush1.bf16.msra.mxu0 0
    %6501 = vmatprep.subr.bf16.mxu0 0
    %6502 = vmatpush1.bf16.msra.mxu0 0
    %6503 = vmatprep.subr.bf16.mxu0 0
    %6504 = vmatpush1.bf16.msra.mxu0 0
    %6505 = vmatprep.subr.bf16.mxu0 0
    %6506 = vmatpush1.bf16.msra.mxu0 0
    %6507 = vmatprep.subr.bf16.mxu0 0
    %6508 = vmatpush1.bf16.msra.mxu0 0
    %6509 = vmatprep.subr.bf16.mxu0 0
    %6510 = vmatpush1.bf16.msra.mxu0 0
    %6511 = vmatprep.mubr.bf16.mxu0 0
    %6512 = vmatmul.mubr.bf16.gmra.mrb[0].mxu0 %v6471
    %v6513 = vpop.f32.mrb[0].mxu0
    %v6514 = vadd.f32 0.0, %v6513
    %v6515 = vpop.f32.mrb[0].mxu0
    %v6516 = vadd.f32 0.0, %v6515
    %v6517 = vpop.f32.mrb[0].mxu0
    %v6518 = vadd.f32 0.0, %v6517
    %v6519 = vpop.f32.mrb[0].mxu0
    %v6520 = vadd.f32 0.0, %v6519
    %6521 = vmatprep.mubr.bf16.mxu0 0
    %6522 = vmatmul.mubr.bf16.gmra.mrb[0].mxu0 %v6472
    %v6523 = vpop.f32.mrb[0].mxu0
    %v6524 = vadd.f32 0.0, %v6523
    %v6525 = vpop.f32.mrb[0].mxu0
    %v6526 = vadd.f32 0.0, %v6525
    %v6527 = vpop.f32.mrb[0].mxu0
    %v6528 = vadd.f32 0.0, %v6527
    %v6529 = vpop.f32.mrb[0].mxu0
    %v6530 = vadd.f32 0.0, %v6529
    %6531 = vmatprep.mubr.bf16.mxu0 0
    %6532 = vmatmul.mubr.bf16.gmra.mrb[0].mxu0 %v6473
    %v6533 = vpop.f32.mrb[0].mxu0
    %v6534 = vadd.f32 0.0, %v6533
    %v6535 = vpop.f32.mrb[0].mxu0
    %v6536 = vadd.f32 0.0, %v6535
    %v6537 = vpop.f32.mrb[0].mxu0
    %v6538 = vadd.f32 0.0, %v6537
    %v6539 = vpop.f32.mrb[0].mxu0
    %v6540 = vadd.f32 0.0, %v6539
    %6541 = vmatprep.mubr.bf16.mxu0 0
    %6542 = vmatmul.mubr.bf16.gmra.mrb[0].mxu0 %v6474
    %v6543 = vpop.f32.mrb[0].mxu0
    %v6544 = vadd.f32 0.0, %v6543
    %v6545 = vpop.f32.mrb[0].mxu0
    %v6546 = vadd.f32 0.0, %v6545
    %v6547 = vpop.f32.mrb[0].mxu0
    %v6548 = vadd.f32 0.0, %v6547
    %v6549 = vpop.f32.mrb[0].mxu0
    %v6550 = vadd.f32 0.0, %v6549
    %6551 = vdwg.mxu0
    %6552 = vmatprep.subr.bf16.mxu0 %v6456
    %6553 = vmatpush1.bf16.msra.mxu0 %v6455
    %6554 = vmatprep.subr.bf16.mxu0 %v6458
    %6555 = vmatpush1.bf16.msra.mxu0 %v6457
    %6556 = vmatprep.subr.bf16.mxu0 %v6460
    %6557 = vmatpush1.bf16.msra.mxu0 %v6459
    %6558 = vmatprep.subr.bf16.mxu0 %v6462
    %6559 = vmatpush1.bf16.msra.mxu0 %v6461
    %6560 = vmatprep.subr.bf16.mxu0 %v6464
    %6561 = vmatpush1.bf16.msra.mxu0 %v6463
    %6562 = vmatprep.subr.bf16.mxu0 %v6466
    %6563 = vmatpush1.bf16.msra.mxu0 %v6465
    %6564 = vmatprep.subr.bf16.mxu0 %v6468
    %6565 = vmatpush1.bf16.msra.mxu0 %v6467
    %6566 = vmatprep.subr.bf16.mxu0 %v6470
    %6567 = vmatpush1.bf16.msra.mxu0 %v6469
    %6568 = vmatprep.subr.bf16.mxu0 0
    %6569 = vmatpush1.bf16.msra.mxu0 0
    %6570 = vmatprep.subr.bf16.mxu0 0
    %6571 = vmatpush1.bf16.msra.mxu0 0
    %6572 = vmatprep.subr.bf16.mxu0 0
    %6573 = vmatpush1.bf16.msra.mxu0 0
    %6574 = vmatprep.subr.bf16.mxu0 0
    %6575 = vmatpush1.bf16.msra.mxu0 0
    %6576 = vmatprep.subr.bf16.mxu0 0
    %6577 = vmatpush1.bf16.msra.mxu0 0
    %6578 = vmatprep.subr.bf16.mxu0 0
    %6579 = vmatpush1.bf16.msra.mxu0 0
    %6580 = vmatprep.subr.bf16.mxu0 0
    %6581 = vmatpush1.bf16.msra.mxu0 0
    %6582 = vmatprep.subr.bf16.mxu0 0
    %6583 = vmatpush1.bf16.msra.mxu0 0
    %6584 = vmatprep.mubr.bf16.mxu0 0
    %6585 = vmatmul.mubr.bf16.gmra.mrb[0].mxu0 %v6475
    %v6586 = vpop.f32.mrb[0].mxu0
    %v6587 = vadd.f32 0.0, %v6586
    %v6588 = vpop.f32.mrb[0].mxu0
    %v6589 = vadd.f32 0.0, %v6588
    %v6590 = vpop.f32.mrb[0].mxu0
    %v6591 = vadd.f32 0.0, %v6590
    %v6592 = vpop.f32.mrb[0].mxu0
    %v6593 = vadd.f32 0.0, %v6592
    %6594 = vmatprep.mubr.bf16.mxu0 0
    %6595 = vmatmul.mubr.bf16.gmra.mrb[0].mxu0 %v6476
    %v6596 = vpop.f32.mrb[0].mxu0
    %v6597 = vadd.f32 0.0, %v6596
    %v6598 = vpop.f32.mrb[0].mxu0
    %v6599 = vadd.f32 0.0, %v6598
    %v6600 = vpop.f32.mrb[0].mxu0
    %v6601 = vadd.f32 0.0, %v6600
    %v6602 = vpop.f32.mrb[0].mxu0
    %v6603 = vadd.f32 0.0, %v6602
    %6604 = vmatprep.mubr.bf16.mxu0 0
    %6605 = vmatmul.mubr.bf16.gmra.mrb[0].mxu0 %v6477
    %v6606 = vpop.f32.mrb[0].mxu0
    %v6607 = vadd.f32 0.0, %v6606
    %v6608 = vpop.f32.mrb[0].mxu0
    %v6609 = vadd.f32 0.0, %v6608
    %v6610 = vpop.f32.mrb[0].mxu0
    %v6611 = vadd.f32 0.0, %v6610
    %v6612 = vpop.f32.mrb[0].mxu0
    %v6613 = vadd.f32 0.0, %v6612
    %6614 = vmatprep.mubr.bf16.mxu0 0
    %6615 = vmatmul.mubr.bf16.gmra.mrb[0].mxu0 %v6478
    %v6616 = vpop.f32.mrb[0].mxu0
    %v6617 = vadd.f32 0.0, %v6616
    %v6618 = vpop.f32.mrb[0].mxu0
    %v6619 = vadd.f32 0.0, %v6618
    %v6620 = vpop.f32.mrb[0].mxu0
    %v6621 = vadd.f32 0.0, %v6620
    %v6622 = vpop.f32.mrb[0].mxu0
    %v6623 = vadd.f32 0.0, %v6622
    %6624 = vdwg.mxu0
    %v6625 = vadd.f32 %v6516, 1e-06
    %v6626 = vadd.f32 %v6520, 1e-06
    %v6627 = vadd.f32 %v6526, 1e-06
    %v6628 = vadd.f32 %v6530, 1e-06
    %v6629 = vadd.f32 %v6536, 1e-06
    %v6630 = vadd.f32 %v6540, 1e-06
    %v6631 = vadd.f32 %v6546, 1e-06
    %v6632 = vadd.f32 %v6550, 1e-06
    %v6633 = vadd.f32 %v6589, 1e-06
    %v6634 = vadd.f32 %v6593, 1e-06
    %v6635 = vadd.f32 %v6599, 1e-06
    %v6636 = vadd.f32 %v6603, 1e-06
    %v6637 = vadd.f32 %v6609, 1e-06
    %v6638 = vadd.f32 %v6613, 1e-06
    %v6639 = vadd.f32 %v6619, 1e-06
    %v6640 = vadd.f32 %v6623, 1e-06
    %v6641 = vrcp.pop %v6625
    %v6642 = vrcp.pop %v6626
    %v6643 = vrcp.pop %v6627
    %v6644 = vrcp.pop %v6628
    %v6645 = vrcp.pop %v6629
    %v6646 = vrcp.pop %v6630
    %v6647 = vrcp.pop %v6631
    %v6648 = vrcp.pop %v6632
    %v6649 = vrcp.pop %v6633
    %v6650 = vrcp.pop %v6634
    %v6651 = vrcp.pop %v6635
    %v6652 = vrcp.pop %v6636
    %v6653 = vrcp.pop %v6637
    %v6654 = vrcp.pop %v6638
    %v6655 = vrcp.pop %v6639
    %v6656 = vrcp.pop %v6640
    %v6657 = vmul.f32 %v6514, %v6641
    %v6658 = vmul.f32 %v6518, %v6642
    %v6659 = vmul.f32 %v6524, %v6643
    %v6660 = vmul.f32 %v6528, %v6644
    %v6661 = vmul.f32 %v6534, %v6645
    %v6662 = vmul.f32 %v6538, %v6646
    %v6663 = vmul.f32 %v6544, %v6647
    %v6664 = vmul.f32 %v6548, %v6648
    %v6665 = vmul.f32 %v6587, %v6649
    %v6666 = vmul.f32 %v6591, %v6650
    %v6667 = vmul.f32 %v6597, %v6651
    %v6668 = vmul.f32 %v6601, %v6652
    %v6669 = vmul.f32 %v6607, %v6653
    %v6670 = vmul.f32 %v6611, %v6654
    %v6671 = vmul.f32 %v6617, %v6655
    %v6672 = vmul.f32 %v6621, %v6656
    %v6673 = vpack.c.bf16 %v6658, %v6657
    %v6674 = vpack.c.bf16 %v6660, %v6659
    %v6675 = vpack.c.bf16 %v6662, %v6661
    %v6676 = vpack.c.bf16 %v6664, %v6663
    %v6677 = vpack.c.bf16 %v6666, %v6665
    %v6678 = vpack.c.bf16 %v6668, %v6667
    %v6679 = vpack.c.bf16 %v6670, %v6669
    %v6680 = vpack.c.bf16 %v6672, %v6671
    %v6697 = vunpack.c.l.b16 %v5423
    %v6698 = vunpack.c.l.b16 %v5424
    %v6699 = vunpack.c.l.b16 %v5425
    %v6700 = vunpack.c.l.b16 %v5426
    %v6701 = vunpack.c.l.b16 %v5427
    %v6702 = vunpack.c.l.b16 %v5428
    %v6703 = vunpack.c.l.b16 %v5429
    %v6704 = vunpack.c.l.b16 %v5430
    %v6705 = vunpack.c.l.b16 %v5431
    %v6706 = vunpack.c.l.b16 %v5432
    %v6707 = vunpack.c.l.b16 %v5433
    %v6708 = vunpack.c.l.b16 %v5434
    %v6709 = vunpack.c.l.b16 %v5435
    %v6710 = vunpack.c.l.b16 %v5436
    %v6711 = vunpack.c.l.b16 %v5437
    %v6712 = vunpack.c.l.b16 %v5438
    %v6713 = vpack.c.b16 %v6698, %v6697
    %v6714 = vpack.c.b16 %v6700, %v6699
    %v6715 = vpack.c.b16 %v6702, %v6701
    %v6716 = vpack.c.b16 %v6704, %v6703
    %v6717 = vpack.c.b16 %v6706, %v6705
    %v6718 = vpack.c.b16 %v6708, %v6707
    %v6719 = vpack.c.b16 %v6710, %v6709
    %v6720 = vpack.c.b16 %v6712, %v6711
    %6729 = vmatprep.subr.bf16.mxu0 0
    %6730 = vmatpush1.bf16.msra.mxu0 %v6713
    %6731 = vmatprep.subr.bf16.mxu0 0
    %6732 = vmatpush1.bf16.msra.mxu0 %v6714
    %6733 = vmatprep.subr.bf16.mxu0 0
    %6734 = vmatpush1.bf16.msra.mxu0 %v6715
    %6735 = vmatprep.subr.bf16.mxu0 0
    %6736 = vmatpush1.bf16.msra.mxu0 %v6716
    %6737 = vmatprep.subr.bf16.mxu0 0
    %6738 = vmatpush1.bf16.msra.mxu0 %v6717
    %6739 = vmatprep.subr.bf16.mxu0 0
    %6740 = vmatpush1.bf16.msra.mxu0 %v6718
    %6741 = vmatprep.subr.bf16.mxu0 0
    %6742 = vmatpush1.bf16.msra.mxu0 %v6719
    %6743 = vmatprep.subr.bf16.mxu0 0
    %6744 = vmatpush1.bf16.msra.mxu0 %v6720
    %6745 = vmatprep.subr.bf16.mxu0 0
    %6746 = vmatpush1.bf16.msra.mxu0 0
    %6747 = vmatprep.subr.bf16.mxu0 0
    %6748 = vmatpush1.bf16.msra.mxu0 0
    %6749 = vmatprep.subr.bf16.mxu0 0
    %6750 = vmatpush1.bf16.msra.mxu0 0
    %6751 = vmatprep.subr.bf16.mxu0 0
    %6752 = vmatpush1.bf16.msra.mxu0 0
    %6753 = vmatprep.subr.bf16.mxu0 0
    %6754 = vmatpush1.bf16.msra.mxu0 0
    %6755 = vmatprep.subr.bf16.mxu0 0
    %6756 = vmatpush1.bf16.msra.mxu0 0
    %6757 = vmatprep.subr.bf16.mxu0 0
    %6758 = vmatpush1.bf16.msra.mxu0 0
    %6759 = vmatprep.subr.bf16.mxu0 0
    %6760 = vmatpush1.bf16.msra.mxu0 0
    %6761 = vmatprep.mubr.bf16.mxu0 0
    %6762 = vmatmul.mubr.bf16.gmra.mrb[0].mxu0 %v6673
    %v6763 = vpop.f32.mrb[0].mxu0
    %v6764 = vadd.f32 0.0, %v6763
    %v6765 = vpop.f32.mrb[0].mxu0
    %v6766 = vpop.f32.mrb[0].mxu0
    %v6767 = vadd.f32 0.0, %v6766
    %v6768 = vpop.f32.mrb[0].mxu0
    %6769 = vmatprep.mubr.bf16.mxu0 0
    %6770 = vmatmul.mubr.bf16.gmra.mrb[0].mxu0 %v6674
    %v6771 = vpop.f32.mrb[0].mxu0
    %v6772 = vadd.f32 0.0, %v6771
    %v6773 = vpop.f32.mrb[0].mxu0
    %v6774 = vpop.f32.mrb[0].mxu0
    %v6775 = vadd.f32 0.0, %v6774
    %v6776 = vpop.f32.mrb[0].mxu0
    %6777 = vmatprep.mubr.bf16.mxu0 0
    %6778 = vmatmul.mubr.bf16.gmra.mrb[0].mxu0 %v6675
    %v6779 = vpop.f32.mrb[0].mxu0
    %v6780 = vadd.f32 0.0, %v6779
    %v6781 = vpop.f32.mrb[0].mxu0
    %v6782 = vpop.f32.mrb[0].mxu0
    %v6783 = vadd.f32 0.0, %v6782
    %v6784 = vpop.f32.mrb[0].mxu0
    %6785 = vmatprep.mubr.bf16.mxu0 0
    %6786 = vmatmul.mubr.bf16.gmra.mrb[0].mxu0 %v6676
    %v6787 = vpop.f32.mrb[0].mxu0
    %v6788 = vadd.f32 0.0, %v6787
    %v6789 = vpop.f32.mrb[0].mxu0
    %v6790 = vpop.f32.mrb[0].mxu0
    %v6791 = vadd.f32 0.0, %v6790
    %v6792 = vpop.f32.mrb[0].mxu0
    %6793 = vmatprep.mubr.bf16.mxu0 0
    %6794 = vmatmul.mubr.bf16.gmra.mrb[0].mxu0 %v6677
    %v6795 = vpop.f32.mrb[0].mxu0
    %v6796 = vadd.f32 0.0, %v6795
    %v6797 = vpop.f32.mrb[0].mxu0
    %v6798 = vpop.f32.mrb[0].mxu0
    %v6799 = vadd.f32 0.0, %v6798
    %v6800 = vpop.f32.mrb[0].mxu0
    %6801 = vmatprep.mubr.bf16.mxu0 0
    %6802 = vmatmul.mubr.bf16.gmra.mrb[0].mxu0 %v6678
    %v6803 = vpop.f32.mrb[0].mxu0
    %v6804 = vadd.f32 0.0, %v6803
    %v6805 = vpop.f32.mrb[0].mxu0
    %v6806 = vpop.f32.mrb[0].mxu0
    %v6807 = vadd.f32 0.0, %v6806
    %v6808 = vpop.f32.mrb[0].mxu0
    %6809 = vmatprep.mubr.bf16.mxu0 0
    %6810 = vmatmul.mubr.bf16.gmra.mrb[0].mxu0 %v6679
    %v6811 = vpop.f32.mrb[0].mxu0
    %v6812 = vadd.f32 0.0, %v6811
    %v6813 = vpop.f32.mrb[0].mxu0
    %v6814 = vpop.f32.mrb[0].mxu0
    %v6815 = vadd.f32 0.0, %v6814
    %v6816 = vpop.f32.mrb[0].mxu0
    %6817 = vmatprep.mubr.bf16.mxu0 0
    %6818 = vmatmul.mubr.bf16.gmra.mrb[0].mxu0 %v6680
    %v6819 = vpop.f32.mrb[0].mxu0
    %v6820 = vadd.f32 0.0, %v6819
    %v6821 = vpop.f32.mrb[0].mxu0
    %v6822 = vpop.f32.mrb[0].mxu0
    %v6823 = vadd.f32 0.0, %v6822
    %v6824 = vpop.f32.mrb[0].mxu0
    %6825 = vdwg.mxu0
    %6826 = vadd.xlane.f32.xlu0 %v6764
    %v6827 = vpop.xlane.xlu0 %6826
    %6828 = vadd.xlane.f32.xlu0 %v6767
    %v6829 = vpop.xlane.xlu0 %6828
    %6830 = vadd.xlane.f32.xlu0 %v6772
    %v6831 = vpop.xlane.xlu0 %6830
    %6832 = vadd.xlane.f32.xlu0 %v6775
    %v6833 = vpop.xlane.xlu0 %6832
    %6834 = vadd.xlane.f32.xlu0 %v6780
    %v6835 = vpop.xlane.xlu0 %6834
    %6836 = vadd.xlane.f32.xlu0 %v6783
    %v6837 = vpop.xlane.xlu0 %6836
    %6838 = vadd.xlane.f32.xlu0 %v6788
    %v6839 = vpop.xlane.xlu0 %6838
    %6840 = vadd.xlane.f32.xlu0 %v6791
    %v6841 = vpop.xlane.xlu0 %6840
    %6842 = vadd.xlane.f32.xlu0 %v6796
    %v6843 = vpop.xlane.xlu0 %6842
    %6844 = vadd.xlane.f32.xlu0 %v6799
    %v6845 = vpop.xlane.xlu0 %6844
    %6846 = vadd.xlane.f32.xlu0 %v6804
    %v6847 = vpop.xlane.xlu0 %6846
    %6848 = vadd.xlane.f32.xlu0 %v6807
    %v6849 = vpop.xlane.xlu0 %6848
    %6850 = vadd.xlane.f32.xlu0 %v6812
    %v6851 = vpop.xlane.xlu0 %6850
    %6852 = vadd.xlane.f32.xlu0 %v6815
    %v6853 = vpop.xlane.xlu0 %6852
    %6854 = vadd.xlane.f32.xlu0 %v6820
    %v6855 = vpop.xlane.xlu0 %6854
    %6856 = vadd.xlane.f32.xlu0 %v6823
    %v6857 = vpop.xlane.xlu0 %6856
    %v6858 = vmul.f32 %v6827, %v1638
    %v6859 = vmul.f32 %v6829, %v1638
    %v6860 = vmul.f32 %v6831, %v1638
    %v6861 = vmul.f32 %v6833, %v1638
    %v6862 = vmul.f32 %v6835, %v1638
    %v6863 = vmul.f32 %v6837, %v1638
    %v6864 = vmul.f32 %v6839, %v1638
    %v6865 = vmul.f32 %v6841, %v1638
    %v6866 = vmul.f32 %v6843, %v1638
    %v6867 = vmul.f32 %v6845, %v1638
    %v6868 = vmul.f32 %v6847, %v1638
    %v6869 = vmul.f32 %v6849, %v1638
    %v6870 = vmul.f32 %v6851, %v1638
    %v6871 = vmul.f32 %v6853, %v1638
    %v6872 = vmul.f32 %v6855, %v1638
    %v6873 = vmul.f32 %v6857, %v1638
    %v6874 = vmul.f32 %v6764, %v6764
    %v6875 = vmul.f32 %v6767, %v6767
    %v6876 = vmul.f32 %v6772, %v6772
    %v6877 = vmul.f32 %v6775, %v6775
    %v6878 = vmul.f32 %v6780, %v6780
    %v6879 = vmul.f32 %v6783, %v6783
    %v6880 = vmul.f32 %v6788, %v6788
    %v6881 = vmul.f32 %v6791, %v6791
    %v6882 = vmul.f32 %v6796, %v6796
    %v6883 = vmul.f32 %v6799, %v6799
    %v6884 = vmul.f32 %v6804, %v6804
    %v6885 = vmul.f32 %v6807, %v6807
    %v6886 = vmul.f32 %v6812, %v6812
    %v6887 = vmul.f32 %v6815, %v6815
    %v6888 = vmul.f32 %v6820, %v6820
    %v6889 = vmul.f32 %v6823, %v6823
    %6890 = vadd.xlane.f32.xlu0 %v6874
    %v6891 = vpop.xlane.xlu0 %6890
    %6892 = vadd.xlane.f32.xlu0 %v6875
    %v6893 = vpop.xlane.xlu0 %6892
    %6894 = vadd.xlane.f32.xlu0 %v6876
    %v6895 = vpop.xlane.xlu0 %6894
    %6896 = vadd.xlane.f32.xlu0 %v6877
    %v6897 = vpop.xlane.xlu0 %6896
    %6898 = vadd.xlane.f32.xlu0 %v6878
    %v6899 = vpop.xlane.xlu0 %6898
    %6900 = vadd.xlane.f32.xlu0 %v6879
    %v6901 = vpop.xlane.xlu0 %6900
    %6902 = vadd.xlane.f32.xlu0 %v6880
    %v6903 = vpop.xlane.xlu0 %6902
    %6904 = vadd.xlane.f32.xlu0 %v6881
    %v6905 = vpop.xlane.xlu0 %6904
    %6906 = vadd.xlane.f32.xlu0 %v6882
    %v6907 = vpop.xlane.xlu0 %6906
    %6908 = vadd.xlane.f32.xlu0 %v6883
    %v6909 = vpop.xlane.xlu0 %6908
    %6910 = vadd.xlane.f32.xlu0 %v6884
    %v6911 = vpop.xlane.xlu0 %6910
    %6912 = vadd.xlane.f32.xlu0 %v6885
    %v6913 = vpop.xlane.xlu0 %6912
    %6914 = vadd.xlane.f32.xlu0 %v6886
    %v6915 = vpop.xlane.xlu0 %6914
    %6916 = vadd.xlane.f32.xlu0 %v6887
    %v6917 = vpop.xlane.xlu0 %6916
    %6918 = vadd.xlane.f32.xlu0 %v6888
    %v6919 = vpop.xlane.xlu0 %6918
    %6920 = vadd.xlane.f32.xlu0 %v6889
    %v6921 = vpop.xlane.xlu0 %6920
    %v6922 = vmul.f32 %v6891, %v1638
    %v6923 = vmul.f32 %v6893, %v1638
    %v6924 = vmul.f32 %v6895, %v1638
    %v6925 = vmul.f32 %v6897, %v1638
    %v6926 = vmul.f32 %v6899, %v1638
    %v6927 = vmul.f32 %v6901, %v1638
    %v6928 = vmul.f32 %v6903, %v1638
    %v6929 = vmul.f32 %v6905, %v1638
    %v6930 = vmul.f32 %v6907, %v1638
    %v6931 = vmul.f32 %v6909, %v1638
    %v6932 = vmul.f32 %v6911, %v1638
    %v6933 = vmul.f32 %v6913, %v1638
    %v6934 = vmul.f32 %v6915, %v1638
    %v6935 = vmul.f32 %v6917, %v1638
    %v6936 = vmul.f32 %v6919, %v1638
    %v6937 = vmul.f32 %v6921, %v1638
    %v6938 = vmul.f32 %v6858, %v6858
    %v6939 = vmul.f32 %v6859, %v6859
    %v6940 = vmul.f32 %v6860, %v6860
    %v6941 = vmul.f32 %v6861, %v6861
    %v6942 = vmul.f32 %v6862, %v6862
    %v6943 = vmul.f32 %v6863, %v6863
    %v6944 = vmul.f32 %v6864, %v6864
    %v6945 = vmul.f32 %v6865, %v6865
    %v6946 = vmul.f32 %v6866, %v6866
    %v6947 = vmul.f32 %v6867, %v6867
    %v6948 = vmul.f32 %v6868, %v6868
    %v6949 = vmul.f32 %v6869, %v6869
    %v6950 = vmul.f32 %v6870, %v6870
    %v6951 = vmul.f32 %v6871, %v6871
    %v6952 = vmul.f32 %v6872, %v6872
    %v6953 = vmul.f32 %v6873, %v6873
    %v6954 = vsub.f32 %v6922, %v6938
    %v6955 = vsub.f32 %v6923, %v6939
    %v6956 = vsub.f32 %v6924, %v6940
    %v6957 = vsub.f32 %v6925, %v6941
    %v6958 = vsub.f32 %v6926, %v6942
    %v6959 = vsub.f32 %v6927, %v6943
    %v6960 = vsub.f32 %v6928, %v6944
    %v6961 = vsub.f32 %v6929, %v6945
    %v6962 = vsub.f32 %v6930, %v6946
    %v6963 = vsub.f32 %v6931, %v6947
    %v6964 = vsub.f32 %v6932, %v6948
    %v6965 = vsub.f32 %v6933, %v6949
    %v6966 = vsub.f32 %v6934, %v6950
    %v6967 = vsub.f32 %v6935, %v6951
    %v6968 = vsub.f32 %v6936, %v6952
    %v6969 = vsub.f32 %v6937, %v6953
    %v6970 = vmax.f32 %v6954, 0.0
    %v6971 = vmax.f32 %v6955, 0.0
    %v6972 = vmax.f32 %v6956, 0.0
    %v6973 = vmax.f32 %v6957, 0.0
    %v6974 = vmax.f32 %v6958, 0.0
    %v6975 = vmax.f32 %v6959, 0.0
    %v6976 = vmax.f32 %v6960, 0.0
    %v6977 = vmax.f32 %v6961, 0.0
    %v6978 = vmax.f32 %v6962, 0.0
    %v6979 = vmax.f32 %v6963, 0.0
    %v6980 = vmax.f32 %v6964, 0.0
    %v6981 = vmax.f32 %v6965, 0.0
    %v6982 = vmax.f32 %v6966, 0.0
    %v6983 = vmax.f32 %v6967, 0.0
    %v6984 = vmax.f32 %v6968, 0.0
    %v6985 = vmax.f32 %v6969, 0.0
    %v6986 = vsub.f32 %v6764, %v6858
    %v6987 = vsub.f32 %v6767, %v6859
    %v6988 = vsub.f32 %v6772, %v6860
    %v6989 = vsub.f32 %v6775, %v6861
    %v6990 = vsub.f32 %v6780, %v6862
    %v6991 = vsub.f32 %v6783, %v6863
    %v6992 = vsub.f32 %v6788, %v6864
    %v6993 = vsub.f32 %v6791, %v6865
    %v6994 = vsub.f32 %v6796, %v6866
    %v6995 = vsub.f32 %v6799, %v6867
    %v6996 = vsub.f32 %v6804, %v6868
    %v6997 = vsub.f32 %v6807, %v6869
    %v6998 = vsub.f32 %v6812, %v6870
    %v6999 = vsub.f32 %v6815, %v6871
    %v7000 = vsub.f32 %v6820, %v6872
    %v7001 = vsub.f32 %v6823, %v6873
    %v7002 = vadd.f32 %v6970, 1e-05
    %v7003 = vadd.f32 %v6971, 1e-05
    %v7004 = vadd.f32 %v6972, 1e-05
    %v7005 = vadd.f32 %v6973, 1e-05
    %v7006 = vadd.f32 %v6974, 1e-05
    %v7007 = vadd.f32 %v6975, 1e-05
    %v7008 = vadd.f32 %v6976, 1e-05
    %v7009 = vadd.f32 %v6977, 1e-05
    %v7010 = vadd.f32 %v6978, 1e-05
    %v7011 = vadd.f32 %v6979, 1e-05
    %v7012 = vadd.f32 %v6980, 1e-05
    %v7013 = vadd.f32 %v6981, 1e-05
    %v7014 = vadd.f32 %v6982, 1e-05
    %v7015 = vadd.f32 %v6983, 1e-05
    %v7016 = vadd.f32 %v6984, 1e-05
    %v7017 = vadd.f32 %v6985, 1e-05
    %v7018 = vrsqrt.pop %v7002
    %v7019 = vrsqrt.pop %v7003
    %v7020 = vrsqrt.pop %v7004
    %v7021 = vrsqrt.pop %v7005
    %v7022 = vrsqrt.pop %v7006
    %v7023 = vrsqrt.pop %v7007
    %v7024 = vrsqrt.pop %v7008
    %v7025 = vrsqrt.pop %v7009
    %v7026 = vrsqrt.pop %v7010
    %v7027 = vrsqrt.pop %v7011
    %v7028 = vrsqrt.pop %v7012
    %v7029 = vrsqrt.pop %v7013
    %v7030 = vrsqrt.pop %v7014
    %v7031 = vrsqrt.pop %v7015
    %v7032 = vrsqrt.pop %v7016
    %v7033 = vrsqrt.pop %v7017
    %v7034 = vmul.f32 %v6986, %v7018
    %v7035 = vmul.f32 %v6987, %v7019
    %v7036 = vmul.f32 %v6988, %v7020
    %v7037 = vmul.f32 %v6989, %v7021
    %v7038 = vmul.f32 %v6990, %v7022
    %v7039 = vmul.f32 %v6991, %v7023
    %v7040 = vmul.f32 %v6992, %v7024
    %v7041 = vmul.f32 %v6993, %v7025
    %v7042 = vmul.f32 %v6994, %v7026
    %v7043 = vmul.f32 %v6995, %v7027
    %v7044 = vmul.f32 %v6996, %v7028
    %v7045 = vmul.f32 %v6997, %v7029
    %v7046 = vmul.f32 %v6998, %v7030
    %v7047 = vmul.f32 %v6999, %v7031
    %v7048 = vmul.f32 %v7000, %v7032
    %v7049 = vmul.f32 %v7001, %v7033
    %v7050 = vlaneseq
    %v7051 = vshrl.u32 %v7050, 7
    %v7052 = vsub.s32 0, %v7051
    %v7053 = vrot.slane %v5506, %v7052
    %v7054 = vmul.f32 %v7034, %v7053
    %v7055 = vmul.f32 %v7035, %v7053
    %v7056 = vmul.f32 %v7036, %v7053
    %v7057 = vmul.f32 %v7037, %v7053
    %v7058 = vmul.f32 %v7038, %v7053
    %v7059 = vmul.f32 %v7039, %v7053
    %v7060 = vmul.f32 %v7040, %v7053
    %v7061 = vmul.f32 %v7041, %v7053
    %v7062 = vmul.f32 %v7042, %v7053
    %v7063 = vmul.f32 %v7043, %v7053
    %v7064 = vmul.f32 %v7044, %v7053
    %v7065 = vmul.f32 %v7045, %v7053
    %v7066 = vmul.f32 %v7046, %v7053
    %v7067 = vmul.f32 %v7047, %v7053
    %v7068 = vmul.f32 %v7048, %v7053
    %v7069 = vmul.f32 %v7049, %v7053
    %v7070 = vlaneseq
    %v7071 = vshrl.u32 %v7070, 7
    %v7072 = vsub.s32 1, %v7071
    %v7073 = vrot.slane %v5506, %v7072
    %v7074 = vadd.f32 %v7054, %v7073
    %v7075 = vadd.f32 %v7055, %v7073
    %v7076 = vadd.f32 %v7056, %v7073
    %v7077 = vadd.f32 %v7057, %v7073
    %v7078 = vadd.f32 %v7058, %v7073
    %v7079 = vadd.f32 %v7059, %v7073
    %v7080 = vadd.f32 %v7060, %v7073
    %v7081 = vadd.f32 %v7061, %v7073
    %v7082 = vadd.f32 %v7062, %v7073
    %v7083 = vadd.f32 %v7063, %v7073
    %v7084 = vadd.f32 %v7064, %v7073
    %v7085 = vadd.f32 %v7065, %v7073
    %v7086 = vadd.f32 %v7066, %v7073
    %v7087 = vadd.f32 %v7067, %v7073
    %v7088 = vadd.f32 %v7068, %v7073
    %v7089 = vadd.f32 %v7069, %v7073
    %v7090 = vpack.c.bf16 %v7075, %v7074
    %v7091 = vpack.c.bf16 %v7077, %v7076
    %v7092 = vpack.c.bf16 %v7079, %v7078
    %v7093 = vpack.c.bf16 %v7081, %v7080
    %v7094 = vpack.c.bf16 %v7083, %v7082
    %v7095 = vpack.c.bf16 %v7085, %v7084
    %v7096 = vpack.c.bf16 %v7087, %v7086
    %v7097 = vpack.c.bf16 %v7089, %v7088
    %v7114 = vunpack.c.l.b16 %v5456
    %v7115 = vunpack.c.h.b16 %v5456
    %v7116 = vunpack.c.l.b16 %v5457
    %v7117 = vunpack.c.h.b16 %v5457
    %v7118 = vunpack.c.l.b16 %v5458
    %v7119 = vunpack.c.h.b16 %v5458
    %v7120 = vunpack.c.l.b16 %v5459
    %v7121 = vunpack.c.h.b16 %v5459
    %v7122 = vunpack.c.l.b16 %v5460
    %v7123 = vunpack.c.h.b16 %v5460
    %v7124 = vunpack.c.l.b16 %v5461
    %v7125 = vunpack.c.h.b16 %v5461
    %v7126 = vunpack.c.l.b16 %v5462
    %v7127 = vunpack.c.h.b16 %v5462
    %v7128 = vunpack.c.l.b16 %v5463
    %v7129 = vunpack.c.h.b16 %v5463
    %v7130 = vunpack.c.l.b16 %v5464
    %v7131 = vunpack.c.h.b16 %v5464
    %v7132 = vunpack.c.l.b16 %v5465
    %v7133 = vunpack.c.h.b16 %v5465
    %v7134 = vunpack.c.l.b16 %v5466
    %v7135 = vunpack.c.h.b16 %v5466
    %v7136 = vunpack.c.l.b16 %v5467
    %v7137 = vunpack.c.h.b16 %v5467
    %v7138 = vunpack.c.l.b16 %v5468
    %v7139 = vunpack.c.h.b16 %v5468
    %v7140 = vunpack.c.l.b16 %v5469
    %v7141 = vunpack.c.h.b16 %v5469
    %v7142 = vunpack.c.l.b16 %v5470
    %v7143 = vunpack.c.h.b16 %v5470
    %v7144 = vunpack.c.l.b16 %v5471
    %v7145 = vunpack.c.h.b16 %v5471
    %v7146 = vpack.c.b16 %v7116, %v7114
    %v7147 = vpack.c.b16 %v7117, %v7115
    %v7148 = vpack.c.b16 %v7120, %v7118
    %v7149 = vpack.c.b16 %v7121, %v7119
    %v7150 = vpack.c.b16 %v7124, %v7122
    %v7151 = vpack.c.b16 %v7125, %v7123
    %v7152 = vpack.c.b16 %v7128, %v7126
    %v7153 = vpack.c.b16 %v7129, %v7127
    %v7154 = vpack.c.b16 %v7132, %v7130
    %v7155 = vpack.c.b16 %v7133, %v7131
    %v7156 = vpack.c.b16 %v7136, %v7134
    %v7157 = vpack.c.b16 %v7137, %v7135
    %v7158 = vpack.c.b16 %v7140, %v7138
    %v7159 = vpack.c.b16 %v7141, %v7139
    %v7160 = vpack.c.b16 %v7144, %v7142
    %v7161 = vpack.c.b16 %v7145, %v7143
    %7178 = vmatprep.subr.bf16.mxu0 %v7147
    %7179 = vmatpush1.bf16.msra.mxu0 %v7146
    %7180 = vmatprep.subr.bf16.mxu0 %v7149
    %7181 = vmatpush1.bf16.msra.mxu0 %v7148
    %7182 = vmatprep.subr.bf16.mxu0 %v7151
    %7183 = vmatpush1.bf16.msra.mxu0 %v7150
    %7184 = vmatprep.subr.bf16.mxu0 %v7153
    %7185 = vmatpush1.bf16.msra.mxu0 %v7152
    %7186 = vmatprep.subr.bf16.mxu0 %v7155
    %7187 = vmatpush1.bf16.msra.mxu0 %v7154
    %7188 = vmatprep.subr.bf16.mxu0 %v7157
    %7189 = vmatpush1.bf16.msra.mxu0 %v7156
    %7190 = vmatprep.subr.bf16.mxu0 %v7159
    %7191 = vmatpush1.bf16.msra.mxu0 %v7158
    %7192 = vmatprep.subr.bf16.mxu0 %v7161
    %7193 = vmatpush1.bf16.msra.mxu0 %v7160
    %7194 = vmatprep.subr.bf16.mxu0 0
    %7195 = vmatpush1.bf16.msra.mxu0 0
    %7196 = vmatprep.subr.bf16.mxu0 0
    %7197 = vmatpush1.bf16.msra.mxu0 0
    %7198 = vmatprep.subr.bf16.mxu0 0
    %7199 = vmatpush1.bf16.msra.mxu0 0
    %7200 = vmatprep.subr.bf16.mxu0 0
    %7201 = vmatpush1.bf16.msra.mxu0 0
    %7202 = vmatprep.subr.bf16.mxu0 0
    %7203 = vmatpush1.bf16.msra.mxu0 0
    %7204 = vmatprep.subr.bf16.mxu0 0
    %7205 = vmatpush1.bf16.msra.mxu0 0
    %7206 = vmatprep.subr.bf16.mxu0 0
    %7207 = vmatpush1.bf16.msra.mxu0 0
    %7208 = vmatprep.subr.bf16.mxu0 0
    %7209 = vmatpush1.bf16.msra.mxu0 0
    %7210 = vmatprep.mubr.bf16.mxu0 0
    %7211 = vmatmul.mubr.bf16.gmra.mrb[0].mxu0 %v7090
    %v7212 = vpop.f32.mrb[0].mxu0
    %v7213 = vadd.f32 0.0, %v7212
    %v7214 = vpop.f32.mrb[0].mxu0
    %v7215 = vadd.f32 0.0, %v7214
    %v7216 = vpop.f32.mrb[0].mxu0
    %v7217 = vadd.f32 0.0, %v7216
    %v7218 = vpop.f32.mrb[0].mxu0
    %v7219 = vadd.f32 0.0, %v7218
    %7220 = vmatprep.mubr.bf16.mxu0 0
    %7221 = vmatmul.mubr.bf16.gmra.mrb[0].mxu0 %v7091
    %v7222 = vpop.f32.mrb[0].mxu0
    %v7223 = vadd.f32 0.0, %v7222
    %v7224 = vpop.f32.mrb[0].mxu0
    %v7225 = vadd.f32 0.0, %v7224
    %v7226 = vpop.f32.mrb[0].mxu0
    %v7227 = vadd.f32 0.0, %v7226
    %v7228 = vpop.f32.mrb[0].mxu0
    %v7229 = vadd.f32 0.0, %v7228
    %7230 = vmatprep.mubr.bf16.mxu0 0
    %7231 = vmatmul.mubr.bf16.gmra.mrb[0].mxu0 %v7092
    %v7232 = vpop.f32.mrb[0].mxu0
    %v7233 = vadd.f32 0.0, %v7232
    %v7234 = vpop.f32.mrb[0].mxu0
    %v7235 = vadd.f32 0.0, %v7234
    %v7236 = vpop.f32.mrb[0].mxu0
    %v7237 = vadd.f32 0.0, %v7236
    %v7238 = vpop.f32.mrb[0].mxu0
    %v7239 = vadd.f32 0.0, %v7238
    %7240 = vmatprep.mubr.bf16.mxu0 0
    %7241 = vmatmul.mubr.bf16.gmra.mrb[0].mxu0 %v7093
    %v7242 = vpop.f32.mrb[0].mxu0
    %v7243 = vadd.f32 0.0, %v7242
    %v7244 = vpop.f32.mrb[0].mxu0
    %v7245 = vadd.f32 0.0, %v7244
    %v7246 = vpop.f32.mrb[0].mxu0
    %v7247 = vadd.f32 0.0, %v7246
    %v7248 = vpop.f32.mrb[0].mxu0
    %v7249 = vadd.f32 0.0, %v7248
    %7250 = vmatprep.mubr.bf16.mxu0 0
    %7251 = vmatmul.mubr.bf16.gmra.mrb[0].mxu0 %v7094
    %v7252 = vpop.f32.mrb[0].mxu0
    %v7253 = vadd.f32 0.0, %v7252
    %v7254 = vpop.f32.mrb[0].mxu0
    %v7255 = vadd.f32 0.0, %v7254
    %v7256 = vpop.f32.mrb[0].mxu0
    %v7257 = vadd.f32 0.0, %v7256
    %v7258 = vpop.f32.mrb[0].mxu0
    %v7259 = vadd.f32 0.0, %v7258
    %7260 = vmatprep.mubr.bf16.mxu0 0
    %7261 = vmatmul.mubr.bf16.gmra.mrb[0].mxu0 %v7095
    %v7262 = vpop.f32.mrb[0].mxu0
    %v7263 = vadd.f32 0.0, %v7262
    %v7264 = vpop.f32.mrb[0].mxu0
    %v7265 = vadd.f32 0.0, %v7264
    %v7266 = vpop.f32.mrb[0].mxu0
    %v7267 = vadd.f32 0.0, %v7266
    %v7268 = vpop.f32.mrb[0].mxu0
    %v7269 = vadd.f32 0.0, %v7268
    %7270 = vmatprep.mubr.bf16.mxu0 0
    %7271 = vmatmul.mubr.bf16.gmra.mrb[0].mxu0 %v7096
    %v7272 = vpop.f32.mrb[0].mxu0
    %v7273 = vadd.f32 0.0, %v7272
    %v7274 = vpop.f32.mrb[0].mxu0
    %v7275 = vadd.f32 0.0, %v7274
    %v7276 = vpop.f32.mrb[0].mxu0
    %v7277 = vadd.f32 0.0, %v7276
    %v7278 = vpop.f32.mrb[0].mxu0
    %v7279 = vadd.f32 0.0, %v7278
    %7280 = vmatprep.mubr.bf16.mxu0 0
    %7281 = vmatmul.mubr.bf16.gmra.mrb[0].mxu0 %v7097
    %v7282 = vpop.f32.mrb[0].mxu0
    %v7283 = vadd.f32 0.0, %v7282
    %v7284 = vpop.f32.mrb[0].mxu0
    %v7285 = vadd.f32 0.0, %v7284
    %v7286 = vpop.f32.mrb[0].mxu0
    %v7287 = vadd.f32 0.0, %v7286
    %v7288 = vpop.f32.mrb[0].mxu0
    %v7289 = vadd.f32 0.0, %v7288
    %7290 = vdwg.mxu0
    %v7307 = vunpack.c.l.b16 %v5440
    %v7308 = vunpack.c.h.b16 %v5440
    %v7309 = vunpack.c.l.b16 %v5441
    %v7310 = vunpack.c.h.b16 %v5441
    %v7311 = vunpack.c.l.b16 %v5442
    %v7312 = vunpack.c.h.b16 %v5442
    %v7313 = vunpack.c.l.b16 %v5443
    %v7314 = vunpack.c.h.b16 %v5443
    %v7315 = vunpack.c.l.b16 %v5444
    %v7316 = vunpack.c.h.b16 %v5444
    %v7317 = vunpack.c.l.b16 %v5445
    %v7318 = vunpack.c.h.b16 %v5445
    %v7319 = vunpack.c.l.b16 %v5446
    %v7320 = vunpack.c.h.b16 %v5446
    %v7321 = vunpack.c.l.b16 %v5447
    %v7322 = vunpack.c.h.b16 %v5447
    %v7323 = vunpack.c.l.b16 %v5448
    %v7324 = vunpack.c.h.b16 %v5448
    %v7325 = vunpack.c.l.b16 %v5449
    %v7326 = vunpack.c.h.b16 %v5449
    %v7327 = vunpack.c.l.b16 %v5450
    %v7328 = vunpack.c.h.b16 %v5450
    %v7329 = vunpack.c.l.b16 %v5451
    %v7330 = vunpack.c.h.b16 %v5451
    %v7331 = vunpack.c.l.b16 %v5452
    %v7332 = vunpack.c.h.b16 %v5452
    %v7333 = vunpack.c.l.b16 %v5453
    %v7334 = vunpack.c.h.b16 %v5453
    %v7335 = vunpack.c.l.b16 %v5454
    %v7336 = vunpack.c.h.b16 %v5454
    %v7337 = vunpack.c.l.b16 %v5455
    %v7338 = vunpack.c.h.b16 %v5455
    %v7339 = vpack.c.b16 %v7309, %v7307
    %v7340 = vpack.c.b16 %v7310, %v7308
    %v7341 = vpack.c.b16 %v7313, %v7311
    %v7342 = vpack.c.b16 %v7314, %v7312
    %v7343 = vpack.c.b16 %v7317, %v7315
    %v7344 = vpack.c.b16 %v7318, %v7316
    %v7345 = vpack.c.b16 %v7321, %v7319
    %v7346 = vpack.c.b16 %v7322, %v7320
    %v7347 = vpack.c.b16 %v7325, %v7323
    %v7348 = vpack.c.b16 %v7326, %v7324
    %v7349 = vpack.c.b16 %v7329, %v7327
    %v7350 = vpack.c.b16 %v7330, %v7328
    %v7351 = vpack.c.b16 %v7333, %v7331
    %v7352 = vpack.c.b16 %v7334, %v7332
    %v7353 = vpack.c.b16 %v7337, %v7335
    %v7354 = vpack.c.b16 %v7338, %v7336
    %7371 = vmatprep.subr.bf16.mxu0 %v7340
    %7372 = vmatpush1.bf16.msra.mxu0 %v7339
    %7373 = vmatprep.subr.bf16.mxu0 %v7342
    %7374 = vmatpush1.bf16.msra.mxu0 %v7341
    %7375 = vmatprep.subr.bf16.mxu0 %v7344
    %7376 = vmatpush1.bf16.msra.mxu0 %v7343
    %7377 = vmatprep.subr.bf16.mxu0 %v7346
    %7378 = vmatpush1.bf16.msra.mxu0 %v7345
    %7379 = vmatprep.subr.bf16.mxu0 %v7348
    %7380 = vmatpush1.bf16.msra.mxu0 %v7347
    %7381 = vmatprep.subr.bf16.mxu0 %v7350
    %7382 = vmatpush1.bf16.msra.mxu0 %v7349
    %7383 = vmatprep.subr.bf16.mxu0 %v7352
    %7384 = vmatpush1.bf16.msra.mxu0 %v7351
    %7385 = vmatprep.subr.bf16.mxu0 %v7354
    %7386 = vmatpush1.bf16.msra.mxu0 %v7353
    %7387 = vmatprep.subr.bf16.mxu0 0
    %7388 = vmatpush1.bf16.msra.mxu0 0
    %7389 = vmatprep.subr.bf16.mxu0 0
    %7390 = vmatpush1.bf16.msra.mxu0 0
    %7391 = vmatprep.subr.bf16.mxu0 0
    %7392 = vmatpush1.bf16.msra.mxu0 0
    %7393 = vmatprep.subr.bf16.mxu0 0
    %7394 = vmatpush1.bf16.msra.mxu0 0
    %7395 = vmatprep.subr.bf16.mxu0 0
    %7396 = vmatpush1.bf16.msra.mxu0 0
    %7397 = vmatprep.subr.bf16.mxu0 0
    %7398 = vmatpush1.bf16.msra.mxu0 0
    %7399 = vmatprep.subr.bf16.mxu0 0
    %7400 = vmatpush1.bf16.msra.mxu0 0
    %7401 = vmatprep.subr.bf16.mxu0 0
    %7402 = vmatpush1.bf16.msra.mxu0 0
    %7403 = vmatprep.mubr.bf16.mxu0 0
    %7404 = vmatmul.mubr.bf16.gmra.mrb[0].mxu0 %v5507
    %v7405 = vpop.f32.mrb[0].mxu0
    %v7406 = vadd.f32 %v7213, %v7405
    %v7407 = vpop.f32.mrb[0].mxu0
    %v7408 = vadd.f32 %v7215, %v7407
    %v7409 = vpop.f32.mrb[0].mxu0
    %v7410 = vadd.f32 %v7217, %v7409
    %v7411 = vpop.f32.mrb[0].mxu0
    %v7412 = vadd.f32 %v7219, %v7411
    %7413 = vmatprep.mubr.bf16.mxu0 0
    %7414 = vmatmul.mubr.bf16.gmra.mrb[0].mxu0 %v5508
    %v7415 = vpop.f32.mrb[0].mxu0
    %v7416 = vadd.f32 %v7223, %v7415
    %v7417 = vpop.f32.mrb[0].mxu0
    %v7418 = vadd.f32 %v7225, %v7417
    %v7419 = vpop.f32.mrb[0].mxu0
    %v7420 = vadd.f32 %v7227, %v7419
    %v7421 = vpop.f32.mrb[0].mxu0
    %v7422 = vadd.f32 %v7229, %v7421
    %7423 = vmatprep.mubr.bf16.mxu0 0
    %7424 = vmatmul.mubr.bf16.gmra.mrb[0].mxu0 %v5509
    %v7425 = vpop.f32.mrb[0].mxu0
    %v7426 = vadd.f32 %v7233, %v7425
    %v7427 = vpop.f32.mrb[0].mxu0
    %v7428 = vadd.f32 %v7235, %v7427
    %v7429 = vpop.f32.mrb[0].mxu0
    %v7430 = vadd.f32 %v7237, %v7429
    %v7431 = vpop.f32.mrb[0].mxu0
    %v7432 = vadd.f32 %v7239, %v7431
    %7433 = vmatprep.mubr.bf16.mxu0 0
    %7434 = vmatmul.mubr.bf16.gmra.mrb[0].mxu0 %v5510
    %v7435 = vpop.f32.mrb[0].mxu0
    %v7436 = vadd.f32 %v7243, %v7435
    %v7437 = vpop.f32.mrb[0].mxu0
    %v7438 = vadd.f32 %v7245, %v7437
    %v7439 = vpop.f32.mrb[0].mxu0
    %v7440 = vadd.f32 %v7247, %v7439
    %v7441 = vpop.f32.mrb[0].mxu0
    %v7442 = vadd.f32 %v7249, %v7441
    %7443 = vmatprep.mubr.bf16.mxu0 0
    %7444 = vmatmul.mubr.bf16.gmra.mrb[0].mxu0 %v5511
    %v7445 = vpop.f32.mrb[0].mxu0
    %v7446 = vadd.f32 %v7253, %v7445
    %v7447 = vpop.f32.mrb[0].mxu0
    %v7448 = vadd.f32 %v7255, %v7447
    %v7449 = vpop.f32.mrb[0].mxu0
    %v7450 = vadd.f32 %v7257, %v7449
    %v7451 = vpop.f32.mrb[0].mxu0
    %v7452 = vadd.f32 %v7259, %v7451
    %7453 = vmatprep.mubr.bf16.mxu0 0
    %7454 = vmatmul.mubr.bf16.gmra.mrb[0].mxu0 %v5512
    %v7455 = vpop.f32.mrb[0].mxu0
    %v7456 = vadd.f32 %v7263, %v7455
    %v7457 = vpop.f32.mrb[0].mxu0
    %v7458 = vadd.f32 %v7265, %v7457
    %v7459 = vpop.f32.mrb[0].mxu0
    %v7460 = vadd.f32 %v7267, %v7459
    %v7461 = vpop.f32.mrb[0].mxu0
    %v7462 = vadd.f32 %v7269, %v7461
    %7463 = vmatprep.mubr.bf16.mxu0 0
    %7464 = vmatmul.mubr.bf16.gmra.mrb[0].mxu0 %v5513
    %v7465 = vpop.f32.mrb[0].mxu0
    %v7466 = vadd.f32 %v7273, %v7465
    %v7467 = vpop.f32.mrb[0].mxu0
    %v7468 = vadd.f32 %v7275, %v7467
    %v7469 = vpop.f32.mrb[0].mxu0
    %v7470 = vadd.f32 %v7277, %v7469
    %v7471 = vpop.f32.mrb[0].mxu0
    %v7472 = vadd.f32 %v7279, %v7471
    %7473 = vmatprep.mubr.bf16.mxu0 0
    %7474 = vmatmul.mubr.bf16.gmra.mrb[0].mxu0 %v5514
    %v7475 = vpop.f32.mrb[0].mxu0
    %v7476 = vadd.f32 %v7283, %v7475
    %v7477 = vpop.f32.mrb[0].mxu0
    %v7478 = vadd.f32 %v7285, %v7477
    %v7479 = vpop.f32.mrb[0].mxu0
    %v7480 = vadd.f32 %v7287, %v7479
    %v7481 = vpop.f32.mrb[0].mxu0
    %v7482 = vadd.f32 %v7289, %v7481
    %7483 = vdwg.mxu0
    %v7484 = vmax.f32 %v7406, 0.0
    %v7485 = vmax.f32 %v7408, 0.0
    %v7486 = vmax.f32 %v7410, 0.0
    %v7487 = vmax.f32 %v7412, 0.0
    %v7488 = vmax.f32 %v7416, 0.0
    %v7489 = vmax.f32 %v7418, 0.0
    %v7490 = vmax.f32 %v7420, 0.0
    %v7491 = vmax.f32 %v7422, 0.0
    %v7492 = vmax.f32 %v7426, 0.0
    %v7493 = vmax.f32 %v7428, 0.0
    %v7494 = vmax.f32 %v7430, 0.0
    %v7495 = vmax.f32 %v7432, 0.0
    %v7496 = vmax.f32 %v7436, 0.0
    %v7497 = vmax.f32 %v7438, 0.0
    %v7498 = vmax.f32 %v7440, 0.0
    %v7499 = vmax.f32 %v7442, 0.0
    %v7500 = vmax.f32 %v7446, 0.0
    %v7501 = vmax.f32 %v7448, 0.0
    %v7502 = vmax.f32 %v7450, 0.0
    %v7503 = vmax.f32 %v7452, 0.0
    %v7504 = vmax.f32 %v7456, 0.0
    %v7505 = vmax.f32 %v7458, 0.0
    %v7506 = vmax.f32 %v7460, 0.0
    %v7507 = vmax.f32 %v7462, 0.0
    %v7508 = vmax.f32 %v7466, 0.0
    %v7509 = vmax.f32 %v7468, 0.0
    %v7510 = vmax.f32 %v7470, 0.0
    %v7511 = vmax.f32 %v7472, 0.0
    %v7512 = vmax.f32 %v7476, 0.0
    %v7513 = vmax.f32 %v7478, 0.0
    %v7514 = vmax.f32 %v7480, 0.0
    %v7515 = vmax.f32 %v7482, 0.0
    %v7516 = vpack.c.bf16 %v7486, %v7484
    %v7517 = vpack.c.bf16 %v7487, %v7485
    %v7518 = vpack.c.bf16 %v7490, %v7488
    %v7519 = vpack.c.bf16 %v7491, %v7489
    %v7520 = vpack.c.bf16 %v7494, %v7492
    %v7521 = vpack.c.bf16 %v7495, %v7493
    %v7522 = vpack.c.bf16 %v7498, %v7496
    %v7523 = vpack.c.bf16 %v7499, %v7497
    %v7524 = vpack.c.bf16 %v7502, %v7500
    %v7525 = vpack.c.bf16 %v7503, %v7501
    %v7526 = vpack.c.bf16 %v7506, %v7504
    %v7527 = vpack.c.bf16 %v7507, %v7505
    %v7528 = vpack.c.bf16 %v7510, %v7508
    %v7529 = vpack.c.bf16 %v7511, %v7509
    %v7530 = vpack.c.bf16 %v7514, %v7512
    %v7531 = vpack.c.bf16 %v7515, %v7513
    %v7564 = vunpack.c.l.b16 %v5473
    %v7565 = vunpack.c.l.b16 %v5474
    %v7566 = vunpack.c.l.b16 %v5475
    %v7567 = vunpack.c.l.b16 %v5476
    %v7568 = vunpack.c.l.b16 %v5477
    %v7569 = vunpack.c.l.b16 %v5478
    %v7570 = vunpack.c.l.b16 %v5479
    %v7571 = vunpack.c.l.b16 %v5480
    %v7572 = vunpack.c.l.b16 %v5481
    %v7573 = vunpack.c.l.b16 %v5482
    %v7574 = vunpack.c.l.b16 %v5483
    %v7575 = vunpack.c.l.b16 %v5484
    %v7576 = vunpack.c.l.b16 %v5485
    %v7577 = vunpack.c.l.b16 %v5486
    %v7578 = vunpack.c.l.b16 %v5487
    %v7579 = vunpack.c.l.b16 %v5488
    %v7580 = vunpack.c.l.b16 %v5489
    %v7581 = vunpack.c.l.b16 %v5490
    %v7582 = vunpack.c.l.b16 %v5491
    %v7583 = vunpack.c.l.b16 %v5492
    %v7584 = vunpack.c.l.b16 %v5493
    %v7585 = vunpack.c.l.b16 %v5494
    %v7586 = vunpack.c.l.b16 %v5495
    %v7587 = vunpack.c.l.b16 %v5496
    %v7588 = vunpack.c.l.b16 %v5497
    %v7589 = vunpack.c.l.b16 %v5498
    %v7590 = vunpack.c.l.b16 %v5499
    %v7591 = vunpack.c.l.b16 %v5500
    %v7592 = vunpack.c.l.b16 %v5501
    %v7593 = vunpack.c.l.b16 %v5502
    %v7594 = vunpack.c.l.b16 %v5503
    %v7595 = vunpack.c.l.b16 %v5504
    %v7596 = vpack.c.b16 %v7565, %v7564
    %v7597 = vpack.c.b16 %v7567, %v7566
    %v7598 = vpack.c.b16 %v7569, %v7568
    %v7599 = vpack.c.b16 %v7571, %v7570
    %v7600 = vpack.c.b16 %v7573, %v7572
    %v7601 = vpack.c.b16 %v7575, %v7574
    %v7602 = vpack.c.b16 %v7577, %v7576
    %v7603 = vpack.c.b16 %v7579, %v7578
    %v7604 = vpack.c.b16 %v7581, %v7580
    %v7605 = vpack.c.b16 %v7583, %v7582
    %v7606 = vpack.c.b16 %v7585, %v7584
    %v7607 = vpack.c.b16 %v7587, %v7586
    %v7608 = vpack.c.b16 %v7589, %v7588
    %v7609 = vpack.c.b16 %v7591, %v7590
    %v7610 = vpack.c.b16 %v7593, %v7592
    %v7611 = vpack.c.b16 %v7595, %v7594
    %7628 = vmatprep.subr.bf16.mxu0 0
    %7629 = vmatpush1.bf16.msra.mxu0 %v7596
    %7630 = vmatprep.subr.bf16.mxu0 0
    %7631 = vmatpush1.bf16.msra.mxu0 %v7597
    %7632 = vmatprep.subr.bf16.mxu0 0
    %7633 = vmatpush1.bf16.msra.mxu0 %v7598
    %7634 = vmatprep.subr.bf16.mxu0 0
    %7635 = vmatpush1.bf16.msra.mxu0 %v7599
    %7636 = vmatprep.subr.bf16.mxu0 0
    %7637 = vmatpush1.bf16.msra.mxu0 %v7600
    %7638 = vmatprep.subr.bf16.mxu0 0
    %7639 = vmatpush1.bf16.msra.mxu0 %v7601
    %7640 = vmatprep.subr.bf16.mxu0 0
    %7641 = vmatpush1.bf16.msra.mxu0 %v7602
    %7642 = vmatprep.subr.bf16.mxu0 0
    %7643 = vmatpush1.bf16.msra.mxu0 %v7603
    %7644 = vmatprep.subr.bf16.mxu0 0
    %7645 = vmatpush1.bf16.msra.mxu0 %v7604
    %7646 = vmatprep.subr.bf16.mxu0 0
    %7647 = vmatpush1.bf16.msra.mxu0 %v7605
    %7648 = vmatprep.subr.bf16.mxu0 0
    %7649 = vmatpush1.bf16.msra.mxu0 %v7606
    %7650 = vmatprep.subr.bf16.mxu0 0
    %7651 = vmatpush1.bf16.msra.mxu0 %v7607
    %7652 = vmatprep.subr.bf16.mxu0 0
    %7653 = vmatpush1.bf16.msra.mxu0 %v7608
    %7654 = vmatprep.subr.bf16.mxu0 0
    %7655 = vmatpush1.bf16.msra.mxu0 %v7609
    %7656 = vmatprep.subr.bf16.mxu0 0
    %7657 = vmatpush1.bf16.msra.mxu0 %v7610
    %7658 = vmatprep.subr.bf16.mxu0 0
    %7659 = vmatpush1.bf16.msra.mxu0 %v7611
    %7660 = vmatprep.mubr.bf16.mxu0 %v7517
    %7661 = vmatmul.mubr.bf16.gmra.mrb[0].mxu0 %v7516
    %v7662 = vpop.f32.mrb[0].mxu0
    %v7663 = vadd.f32 0.0, %v7662
    %v7664 = vpop.f32.mrb[0].mxu0
    %v7665 = vpop.f32.mrb[0].mxu0
    %v7666 = vadd.f32 0.0, %v7665
    %v7667 = vpop.f32.mrb[0].mxu0
    %7668 = vmatprep.mubr.bf16.mxu0 %v7519
    %7669 = vmatmul.mubr.bf16.gmra.mrb[0].mxu0 %v7518
    %v7670 = vpop.f32.mrb[0].mxu0
    %v7671 = vadd.f32 0.0, %v7670
    %v7672 = vpop.f32.mrb[0].mxu0
    %v7673 = vpop.f32.mrb[0].mxu0
    %v7674 = vadd.f32 0.0, %v7673
    %v7675 = vpop.f32.mrb[0].mxu0
    %7676 = vmatprep.mubr.bf16.mxu0 %v7521
    %7677 = vmatmul.mubr.bf16.gmra.mrb[0].mxu0 %v7520
    %v7678 = vpop.f32.mrb[0].mxu0
    %v7679 = vadd.f32 0.0, %v7678
    %v7680 = vpop.f32.mrb[0].mxu0
    %v7681 = vpop.f32.mrb[0].mxu0
    %v7682 = vadd.f32 0.0, %v7681
    %v7683 = vpop.f32.mrb[0].mxu0
    %7684 = vmatprep.mubr.bf16.mxu0 %v7523
    %7685 = vmatmul.mubr.bf16.gmra.mrb[0].mxu0 %v7522
    %v7686 = vpop.f32.mrb[0].mxu0
    %v7687 = vadd.f32 0.0, %v7686
    %v7688 = vpop.f32.mrb[0].mxu0
    %v7689 = vpop.f32.mrb[0].mxu0
    %v7690 = vadd.f32 0.0, %v7689
    %v7691 = vpop.f32.mrb[0].mxu0
    %7692 = vmatprep.mubr.bf16.mxu0 %v7525
    %7693 = vmatmul.mubr.bf16.gmra.mrb[0].mxu0 %v7524
    %v7694 = vpop.f32.mrb[0].mxu0
    %v7695 = vadd.f32 0.0, %v7694
    %v7696 = vpop.f32.mrb[0].mxu0
    %v7697 = vpop.f32.mrb[0].mxu0
    %v7698 = vadd.f32 0.0, %v7697
    %v7699 = vpop.f32.mrb[0].mxu0
    %7700 = vmatprep.mubr.bf16.mxu0 %v7527
    %7701 = vmatmul.mubr.bf16.gmra.mrb[0].mxu0 %v7526
    %v7702 = vpop.f32.mrb[0].mxu0
    %v7703 = vadd.f32 0.0, %v7702
    %v7704 = vpop.f32.mrb[0].mxu0
    %v7705 = vpop.f32.mrb[0].mxu0
    %v7706 = vadd.f32 0.0, %v7705
    %v7707 = vpop.f32.mrb[0].mxu0
    %7708 = vmatprep.mubr.bf16.mxu0 %v7529
    %7709 = vmatmul.mubr.bf16.gmra.mrb[0].mxu0 %v7528
    %v7710 = vpop.f32.mrb[0].mxu0
    %v7711 = vadd.f32 0.0, %v7710
    %v7712 = vpop.f32.mrb[0].mxu0
    %v7713 = vpop.f32.mrb[0].mxu0
    %v7714 = vadd.f32 0.0, %v7713
    %v7715 = vpop.f32.mrb[0].mxu0
    %7716 = vmatprep.mubr.bf16.mxu0 %v7531
    %7717 = vmatmul.mubr.bf16.gmra.mrb[0].mxu0 %v7530
    %v7718 = vpop.f32.mrb[0].mxu0
    %v7719 = vadd.f32 0.0, %v7718
    %v7720 = vpop.f32.mrb[0].mxu0
    %v7721 = vpop.f32.mrb[0].mxu0
    %v7722 = vadd.f32 0.0, %v7721
    %v7723 = vpop.f32.mrb[0].mxu0
    %7724 = vdwg.mxu0
    %7725 = vadd.xlane.f32.xlu0 %v7663
    %v7726 = vpop.xlane.xlu0 %7725
    %7727 = vadd.xlane.f32.xlu0 %v7666
    %v7728 = vpop.xlane.xlu0 %7727
    %7729 = vadd.xlane.f32.xlu0 %v7671
    %v7730 = vpop.xlane.xlu0 %7729
    %7731 = vadd.xlane.f32.xlu0 %v7674
    %v7732 = vpop.xlane.xlu0 %7731
    %7733 = vadd.xlane.f32.xlu0 %v7679
    %v7734 = vpop.xlane.xlu0 %7733
    %7735 = vadd.xlane.f32.xlu0 %v7682
    %v7736 = vpop.xlane.xlu0 %7735
    %7737 = vadd.xlane.f32.xlu0 %v7687
    %v7738 = vpop.xlane.xlu0 %7737
    %7739 = vadd.xlane.f32.xlu0 %v7690
    %v7740 = vpop.xlane.xlu0 %7739
    %7741 = vadd.xlane.f32.xlu0 %v7695
    %v7742 = vpop.xlane.xlu0 %7741
    %7743 = vadd.xlane.f32.xlu0 %v7698
    %v7744 = vpop.xlane.xlu0 %7743
    %7745 = vadd.xlane.f32.xlu0 %v7703
    %v7746 = vpop.xlane.xlu0 %7745
    %7747 = vadd.xlane.f32.xlu0 %v7706
    %v7748 = vpop.xlane.xlu0 %7747
    %7749 = vadd.xlane.f32.xlu0 %v7711
    %v7750 = vpop.xlane.xlu0 %7749
    %7751 = vadd.xlane.f32.xlu0 %v7714
    %v7752 = vpop.xlane.xlu0 %7751
    %7753 = vadd.xlane.f32.xlu0 %v7719
    %v7754 = vpop.xlane.xlu0 %7753
    %7755 = vadd.xlane.f32.xlu0 %v7722
    %v7756 = vpop.xlane.xlu0 %7755
    %v7757 = vmul.f32 %v7726, %v1638
    %v7758 = vmul.f32 %v7728, %v1638
    %v7759 = vmul.f32 %v7730, %v1638
    %v7760 = vmul.f32 %v7732, %v1638
    %v7761 = vmul.f32 %v7734, %v1638
    %v7762 = vmul.f32 %v7736, %v1638
    %v7763 = vmul.f32 %v7738, %v1638
    %v7764 = vmul.f32 %v7740, %v1638
    %v7765 = vmul.f32 %v7742, %v1638
    %v7766 = vmul.f32 %v7744, %v1638
    %v7767 = vmul.f32 %v7746, %v1638
    %v7768 = vmul.f32 %v7748, %v1638
    %v7769 = vmul.f32 %v7750, %v1638
    %v7770 = vmul.f32 %v7752, %v1638
    %v7771 = vmul.f32 %v7754, %v1638
    %v7772 = vmul.f32 %v7756, %v1638
    %v7773 = vmul.f32 %v7663, %v7663
    %v7774 = vmul.f32 %v7666, %v7666
    %v7775 = vmul.f32 %v7671, %v7671
    %v7776 = vmul.f32 %v7674, %v7674
    %v7777 = vmul.f32 %v7679, %v7679
    %v7778 = vmul.f32 %v7682, %v7682
    %v7779 = vmul.f32 %v7687, %v7687
    %v7780 = vmul.f32 %v7690, %v7690
    %v7781 = vmul.f32 %v7695, %v7695
    %v7782 = vmul.f32 %v7698, %v7698
    %v7783 = vmul.f32 %v7703, %v7703
    %v7784 = vmul.f32 %v7706, %v7706
    %v7785 = vmul.f32 %v7711, %v7711
    %v7786 = vmul.f32 %v7714, %v7714
    %v7787 = vmul.f32 %v7719, %v7719
    %v7788 = vmul.f32 %v7722, %v7722
    %7789 = vadd.xlane.f32.xlu0 %v7773
    %v7790 = vpop.xlane.xlu0 %7789
    %7791 = vadd.xlane.f32.xlu0 %v7774
    %v7792 = vpop.xlane.xlu0 %7791
    %7793 = vadd.xlane.f32.xlu0 %v7775
    %v7794 = vpop.xlane.xlu0 %7793
    %7795 = vadd.xlane.f32.xlu0 %v7776
    %v7796 = vpop.xlane.xlu0 %7795
    %7797 = vadd.xlane.f32.xlu0 %v7777
    %v7798 = vpop.xlane.xlu0 %7797
    %7799 = vadd.xlane.f32.xlu0 %v7778
    %v7800 = vpop.xlane.xlu0 %7799
    %7801 = vadd.xlane.f32.xlu0 %v7779
    %v7802 = vpop.xlane.xlu0 %7801
    %7803 = vadd.xlane.f32.xlu0 %v7780
    %v7804 = vpop.xlane.xlu0 %7803
    %7805 = vadd.xlane.f32.xlu0 %v7781
    %v7806 = vpop.xlane.xlu0 %7805
    %7807 = vadd.xlane.f32.xlu0 %v7782
    %v7808 = vpop.xlane.xlu0 %7807
    %7809 = vadd.xlane.f32.xlu0 %v7783
    %v7810 = vpop.xlane.xlu0 %7809
    %7811 = vadd.xlane.f32.xlu0 %v7784
    %v7812 = vpop.xlane.xlu0 %7811
    %7813 = vadd.xlane.f32.xlu0 %v7785
    %v7814 = vpop.xlane.xlu0 %7813
    %7815 = vadd.xlane.f32.xlu0 %v7786
    %v7816 = vpop.xlane.xlu0 %7815
    %7817 = vadd.xlane.f32.xlu0 %v7787
    %v7818 = vpop.xlane.xlu0 %7817
    %7819 = vadd.xlane.f32.xlu0 %v7788
    %v7820 = vpop.xlane.xlu0 %7819
    %v7821 = vmul.f32 %v7790, %v1638
    %v7822 = vmul.f32 %v7792, %v1638
    %v7823 = vmul.f32 %v7794, %v1638
    %v7824 = vmul.f32 %v7796, %v1638
    %v7825 = vmul.f32 %v7798, %v1638
    %v7826 = vmul.f32 %v7800, %v1638
    %v7827 = vmul.f32 %v7802, %v1638
    %v7828 = vmul.f32 %v7804, %v1638
    %v7829 = vmul.f32 %v7806, %v1638
    %v7830 = vmul.f32 %v7808, %v1638
    %v7831 = vmul.f32 %v7810, %v1638
    %v7832 = vmul.f32 %v7812, %v1638
    %v7833 = vmul.f32 %v7814, %v1638
    %v7834 = vmul.f32 %v7816, %v1638
    %v7835 = vmul.f32 %v7818, %v1638
    %v7836 = vmul.f32 %v7820, %v1638
    %v7837 = vmul.f32 %v7757, %v7757
    %v7838 = vmul.f32 %v7758, %v7758
    %v7839 = vmul.f32 %v7759, %v7759
    %v7840 = vmul.f32 %v7760, %v7760
    %v7841 = vmul.f32 %v7761, %v7761
    %v7842 = vmul.f32 %v7762, %v7762
    %v7843 = vmul.f32 %v7763, %v7763
    %v7844 = vmul.f32 %v7764, %v7764
    %v7845 = vmul.f32 %v7765, %v7765
    %v7846 = vmul.f32 %v7766, %v7766
    %v7847 = vmul.f32 %v7767, %v7767
    %v7848 = vmul.f32 %v7768, %v7768
    %v7849 = vmul.f32 %v7769, %v7769
    %v7850 = vmul.f32 %v7770, %v7770
    %v7851 = vmul.f32 %v7771, %v7771
    %v7852 = vmul.f32 %v7772, %v7772
    %v7853 = vsub.f32 %v7821, %v7837
    %v7854 = vsub.f32 %v7822, %v7838
    %v7855 = vsub.f32 %v7823, %v7839
    %v7856 = vsub.f32 %v7824, %v7840
    %v7857 = vsub.f32 %v7825, %v7841
    %v7858 = vsub.f32 %v7826, %v7842
    %v7859 = vsub.f32 %v7827, %v7843
    %v7860 = vsub.f32 %v7828, %v7844
    %v7861 = vsub.f32 %v7829, %v7845
    %v7862 = vsub.f32 %v7830, %v7846
    %v7863 = vsub.f32 %v7831, %v7847
    %v7864 = vsub.f32 %v7832, %v7848
    %v7865 = vsub.f32 %v7833, %v7849
    %v7866 = vsub.f32 %v7834, %v7850
    %v7867 = vsub.f32 %v7835, %v7851
    %v7868 = vsub.f32 %v7836, %v7852
    %v7869 = vmax.f32 %v7853, 0.0
    %v7870 = vmax.f32 %v7854, 0.0
    %v7871 = vmax.f32 %v7855, 0.0
    %v7872 = vmax.f32 %v7856, 0.0
    %v7873 = vmax.f32 %v7857, 0.0
    %v7874 = vmax.f32 %v7858, 0.0
    %v7875 = vmax.f32 %v7859, 0.0
    %v7876 = vmax.f32 %v7860, 0.0
    %v7877 = vmax.f32 %v7861, 0.0
    %v7878 = vmax.f32 %v7862, 0.0
    %v7879 = vmax.f32 %v7863, 0.0
    %v7880 = vmax.f32 %v7864, 0.0
    %v7881 = vmax.f32 %v7865, 0.0
    %v7882 = vmax.f32 %v7866, 0.0
    %v7883 = vmax.f32 %v7867, 0.0
    %v7884 = vmax.f32 %v7868, 0.0
    %v7885 = vsub.f32 %v7663, %v7757
    %v7886 = vsub.f32 %v7666, %v7758
    %v7887 = vsub.f32 %v7671, %v7759
    %v7888 = vsub.f32 %v7674, %v7760
    %v7889 = vsub.f32 %v7679, %v7761
    %v7890 = vsub.f32 %v7682, %v7762
    %v7891 = vsub.f32 %v7687, %v7763
    %v7892 = vsub.f32 %v7690, %v7764
    %v7893 = vsub.f32 %v7695, %v7765
    %v7894 = vsub.f32 %v7698, %v7766
    %v7895 = vsub.f32 %v7703, %v7767
    %v7896 = vsub.f32 %v7706, %v7768
    %v7897 = vsub.f32 %v7711, %v7769
    %v7898 = vsub.f32 %v7714, %v7770
    %v7899 = vsub.f32 %v7719, %v7771
    %v7900 = vsub.f32 %v7722, %v7772
    %v7901 = vadd.f32 %v7869, 1e-05
    %v7902 = vadd.f32 %v7870, 1e-05
    %v7903 = vadd.f32 %v7871, 1e-05
    %v7904 = vadd.f32 %v7872, 1e-05
    %v7905 = vadd.f32 %v7873, 1e-05
    %v7906 = vadd.f32 %v7874, 1e-05
    %v7907 = vadd.f32 %v7875, 1e-05
    %v7908 = vadd.f32 %v7876, 1e-05
    %v7909 = vadd.f32 %v7877, 1e-05
    %v7910 = vadd.f32 %v7878, 1e-05
    %v7911 = vadd.f32 %v7879, 1e-05
    %v7912 = vadd.f32 %v7880, 1e-05
    %v7913 = vadd.f32 %v7881, 1e-05
    %v7914 = vadd.f32 %v7882, 1e-05
    %v7915 = vadd.f32 %v7883, 1e-05
    %v7916 = vadd.f32 %v7884, 1e-05
    %v7917 = vrsqrt.pop %v7901
    %v7918 = vrsqrt.pop %v7902
    %v7919 = vrsqrt.pop %v7903
    %v7920 = vrsqrt.pop %v7904
    %v7921 = vrsqrt.pop %v7905
    %v7922 = vrsqrt.pop %v7906
    %v7923 = vrsqrt.pop %v7907
    %v7924 = vrsqrt.pop %v7908
    %v7925 = vrsqrt.pop %v7909
    %v7926 = vrsqrt.pop %v7910
    %v7927 = vrsqrt.pop %v7911
    %v7928 = vrsqrt.pop %v7912
    %v7929 = vrsqrt.pop %v7913
    %v7930 = vrsqrt.pop %v7914
    %v7931 = vrsqrt.pop %v7915
    %v7932 = vrsqrt.pop %v7916
    %v7933 = vmul.f32 %v7885, %v7917
    %v7934 = vmul.f32 %v7886, %v7918
    %v7935 = vmul.f32 %v7887, %v7919
    %v7936 = vmul.f32 %v7888, %v7920
    %v7937 = vmul.f32 %v7889, %v7921
    %v7938 = vmul.f32 %v7890, %v7922
    %v7939 = vmul.f32 %v7891, %v7923
    %v7940 = vmul.f32 %v7892, %v7924
    %v7941 = vmul.f32 %v7893, %v7925
    %v7942 = vmul.f32 %v7894, %v7926
    %v7943 = vmul.f32 %v7895, %v7927
    %v7944 = vmul.f32 %v7896, %v7928
    %v7945 = vmul.f32 %v7897, %v7929
    %v7946 = vmul.f32 %v7898, %v7930
    %v7947 = vmul.f32 %v7899, %v7931
    %v7948 = vmul.f32 %v7900, %v7932
    %v7949 = vlaneseq
    %v7950 = vshrl.u32 %v7949, 7
    %v7951 = vsub.s32 2, %v7950
    %v7952 = vrot.slane %v5506, %v7951
    %v7953 = vmul.f32 %v7933, %v7952
    %v7954 = vmul.f32 %v7934, %v7952
    %v7955 = vmul.f32 %v7935, %v7952
    %v7956 = vmul.f32 %v7936, %v7952
    %v7957 = vmul.f32 %v7937, %v7952
    %v7958 = vmul.f32 %v7938, %v7952
    %v7959 = vmul.f32 %v7939, %v7952
    %v7960 = vmul.f32 %v7940, %v7952
    %v7961 = vmul.f32 %v7941, %v7952
    %v7962 = vmul.f32 %v7942, %v7952
    %v7963 = vmul.f32 %v7943, %v7952
    %v7964 = vmul.f32 %v7944, %v7952
    %v7965 = vmul.f32 %v7945, %v7952
    %v7966 = vmul.f32 %v7946, %v7952
    %v7967 = vmul.f32 %v7947, %v7952
    %v7968 = vmul.f32 %v7948, %v7952
    %v7969 = vlaneseq
    %v7970 = vshrl.u32 %v7969, 7
    %v7971 = vsub.s32 3, %v7970
    %v7972 = vrot.slane %v5506, %v7971
    %v7973 = vadd.f32 %v7953, %v7972
    %v7974 = vadd.f32 %v7954, %v7972
    %v7975 = vadd.f32 %v7955, %v7972
    %v7976 = vadd.f32 %v7956, %v7972
    %v7977 = vadd.f32 %v7957, %v7972
    %v7978 = vadd.f32 %v7958, %v7972
    %v7979 = vadd.f32 %v7959, %v7972
    %v7980 = vadd.f32 %v7960, %v7972
    %v7981 = vadd.f32 %v7961, %v7972
    %v7982 = vadd.f32 %v7962, %v7972
    %v7983 = vadd.f32 %v7963, %v7972
    %v7984 = vadd.f32 %v7964, %v7972
    %v7985 = vadd.f32 %v7965, %v7972
    %v7986 = vadd.f32 %v7966, %v7972
    %v7987 = vadd.f32 %v7967, %v7972
    %v7988 = vadd.f32 %v7968, %v7972
    %v7989 = vadd.f32 %v2770, %v7973
    %v7990 = vadd.f32 %v2771, %v7974
    %v7991 = vadd.f32 %v2772, %v7975
    %v7992 = vadd.f32 %v2773, %v7976
    %v7993 = vadd.f32 %v2774, %v7977
    %v7994 = vadd.f32 %v2775, %v7978
    %v7995 = vadd.f32 %v2776, %v7979
    %v7996 = vadd.f32 %v2777, %v7980
    %v7997 = vadd.f32 %v2778, %v7981
    %v7998 = vadd.f32 %v2779, %v7982
    %v7999 = vadd.f32 %v2780, %v7983
    %v8000 = vadd.f32 %v2781, %v7984
    %v8001 = vadd.f32 %v2782, %v7985
    %v8002 = vadd.f32 %v2783, %v7986
    %v8003 = vadd.f32 %v2784, %v7987
    %v8004 = vadd.f32 %v2785, %v7988
    %v8005 = vld [vmem:[%s5389] sm:$0xff]
    %v8006 = vld [vmem:[%s5389 + $0x8] sm:$0xf]
    %v8007 = vld [vmem:[%s5389 + $0xc] sm:$0xff]
    %v8008 = vld [vmem:[%s5389 + $0x14] sm:$0xf]
    %v8009 = vld [vmem:[%s5389 + $0x18] sm:$0xff]
    %v8010 = vld [vmem:[%s5389 + $0x20] sm:$0xf]
    %v8011 = vld [vmem:[%s5389 + $0x24] sm:$0xff]
    %v8012 = vld [vmem:[%s5389 + $0x2c] sm:$0xf]
    %v8013 = vld [vmem:[%s5389 + $0x30] sm:$0xff]
    %v8014 = vld [vmem:[%s5389 + $0x38] sm:$0xf]
    %v8015 = vld [vmem:[%s5389 + $0x3c] sm:$0xff]
    %v8016 = vld [vmem:[%s5389 + $0x44] sm:$0xf]
    %v8017 = vld [vmem:[%s5389 + $0x48] sm:$0xff]
    %v8018 = vld [vmem:[%s5389 + $0x50] sm:$0xf]
    %v8019 = vld [vmem:[%s5389 + $0x54] sm:$0xff]
    %v8020 = vld [vmem:[%s5389 + $0x5c] sm:$0xf]
    %v8021 = vld [vmem:[%s5389 + $0x60] sm:$0xff]
    %v8022 = vld [vmem:[%s5389 + $0x68] sm:$0xf]
    %v8023 = vld [vmem:[%s5389 + $0x6c] sm:$0xff]
    %v8024 = vld [vmem:[%s5389 + $0x74] sm:$0xf]
    %v8025 = vld [vmem:[%s5389 + $0x78] sm:$0xff]
    %v8026 = vld [vmem:[%s5389 + $0x80] sm:$0xf]
    %v8027 = vld [vmem:[%s5389 + $0x84] sm:$0xff]
    %v8028 = vld [vmem:[%s5389 + $0x8c] sm:$0xf]
    %v8029 = vld [vmem:[%s5389 + $0x90] sm:$0xff]
    %v8030 = vld [vmem:[%s5389 + $0x98] sm:$0xf]
    %v8031 = vld [vmem:[%s5389 + $0x9c] sm:$0xff]
    %v8032 = vld [vmem:[%s5389 + $0xa4] sm:$0xf]
    %v8033 = vld [vmem:[%s5389 + $0xa8] sm:$0xff]
    %v8034 = vld [vmem:[%s5389 + $0xb0] sm:$0xf]
    %v8035 = vld [vmem:[%s5389 + $0xb4] sm:$0xff]
    %v8036 = vld [vmem:[%s5389 + $0xbc] sm:$0xf]
    %v8037 = vld [vmem:[%s5422] sm:$0xf]
    %v8038 = vld [vmem:[%s5422 + $0x4] sm:$0xf]
    %v8039 = vld [vmem:[%s5422 + $0x8] sm:$0xf]
    %v8040 = vld [vmem:[%s5422 + $0xc] sm:$0xf]
    %v8041 = vld [vmem:[%s5422 + $0x10] sm:$0xf]
    %v8042 = vld [vmem:[%s5422 + $0x14] sm:$0xf]
    %v8043 = vld [vmem:[%s5422 + $0x18] sm:$0xf]
    %v8044 = vld [vmem:[%s5422 + $0x1c] sm:$0xf]
    %v8045 = vld [vmem:[%s5422 + $0x20] sm:$0xf]
    %v8046 = vld [vmem:[%s5422 + $0x24] sm:$0xf]
    %v8047 = vld [vmem:[%s5422 + $0x28] sm:$0xf]
    %v8048 = vld [vmem:[%s5422 + $0x2c] sm:$0xf]
    %v8049 = vld [vmem:[%s5422 + $0x30] sm:$0xf]
    %v8050 = vld [vmem:[%s5422 + $0x34] sm:$0xf]
    %v8051 = vld [vmem:[%s5422 + $0x38] sm:$0xf]
    %v8052 = vld [vmem:[%s5422 + $0x3c] sm:$0xf]
    %v8053 = vld [vmem:[%s5439] sm:$0xff]
    %v8054 = vld [vmem:[%s5439 + $0x8] sm:$0xff]
    %v8055 = vld [vmem:[%s5439 + $0x10] sm:$0xff]
    %v8056 = vld [vmem:[%s5439 + $0x18] sm:$0xff]
    %v8057 = vld [vmem:[%s5439 + $0x20] sm:$0xff]
    %v8058 = vld [vmem:[%s5439 + $0x28] sm:$0xff]
    %v8059 = vld [vmem:[%s5439 + $0x30] sm:$0xff]
    %v8060 = vld [vmem:[%s5439 + $0x38] sm:$0xff]
    %v8061 = vld [vmem:[%s5439 + $0x40] sm:$0xff]
    %v8062 = vld [vmem:[%s5439 + $0x48] sm:$0xff]
    %v8063 = vld [vmem:[%s5439 + $0x50] sm:$0xff]
    %v8064 = vld [vmem:[%s5439 + $0x58] sm:$0xff]
    %v8065 = vld [vmem:[%s5439 + $0x60] sm:$0xff]
    %v8066 = vld [vmem:[%s5439 + $0x68] sm:$0xff]
    %v8067 = vld [vmem:[%s5439 + $0x70] sm:$0xff]
    %v8068 = vld [vmem:[%s5439 + $0x78] sm:$0xff]
    %v8069 = vld [vmem:[%s5439 + $0x80] sm:$0xff]
    %v8070 = vld [vmem:[%s5439 + $0x88] sm:$0xff]
    %v8071 = vld [vmem:[%s5439 + $0x90] sm:$0xff]
    %v8072 = vld [vmem:[%s5439 + $0x98] sm:$0xff]
    %v8073 = vld [vmem:[%s5439 + $0xa0] sm:$0xff]
    %v8074 = vld [vmem:[%s5439 + $0xa8] sm:$0xff]
    %v8075 = vld [vmem:[%s5439 + $0xb0] sm:$0xff]
    %v8076 = vld [vmem:[%s5439 + $0xb8] sm:$0xff]
    %v8077 = vld [vmem:[%s5439 + $0xc0] sm:$0xff]
    %v8078 = vld [vmem:[%s5439 + $0xc8] sm:$0xff]
    %v8079 = vld [vmem:[%s5439 + $0xd0] sm:$0xff]
    %v8080 = vld [vmem:[%s5439 + $0xd8] sm:$0xff]
    %v8081 = vld [vmem:[%s5439 + $0xe0] sm:$0xff]
    %v8082 = vld [vmem:[%s5439 + $0xe8] sm:$0xff]
    %v8083 = vld [vmem:[%s5439 + $0xf0] sm:$0xff]
    %v8084 = vld [vmem:[%s5439 + $0xf8] sm:$0xff]
    %v8085 = vld [vmem:[%s5472] sm:$0xf]
    %v8086 = vld [vmem:[%s5472 + $0x4] sm:$0xf]
    %v8087 = vld [vmem:[%s5472 + $0x8] sm:$0xf]
    %v8088 = vld [vmem:[%s5472 + $0xc] sm:$0xf]
    %v8089 = vld [vmem:[%s5472 + $0x10] sm:$0xf]
    %v8090 = vld [vmem:[%s5472 + $0x14] sm:$0xf]
    %v8091 = vld [vmem:[%s5472 + $0x18] sm:$0xf]
    %v8092 = vld [vmem:[%s5472 + $0x1c] sm:$0xf]
    %v8093 = vld [vmem:[%s5472 + $0x20] sm:$0xf]
    %v8094 = vld [vmem:[%s5472 + $0x24] sm:$0xf]
    %v8095 = vld [vmem:[%s5472 + $0x28] sm:$0xf]
    %v8096 = vld [vmem:[%s5472 + $0x2c] sm:$0xf]
    %v8097 = vld [vmem:[%s5472 + $0x30] sm:$0xf]
    %v8098 = vld [vmem:[%s5472 + $0x34] sm:$0xf]
    %v8099 = vld [vmem:[%s5472 + $0x38] sm:$0xf]
    %v8100 = vld [vmem:[%s5472 + $0x3c] sm:$0xf]
    %v8101 = vld [vmem:[%s5472 + $0x40] sm:$0xf]
    %v8102 = vld [vmem:[%s5472 + $0x44] sm:$0xf]
    %v8103 = vld [vmem:[%s5472 + $0x48] sm:$0xf]
    %v8104 = vld [vmem:[%s5472 + $0x4c] sm:$0xf]
    %v8105 = vld [vmem:[%s5472 + $0x50] sm:$0xf]
    %v8106 = vld [vmem:[%s5472 + $0x54] sm:$0xf]
    %v8107 = vld [vmem:[%s5472 + $0x58] sm:$0xf]
    %v8108 = vld [vmem:[%s5472 + $0x5c] sm:$0xf]
    %v8109 = vld [vmem:[%s5472 + $0x60] sm:$0xf]
    %v8110 = vld [vmem:[%s5472 + $0x64] sm:$0xf]
    %v8111 = vld [vmem:[%s5472 + $0x68] sm:$0xf]
    %v8112 = vld [vmem:[%s5472 + $0x6c] sm:$0xf]
    %v8113 = vld [vmem:[%s5472 + $0x70] sm:$0xf]
    %v8114 = vld [vmem:[%s5472 + $0x74] sm:$0xf]
    %v8115 = vld [vmem:[%s5472 + $0x78] sm:$0xf]
    %v8116 = vld [vmem:[%s5472 + $0x7c] sm:$0xf]
    %v8117 = vld [vmem:[%s5505] sm:$0xf]
    %v8118 = vpack.c.bf16 %v7990, %v7989
    %v8119 = vpack.c.bf16 %v7992, %v7991
    %v8120 = vpack.c.bf16 %v7994, %v7993
    %v8121 = vpack.c.bf16 %v7996, %v7995
    %v8122 = vpack.c.bf16 %v7998, %v7997
    %v8123 = vpack.c.bf16 %v8000, %v7999
    %v8124 = vpack.c.bf16 %v8002, %v8001
    %v8125 = vpack.c.bf16 %v8004, %v8003
    %v8142 = vunpack.c.l.b16 %v8005
    %v8143 = vunpack.c.l.b16 %v8007
    %v8144 = vunpack.c.l.b16 %v8009
    %v8145 = vunpack.c.l.b16 %v8011
    %v8146 = vunpack.c.l.b16 %v8013
    %v8147 = vunpack.c.l.b16 %v8015
    %v8148 = vunpack.c.l.b16 %v8017
    %v8149 = vunpack.c.l.b16 %v8019
    %v8150 = vunpack.c.l.b16 %v8021
    %v8151 = vunpack.c.l.b16 %v8023
    %v8152 = vunpack.c.l.b16 %v8025
    %v8153 = vunpack.c.l.b16 %v8027
    %v8154 = vunpack.c.l.b16 %v8029
    %v8155 = vunpack.c.l.b16 %v8031
    %v8156 = vunpack.c.l.b16 %v8033
    %v8157 = vunpack.c.l.b16 %v8035
    %v8158 = vpack.c.b16 %v8143, %v8142
    %v8159 = vpack.c.b16 %v8145, %v8144
    %v8160 = vpack.c.b16 %v8147, %v8146
    %v8161 = vpack.c.b16 %v8149, %v8148
    %v8162 = vpack.c.b16 %v8151, %v8150
    %v8163 = vpack.c.b16 %v8153, %v8152
    %v8164 = vpack.c.b16 %v8155, %v8154
    %v8165 = vpack.c.b16 %v8157, %v8156
    %8174 = vmatprep.subr.bf16.mxu0 0
    %8175 = vmatpush1.bf16.msra.mxu0 %v8158
    %8176 = vmatprep.subr.bf16.mxu0 0
    %8177 = vmatpush1.bf16.msra.mxu0 %v8159
    %8178 = vmatprep.subr.bf16.mxu0 0
    %8179 = vmatpush1.bf16.msra.mxu0 %v8160
    %8180 = vmatprep.subr.bf16.mxu0 0
    %8181 = vmatpush1.bf16.msra.mxu0 %v8161
    %8182 = vmatprep.subr.bf16.mxu0 0
    %8183 = vmatpush1.bf16.msra.mxu0 %v8162
    %8184 = vmatprep.subr.bf16.mxu0 0
    %8185 = vmatpush1.bf16.msra.mxu0 %v8163
    %8186 = vmatprep.subr.bf16.mxu0 0
    %8187 = vmatpush1.bf16.msra.mxu0 %v8164
    %8188 = vmatprep.subr.bf16.mxu0 0
    %8189 = vmatpush1.bf16.msra.mxu0 %v8165
    %8190 = vmatprep.subr.bf16.mxu0 0
    %8191 = vmatpush1.bf16.msra.mxu0 0
    %8192 = vmatprep.subr.bf16.mxu0 0
    %8193 = vmatpush1.bf16.msra.mxu0 0
    %8194 = vmatprep.subr.bf16.mxu0 0
    %8195 = vmatpush1.bf16.msra.mxu0 0
    %8196 = vmatprep.subr.bf16.mxu0 0
    %8197 = vmatpush1.bf16.msra.mxu0 0
    %8198 = vmatprep.subr.bf16.mxu0 0
    %8199 = vmatpush1.bf16.msra.mxu0 0
    %8200 = vmatprep.subr.bf16.mxu0 0
    %8201 = vmatpush1.bf16.msra.mxu0 0
    %8202 = vmatprep.subr.bf16.mxu0 0
    %8203 = vmatpush1.bf16.msra.mxu0 0
    %8204 = vmatprep.subr.bf16.mxu0 0
    %8205 = vmatpush1.bf16.msra.mxu0 0
    %8206 = vmatprep.mubr.bf16.mxu0 0
    %8207 = vmatmul.mubr.bf16.gmra.mrb[0].mxu0 %v5515
    %v8208 = vpop.f32.mrb[0].mxu0
    %v8209 = vadd.f32 0.0, %v8208
    %v8210 = vpop.f32.mrb[0].mxu0
    %v8211 = vpop.f32.mrb[0].mxu0
    %v8212 = vadd.f32 0.0, %v8211
    %v8213 = vpop.f32.mrb[0].mxu0
    %8214 = vmatprep.mubr.bf16.mxu0 0
    %8215 = vmatmul.mubr.bf16.gmra.mrb[0].mxu0 %v5516
    %v8216 = vpop.f32.mrb[0].mxu0
    %v8217 = vadd.f32 0.0, %v8216
    %v8218 = vpop.f32.mrb[0].mxu0
    %v8219 = vpop.f32.mrb[0].mxu0
    %v8220 = vadd.f32 0.0, %v8219
    %v8221 = vpop.f32.mrb[0].mxu0
    %8222 = vmatprep.mubr.bf16.mxu0 0
    %8223 = vmatmul.mubr.bf16.gmra.mrb[0].mxu0 %v5517
    %v8224 = vpop.f32.mrb[0].mxu0
    %v8225 = vadd.f32 0.0, %v8224
    %v8226 = vpop.f32.mrb[0].mxu0
    %v8227 = vpop.f32.mrb[0].mxu0
    %v8228 = vadd.f32 0.0, %v8227
    %v8229 = vpop.f32.mrb[0].mxu0
    %8230 = vmatprep.mubr.bf16.mxu0 0
    %8231 = vmatmul.mubr.bf16.gmra.mrb[0].mxu0 %v5518
    %v8232 = vpop.f32.mrb[0].mxu0
    %v8233 = vadd.f32 0.0, %v8232
    %v8234 = vpop.f32.mrb[0].mxu0
    %v8235 = vpop.f32.mrb[0].mxu0
    %v8236 = vadd.f32 0.0, %v8235
    %v8237 = vpop.f32.mrb[0].mxu0
    %8238 = vmatprep.mubr.bf16.mxu0 0
    %8239 = vmatmul.mubr.bf16.gmra.mrb[0].mxu0 %v5519
    %v8240 = vpop.f32.mrb[0].mxu0
    %v8241 = vadd.f32 0.0, %v8240
    %v8242 = vpop.f32.mrb[0].mxu0
    %v8243 = vpop.f32.mrb[0].mxu0
    %v8244 = vadd.f32 0.0, %v8243
    %v8245 = vpop.f32.mrb[0].mxu0
    %8246 = vmatprep.mubr.bf16.mxu0 0
    %8247 = vmatmul.mubr.bf16.gmra.mrb[0].mxu0 %v5520
    %v8248 = vpop.f32.mrb[0].mxu0
    %v8249 = vadd.f32 0.0, %v8248
    %v8250 = vpop.f32.mrb[0].mxu0
    %v8251 = vpop.f32.mrb[0].mxu0
    %v8252 = vadd.f32 0.0, %v8251
    %v8253 = vpop.f32.mrb[0].mxu0
    %8254 = vmatprep.mubr.bf16.mxu0 0
    %8255 = vmatmul.mubr.bf16.gmra.mrb[0].mxu0 %v5521
    %v8256 = vpop.f32.mrb[0].mxu0
    %v8257 = vadd.f32 0.0, %v8256
    %v8258 = vpop.f32.mrb[0].mxu0
    %v8259 = vpop.f32.mrb[0].mxu0
    %v8260 = vadd.f32 0.0, %v8259
    %v8261 = vpop.f32.mrb[0].mxu0
    %8262 = vmatprep.mubr.bf16.mxu0 0
    %8263 = vmatmul.mubr.bf16.gmra.mrb[0].mxu0 %v5522
    %v8264 = vpop.f32.mrb[0].mxu0
    %v8265 = vadd.f32 0.0, %v8264
    %v8266 = vpop.f32.mrb[0].mxu0
    %v8267 = vpop.f32.mrb[0].mxu0
    %v8268 = vadd.f32 0.0, %v8267
    %v8269 = vpop.f32.mrb[0].mxu0
    %8270 = vdwg.mxu0
    %v8287 = vunpack.c.h.b16 %v8005
    %v8288 = vunpack.c.l.b16 %v8006
    %v8289 = vunpack.c.h.b16 %v8007
    %v8290 = vunpack.c.l.b16 %v8008
    %v8291 = vunpack.c.h.b16 %v8009
    %v8292 = vunpack.c.l.b16 %v8010
    %v8293 = vunpack.c.h.b16 %v8011
    %v8294 = vunpack.c.l.b16 %v8012
    %v8295 = vunpack.c.h.b16 %v8013
    %v8296 = vunpack.c.l.b16 %v8014
    %v8297 = vunpack.c.h.b16 %v8015
    %v8298 = vunpack.c.l.b16 %v8016
    %v8299 = vunpack.c.h.b16 %v8017
    %v8300 = vunpack.c.l.b16 %v8018
    %v8301 = vunpack.c.h.b16 %v8019
    %v8302 = vunpack.c.l.b16 %v8020
    %v8303 = vunpack.c.h.b16 %v8021
    %v8304 = vunpack.c.l.b16 %v8022
    %v8305 = vunpack.c.h.b16 %v8023
    %v8306 = vunpack.c.l.b16 %v8024
    %v8307 = vunpack.c.h.b16 %v8025
    %v8308 = vunpack.c.l.b16 %v8026
    %v8309 = vunpack.c.h.b16 %v8027
    %v8310 = vunpack.c.l.b16 %v8028
    %v8311 = vunpack.c.h.b16 %v8029
    %v8312 = vunpack.c.l.b16 %v8030
    %v8313 = vunpack.c.h.b16 %v8031
    %v8314 = vunpack.c.l.b16 %v8032
    %v8315 = vunpack.c.h.b16 %v8033
    %v8316 = vunpack.c.l.b16 %v8034
    %v8317 = vunpack.c.h.b16 %v8035
    %v8318 = vunpack.c.l.b16 %v8036
    %v8319 = vpack.c.b16 %v8289, %v8287
    %v8320 = vpack.c.b16 %v8290, %v8288
    %v8321 = vpack.c.b16 %v8293, %v8291
    %v8322 = vpack.c.b16 %v8294, %v8292
    %v8323 = vpack.c.b16 %v8297, %v8295
    %v8324 = vpack.c.b16 %v8298, %v8296
    %v8325 = vpack.c.b16 %v8301, %v8299
    %v8326 = vpack.c.b16 %v8302, %v8300
    %v8327 = vpack.c.b16 %v8305, %v8303
    %v8328 = vpack.c.b16 %v8306, %v8304
    %v8329 = vpack.c.b16 %v8309, %v8307
    %v8330 = vpack.c.b16 %v8310, %v8308
    %v8331 = vpack.c.b16 %v8313, %v8311
    %v8332 = vpack.c.b16 %v8314, %v8312
    %v8333 = vpack.c.b16 %v8317, %v8315
    %v8334 = vpack.c.b16 %v8318, %v8316
    %8351 = vmatprep.subr.bf16.mxu0 %v8320
    %8352 = vmatpush1.bf16.msra.mxu0 %v8319
    %8353 = vmatprep.subr.bf16.mxu0 %v8322
    %8354 = vmatpush1.bf16.msra.mxu0 %v8321
    %8355 = vmatprep.subr.bf16.mxu0 %v8324
    %8356 = vmatpush1.bf16.msra.mxu0 %v8323
    %8357 = vmatprep.subr.bf16.mxu0 %v8326
    %8358 = vmatpush1.bf16.msra.mxu0 %v8325
    %8359 = vmatprep.subr.bf16.mxu0 %v8328
    %8360 = vmatpush1.bf16.msra.mxu0 %v8327
    %8361 = vmatprep.subr.bf16.mxu0 %v8330
    %8362 = vmatpush1.bf16.msra.mxu0 %v8329
    %8363 = vmatprep.subr.bf16.mxu0 %v8332
    %8364 = vmatpush1.bf16.msra.mxu0 %v8331
    %8365 = vmatprep.subr.bf16.mxu0 %v8334
    %8366 = vmatpush1.bf16.msra.mxu0 %v8333
    %8367 = vmatprep.subr.bf16.mxu0 0
    %8368 = vmatpush1.bf16.msra.mxu0 0
    %8369 = vmatprep.subr.bf16.mxu0 0
    %8370 = vmatpush1.bf16.msra.mxu0 0
    %8371 = vmatprep.subr.bf16.mxu0 0
    %8372 = vmatpush1.bf16.msra.mxu0 0
    %8373 = vmatprep.subr.bf16.mxu0 0
    %8374 = vmatpush1.bf16.msra.mxu0 0
    %8375 = vmatprep.subr.bf16.mxu0 0
    %8376 = vmatpush1.bf16.msra.mxu0 0
    %8377 = vmatprep.subr.bf16.mxu0 0
    %8378 = vmatpush1.bf16.msra.mxu0 0
    %8379 = vmatprep.subr.bf16.mxu0 0
    %8380 = vmatpush1.bf16.msra.mxu0 0
    %8381 = vmatprep.subr.bf16.mxu0 0
    %8382 = vmatpush1.bf16.msra.mxu0 0
    %8383 = vmatprep.mubr.bf16.mxu0 0
    %8384 = vmatmul.mubr.bf16.gmra.mrb[0].mxu0 %v8118
    %v8385 = vpop.f32.mrb[0].mxu0
    %v8386 = vadd.f32 0.0, %v8385
    %v8387 = vpop.f32.mrb[0].mxu0
    %v8388 = vadd.f32 0.0, %v8387
    %v8389 = vpop.f32.mrb[0].mxu0
    %v8390 = vadd.f32 0.0, %v8389
    %v8391 = vpop.f32.mrb[0].mxu0
    %v8392 = vadd.f32 0.0, %v8391
    %8393 = vmatprep.mubr.bf16.mxu0 0
    %8394 = vmatmul.mubr.bf16.gmra.mrb[0].mxu0 %v8119
    %v8395 = vpop.f32.mrb[0].mxu0
    %v8396 = vadd.f32 0.0, %v8395
    %v8397 = vpop.f32.mrb[0].mxu0
    %v8398 = vadd.f32 0.0, %v8397
    %v8399 = vpop.f32.mrb[0].mxu0
    %v8400 = vadd.f32 0.0, %v8399
    %v8401 = vpop.f32.mrb[0].mxu0
    %v8402 = vadd.f32 0.0, %v8401
    %8403 = vmatprep.mubr.bf16.mxu0 0
    %8404 = vmatmul.mubr.bf16.gmra.mrb[0].mxu0 %v8120
    %v8405 = vpop.f32.mrb[0].mxu0
    %v8406 = vadd.f32 0.0, %v8405
    %v8407 = vpop.f32.mrb[0].mxu0
    %v8408 = vadd.f32 0.0, %v8407
    %v8409 = vpop.f32.mrb[0].mxu0
    %v8410 = vadd.f32 0.0, %v8409
    %v8411 = vpop.f32.mrb[0].mxu0
    %v8412 = vadd.f32 0.0, %v8411
    %8413 = vmatprep.mubr.bf16.mxu0 0
    %8414 = vmatmul.mubr.bf16.gmra.mrb[0].mxu0 %v8121
    %v8415 = vpop.f32.mrb[0].mxu0
    %v8416 = vadd.f32 0.0, %v8415
    %v8417 = vpop.f32.mrb[0].mxu0
    %v8418 = vadd.f32 0.0, %v8417
    %v8419 = vpop.f32.mrb[0].mxu0
    %v8420 = vadd.f32 0.0, %v8419
    %v8421 = vpop.f32.mrb[0].mxu0
    %v8422 = vadd.f32 0.0, %v8421
    %8423 = vmatprep.mubr.bf16.mxu0 0
    %8424 = vmatmul.mubr.bf16.gmra.mrb[0].mxu0 %v8122
    %v8425 = vpop.f32.mrb[0].mxu0
    %v8426 = vadd.f32 0.0, %v8425
    %v8427 = vpop.f32.mrb[0].mxu0
    %v8428 = vadd.f32 0.0, %v8427
    %v8429 = vpop.f32.mrb[0].mxu0
    %v8430 = vadd.f32 0.0, %v8429
    %v8431 = vpop.f32.mrb[0].mxu0
    %v8432 = vadd.f32 0.0, %v8431
    %8433 = vmatprep.mubr.bf16.mxu0 0
    %8434 = vmatmul.mubr.bf16.gmra.mrb[0].mxu0 %v8123
    %v8435 = vpop.f32.mrb[0].mxu0
    %v8436 = vadd.f32 0.0, %v8435
    %v8437 = vpop.f32.mrb[0].mxu0
    %v8438 = vadd.f32 0.0, %v8437
    %v8439 = vpop.f32.mrb[0].mxu0
    %v8440 = vadd.f32 0.0, %v8439
    %v8441 = vpop.f32.mrb[0].mxu0
    %v8442 = vadd.f32 0.0, %v8441
    %8443 = vmatprep.mubr.bf16.mxu0 0
    %8444 = vmatmul.mubr.bf16.gmra.mrb[0].mxu0 %v8124
    %v8445 = vpop.f32.mrb[0].mxu0
    %v8446 = vadd.f32 0.0, %v8445
    %v8447 = vpop.f32.mrb[0].mxu0
    %v8448 = vadd.f32 0.0, %v8447
    %v8449 = vpop.f32.mrb[0].mxu0
    %v8450 = vadd.f32 0.0, %v8449
    %v8451 = vpop.f32.mrb[0].mxu0
    %v8452 = vadd.f32 0.0, %v8451
    %8453 = vmatprep.mubr.bf16.mxu0 0
    %8454 = vmatmul.mubr.bf16.gmra.mrb[0].mxu0 %v8125
    %v8455 = vpop.f32.mrb[0].mxu0
    %v8456 = vadd.f32 0.0, %v8455
    %v8457 = vpop.f32.mrb[0].mxu0
    %v8458 = vadd.f32 0.0, %v8457
    %v8459 = vpop.f32.mrb[0].mxu0
    %v8460 = vadd.f32 0.0, %v8459
    %v8461 = vpop.f32.mrb[0].mxu0
    %v8462 = vadd.f32 0.0, %v8461
    %8463 = vdwg.mxu0
    %vm8464 = vcmp.gt.f32.partialorder %v8209, 0.0
    %vm8465 = vcmp.gt.f32.partialorder %v8212, 0.0
    %vm8466 = vcmp.gt.f32.partialorder %v8217, 0.0
    %vm8467 = vcmp.gt.f32.partialorder %v8220, 0.0
    %vm8468 = vcmp.gt.f32.partialorder %v8225, 0.0
    %vm8469 = vcmp.gt.f32.partialorder %v8228, 0.0
    %vm8470 = vcmp.gt.f32.partialorder %v8233, 0.0
    %vm8471 = vcmp.gt.f32.partialorder %v8236, 0.0
    %vm8472 = vcmp.gt.f32.partialorder %v8241, 0.0
    %vm8473 = vcmp.gt.f32.partialorder %v8244, 0.0
    %vm8474 = vcmp.gt.f32.partialorder %v8249, 0.0
    %vm8475 = vcmp.gt.f32.partialorder %v8252, 0.0
    %vm8476 = vcmp.gt.f32.partialorder %v8257, 0.0
    %vm8477 = vcmp.gt.f32.partialorder %v8260, 0.0
    %vm8478 = vcmp.gt.f32.partialorder %v8265, 0.0
    %vm8479 = vcmp.gt.f32.partialorder %v8268, 0.0
    %v8480 = vadd.f32 %v8209, 1.0
    %v8481 = vadd.f32 %v8212, 1.0
    %v8482 = vadd.f32 %v8217, 1.0
    %v8483 = vadd.f32 %v8220, 1.0
    %v8484 = vadd.f32 %v8225, 1.0
    %v8485 = vadd.f32 %v8228, 1.0
    %v8486 = vadd.f32 %v8233, 1.0
    %v8487 = vadd.f32 %v8236, 1.0
    %v8488 = vadd.f32 %v8241, 1.0
    %v8489 = vadd.f32 %v8244, 1.0
    %v8490 = vadd.f32 %v8249, 1.0
    %v8491 = vadd.f32 %v8252, 1.0
    %v8492 = vadd.f32 %v8257, 1.0
    %v8493 = vadd.f32 %v8260, 1.0
    %v8494 = vadd.f32 %v8265, 1.0
    %v8495 = vadd.f32 %v8268, 1.0
    %v8496 = vmin.f32 %v8209, 0.0
    %v8497 = vmin.f32 %v8212, 0.0
    %v8498 = vmin.f32 %v8217, 0.0
    %v8499 = vmin.f32 %v8220, 0.0
    %v8500 = vmin.f32 %v8225, 0.0
    %v8501 = vmin.f32 %v8228, 0.0
    %v8502 = vmin.f32 %v8233, 0.0
    %v8503 = vmin.f32 %v8236, 0.0
    %v8504 = vmin.f32 %v8241, 0.0
    %v8505 = vmin.f32 %v8244, 0.0
    %v8506 = vmin.f32 %v8249, 0.0
    %v8507 = vmin.f32 %v8252, 0.0
    %v8508 = vmin.f32 %v8257, 0.0
    %v8509 = vmin.f32 %v8260, 0.0
    %v8510 = vmin.f32 %v8265, 0.0
    %v8511 = vmin.f32 %v8268, 0.0
    %v8512 = vmul.f32 %v8496, 1.442695
    %v8513 = vpow.pop %v8512
    %v8514 = vmul.f32 %v8497, 1.442695
    %v8515 = vpow.pop %v8514
    %v8516 = vmul.f32 %v8498, 1.442695
    %v8517 = vpow.pop %v8516
    %v8518 = vmul.f32 %v8499, 1.442695
    %v8519 = vpow.pop %v8518
    %v8520 = vmul.f32 %v8500, 1.442695
    %v8521 = vpow.pop %v8520
    %v8522 = vmul.f32 %v8501, 1.442695
    %v8523 = vpow.pop %v8522
    %v8524 = vmul.f32 %v8502, 1.442695
    %v8525 = vpow.pop %v8524
    %v8526 = vmul.f32 %v8503, 1.442695
    %v8527 = vpow.pop %v8526
    %v8528 = vmul.f32 %v8504, 1.442695
    %v8529 = vpow.pop %v8528
    %v8530 = vmul.f32 %v8505, 1.442695
    %v8531 = vpow.pop %v8530
    %v8532 = vmul.f32 %v8506, 1.442695
    %v8533 = vpow.pop %v8532
    %v8534 = vmul.f32 %v8507, 1.442695
    %v8535 = vpow.pop %v8534
    %v8536 = vmul.f32 %v8508, 1.442695
    %v8537 = vpow.pop %v8536
    %v8538 = vmul.f32 %v8509, 1.442695
    %v8539 = vpow.pop %v8538
    %v8540 = vmul.f32 %v8510, 1.442695
    %v8541 = vpow.pop %v8540
    %v8542 = vmul.f32 %v8511, 1.442695
    %v8543 = vpow.pop %v8542
    %v8544 = vsel %vm8464, %v8480, %v8513
    %v8545 = vsel %vm8465, %v8481, %v8515
    %v8546 = vsel %vm8466, %v8482, %v8517
    %v8547 = vsel %vm8467, %v8483, %v8519
    %v8548 = vsel %vm8468, %v8484, %v8521
    %v8549 = vsel %vm8469, %v8485, %v8523
    %v8550 = vsel %vm8470, %v8486, %v8525
    %v8551 = vsel %vm8471, %v8487, %v8527
    %v8552 = vsel %vm8472, %v8488, %v8529
    %v8553 = vsel %vm8473, %v8489, %v8531
    %v8554 = vsel %vm8474, %v8490, %v8533
    %v8555 = vsel %vm8475, %v8491, %v8535
    %v8556 = vsel %vm8476, %v8492, %v8537
    %v8557 = vsel %vm8477, %v8493, %v8539
    %v8558 = vsel %vm8478, %v8494, %v8541
    %v8559 = vsel %vm8479, %v8495, %v8543
    %vm8560 = vcmp.gt.f32.partialorder %v8386, 0.0
    %vm8561 = vcmp.gt.f32.partialorder %v8390, 0.0
    %vm8562 = vcmp.gt.f32.partialorder %v8396, 0.0
    %vm8563 = vcmp.gt.f32.partialorder %v8400, 0.0
    %vm8564 = vcmp.gt.f32.partialorder %v8406, 0.0
    %vm8565 = vcmp.gt.f32.partialorder %v8410, 0.0
    %vm8566 = vcmp.gt.f32.partialorder %v8416, 0.0
    %vm8567 = vcmp.gt.f32.partialorder %v8420, 0.0
    %vm8568 = vcmp.gt.f32.partialorder %v8426, 0.0
    %vm8569 = vcmp.gt.f32.partialorder %v8430, 0.0
    %vm8570 = vcmp.gt.f32.partialorder %v8436, 0.0
    %vm8571 = vcmp.gt.f32.partialorder %v8440, 0.0
    %vm8572 = vcmp.gt.f32.partialorder %v8446, 0.0
    %vm8573 = vcmp.gt.f32.partialorder %v8450, 0.0
    %vm8574 = vcmp.gt.f32.partialorder %v8456, 0.0
    %vm8575 = vcmp.gt.f32.partialorder %v8460, 0.0
    %v8576 = vadd.f32 %v8386, 1.0
    %v8577 = vadd.f32 %v8390, 1.0
    %v8578 = vadd.f32 %v8396, 1.0
    %v8579 = vadd.f32 %v8400, 1.0
    %v8580 = vadd.f32 %v8406, 1.0
    %v8581 = vadd.f32 %v8410, 1.0
    %v8582 = vadd.f32 %v8416, 1.0
    %v8583 = vadd.f32 %v8420, 1.0
    %v8584 = vadd.f32 %v8426, 1.0
    %v8585 = vadd.f32 %v8430, 1.0
    %v8586 = vadd.f32 %v8436, 1.0
    %v8587 = vadd.f32 %v8440, 1.0
    %v8588 = vadd.f32 %v8446, 1.0
    %v8589 = vadd.f32 %v8450, 1.0
    %v8590 = vadd.f32 %v8456, 1.0
    %v8591 = vadd.f32 %v8460, 1.0
    %v8592 = vmin.f32 %v8386, 0.0
    %v8593 = vmin.f32 %v8390, 0.0
    %v8594 = vmin.f32 %v8396, 0.0
    %v8595 = vmin.f32 %v8400, 0.0
    %v8596 = vmin.f32 %v8406, 0.0
    %v8597 = vmin.f32 %v8410, 0.0
    %v8598 = vmin.f32 %v8416, 0.0
    %v8599 = vmin.f32 %v8420, 0.0
    %v8600 = vmin.f32 %v8426, 0.0
    %v8601 = vmin.f32 %v8430, 0.0
    %v8602 = vmin.f32 %v8436, 0.0
    %v8603 = vmin.f32 %v8440, 0.0
    %v8604 = vmin.f32 %v8446, 0.0
    %v8605 = vmin.f32 %v8450, 0.0
    %v8606 = vmin.f32 %v8456, 0.0
    %v8607 = vmin.f32 %v8460, 0.0
    %v8608 = vmul.f32 %v8592, 1.442695
    %v8609 = vpow.pop %v8608
    %v8610 = vmul.f32 %v8593, 1.442695
    %v8611 = vpow.pop %v8610
    %v8612 = vmul.f32 %v8594, 1.442695
    %v8613 = vpow.pop %v8612
    %v8614 = vmul.f32 %v8595, 1.442695
    %v8615 = vpow.pop %v8614
    %v8616 = vmul.f32 %v8596, 1.442695
    %v8617 = vpow.pop %v8616
    %v8618 = vmul.f32 %v8597, 1.442695
    %v8619 = vpow.pop %v8618
    %v8620 = vmul.f32 %v8598, 1.442695
    %v8621 = vpow.pop %v8620
    %v8622 = vmul.f32 %v8599, 1.442695
    %v8623 = vpow.pop %v8622
    %v8624 = vmul.f32 %v8600, 1.442695
    %v8625 = vpow.pop %v8624
    %v8626 = vmul.f32 %v8601, 1.442695
    %v8627 = vpow.pop %v8626
    %v8628 = vmul.f32 %v8602, 1.442695
    %v8629 = vpow.pop %v8628
    %v8630 = vmul.f32 %v8603, 1.442695
    %v8631 = vpow.pop %v8630
    %v8632 = vmul.f32 %v8604, 1.442695
    %v8633 = vpow.pop %v8632
    %v8634 = vmul.f32 %v8605, 1.442695
    %v8635 = vpow.pop %v8634
    %v8636 = vmul.f32 %v8606, 1.442695
    %v8637 = vpow.pop %v8636
    %v8638 = vmul.f32 %v8607, 1.442695
    %v8639 = vpow.pop %v8638
    %v8640 = vsel %vm8560, %v8576, %v8609
    %v8641 = vsel %vm8561, %v8577, %v8611
    %v8642 = vsel %vm8562, %v8578, %v8613
    %v8643 = vsel %vm8563, %v8579, %v8615
    %v8644 = vsel %vm8564, %v8580, %v8617
    %v8645 = vsel %vm8565, %v8581, %v8619
    %v8646 = vsel %vm8566, %v8582, %v8621
    %v8647 = vsel %vm8567, %v8583, %v8623
    %v8648 = vsel %vm8568, %v8584, %v8625
    %v8649 = vsel %vm8569, %v8585, %v8627
    %v8650 = vsel %vm8570, %v8586, %v8629
    %v8651 = vsel %vm8571, %v8587, %v8631
    %v8652 = vsel %vm8572, %v8588, %v8633
    %v8653 = vsel %vm8573, %v8589, %v8635
    %v8654 = vsel %vm8574, %v8590, %v8637
    %v8655 = vsel %vm8575, %v8591, %v8639
    %v8656 = vpack.c.bf16 %v8392, %v8388
    %v8657 = vpack.c.bf16 %v8402, %v8398
    %v8658 = vpack.c.bf16 %v8412, %v8408
    %v8659 = vpack.c.bf16 %v8422, %v8418
    %v8660 = vpack.c.bf16 %v8432, %v8428
    %v8661 = vpack.c.bf16 %v8442, %v8438
    %v8662 = vpack.c.bf16 %v8452, %v8448
    %v8663 = vpack.c.bf16 %v8462, %v8458
    %v8664 = vpack.c.bf16 %v8641, %v8640
    %v8665 = vpack.c.bf16 %v8643, %v8642
    %v8666 = vpack.c.bf16 %v8645, %v8644
    %v8667 = vpack.c.bf16 %v8647, %v8646
    %v8668 = vpack.c.bf16 %v8649, %v8648
    %v8669 = vpack.c.bf16 %v8651, %v8650
    %v8670 = vpack.c.bf16 %v8653, %v8652
    %v8671 = vpack.c.bf16 %v8655, %v8654
    %8672 = vxpose.xlu0.c.b16.start [1/8] %v8664, 128
    %8673 = vxpose.xlu0.c.b16.cont [2/8] %v8665, 128
    %8674 = vxpose.xlu0.c.b16.cont [3/8] %v8666, 128
    %8675 = vxpose.xlu0.c.b16.cont [4/8] %v8667, 128
    %8676 = vxpose.xlu0.c.b16.cont [5/8] 0, 128
    %8677 = vxpose.xlu0.c.b16.cont [6/8] 0, 128
    %8678 = vxpose.xlu0.c.b16.cont [7/8] 0, 128
    %8679 = vxpose.xlu0.c.b16.end [8/8] 0, 128
    %v8680 = vpop.trf.xlu0
    %v8681 = vpop.trf.xlu0
    %v8682 = vpop.trf.xlu0
    %v8683 = vpop.trf.xlu0
    %v8684 = vpop.trf.xlu0
    %v8685 = vpop.trf.xlu0
    %v8686 = vpop.trf.xlu0
    %v8687 = vpop.trf.xlu0
    %v8689 = vsel %vm864, %v8680, 0
    %v8692 = vsel %vm864, %v8681, 0
    %v8695 = vsel %vm864, %v8682, 0
    %v8698 = vsel %vm864, %v8683, 0
    %v8701 = vsel %vm864, %v8684, 0
    %v8704 = vsel %vm864, %v8685, 0
    %v8707 = vsel %vm864, %v8686, 0
    %v8710 = vsel %vm864, %v8687, 0
    %8712 = vmatprep.subr.bf16.mxu0 %v832
    %8713 = vmatpush1.bf16.msra.mxu0 %v8656
    %8714 = vmatprep.subr.bf16.mxu0 %v832
    %8715 = vmatpush1.bf16.msra.mxu0 %v8657
    %8716 = vmatprep.subr.bf16.mxu0 %v832
    %8717 = vmatpush1.bf16.msra.mxu0 %v8658
    %8718 = vmatprep.subr.bf16.mxu0 %v832
    %8719 = vmatpush1.bf16.msra.mxu0 %v8659
    %8720 = vmatprep.subr.bf16.mxu0 0
    %8721 = vmatpush1.bf16.msra.mxu0 0
    %8722 = vmatprep.subr.bf16.mxu0 0
    %8723 = vmatpush1.bf16.msra.mxu0 0
    %8724 = vmatprep.subr.bf16.mxu0 0
    %8725 = vmatpush1.bf16.msra.mxu0 0
    %8726 = vmatprep.subr.bf16.mxu0 0
    %8727 = vmatpush1.bf16.msra.mxu0 0
    %8728 = vmatprep.subr.bf16.mxu0 0
    %8729 = vmatpush1.bf16.msra.mxu0 0
    %8730 = vmatprep.subr.bf16.mxu0 0
    %8731 = vmatpush1.bf16.msra.mxu0 0
    %8732 = vmatprep.subr.bf16.mxu0 0
    %8733 = vmatpush1.bf16.msra.mxu0 0
    %8734 = vmatprep.subr.bf16.mxu0 0
    %8735 = vmatpush1.bf16.msra.mxu0 0
    %8736 = vmatprep.subr.bf16.mxu0 0
    %8737 = vmatpush1.bf16.msra.mxu0 0
    %8738 = vmatprep.subr.bf16.mxu0 0
    %8739 = vmatpush1.bf16.msra.mxu0 0
    %8740 = vmatprep.subr.bf16.mxu0 0
    %8741 = vmatpush1.bf16.msra.mxu0 0
    %8742 = vmatprep.subr.bf16.mxu0 0
    %8743 = vmatpush1.bf16.msra.mxu0 0
    %8744 = vmatprep.mubr.bf16.mxu0 0
    %8745 = vmatmul.mubr.bf16.gmra.mrb[0].mxu0 %v8689
    %v8746 = vpop.f32.mrb[0].mxu0
    %v8747 = vadd.f32 0.0, %v8746
    %v8748 = vpop.f32.mrb[0].mxu0
    %v8749 = vadd.f32 0.0, %v8748
    %v8750 = vpop.f32.mrb[0].mxu0
    %v8751 = vadd.f32 0.0, %v8750
    %v8752 = vpop.f32.mrb[0].mxu0
    %v8753 = vadd.f32 0.0, %v8752
    %8754 = vmatprep.mubr.bf16.mxu0 0
    %8755 = vmatmul.mubr.bf16.gmra.mrb[0].mxu0 %v8692
    %v8756 = vpop.f32.mrb[0].mxu0
    %v8757 = vadd.f32 0.0, %v8756
    %v8758 = vpop.f32.mrb[0].mxu0
    %v8759 = vadd.f32 0.0, %v8758
    %v8760 = vpop.f32.mrb[0].mxu0
    %v8761 = vadd.f32 0.0, %v8760
    %v8762 = vpop.f32.mrb[0].mxu0
    %v8763 = vadd.f32 0.0, %v8762
    %8764 = vmatprep.mubr.bf16.mxu0 0
    %8765 = vmatmul.mubr.bf16.gmra.mrb[0].mxu0 %v8695
    %v8766 = vpop.f32.mrb[0].mxu0
    %v8767 = vadd.f32 0.0, %v8766
    %v8768 = vpop.f32.mrb[0].mxu0
    %v8769 = vadd.f32 0.0, %v8768
    %v8770 = vpop.f32.mrb[0].mxu0
    %v8771 = vadd.f32 0.0, %v8770
    %v8772 = vpop.f32.mrb[0].mxu0
    %v8773 = vadd.f32 0.0, %v8772
    %8774 = vmatprep.mubr.bf16.mxu0 0
    %8775 = vmatmul.mubr.bf16.gmra.mrb[0].mxu0 %v8698
    %v8776 = vpop.f32.mrb[0].mxu0
    %v8777 = vadd.f32 0.0, %v8776
    %v8778 = vpop.f32.mrb[0].mxu0
    %v8779 = vadd.f32 0.0, %v8778
    %v8780 = vpop.f32.mrb[0].mxu0
    %v8781 = vadd.f32 0.0, %v8780
    %v8782 = vpop.f32.mrb[0].mxu0
    %v8783 = vadd.f32 0.0, %v8782
    %8784 = vmatprep.mubr.bf16.mxu0 0
    %8785 = vmatmul.mubr.bf16.gmra.mrb[0].mxu0 %v8701
    %v8786 = vpop.f32.mrb[0].mxu0
    %v8787 = vadd.f32 0.0, %v8786
    %v8788 = vpop.f32.mrb[0].mxu0
    %v8789 = vadd.f32 0.0, %v8788
    %v8790 = vpop.f32.mrb[0].mxu0
    %v8791 = vadd.f32 0.0, %v8790
    %v8792 = vpop.f32.mrb[0].mxu0
    %v8793 = vadd.f32 0.0, %v8792
    %8794 = vmatprep.mubr.bf16.mxu0 0
    %8795 = vmatmul.mubr.bf16.gmra.mrb[0].mxu0 %v8704
    %v8796 = vpop.f32.mrb[0].mxu0
    %v8797 = vadd.f32 0.0, %v8796
    %v8798 = vpop.f32.mrb[0].mxu0
    %v8799 = vadd.f32 0.0, %v8798
    %v8800 = vpop.f32.mrb[0].mxu0
    %v8801 = vadd.f32 0.0, %v8800
    %v8802 = vpop.f32.mrb[0].mxu0
    %v8803 = vadd.f32 0.0, %v8802
    %8804 = vmatprep.mubr.bf16.mxu0 0
    %8805 = vmatmul.mubr.bf16.gmra.mrb[0].mxu0 %v8707
    %v8806 = vpop.f32.mrb[0].mxu0
    %v8807 = vadd.f32 0.0, %v8806
    %v8808 = vpop.f32.mrb[0].mxu0
    %v8809 = vadd.f32 0.0, %v8808
    %v8810 = vpop.f32.mrb[0].mxu0
    %v8811 = vadd.f32 0.0, %v8810
    %v8812 = vpop.f32.mrb[0].mxu0
    %v8813 = vadd.f32 0.0, %v8812
    %8814 = vmatprep.mubr.bf16.mxu0 0
    %8815 = vmatmul.mubr.bf16.gmra.mrb[0].mxu0 %v8710
    %v8816 = vpop.f32.mrb[0].mxu0
    %v8817 = vadd.f32 0.0, %v8816
    %v8818 = vpop.f32.mrb[0].mxu0
    %v8819 = vadd.f32 0.0, %v8818
    %v8820 = vpop.f32.mrb[0].mxu0
    %v8821 = vadd.f32 0.0, %v8820
    %v8822 = vpop.f32.mrb[0].mxu0
    %v8823 = vadd.f32 0.0, %v8822
    %8824 = vdwg.mxu0
    %8825 = vxpose.xlu0.c.b16.start [1/8] %v8668, 128
    %8826 = vxpose.xlu0.c.b16.cont [2/8] %v8669, 128
    %8827 = vxpose.xlu0.c.b16.cont [3/8] %v8670, 128
    %8828 = vxpose.xlu0.c.b16.cont [4/8] %v8671, 128
    %8829 = vxpose.xlu0.c.b16.cont [5/8] 0, 128
    %8830 = vxpose.xlu0.c.b16.cont [6/8] 0, 128
    %8831 = vxpose.xlu0.c.b16.cont [7/8] 0, 128
    %8832 = vxpose.xlu0.c.b16.end [8/8] 0, 128
    %v8833 = vpop.trf.xlu0
    %v8834 = vpop.trf.xlu0
    %v8835 = vpop.trf.xlu0
    %v8836 = vpop.trf.xlu0
    %v8837 = vpop.trf.xlu0
    %v8838 = vpop.trf.xlu0
    %v8839 = vpop.trf.xlu0
    %v8840 = vpop.trf.xlu0
    %v8842 = vsel %vm864, %v8833, 0
    %v8845 = vsel %vm864, %v8834, 0
    %v8848 = vsel %vm864, %v8835, 0
    %v8851 = vsel %vm864, %v8836, 0
    %v8854 = vsel %vm864, %v8837, 0
    %v8857 = vsel %vm864, %v8838, 0
    %v8860 = vsel %vm864, %v8839, 0
    %v8863 = vsel %vm864, %v8840, 0
    %8865 = vmatprep.subr.bf16.mxu0 %v832
    %8866 = vmatpush1.bf16.msra.mxu0 %v8660
    %8867 = vmatprep.subr.bf16.mxu0 %v832
    %8868 = vmatpush1.bf16.msra.mxu0 %v8661
    %8869 = vmatprep.subr.bf16.mxu0 %v832
    %8870 = vmatpush1.bf16.msra.mxu0 %v8662
    %8871 = vmatprep.subr.bf16.mxu0 %v832
    %8872 = vmatpush1.bf16.msra.mxu0 %v8663
    %8873 = vmatprep.subr.bf16.mxu0 0
    %8874 = vmatpush1.bf16.msra.mxu0 0
    %8875 = vmatprep.subr.bf16.mxu0 0
    %8876 = vmatpush1.bf16.msra.mxu0 0
    %8877 = vmatprep.subr.bf16.mxu0 0
    %8878 = vmatpush1.bf16.msra.mxu0 0
    %8879 = vmatprep.subr.bf16.mxu0 0
    %8880 = vmatpush1.bf16.msra.mxu0 0
    %8881 = vmatprep.subr.bf16.mxu0 0
    %8882 = vmatpush1.bf16.msra.mxu0 0
    %8883 = vmatprep.subr.bf16.mxu0 0
    %8884 = vmatpush1.bf16.msra.mxu0 0
    %8885 = vmatprep.subr.bf16.mxu0 0
    %8886 = vmatpush1.bf16.msra.mxu0 0
    %8887 = vmatprep.subr.bf16.mxu0 0
    %8888 = vmatpush1.bf16.msra.mxu0 0
    %8889 = vmatprep.subr.bf16.mxu0 0
    %8890 = vmatpush1.bf16.msra.mxu0 0
    %8891 = vmatprep.subr.bf16.mxu0 0
    %8892 = vmatpush1.bf16.msra.mxu0 0
    %8893 = vmatprep.subr.bf16.mxu0 0
    %8894 = vmatpush1.bf16.msra.mxu0 0
    %8895 = vmatprep.subr.bf16.mxu0 0
    %8896 = vmatpush1.bf16.msra.mxu0 0
    %8897 = vmatprep.mubr.bf16.mxu0 0
    %8898 = vmatmul.mubr.bf16.gmra.mrb[0].mxu0 %v8842
    %v8899 = vpop.f32.mrb[0].mxu0
    %v8900 = vadd.f32 0.0, %v8899
    %v8901 = vpop.f32.mrb[0].mxu0
    %v8902 = vadd.f32 0.0, %v8901
    %v8903 = vpop.f32.mrb[0].mxu0
    %v8904 = vadd.f32 0.0, %v8903
    %v8905 = vpop.f32.mrb[0].mxu0
    %v8906 = vadd.f32 0.0, %v8905
    %8907 = vmatprep.mubr.bf16.mxu0 0
    %8908 = vmatmul.mubr.bf16.gmra.mrb[0].mxu0 %v8845
    %v8909 = vpop.f32.mrb[0].mxu0
    %v8910 = vadd.f32 0.0, %v8909
    %v8911 = vpop.f32.mrb[0].mxu0
    %v8912 = vadd.f32 0.0, %v8911
    %v8913 = vpop.f32.mrb[0].mxu0
    %v8914 = vadd.f32 0.0, %v8913
    %v8915 = vpop.f32.mrb[0].mxu0
    %v8916 = vadd.f32 0.0, %v8915
    %8917 = vmatprep.mubr.bf16.mxu0 0
    %8918 = vmatmul.mubr.bf16.gmra.mrb[0].mxu0 %v8848
    %v8919 = vpop.f32.mrb[0].mxu0
    %v8920 = vadd.f32 0.0, %v8919
    %v8921 = vpop.f32.mrb[0].mxu0
    %v8922 = vadd.f32 0.0, %v8921
    %v8923 = vpop.f32.mrb[0].mxu0
    %v8924 = vadd.f32 0.0, %v8923
    %v8925 = vpop.f32.mrb[0].mxu0
    %v8926 = vadd.f32 0.0, %v8925
    %8927 = vmatprep.mubr.bf16.mxu0 0
    %8928 = vmatmul.mubr.bf16.gmra.mrb[0].mxu0 %v8851
    %v8929 = vpop.f32.mrb[0].mxu0
    %v8930 = vadd.f32 0.0, %v8929
    %v8931 = vpop.f32.mrb[0].mxu0
    %v8932 = vadd.f32 0.0, %v8931
    %v8933 = vpop.f32.mrb[0].mxu0
    %v8934 = vadd.f32 0.0, %v8933
    %v8935 = vpop.f32.mrb[0].mxu0
    %v8936 = vadd.f32 0.0, %v8935
    %8937 = vmatprep.mubr.bf16.mxu0 0
    %8938 = vmatmul.mubr.bf16.gmra.mrb[0].mxu0 %v8854
    %v8939 = vpop.f32.mrb[0].mxu0
    %v8940 = vadd.f32 0.0, %v8939
    %v8941 = vpop.f32.mrb[0].mxu0
    %v8942 = vadd.f32 0.0, %v8941
    %v8943 = vpop.f32.mrb[0].mxu0
    %v8944 = vadd.f32 0.0, %v8943
    %v8945 = vpop.f32.mrb[0].mxu0
    %v8946 = vadd.f32 0.0, %v8945
    %8947 = vmatprep.mubr.bf16.mxu0 0
    %8948 = vmatmul.mubr.bf16.gmra.mrb[0].mxu0 %v8857
    %v8949 = vpop.f32.mrb[0].mxu0
    %v8950 = vadd.f32 0.0, %v8949
    %v8951 = vpop.f32.mrb[0].mxu0
    %v8952 = vadd.f32 0.0, %v8951
    %v8953 = vpop.f32.mrb[0].mxu0
    %v8954 = vadd.f32 0.0, %v8953
    %v8955 = vpop.f32.mrb[0].mxu0
    %v8956 = vadd.f32 0.0, %v8955
    %8957 = vmatprep.mubr.bf16.mxu0 0
    %8958 = vmatmul.mubr.bf16.gmra.mrb[0].mxu0 %v8860
    %v8959 = vpop.f32.mrb[0].mxu0
    %v8960 = vadd.f32 0.0, %v8959
    %v8961 = vpop.f32.mrb[0].mxu0
    %v8962 = vadd.f32 0.0, %v8961
    %v8963 = vpop.f32.mrb[0].mxu0
    %v8964 = vadd.f32 0.0, %v8963
    %v8965 = vpop.f32.mrb[0].mxu0
    %v8966 = vadd.f32 0.0, %v8965
    %8967 = vmatprep.mubr.bf16.mxu0 0
    %8968 = vmatmul.mubr.bf16.gmra.mrb[0].mxu0 %v8863
    %v8969 = vpop.f32.mrb[0].mxu0
    %v8970 = vadd.f32 0.0, %v8969
    %v8971 = vpop.f32.mrb[0].mxu0
    %v8972 = vadd.f32 0.0, %v8971
    %v8973 = vpop.f32.mrb[0].mxu0
    %v8974 = vadd.f32 0.0, %v8973
    %v8975 = vpop.f32.mrb[0].mxu0
    %v8976 = vadd.f32 0.0, %v8975
    %8977 = vdwg.mxu0
    %v8978 = vmul.f32 %v8747, %v148
    %v8979 = vmul.f32 %v8749, %v149
    %v8980 = vmul.f32 %v8751, %v150
    %v8981 = vmul.f32 %v8753, %v151
    %v8982 = vmul.f32 %v8757, %v152
    %v8983 = vmul.f32 %v8759, %v153
    %v8984 = vmul.f32 %v8761, %v154
    %v8985 = vmul.f32 %v8763, %v155
    %v8986 = vmul.f32 %v8767, %v156
    %v8987 = vmul.f32 %v8769, %v157
    %v8988 = vmul.f32 %v8771, %v158
    %v8989 = vmul.f32 %v8773, %v159
    %v8990 = vmul.f32 %v8777, %v160
    %v8991 = vmul.f32 %v8779, %v161
    %v8992 = vmul.f32 %v8781, %v162
    %v8993 = vmul.f32 %v8783, %v163
    %v8994 = vmul.f32 %v8787, %v164
    %v8995 = vmul.f32 %v8789, %v165
    %v8996 = vmul.f32 %v8791, %v166
    %v8997 = vmul.f32 %v8793, %v167
    %v8998 = vmul.f32 %v8797, %v168
    %v8999 = vmul.f32 %v8799, %v169
    %v9000 = vmul.f32 %v8801, %v170
    %v9001 = vmul.f32 %v8803, %v171
    %v9002 = vmul.f32 %v8807, %v172
    %v9003 = vmul.f32 %v8809, %v173
    %v9004 = vmul.f32 %v8811, %v174
    %v9005 = vmul.f32 %v8813, %v175
    %v9006 = vmul.f32 %v8817, %v176
    %v9007 = vmul.f32 %v8819, %v177
    %v9008 = vmul.f32 %v8821, %v178
    %v9009 = vmul.f32 %v8823, %v179
    %v9010 = vmul.f32 %v8900, %v148
    %v9011 = vmul.f32 %v8902, %v149
    %v9012 = vmul.f32 %v8904, %v150
    %v9013 = vmul.f32 %v8906, %v151
    %v9014 = vmul.f32 %v8910, %v152
    %v9015 = vmul.f32 %v8912, %v153
    %v9016 = vmul.f32 %v8914, %v154
    %v9017 = vmul.f32 %v8916, %v155
    %v9018 = vmul.f32 %v8920, %v156
    %v9019 = vmul.f32 %v8922, %v157
    %v9020 = vmul.f32 %v8924, %v158
    %v9021 = vmul.f32 %v8926, %v159
    %v9022 = vmul.f32 %v8930, %v160
    %v9023 = vmul.f32 %v8932, %v161
    %v9024 = vmul.f32 %v8934, %v162
    %v9025 = vmul.f32 %v8936, %v163
    %v9026 = vmul.f32 %v8940, %v164
    %v9027 = vmul.f32 %v8942, %v165
    %v9028 = vmul.f32 %v8944, %v166
    %v9029 = vmul.f32 %v8946, %v167
    %v9030 = vmul.f32 %v8950, %v168
    %v9031 = vmul.f32 %v8952, %v169
    %v9032 = vmul.f32 %v8954, %v170
    %v9033 = vmul.f32 %v8956, %v171
    %v9034 = vmul.f32 %v8960, %v172
    %v9035 = vmul.f32 %v8962, %v173
    %v9036 = vmul.f32 %v8964, %v174
    %v9037 = vmul.f32 %v8966, %v175
    %v9038 = vmul.f32 %v8970, %v176
    %v9039 = vmul.f32 %v8972, %v177
    %v9040 = vmul.f32 %v8974, %v178
    %v9041 = vmul.f32 %v8976, %v179
    %v9042 = vpack.c.bf16 %v8980, %v8978
    %v9043 = vpack.c.bf16 %v8981, %v8979
    %v9044 = vpack.c.bf16 %v8984, %v8982
    %v9045 = vpack.c.bf16 %v8985, %v8983
    %v9046 = vpack.c.bf16 %v8988, %v8986
    %v9047 = vpack.c.bf16 %v8989, %v8987
    %v9048 = vpack.c.bf16 %v8992, %v8990
    %v9049 = vpack.c.bf16 %v8993, %v8991
    %v9050 = vpack.c.bf16 %v8996, %v8994
    %v9051 = vpack.c.bf16 %v8997, %v8995
    %v9052 = vpack.c.bf16 %v9000, %v8998
    %v9053 = vpack.c.bf16 %v9001, %v8999
    %v9054 = vpack.c.bf16 %v9004, %v9002
    %v9055 = vpack.c.bf16 %v9005, %v9003
    %v9056 = vpack.c.bf16 %v9008, %v9006
    %v9057 = vpack.c.bf16 %v9009, %v9007
    %v9058 = vpack.c.bf16 %v9012, %v9010
    %v9059 = vpack.c.bf16 %v9013, %v9011
    %v9060 = vpack.c.bf16 %v9016, %v9014
    %v9061 = vpack.c.bf16 %v9017, %v9015
    %v9062 = vpack.c.bf16 %v9020, %v9018
    %v9063 = vpack.c.bf16 %v9021, %v9019
    %v9064 = vpack.c.bf16 %v9024, %v9022
    %v9065 = vpack.c.bf16 %v9025, %v9023
    %v9066 = vpack.c.bf16 %v9028, %v9026
    %v9067 = vpack.c.bf16 %v9029, %v9027
    %v9068 = vpack.c.bf16 %v9032, %v9030
    %v9069 = vpack.c.bf16 %v9033, %v9031
    %v9070 = vpack.c.bf16 %v9036, %v9034
    %v9071 = vpack.c.bf16 %v9037, %v9035
    %v9072 = vpack.c.bf16 %v9040, %v9038
    %v9073 = vpack.c.bf16 %v9041, %v9039
    %v9074 = vpack.c.bf16 %v8545, %v8544
    %v9075 = vpack.c.bf16 %v8547, %v8546
    %v9076 = vpack.c.bf16 %v8549, %v8548
    %v9077 = vpack.c.bf16 %v8551, %v8550
    %v9078 = vpack.c.bf16 %v8553, %v8552
    %v9079 = vpack.c.bf16 %v8555, %v8554
    %v9080 = vpack.c.bf16 %v8557, %v8556
    %v9081 = vpack.c.bf16 %v8559, %v8558
    %9082 = vmatprep.subr.bf16.mxu0 %v9043
    %9083 = vmatpush1.bf16.msra.mxu0 %v9042
    %9084 = vmatprep.subr.bf16.mxu0 %v9045
    %9085 = vmatpush1.bf16.msra.mxu0 %v9044
    %9086 = vmatprep.subr.bf16.mxu0 %v9047
    %9087 = vmatpush1.bf16.msra.mxu0 %v9046
    %9088 = vmatprep.subr.bf16.mxu0 %v9049
    %9089 = vmatpush1.bf16.msra.mxu0 %v9048
    %9090 = vmatprep.subr.bf16.mxu0 %v9051
    %9091 = vmatpush1.bf16.msra.mxu0 %v9050
    %9092 = vmatprep.subr.bf16.mxu0 %v9053
    %9093 = vmatpush1.bf16.msra.mxu0 %v9052
    %9094 = vmatprep.subr.bf16.mxu0 %v9055
    %9095 = vmatpush1.bf16.msra.mxu0 %v9054
    %9096 = vmatprep.subr.bf16.mxu0 %v9057
    %9097 = vmatpush1.bf16.msra.mxu0 %v9056
    %9098 = vmatprep.subr.bf16.mxu0 0
    %9099 = vmatpush1.bf16.msra.mxu0 0
    %9100 = vmatprep.subr.bf16.mxu0 0
    %9101 = vmatpush1.bf16.msra.mxu0 0
    %9102 = vmatprep.subr.bf16.mxu0 0
    %9103 = vmatpush1.bf16.msra.mxu0 0
    %9104 = vmatprep.subr.bf16.mxu0 0
    %9105 = vmatpush1.bf16.msra.mxu0 0
    %9106 = vmatprep.subr.bf16.mxu0 0
    %9107 = vmatpush1.bf16.msra.mxu0 0
    %9108 = vmatprep.subr.bf16.mxu0 0
    %9109 = vmatpush1.bf16.msra.mxu0 0
    %9110 = vmatprep.subr.bf16.mxu0 0
    %9111 = vmatpush1.bf16.msra.mxu0 0
    %9112 = vmatprep.subr.bf16.mxu0 0
    %9113 = vmatpush1.bf16.msra.mxu0 0
    %9114 = vmatprep.mubr.bf16.mxu0 0
    %9115 = vmatmul.mubr.bf16.gmra.mrb[0].mxu0 %v9074
    %v9116 = vpop.f32.mrb[0].mxu0
    %v9117 = vadd.f32 0.0, %v9116
    %v9118 = vpop.f32.mrb[0].mxu0
    %v9119 = vadd.f32 0.0, %v9118
    %v9120 = vpop.f32.mrb[0].mxu0
    %v9121 = vadd.f32 0.0, %v9120
    %v9122 = vpop.f32.mrb[0].mxu0
    %v9123 = vadd.f32 0.0, %v9122
    %9124 = vmatprep.mubr.bf16.mxu0 0
    %9125 = vmatmul.mubr.bf16.gmra.mrb[0].mxu0 %v9075
    %v9126 = vpop.f32.mrb[0].mxu0
    %v9127 = vadd.f32 0.0, %v9126
    %v9128 = vpop.f32.mrb[0].mxu0
    %v9129 = vadd.f32 0.0, %v9128
    %v9130 = vpop.f32.mrb[0].mxu0
    %v9131 = vadd.f32 0.0, %v9130
    %v9132 = vpop.f32.mrb[0].mxu0
    %v9133 = vadd.f32 0.0, %v9132
    %9134 = vmatprep.mubr.bf16.mxu0 0
    %9135 = vmatmul.mubr.bf16.gmra.mrb[0].mxu0 %v9076
    %v9136 = vpop.f32.mrb[0].mxu0
    %v9137 = vadd.f32 0.0, %v9136
    %v9138 = vpop.f32.mrb[0].mxu0
    %v9139 = vadd.f32 0.0, %v9138
    %v9140 = vpop.f32.mrb[0].mxu0
    %v9141 = vadd.f32 0.0, %v9140
    %v9142 = vpop.f32.mrb[0].mxu0
    %v9143 = vadd.f32 0.0, %v9142
    %9144 = vmatprep.mubr.bf16.mxu0 0
    %9145 = vmatmul.mubr.bf16.gmra.mrb[0].mxu0 %v9077
    %v9146 = vpop.f32.mrb[0].mxu0
    %v9147 = vadd.f32 0.0, %v9146
    %v9148 = vpop.f32.mrb[0].mxu0
    %v9149 = vadd.f32 0.0, %v9148
    %v9150 = vpop.f32.mrb[0].mxu0
    %v9151 = vadd.f32 0.0, %v9150
    %v9152 = vpop.f32.mrb[0].mxu0
    %v9153 = vadd.f32 0.0, %v9152
    %9154 = vdwg.mxu0
    %9155 = vmatprep.subr.bf16.mxu0 %v9059
    %9156 = vmatpush1.bf16.msra.mxu0 %v9058
    %9157 = vmatprep.subr.bf16.mxu0 %v9061
    %9158 = vmatpush1.bf16.msra.mxu0 %v9060
    %9159 = vmatprep.subr.bf16.mxu0 %v9063
    %9160 = vmatpush1.bf16.msra.mxu0 %v9062
    %9161 = vmatprep.subr.bf16.mxu0 %v9065
    %9162 = vmatpush1.bf16.msra.mxu0 %v9064
    %9163 = vmatprep.subr.bf16.mxu0 %v9067
    %9164 = vmatpush1.bf16.msra.mxu0 %v9066
    %9165 = vmatprep.subr.bf16.mxu0 %v9069
    %9166 = vmatpush1.bf16.msra.mxu0 %v9068
    %9167 = vmatprep.subr.bf16.mxu0 %v9071
    %9168 = vmatpush1.bf16.msra.mxu0 %v9070
    %9169 = vmatprep.subr.bf16.mxu0 %v9073
    %9170 = vmatpush1.bf16.msra.mxu0 %v9072
    %9171 = vmatprep.subr.bf16.mxu0 0
    %9172 = vmatpush1.bf16.msra.mxu0 0
    %9173 = vmatprep.subr.bf16.mxu0 0
    %9174 = vmatpush1.bf16.msra.mxu0 0
    %9175 = vmatprep.subr.bf16.mxu0 0
    %9176 = vmatpush1.bf16.msra.mxu0 0
    %9177 = vmatprep.subr.bf16.mxu0 0
    %9178 = vmatpush1.bf16.msra.mxu0 0
    %9179 = vmatprep.subr.bf16.mxu0 0
    %9180 = vmatpush1.bf16.msra.mxu0 0
    %9181 = vmatprep.subr.bf16.mxu0 0
    %9182 = vmatpush1.bf16.msra.mxu0 0
    %9183 = vmatprep.subr.bf16.mxu0 0
    %9184 = vmatpush1.bf16.msra.mxu0 0
    %9185 = vmatprep.subr.bf16.mxu0 0
    %9186 = vmatpush1.bf16.msra.mxu0 0
    %9187 = vmatprep.mubr.bf16.mxu0 0
    %9188 = vmatmul.mubr.bf16.gmra.mrb[0].mxu0 %v9078
    %v9189 = vpop.f32.mrb[0].mxu0
    %v9190 = vadd.f32 0.0, %v9189
    %v9191 = vpop.f32.mrb[0].mxu0
    %v9192 = vadd.f32 0.0, %v9191
    %v9193 = vpop.f32.mrb[0].mxu0
    %v9194 = vadd.f32 0.0, %v9193
    %v9195 = vpop.f32.mrb[0].mxu0
    %v9196 = vadd.f32 0.0, %v9195
    %9197 = vmatprep.mubr.bf16.mxu0 0
    %9198 = vmatmul.mubr.bf16.gmra.mrb[0].mxu0 %v9079
    %v9199 = vpop.f32.mrb[0].mxu0
    %v9200 = vadd.f32 0.0, %v9199
    %v9201 = vpop.f32.mrb[0].mxu0
    %v9202 = vadd.f32 0.0, %v9201
    %v9203 = vpop.f32.mrb[0].mxu0
    %v9204 = vadd.f32 0.0, %v9203
    %v9205 = vpop.f32.mrb[0].mxu0
    %v9206 = vadd.f32 0.0, %v9205
    %9207 = vmatprep.mubr.bf16.mxu0 0
    %9208 = vmatmul.mubr.bf16.gmra.mrb[0].mxu0 %v9080
    %v9209 = vpop.f32.mrb[0].mxu0
    %v9210 = vadd.f32 0.0, %v9209
    %v9211 = vpop.f32.mrb[0].mxu0
    %v9212 = vadd.f32 0.0, %v9211
    %v9213 = vpop.f32.mrb[0].mxu0
    %v9214 = vadd.f32 0.0, %v9213
    %v9215 = vpop.f32.mrb[0].mxu0
    %v9216 = vadd.f32 0.0, %v9215
    %9217 = vmatprep.mubr.bf16.mxu0 0
    %9218 = vmatmul.mubr.bf16.gmra.mrb[0].mxu0 %v9081
    %v9219 = vpop.f32.mrb[0].mxu0
    %v9220 = vadd.f32 0.0, %v9219
    %v9221 = vpop.f32.mrb[0].mxu0
    %v9222 = vadd.f32 0.0, %v9221
    %v9223 = vpop.f32.mrb[0].mxu0
    %v9224 = vadd.f32 0.0, %v9223
    %v9225 = vpop.f32.mrb[0].mxu0
    %v9226 = vadd.f32 0.0, %v9225
    %9227 = vdwg.mxu0
    %v9228 = vadd.f32 %v9119, 1e-06
    %v9229 = vadd.f32 %v9123, 1e-06
    %v9230 = vadd.f32 %v9129, 1e-06
    %v9231 = vadd.f32 %v9133, 1e-06
    %v9232 = vadd.f32 %v9139, 1e-06
    %v9233 = vadd.f32 %v9143, 1e-06
    %v9234 = vadd.f32 %v9149, 1e-06
    %v9235 = vadd.f32 %v9153, 1e-06
    %v9236 = vadd.f32 %v9192, 1e-06
    %v9237 = vadd.f32 %v9196, 1e-06
    %v9238 = vadd.f32 %v9202, 1e-06
    %v9239 = vadd.f32 %v9206, 1e-06
    %v9240 = vadd.f32 %v9212, 1e-06
    %v9241 = vadd.f32 %v9216, 1e-06
    %v9242 = vadd.f32 %v9222, 1e-06
    %v9243 = vadd.f32 %v9226, 1e-06
    %v9244 = vrcp.pop %v9228
    %v9245 = vrcp.pop %v9229
    %v9246 = vrcp.pop %v9230
    %v9247 = vrcp.pop %v9231
    %v9248 = vrcp.pop %v9232
    %v9249 = vrcp.pop %v9233
    %v9250 = vrcp.pop %v9234
    %v9251 = vrcp.pop %v9235
    %v9252 = vrcp.pop %v9236
    %v9253 = vrcp.pop %v9237
    %v9254 = vrcp.pop %v9238
    %v9255 = vrcp.pop %v9239
    %v9256 = vrcp.pop %v9240
    %v9257 = vrcp.pop %v9241
    %v9258 = vrcp.pop %v9242
    %v9259 = vrcp.pop %v9243
    %v9260 = vmul.f32 %v9117, %v9244
    %v9261 = vmul.f32 %v9121, %v9245
    %v9262 = vmul.f32 %v9127, %v9246
    %v9263 = vmul.f32 %v9131, %v9247
    %v9264 = vmul.f32 %v9137, %v9248
    %v9265 = vmul.f32 %v9141, %v9249
    %v9266 = vmul.f32 %v9147, %v9250
    %v9267 = vmul.f32 %v9151, %v9251
    %v9268 = vmul.f32 %v9190, %v9252
    %v9269 = vmul.f32 %v9194, %v9253
    %v9270 = vmul.f32 %v9200, %v9254
    %v9271 = vmul.f32 %v9204, %v9255
    %v9272 = vmul.f32 %v9210, %v9256
    %v9273 = vmul.f32 %v9214, %v9257
    %v9274 = vmul.f32 %v9220, %v9258
    %v9275 = vmul.f32 %v9224, %v9259
    %v9276 = vpack.c.bf16 %v9261, %v9260
    %v9277 = vpack.c.bf16 %v9263, %v9262
    %v9278 = vpack.c.bf16 %v9265, %v9264
    %v9279 = vpack.c.bf16 %v9267, %v9266
    %v9280 = vpack.c.bf16 %v9269, %v9268
    %v9281 = vpack.c.bf16 %v9271, %v9270
    %v9282 = vpack.c.bf16 %v9273, %v9272
    %v9283 = vpack.c.bf16 %v9275, %v9274
    %v9300 = vunpack.c.l.b16 %v8037
    %v9301 = vunpack.c.l.b16 %v8038
    %v9302 = vunpack.c.l.b16 %v8039
    %v9303 = vunpack.c.l.b16 %v8040
    %v9304 = vunpack.c.l.b16 %v8041
    %v9305 = vunpack.c.l.b16 %v8042
    %v9306 = vunpack.c.l.b16 %v8043
    %v9307 = vunpack.c.l.b16 %v8044
    %v9308 = vunpack.c.l.b16 %v8045
    %v9309 = vunpack.c.l.b16 %v8046
    %v9310 = vunpack.c.l.b16 %v8047
    %v9311 = vunpack.c.l.b16 %v8048
    %v9312 = vunpack.c.l.b16 %v8049
    %v9313 = vunpack.c.l.b16 %v8050
    %v9314 = vunpack.c.l.b16 %v8051
    %v9315 = vunpack.c.l.b16 %v8052
    %v9316 = vpack.c.b16 %v9301, %v9300
    %v9317 = vpack.c.b16 %v9303, %v9302
    %v9318 = vpack.c.b16 %v9305, %v9304
    %v9319 = vpack.c.b16 %v9307, %v9306
    %v9320 = vpack.c.b16 %v9309, %v9308
    %v9321 = vpack.c.b16 %v9311, %v9310
    %v9322 = vpack.c.b16 %v9313, %v9312
    %v9323 = vpack.c.b16 %v9315, %v9314
    %9332 = vmatprep.subr.bf16.mxu0 0
    %9333 = vmatpush1.bf16.msra.mxu0 %v9316
    %9334 = vmatprep.subr.bf16.mxu0 0
    %9335 = vmatpush1.bf16.msra.mxu0 %v9317
    %9336 = vmatprep.subr.bf16.mxu0 0
    %9337 = vmatpush1.bf16.msra.mxu0 %v9318
    %9338 = vmatprep.subr.bf16.mxu0 0
    %9339 = vmatpush1.bf16.msra.mxu0 %v9319
    %9340 = vmatprep.subr.bf16.mxu0 0
    %9341 = vmatpush1.bf16.msra.mxu0 %v9320
    %9342 = vmatprep.subr.bf16.mxu0 0
    %9343 = vmatpush1.bf16.msra.mxu0 %v9321
    %9344 = vmatprep.subr.bf16.mxu0 0
    %9345 = vmatpush1.bf16.msra.mxu0 %v9322
    %9346 = vmatprep.subr.bf16.mxu0 0
    %9347 = vmatpush1.bf16.msra.mxu0 %v9323
    %9348 = vmatprep.subr.bf16.mxu0 0
    %9349 = vmatpush1.bf16.msra.mxu0 0
    %9350 = vmatprep.subr.bf16.mxu0 0
    %9351 = vmatpush1.bf16.msra.mxu0 0
    %9352 = vmatprep.subr.bf16.mxu0 0
    %9353 = vmatpush1.bf16.msra.mxu0 0
    %9354 = vmatprep.subr.bf16.mxu0 0
    %9355 = vmatpush1.bf16.msra.mxu0 0
    %9356 = vmatprep.subr.bf16.mxu0 0
    %9357 = vmatpush1.bf16.msra.mxu0 0
    %9358 = vmatprep.subr.bf16.mxu0 0
    %9359 = vmatpush1.bf16.msra.mxu0 0
    %9360 = vmatprep.subr.bf16.mxu0 0
    %9361 = vmatpush1.bf16.msra.mxu0 0
    %9362 = vmatprep.subr.bf16.mxu0 0
    %9363 = vmatpush1.bf16.msra.mxu0 0
    %9364 = vmatprep.mubr.bf16.mxu0 0
    %9365 = vmatmul.mubr.bf16.gmra.mrb[0].mxu0 %v9276
    %v9366 = vpop.f32.mrb[0].mxu0
    %v9367 = vadd.f32 0.0, %v9366
    %v9368 = vpop.f32.mrb[0].mxu0
    %v9369 = vpop.f32.mrb[0].mxu0
    %v9370 = vadd.f32 0.0, %v9369
    %v9371 = vpop.f32.mrb[0].mxu0
    %9372 = vmatprep.mubr.bf16.mxu0 0
    %9373 = vmatmul.mubr.bf16.gmra.mrb[0].mxu0 %v9277
    %v9374 = vpop.f32.mrb[0].mxu0
    %v9375 = vadd.f32 0.0, %v9374
    %v9376 = vpop.f32.mrb[0].mxu0
    %v9377 = vpop.f32.mrb[0].mxu0
    %v9378 = vadd.f32 0.0, %v9377
    %v9379 = vpop.f32.mrb[0].mxu0
    %9380 = vmatprep.mubr.bf16.mxu0 0
    %9381 = vmatmul.mubr.bf16.gmra.mrb[0].mxu0 %v9278
    %v9382 = vpop.f32.mrb[0].mxu0
    %v9383 = vadd.f32 0.0, %v9382
    %v9384 = vpop.f32.mrb[0].mxu0
    %v9385 = vpop.f32.mrb[0].mxu0
    %v9386 = vadd.f32 0.0, %v9385
    %v9387 = vpop.f32.mrb[0].mxu0
    %9388 = vmatprep.mubr.bf16.mxu0 0
    %9389 = vmatmul.mubr.bf16.gmra.mrb[0].mxu0 %v9279
    %v9390 = vpop.f32.mrb[0].mxu0
    %v9391 = vadd.f32 0.0, %v9390
    %v9392 = vpop.f32.mrb[0].mxu0
    %v9393 = vpop.f32.mrb[0].mxu0
    %v9394 = vadd.f32 0.0, %v9393
    %v9395 = vpop.f32.mrb[0].mxu0
    %9396 = vmatprep.mubr.bf16.mxu0 0
    %9397 = vmatmul.mubr.bf16.gmra.mrb[0].mxu0 %v9280
    %v9398 = vpop.f32.mrb[0].mxu0
    %v9399 = vadd.f32 0.0, %v9398
    %v9400 = vpop.f32.mrb[0].mxu0
    %v9401 = vpop.f32.mrb[0].mxu0
    %v9402 = vadd.f32 0.0, %v9401
    %v9403 = vpop.f32.mrb[0].mxu0
    %9404 = vmatprep.mubr.bf16.mxu0 0
    %9405 = vmatmul.mubr.bf16.gmra.mrb[0].mxu0 %v9281
    %v9406 = vpop.f32.mrb[0].mxu0
    %v9407 = vadd.f32 0.0, %v9406
    %v9408 = vpop.f32.mrb[0].mxu0
    %v9409 = vpop.f32.mrb[0].mxu0
    %v9410 = vadd.f32 0.0, %v9409
    %v9411 = vpop.f32.mrb[0].mxu0
    %9412 = vmatprep.mubr.bf16.mxu0 0
    %9413 = vmatmul.mubr.bf16.gmra.mrb[0].mxu0 %v9282
    %v9414 = vpop.f32.mrb[0].mxu0
    %v9415 = vadd.f32 0.0, %v9414
    %v9416 = vpop.f32.mrb[0].mxu0
    %v9417 = vpop.f32.mrb[0].mxu0
    %v9418 = vadd.f32 0.0, %v9417
    %v9419 = vpop.f32.mrb[0].mxu0
    %9420 = vmatprep.mubr.bf16.mxu0 0
    %9421 = vmatmul.mubr.bf16.gmra.mrb[0].mxu0 %v9283
    %v9422 = vpop.f32.mrb[0].mxu0
    %v9423 = vadd.f32 0.0, %v9422
    %v9424 = vpop.f32.mrb[0].mxu0
    %v9425 = vpop.f32.mrb[0].mxu0
    %v9426 = vadd.f32 0.0, %v9425
    %v9427 = vpop.f32.mrb[0].mxu0
    %9428 = vdwg.mxu0
    %9429 = vadd.xlane.f32.xlu0 %v9367
    %v9430 = vpop.xlane.xlu0 %9429
    %9431 = vadd.xlane.f32.xlu0 %v9370
    %v9432 = vpop.xlane.xlu0 %9431
    %9433 = vadd.xlane.f32.xlu0 %v9375
    %v9434 = vpop.xlane.xlu0 %9433
    %9435 = vadd.xlane.f32.xlu0 %v9378
    %v9436 = vpop.xlane.xlu0 %9435
    %9437 = vadd.xlane.f32.xlu0 %v9383
    %v9438 = vpop.xlane.xlu0 %9437
    %9439 = vadd.xlane.f32.xlu0 %v9386
    %v9440 = vpop.xlane.xlu0 %9439
    %9441 = vadd.xlane.f32.xlu0 %v9391
    %v9442 = vpop.xlane.xlu0 %9441
    %9443 = vadd.xlane.f32.xlu0 %v9394
    %v9444 = vpop.xlane.xlu0 %9443
    %9445 = vadd.xlane.f32.xlu0 %v9399
    %v9446 = vpop.xlane.xlu0 %9445
    %9447 = vadd.xlane.f32.xlu0 %v9402
    %v9448 = vpop.xlane.xlu0 %9447
    %9449 = vadd.xlane.f32.xlu0 %v9407
    %v9450 = vpop.xlane.xlu0 %9449
    %9451 = vadd.xlane.f32.xlu0 %v9410
    %v9452 = vpop.xlane.xlu0 %9451
    %9453 = vadd.xlane.f32.xlu0 %v9415
    %v9454 = vpop.xlane.xlu0 %9453
    %9455 = vadd.xlane.f32.xlu0 %v9418
    %v9456 = vpop.xlane.xlu0 %9455
    %9457 = vadd.xlane.f32.xlu0 %v9423
    %v9458 = vpop.xlane.xlu0 %9457
    %9459 = vadd.xlane.f32.xlu0 %v9426
    %v9460 = vpop.xlane.xlu0 %9459
    %v9461 = vmul.f32 %v9430, %v1638
    %v9462 = vmul.f32 %v9432, %v1638
    %v9463 = vmul.f32 %v9434, %v1638
    %v9464 = vmul.f32 %v9436, %v1638
    %v9465 = vmul.f32 %v9438, %v1638
    %v9466 = vmul.f32 %v9440, %v1638
    %v9467 = vmul.f32 %v9442, %v1638
    %v9468 = vmul.f32 %v9444, %v1638
    %v9469 = vmul.f32 %v9446, %v1638
    %v9470 = vmul.f32 %v9448, %v1638
    %v9471 = vmul.f32 %v9450, %v1638
    %v9472 = vmul.f32 %v9452, %v1638
    %v9473 = vmul.f32 %v9454, %v1638
    %v9474 = vmul.f32 %v9456, %v1638
    %v9475 = vmul.f32 %v9458, %v1638
    %v9476 = vmul.f32 %v9460, %v1638
    %v9477 = vmul.f32 %v9367, %v9367
    %v9478 = vmul.f32 %v9370, %v9370
    %v9479 = vmul.f32 %v9375, %v9375
    %v9480 = vmul.f32 %v9378, %v9378
    %v9481 = vmul.f32 %v9383, %v9383
    %v9482 = vmul.f32 %v9386, %v9386
    %v9483 = vmul.f32 %v9391, %v9391
    %v9484 = vmul.f32 %v9394, %v9394
    %v9485 = vmul.f32 %v9399, %v9399
    %v9486 = vmul.f32 %v9402, %v9402
    %v9487 = vmul.f32 %v9407, %v9407
    %v9488 = vmul.f32 %v9410, %v9410
    %v9489 = vmul.f32 %v9415, %v9415
    %v9490 = vmul.f32 %v9418, %v9418
    %v9491 = vmul.f32 %v9423, %v9423
    %v9492 = vmul.f32 %v9426, %v9426
    %9493 = vadd.xlane.f32.xlu0 %v9477
    %v9494 = vpop.xlane.xlu0 %9493
    %9495 = vadd.xlane.f32.xlu0 %v9478
    %v9496 = vpop.xlane.xlu0 %9495
    %9497 = vadd.xlane.f32.xlu0 %v9479
    %v9498 = vpop.xlane.xlu0 %9497
    %9499 = vadd.xlane.f32.xlu0 %v9480
    %v9500 = vpop.xlane.xlu0 %9499
    %9501 = vadd.xlane.f32.xlu0 %v9481
    %v9502 = vpop.xlane.xlu0 %9501
    %9503 = vadd.xlane.f32.xlu0 %v9482
    %v9504 = vpop.xlane.xlu0 %9503
    %9505 = vadd.xlane.f32.xlu0 %v9483
    %v9506 = vpop.xlane.xlu0 %9505
    %9507 = vadd.xlane.f32.xlu0 %v9484
    %v9508 = vpop.xlane.xlu0 %9507
    %9509 = vadd.xlane.f32.xlu0 %v9485
    %v9510 = vpop.xlane.xlu0 %9509
    %9511 = vadd.xlane.f32.xlu0 %v9486
    %v9512 = vpop.xlane.xlu0 %9511
    %9513 = vadd.xlane.f32.xlu0 %v9487
    %v9514 = vpop.xlane.xlu0 %9513
    %9515 = vadd.xlane.f32.xlu0 %v9488
    %v9516 = vpop.xlane.xlu0 %9515
    %9517 = vadd.xlane.f32.xlu0 %v9489
    %v9518 = vpop.xlane.xlu0 %9517
    %9519 = vadd.xlane.f32.xlu0 %v9490
    %v9520 = vpop.xlane.xlu0 %9519
    %9521 = vadd.xlane.f32.xlu0 %v9491
    %v9522 = vpop.xlane.xlu0 %9521
    %9523 = vadd.xlane.f32.xlu0 %v9492
    %v9524 = vpop.xlane.xlu0 %9523
    %v9525 = vmul.f32 %v9494, %v1638
    %v9526 = vmul.f32 %v9496, %v1638
    %v9527 = vmul.f32 %v9498, %v1638
    %v9528 = vmul.f32 %v9500, %v1638
    %v9529 = vmul.f32 %v9502, %v1638
    %v9530 = vmul.f32 %v9504, %v1638
    %v9531 = vmul.f32 %v9506, %v1638
    %v9532 = vmul.f32 %v9508, %v1638
    %v9533 = vmul.f32 %v9510, %v1638
    %v9534 = vmul.f32 %v9512, %v1638
    %v9535 = vmul.f32 %v9514, %v1638
    %v9536 = vmul.f32 %v9516, %v1638
    %v9537 = vmul.f32 %v9518, %v1638
    %v9538 = vmul.f32 %v9520, %v1638
    %v9539 = vmul.f32 %v9522, %v1638
    %v9540 = vmul.f32 %v9524, %v1638
    %v9541 = vmul.f32 %v9461, %v9461
    %v9542 = vmul.f32 %v9462, %v9462
    %v9543 = vmul.f32 %v9463, %v9463
    %v9544 = vmul.f32 %v9464, %v9464
    %v9545 = vmul.f32 %v9465, %v9465
    %v9546 = vmul.f32 %v9466, %v9466
    %v9547 = vmul.f32 %v9467, %v9467
    %v9548 = vmul.f32 %v9468, %v9468
    %v9549 = vmul.f32 %v9469, %v9469
    %v9550 = vmul.f32 %v9470, %v9470
    %v9551 = vmul.f32 %v9471, %v9471
    %v9552 = vmul.f32 %v9472, %v9472
    %v9553 = vmul.f32 %v9473, %v9473
    %v9554 = vmul.f32 %v9474, %v9474
    %v9555 = vmul.f32 %v9475, %v9475
    %v9556 = vmul.f32 %v9476, %v9476
    %v9557 = vsub.f32 %v9525, %v9541
    %v9558 = vsub.f32 %v9526, %v9542
    %v9559 = vsub.f32 %v9527, %v9543
    %v9560 = vsub.f32 %v9528, %v9544
    %v9561 = vsub.f32 %v9529, %v9545
    %v9562 = vsub.f32 %v9530, %v9546
    %v9563 = vsub.f32 %v9531, %v9547
    %v9564 = vsub.f32 %v9532, %v9548
    %v9565 = vsub.f32 %v9533, %v9549
    %v9566 = vsub.f32 %v9534, %v9550
    %v9567 = vsub.f32 %v9535, %v9551
    %v9568 = vsub.f32 %v9536, %v9552
    %v9569 = vsub.f32 %v9537, %v9553
    %v9570 = vsub.f32 %v9538, %v9554
    %v9571 = vsub.f32 %v9539, %v9555
    %v9572 = vsub.f32 %v9540, %v9556
    %v9573 = vmax.f32 %v9557, 0.0
    %v9574 = vmax.f32 %v9558, 0.0
    %v9575 = vmax.f32 %v9559, 0.0
    %v9576 = vmax.f32 %v9560, 0.0
    %v9577 = vmax.f32 %v9561, 0.0
    %v9578 = vmax.f32 %v9562, 0.0
    %v9579 = vmax.f32 %v9563, 0.0
    %v9580 = vmax.f32 %v9564, 0.0
    %v9581 = vmax.f32 %v9565, 0.0
    %v9582 = vmax.f32 %v9566, 0.0
    %v9583 = vmax.f32 %v9567, 0.0
    %v9584 = vmax.f32 %v9568, 0.0
    %v9585 = vmax.f32 %v9569, 0.0
    %v9586 = vmax.f32 %v9570, 0.0
    %v9587 = vmax.f32 %v9571, 0.0
    %v9588 = vmax.f32 %v9572, 0.0
    %v9589 = vsub.f32 %v9367, %v9461
    %v9590 = vsub.f32 %v9370, %v9462
    %v9591 = vsub.f32 %v9375, %v9463
    %v9592 = vsub.f32 %v9378, %v9464
    %v9593 = vsub.f32 %v9383, %v9465
    %v9594 = vsub.f32 %v9386, %v9466
    %v9595 = vsub.f32 %v9391, %v9467
    %v9596 = vsub.f32 %v9394, %v9468
    %v9597 = vsub.f32 %v9399, %v9469
    %v9598 = vsub.f32 %v9402, %v9470
    %v9599 = vsub.f32 %v9407, %v9471
    %v9600 = vsub.f32 %v9410, %v9472
    %v9601 = vsub.f32 %v9415, %v9473
    %v9602 = vsub.f32 %v9418, %v9474
    %v9603 = vsub.f32 %v9423, %v9475
    %v9604 = vsub.f32 %v9426, %v9476
    %v9605 = vadd.f32 %v9573, 1e-05
    %v9606 = vadd.f32 %v9574, 1e-05
    %v9607 = vadd.f32 %v9575, 1e-05
    %v9608 = vadd.f32 %v9576, 1e-05
    %v9609 = vadd.f32 %v9577, 1e-05
    %v9610 = vadd.f32 %v9578, 1e-05
    %v9611 = vadd.f32 %v9579, 1e-05
    %v9612 = vadd.f32 %v9580, 1e-05
    %v9613 = vadd.f32 %v9581, 1e-05
    %v9614 = vadd.f32 %v9582, 1e-05
    %v9615 = vadd.f32 %v9583, 1e-05
    %v9616 = vadd.f32 %v9584, 1e-05
    %v9617 = vadd.f32 %v9585, 1e-05
    %v9618 = vadd.f32 %v9586, 1e-05
    %v9619 = vadd.f32 %v9587, 1e-05
    %v9620 = vadd.f32 %v9588, 1e-05
    %v9621 = vrsqrt.pop %v9605
    %v9622 = vrsqrt.pop %v9606
    %v9623 = vrsqrt.pop %v9607
    %v9624 = vrsqrt.pop %v9608
    %v9625 = vrsqrt.pop %v9609
    %v9626 = vrsqrt.pop %v9610
    %v9627 = vrsqrt.pop %v9611
    %v9628 = vrsqrt.pop %v9612
    %v9629 = vrsqrt.pop %v9613
    %v9630 = vrsqrt.pop %v9614
    %v9631 = vrsqrt.pop %v9615
    %v9632 = vrsqrt.pop %v9616
    %v9633 = vrsqrt.pop %v9617
    %v9634 = vrsqrt.pop %v9618
    %v9635 = vrsqrt.pop %v9619
    %v9636 = vrsqrt.pop %v9620
    %v9637 = vmul.f32 %v9589, %v9621
    %v9638 = vmul.f32 %v9590, %v9622
    %v9639 = vmul.f32 %v9591, %v9623
    %v9640 = vmul.f32 %v9592, %v9624
    %v9641 = vmul.f32 %v9593, %v9625
    %v9642 = vmul.f32 %v9594, %v9626
    %v9643 = vmul.f32 %v9595, %v9627
    %v9644 = vmul.f32 %v9596, %v9628
    %v9645 = vmul.f32 %v9597, %v9629
    %v9646 = vmul.f32 %v9598, %v9630
    %v9647 = vmul.f32 %v9599, %v9631
    %v9648 = vmul.f32 %v9600, %v9632
    %v9649 = vmul.f32 %v9601, %v9633
    %v9650 = vmul.f32 %v9602, %v9634
    %v9651 = vmul.f32 %v9603, %v9635
    %v9652 = vmul.f32 %v9604, %v9636
    %v9653 = vlaneseq
    %v9654 = vshrl.u32 %v9653, 7
    %v9655 = vsub.s32 0, %v9654
    %v9656 = vrot.slane %v8117, %v9655
    %v9657 = vmul.f32 %v9637, %v9656
    %v9658 = vmul.f32 %v9638, %v9656
    %v9659 = vmul.f32 %v9639, %v9656
    %v9660 = vmul.f32 %v9640, %v9656
    %v9661 = vmul.f32 %v9641, %v9656
    %v9662 = vmul.f32 %v9642, %v9656
    %v9663 = vmul.f32 %v9643, %v9656
    %v9664 = vmul.f32 %v9644, %v9656
    %v9665 = vmul.f32 %v9645, %v9656
    %v9666 = vmul.f32 %v9646, %v9656
    %v9667 = vmul.f32 %v9647, %v9656
    %v9668 = vmul.f32 %v9648, %v9656
    %v9669 = vmul.f32 %v9649, %v9656
    %v9670 = vmul.f32 %v9650, %v9656
    %v9671 = vmul.f32 %v9651, %v9656
    %v9672 = vmul.f32 %v9652, %v9656
    %v9673 = vlaneseq
    %v9674 = vshrl.u32 %v9673, 7
    %v9675 = vsub.s32 1, %v9674
    %v9676 = vrot.slane %v8117, %v9675
    %v9677 = vadd.f32 %v9657, %v9676
    %v9678 = vadd.f32 %v9658, %v9676
    %v9679 = vadd.f32 %v9659, %v9676
    %v9680 = vadd.f32 %v9660, %v9676
    %v9681 = vadd.f32 %v9661, %v9676
    %v9682 = vadd.f32 %v9662, %v9676
    %v9683 = vadd.f32 %v9663, %v9676
    %v9684 = vadd.f32 %v9664, %v9676
    %v9685 = vadd.f32 %v9665, %v9676
    %v9686 = vadd.f32 %v9666, %v9676
    %v9687 = vadd.f32 %v9667, %v9676
    %v9688 = vadd.f32 %v9668, %v9676
    %v9689 = vadd.f32 %v9669, %v9676
    %v9690 = vadd.f32 %v9670, %v9676
    %v9691 = vadd.f32 %v9671, %v9676
    %v9692 = vadd.f32 %v9672, %v9676
    %v9693 = vpack.c.bf16 %v9678, %v9677
    %v9694 = vpack.c.bf16 %v9680, %v9679
    %v9695 = vpack.c.bf16 %v9682, %v9681
    %v9696 = vpack.c.bf16 %v9684, %v9683
    %v9697 = vpack.c.bf16 %v9686, %v9685
    %v9698 = vpack.c.bf16 %v9688, %v9687
    %v9699 = vpack.c.bf16 %v9690, %v9689
    %v9700 = vpack.c.bf16 %v9692, %v9691
    %v9717 = vunpack.c.l.b16 %v8069
    %v9718 = vunpack.c.h.b16 %v8069
    %v9719 = vunpack.c.l.b16 %v8070
    %v9720 = vunpack.c.h.b16 %v8070
    %v9721 = vunpack.c.l.b16 %v8071
    %v9722 = vunpack.c.h.b16 %v8071
    %v9723 = vunpack.c.l.b16 %v8072
    %v9724 = vunpack.c.h.b16 %v8072
    %v9725 = vunpack.c.l.b16 %v8073
    %v9726 = vunpack.c.h.b16 %v8073
    %v9727 = vunpack.c.l.b16 %v8074
    %v9728 = vunpack.c.h.b16 %v8074
    %v9729 = vunpack.c.l.b16 %v8075
    %v9730 = vunpack.c.h.b16 %v8075
    %v9731 = vunpack.c.l.b16 %v8076
    %v9732 = vunpack.c.h.b16 %v8076
    %v9733 = vunpack.c.l.b16 %v8077
    %v9734 = vunpack.c.h.b16 %v8077
    %v9735 = vunpack.c.l.b16 %v8078
    %v9736 = vunpack.c.h.b16 %v8078
    %v9737 = vunpack.c.l.b16 %v8079
    %v9738 = vunpack.c.h.b16 %v8079
    %v9739 = vunpack.c.l.b16 %v8080
    %v9740 = vunpack.c.h.b16 %v8080
    %v9741 = vunpack.c.l.b16 %v8081
    %v9742 = vunpack.c.h.b16 %v8081
    %v9743 = vunpack.c.l.b16 %v8082
    %v9744 = vunpack.c.h.b16 %v8082
    %v9745 = vunpack.c.l.b16 %v8083
    %v9746 = vunpack.c.h.b16 %v8083
    %v9747 = vunpack.c.l.b16 %v8084
    %v9748 = vunpack.c.h.b16 %v8084
    %v9749 = vpack.c.b16 %v9719, %v9717
    %v9750 = vpack.c.b16 %v9720, %v9718
    %v9751 = vpack.c.b16 %v9723, %v9721
    %v9752 = vpack.c.b16 %v9724, %v9722
    %v9753 = vpack.c.b16 %v9727, %v9725
    %v9754 = vpack.c.b16 %v9728, %v9726
    %v9755 = vpack.c.b16 %v9731, %v9729
    %v9756 = vpack.c.b16 %v9732, %v9730
    %v9757 = vpack.c.b16 %v9735, %v9733
    %v9758 = vpack.c.b16 %v9736, %v9734
    %v9759 = vpack.c.b16 %v9739, %v9737
    %v9760 = vpack.c.b16 %v9740, %v9738
    %v9761 = vpack.c.b16 %v9743, %v9741
    %v9762 = vpack.c.b16 %v9744, %v9742
    %v9763 = vpack.c.b16 %v9747, %v9745
    %v9764 = vpack.c.b16 %v9748, %v9746
    %9781 = vmatprep.subr.bf16.mxu0 %v9750
    %9782 = vmatpush1.bf16.msra.mxu0 %v9749
    %9783 = vmatprep.subr.bf16.mxu0 %v9752
    %9784 = vmatpush1.bf16.msra.mxu0 %v9751
    %9785 = vmatprep.subr.bf16.mxu0 %v9754
    %9786 = vmatpush1.bf16.msra.mxu0 %v9753
    %9787 = vmatprep.subr.bf16.mxu0 %v9756
    %9788 = vmatpush1.bf16.msra.mxu0 %v9755
    %9789 = vmatprep.subr.bf16.mxu0 %v9758
    %9790 = vmatpush1.bf16.msra.mxu0 %v9757
    %9791 = vmatprep.subr.bf16.mxu0 %v9760
    %9792 = vmatpush1.bf16.msra.mxu0 %v9759
    %9793 = vmatprep.subr.bf16.mxu0 %v9762
    %9794 = vmatpush1.bf16.msra.mxu0 %v9761
    %9795 = vmatprep.subr.bf16.mxu0 %v9764
    %9796 = vmatpush1.bf16.msra.mxu0 %v9763
    %9797 = vmatprep.subr.bf16.mxu0 0
    %9798 = vmatpush1.bf16.msra.mxu0 0
    %9799 = vmatprep.subr.bf16.mxu0 0
    %9800 = vmatpush1.bf16.msra.mxu0 0
    %9801 = vmatprep.subr.bf16.mxu0 0
    %9802 = vmatpush1.bf16.msra.mxu0 0
    %9803 = vmatprep.subr.bf16.mxu0 0
    %9804 = vmatpush1.bf16.msra.mxu0 0
    %9805 = vmatprep.subr.bf16.mxu0 0
    %9806 = vmatpush1.bf16.msra.mxu0 0
    %9807 = vmatprep.subr.bf16.mxu0 0
    %9808 = vmatpush1.bf16.msra.mxu0 0
    %9809 = vmatprep.subr.bf16.mxu0 0
    %9810 = vmatpush1.bf16.msra.mxu0 0
    %9811 = vmatprep.subr.bf16.mxu0 0
    %9812 = vmatpush1.bf16.msra.mxu0 0
    %9813 = vmatprep.mubr.bf16.mxu0 0
    %9814 = vmatmul.mubr.bf16.gmra.mrb[0].mxu0 %v9693
    %v9815 = vpop.f32.mrb[0].mxu0
    %v9816 = vadd.f32 0.0, %v9815
    %v9817 = vpop.f32.mrb[0].mxu0
    %v9818 = vadd.f32 0.0, %v9817
    %v9819 = vpop.f32.mrb[0].mxu0
    %v9820 = vadd.f32 0.0, %v9819
    %v9821 = vpop.f32.mrb[0].mxu0
    %v9822 = vadd.f32 0.0, %v9821
    %9823 = vmatprep.mubr.bf16.mxu0 0
    %9824 = vmatmul.mubr.bf16.gmra.mrb[0].mxu0 %v9694
    %v9825 = vpop.f32.mrb[0].mxu0
    %v9826 = vadd.f32 0.0, %v9825
    %v9827 = vpop.f32.mrb[0].mxu0
    %v9828 = vadd.f32 0.0, %v9827
    %v9829 = vpop.f32.mrb[0].mxu0
    %v9830 = vadd.f32 0.0, %v9829
    %v9831 = vpop.f32.mrb[0].mxu0
    %v9832 = vadd.f32 0.0, %v9831
    %9833 = vmatprep.mubr.bf16.mxu0 0
    %9834 = vmatmul.mubr.bf16.gmra.mrb[0].mxu0 %v9695
    %v9835 = vpop.f32.mrb[0].mxu0
    %v9836 = vadd.f32 0.0, %v9835
    %v9837 = vpop.f32.mrb[0].mxu0
    %v9838 = vadd.f32 0.0, %v9837
    %v9839 = vpop.f32.mrb[0].mxu0
    %v9840 = vadd.f32 0.0, %v9839
    %v9841 = vpop.f32.mrb[0].mxu0
    %v9842 = vadd.f32 0.0, %v9841
    %9843 = vmatprep.mubr.bf16.mxu0 0
    %9844 = vmatmul.mubr.bf16.gmra.mrb[0].mxu0 %v9696
    %v9845 = vpop.f32.mrb[0].mxu0
    %v9846 = vadd.f32 0.0, %v9845
    %v9847 = vpop.f32.mrb[0].mxu0
    %v9848 = vadd.f32 0.0, %v9847
    %v9849 = vpop.f32.mrb[0].mxu0
    %v9850 = vadd.f32 0.0, %v9849
    %v9851 = vpop.f32.mrb[0].mxu0
    %v9852 = vadd.f32 0.0, %v9851
    %9853 = vmatprep.mubr.bf16.mxu0 0
    %9854 = vmatmul.mubr.bf16.gmra.mrb[0].mxu0 %v9697
    %v9855 = vpop.f32.mrb[0].mxu0
    %v9856 = vadd.f32 0.0, %v9855
    %v9857 = vpop.f32.mrb[0].mxu0
    %v9858 = vadd.f32 0.0, %v9857
    %v9859 = vpop.f32.mrb[0].mxu0
    %v9860 = vadd.f32 0.0, %v9859
    %v9861 = vpop.f32.mrb[0].mxu0
    %v9862 = vadd.f32 0.0, %v9861
    %9863 = vmatprep.mubr.bf16.mxu0 0
    %9864 = vmatmul.mubr.bf16.gmra.mrb[0].mxu0 %v9698
    %v9865 = vpop.f32.mrb[0].mxu0
    %v9866 = vadd.f32 0.0, %v9865
    %v9867 = vpop.f32.mrb[0].mxu0
    %v9868 = vadd.f32 0.0, %v9867
    %v9869 = vpop.f32.mrb[0].mxu0
    %v9870 = vadd.f32 0.0, %v9869
    %v9871 = vpop.f32.mrb[0].mxu0
    %v9872 = vadd.f32 0.0, %v9871
    %9873 = vmatprep.mubr.bf16.mxu0 0
    %9874 = vmatmul.mubr.bf16.gmra.mrb[0].mxu0 %v9699
    %v9875 = vpop.f32.mrb[0].mxu0
    %v9876 = vadd.f32 0.0, %v9875
    %v9877 = vpop.f32.mrb[0].mxu0
    %v9878 = vadd.f32 0.0, %v9877
    %v9879 = vpop.f32.mrb[0].mxu0
    %v9880 = vadd.f32 0.0, %v9879
    %v9881 = vpop.f32.mrb[0].mxu0
    %v9882 = vadd.f32 0.0, %v9881
    %9883 = vmatprep.mubr.bf16.mxu0 0
    %9884 = vmatmul.mubr.bf16.gmra.mrb[0].mxu0 %v9700
    %v9885 = vpop.f32.mrb[0].mxu0
    %v9886 = vadd.f32 0.0, %v9885
    %v9887 = vpop.f32.mrb[0].mxu0
    %v9888 = vadd.f32 0.0, %v9887
    %v9889 = vpop.f32.mrb[0].mxu0
    %v9890 = vadd.f32 0.0, %v9889
    %v9891 = vpop.f32.mrb[0].mxu0
    %v9892 = vadd.f32 0.0, %v9891
    %9893 = vdwg.mxu0
    %v9910 = vunpack.c.l.b16 %v8053
    %v9911 = vunpack.c.h.b16 %v8053
    %v9912 = vunpack.c.l.b16 %v8054
    %v9913 = vunpack.c.h.b16 %v8054
    %v9914 = vunpack.c.l.b16 %v8055
    %v9915 = vunpack.c.h.b16 %v8055
    %v9916 = vunpack.c.l.b16 %v8056
    %v9917 = vunpack.c.h.b16 %v8056
    %v9918 = vunpack.c.l.b16 %v8057
    %v9919 = vunpack.c.h.b16 %v8057
    %v9920 = vunpack.c.l.b16 %v8058
    %v9921 = vunpack.c.h.b16 %v8058
    %v9922 = vunpack.c.l.b16 %v8059
    %v9923 = vunpack.c.h.b16 %v8059
    %v9924 = vunpack.c.l.b16 %v8060
    %v9925 = vunpack.c.h.b16 %v8060
    %v9926 = vunpack.c.l.b16 %v8061
    %v9927 = vunpack.c.h.b16 %v8061
    %v9928 = vunpack.c.l.b16 %v8062
    %v9929 = vunpack.c.h.b16 %v8062
    %v9930 = vunpack.c.l.b16 %v8063
    %v9931 = vunpack.c.h.b16 %v8063
    %v9932 = vunpack.c.l.b16 %v8064
    %v9933 = vunpack.c.h.b16 %v8064
    %v9934 = vunpack.c.l.b16 %v8065
    %v9935 = vunpack.c.h.b16 %v8065
    %v9936 = vunpack.c.l.b16 %v8066
    %v9937 = vunpack.c.h.b16 %v8066
    %v9938 = vunpack.c.l.b16 %v8067
    %v9939 = vunpack.c.h.b16 %v8067
    %v9940 = vunpack.c.l.b16 %v8068
    %v9941 = vunpack.c.h.b16 %v8068
    %v9942 = vpack.c.b16 %v9912, %v9910
    %v9943 = vpack.c.b16 %v9913, %v9911
    %v9944 = vpack.c.b16 %v9916, %v9914
    %v9945 = vpack.c.b16 %v9917, %v9915
    %v9946 = vpack.c.b16 %v9920, %v9918
    %v9947 = vpack.c.b16 %v9921, %v9919
    %v9948 = vpack.c.b16 %v9924, %v9922
    %v9949 = vpack.c.b16 %v9925, %v9923
    %v9950 = vpack.c.b16 %v9928, %v9926
    %v9951 = vpack.c.b16 %v9929, %v9927
    %v9952 = vpack.c.b16 %v9932, %v9930
    %v9953 = vpack.c.b16 %v9933, %v9931
    %v9954 = vpack.c.b16 %v9936, %v9934
    %v9955 = vpack.c.b16 %v9937, %v9935
    %v9956 = vpack.c.b16 %v9940, %v9938
    %v9957 = vpack.c.b16 %v9941, %v9939
    %9974 = vmatprep.subr.bf16.mxu0 %v9943
    %9975 = vmatpush1.bf16.msra.mxu0 %v9942
    %9976 = vmatprep.subr.bf16.mxu0 %v9945
    %9977 = vmatpush1.bf16.msra.mxu0 %v9944
    %9978 = vmatprep.subr.bf16.mxu0 %v9947
    %9979 = vmatpush1.bf16.msra.mxu0 %v9946
    %9980 = vmatprep.subr.bf16.mxu0 %v9949
    %9981 = vmatpush1.bf16.msra.mxu0 %v9948
    %9982 = vmatprep.subr.bf16.mxu0 %v9951
    %9983 = vmatpush1.bf16.msra.mxu0 %v9950
    %9984 = vmatprep.subr.bf16.mxu0 %v9953
    %9985 = vmatpush1.bf16.msra.mxu0 %v9952
    %9986 = vmatprep.subr.bf16.mxu0 %v9955
    %9987 = vmatpush1.bf16.msra.mxu0 %v9954
    %9988 = vmatprep.subr.bf16.mxu0 %v9957
    %9989 = vmatpush1.bf16.msra.mxu0 %v9956
    %9990 = vmatprep.subr.bf16.mxu0 0
    %9991 = vmatpush1.bf16.msra.mxu0 0
    %9992 = vmatprep.subr.bf16.mxu0 0
    %9993 = vmatpush1.bf16.msra.mxu0 0
    %9994 = vmatprep.subr.bf16.mxu0 0
    %9995 = vmatpush1.bf16.msra.mxu0 0
    %9996 = vmatprep.subr.bf16.mxu0 0
    %9997 = vmatpush1.bf16.msra.mxu0 0
    %9998 = vmatprep.subr.bf16.mxu0 0
    %9999 = vmatpush1.bf16.msra.mxu0 0
    %10000 = vmatprep.subr.bf16.mxu0 0
    %10001 = vmatpush1.bf16.msra.mxu0 0
    %10002 = vmatprep.subr.bf16.mxu0 0
    %10003 = vmatpush1.bf16.msra.mxu0 0
    %10004 = vmatprep.subr.bf16.mxu0 0
    %10005 = vmatpush1.bf16.msra.mxu0 0
    %10006 = vmatprep.mubr.bf16.mxu0 0
    %10007 = vmatmul.mubr.bf16.gmra.mrb[0].mxu0 %v5515
    %v10008 = vpop.f32.mrb[0].mxu0
    %v10009 = vadd.f32 %v9816, %v10008
    %v10010 = vpop.f32.mrb[0].mxu0
    %v10011 = vadd.f32 %v9818, %v10010
    %v10012 = vpop.f32.mrb[0].mxu0
    %v10013 = vadd.f32 %v9820, %v10012
    %v10014 = vpop.f32.mrb[0].mxu0
    %v10015 = vadd.f32 %v9822, %v10014
    %10016 = vmatprep.mubr.bf16.mxu0 0
    %10017 = vmatmul.mubr.bf16.gmra.mrb[0].mxu0 %v5516
    %v10018 = vpop.f32.mrb[0].mxu0
    %v10019 = vadd.f32 %v9826, %v10018
    %v10020 = vpop.f32.mrb[0].mxu0
    %v10021 = vadd.f32 %v9828, %v10020
    %v10022 = vpop.f32.mrb[0].mxu0
    %v10023 = vadd.f32 %v9830, %v10022
    %v10024 = vpop.f32.mrb[0].mxu0
    %v10025 = vadd.f32 %v9832, %v10024
    %10026 = vmatprep.mubr.bf16.mxu0 0
    %10027 = vmatmul.mubr.bf16.gmra.mrb[0].mxu0 %v5517
    %v10028 = vpop.f32.mrb[0].mxu0
    %v10029 = vadd.f32 %v9836, %v10028
    %v10030 = vpop.f32.mrb[0].mxu0
    %v10031 = vadd.f32 %v9838, %v10030
    %v10032 = vpop.f32.mrb[0].mxu0
    %v10033 = vadd.f32 %v9840, %v10032
    %v10034 = vpop.f32.mrb[0].mxu0
    %v10035 = vadd.f32 %v9842, %v10034
    %10036 = vmatprep.mubr.bf16.mxu0 0
    %10037 = vmatmul.mubr.bf16.gmra.mrb[0].mxu0 %v5518
    %v10038 = vpop.f32.mrb[0].mxu0
    %v10039 = vadd.f32 %v9846, %v10038
    %v10040 = vpop.f32.mrb[0].mxu0
    %v10041 = vadd.f32 %v9848, %v10040
    %v10042 = vpop.f32.mrb[0].mxu0
    %v10043 = vadd.f32 %v9850, %v10042
    %v10044 = vpop.f32.mrb[0].mxu0
    %v10045 = vadd.f32 %v9852, %v10044
    %10046 = vmatprep.mubr.bf16.mxu0 0
    %10047 = vmatmul.mubr.bf16.gmra.mrb[0].mxu0 %v5519
    %v10048 = vpop.f32.mrb[0].mxu0
    %v10049 = vadd.f32 %v9856, %v10048
    %v10050 = vpop.f32.mrb[0].mxu0
    %v10051 = vadd.f32 %v9858, %v10050
    %v10052 = vpop.f32.mrb[0].mxu0
    %v10053 = vadd.f32 %v9860, %v10052
    %v10054 = vpop.f32.mrb[0].mxu0
    %v10055 = vadd.f32 %v9862, %v10054
    %10056 = vmatprep.mubr.bf16.mxu0 0
    %10057 = vmatmul.mubr.bf16.gmra.mrb[0].mxu0 %v5520
    %v10058 = vpop.f32.mrb[0].mxu0
    %v10059 = vadd.f32 %v9866, %v10058
    %v10060 = vpop.f32.mrb[0].mxu0
    %v10061 = vadd.f32 %v9868, %v10060
    %v10062 = vpop.f32.mrb[0].mxu0
    %v10063 = vadd.f32 %v9870, %v10062
    %v10064 = vpop.f32.mrb[0].mxu0
    %v10065 = vadd.f32 %v9872, %v10064
    %10066 = vmatprep.mubr.bf16.mxu0 0
    %10067 = vmatmul.mubr.bf16.gmra.mrb[0].mxu0 %v5521
    %v10068 = vpop.f32.mrb[0].mxu0
    %v10069 = vadd.f32 %v9876, %v10068
    %v10070 = vpop.f32.mrb[0].mxu0
    %v10071 = vadd.f32 %v9878, %v10070
    %v10072 = vpop.f32.mrb[0].mxu0
    %v10073 = vadd.f32 %v9880, %v10072
    %v10074 = vpop.f32.mrb[0].mxu0
    %v10075 = vadd.f32 %v9882, %v10074
    %10076 = vmatprep.mubr.bf16.mxu0 0
    %10077 = vmatmul.mubr.bf16.gmra.mrb[0].mxu0 %v5522
    %v10078 = vpop.f32.mrb[0].mxu0
    %v10079 = vadd.f32 %v9886, %v10078
    %v10080 = vpop.f32.mrb[0].mxu0
    %v10081 = vadd.f32 %v9888, %v10080
    %v10082 = vpop.f32.mrb[0].mxu0
    %v10083 = vadd.f32 %v9890, %v10082
    %v10084 = vpop.f32.mrb[0].mxu0
    %v10085 = vadd.f32 %v9892, %v10084
    %10086 = vdwg.mxu0
    %v10087 = vmax.f32 %v10009, 0.0
    %v10088 = vmax.f32 %v10011, 0.0
    %v10089 = vmax.f32 %v10013, 0.0
    %v10090 = vmax.f32 %v10015, 0.0
    %v10091 = vmax.f32 %v10019, 0.0
    %v10092 = vmax.f32 %v10021, 0.0
    %v10093 = vmax.f32 %v10023, 0.0
    %v10094 = vmax.f32 %v10025, 0.0
    %v10095 = vmax.f32 %v10029, 0.0
    %v10096 = vmax.f32 %v10031, 0.0
    %v10097 = vmax.f32 %v10033, 0.0
    %v10098 = vmax.f32 %v10035, 0.0
    %v10099 = vmax.f32 %v10039, 0.0
    %v10100 = vmax.f32 %v10041, 0.0
    %v10101 = vmax.f32 %v10043, 0.0
    %v10102 = vmax.f32 %v10045, 0.0
    %v10103 = vmax.f32 %v10049, 0.0
    %v10104 = vmax.f32 %v10051, 0.0
    %v10105 = vmax.f32 %v10053, 0.0
    %v10106 = vmax.f32 %v10055, 0.0
    %v10107 = vmax.f32 %v10059, 0.0
    %v10108 = vmax.f32 %v10061, 0.0
    %v10109 = vmax.f32 %v10063, 0.0
    %v10110 = vmax.f32 %v10065, 0.0
    %v10111 = vmax.f32 %v10069, 0.0
    %v10112 = vmax.f32 %v10071, 0.0
    %v10113 = vmax.f32 %v10073, 0.0
    %v10114 = vmax.f32 %v10075, 0.0
    %v10115 = vmax.f32 %v10079, 0.0
    %v10116 = vmax.f32 %v10081, 0.0
    %v10117 = vmax.f32 %v10083, 0.0
    %v10118 = vmax.f32 %v10085, 0.0
    %v10119 = vpack.c.bf16 %v10089, %v10087
    %v10120 = vpack.c.bf16 %v10090, %v10088
    %v10121 = vpack.c.bf16 %v10093, %v10091
    %v10122 = vpack.c.bf16 %v10094, %v10092
    %v10123 = vpack.c.bf16 %v10097, %v10095
    %v10124 = vpack.c.bf16 %v10098, %v10096
    %v10125 = vpack.c.bf16 %v10101, %v10099
    %v10126 = vpack.c.bf16 %v10102, %v10100
    %v10127 = vpack.c.bf16 %v10105, %v10103
    %v10128 = vpack.c.bf16 %v10106, %v10104
    %v10129 = vpack.c.bf16 %v10109, %v10107
    %v10130 = vpack.c.bf16 %v10110, %v10108
    %v10131 = vpack.c.bf16 %v10113, %v10111
    %v10132 = vpack.c.bf16 %v10114, %v10112
    %v10133 = vpack.c.bf16 %v10117, %v10115
    %v10134 = vpack.c.bf16 %v10118, %v10116
    %v10167 = vunpack.c.l.b16 %v8085
    %v10168 = vunpack.c.l.b16 %v8086
    %v10169 = vunpack.c.l.b16 %v8087
    %v10170 = vunpack.c.l.b16 %v8088
    %v10171 = vunpack.c.l.b16 %v8089
    %v10172 = vunpack.c.l.b16 %v8090
    %v10173 = vunpack.c.l.b16 %v8091
    %v10174 = vunpack.c.l.b16 %v8092
    %v10175 = vunpack.c.l.b16 %v8093
    %v10176 = vunpack.c.l.b16 %v8094
    %v10177 = vunpack.c.l.b16 %v8095
    %v10178 = vunpack.c.l.b16 %v8096
    %v10179 = vunpack.c.l.b16 %v8097
    %v10180 = vunpack.c.l.b16 %v8098
    %v10181 = vunpack.c.l.b16 %v8099
    %v10182 = vunpack.c.l.b16 %v8100
    %v10183 = vunpack.c.l.b16 %v8101
    %v10184 = vunpack.c.l.b16 %v8102
    %v10185 = vunpack.c.l.b16 %v8103
    %v10186 = vunpack.c.l.b16 %v8104
    %v10187 = vunpack.c.l.b16 %v8105
    %v10188 = vunpack.c.l.b16 %v8106
    %v10189 = vunpack.c.l.b16 %v8107
    %v10190 = vunpack.c.l.b16 %v8108
    %v10191 = vunpack.c.l.b16 %v8109
    %v10192 = vunpack.c.l.b16 %v8110
    %v10193 = vunpack.c.l.b16 %v8111
    %v10194 = vunpack.c.l.b16 %v8112
    %v10195 = vunpack.c.l.b16 %v8113
    %v10196 = vunpack.c.l.b16 %v8114
    %v10197 = vunpack.c.l.b16 %v8115
    %v10198 = vunpack.c.l.b16 %v8116
    %v10199 = vpack.c.b16 %v10168, %v10167
    %v10200 = vpack.c.b16 %v10170, %v10169
    %v10201 = vpack.c.b16 %v10172, %v10171
    %v10202 = vpack.c.b16 %v10174, %v10173
    %v10203 = vpack.c.b16 %v10176, %v10175
    %v10204 = vpack.c.b16 %v10178, %v10177
    %v10205 = vpack.c.b16 %v10180, %v10179
    %v10206 = vpack.c.b16 %v10182, %v10181
    %v10207 = vpack.c.b16 %v10184, %v10183
    %v10208 = vpack.c.b16 %v10186, %v10185
    %v10209 = vpack.c.b16 %v10188, %v10187
    %v10210 = vpack.c.b16 %v10190, %v10189
    %v10211 = vpack.c.b16 %v10192, %v10191
    %v10212 = vpack.c.b16 %v10194, %v10193
    %v10213 = vpack.c.b16 %v10196, %v10195
    %v10214 = vpack.c.b16 %v10198, %v10197
    %10231 = vmatprep.subr.bf16.mxu0 0
    %10232 = vmatpush1.bf16.msra.mxu0 %v10199
    %10233 = vmatprep.subr.bf16.mxu0 0
    %10234 = vmatpush1.bf16.msra.mxu0 %v10200
    %10235 = vmatprep.subr.bf16.mxu0 0
    %10236 = vmatpush1.bf16.msra.mxu0 %v10201
    %10237 = vmatprep.subr.bf16.mxu0 0
    %10238 = vmatpush1.bf16.msra.mxu0 %v10202
    %10239 = vmatprep.subr.bf16.mxu0 0
    %10240 = vmatpush1.bf16.msra.mxu0 %v10203
    %10241 = vmatprep.subr.bf16.mxu0 0
    %10242 = vmatpush1.bf16.msra.mxu0 %v10204
    %10243 = vmatprep.subr.bf16.mxu0 0
    %10244 = vmatpush1.bf16.msra.mxu0 %v10205
    %10245 = vmatprep.subr.bf16.mxu0 0
    %10246 = vmatpush1.bf16.msra.mxu0 %v10206
    %10247 = vmatprep.subr.bf16.mxu0 0
    %10248 = vmatpush1.bf16.msra.mxu0 %v10207
    %10249 = vmatprep.subr.bf16.mxu0 0
    %10250 = vmatpush1.bf16.msra.mxu0 %v10208
    %10251 = vmatprep.subr.bf16.mxu0 0
    %10252 = vmatpush1.bf16.msra.mxu0 %v10209
    %10253 = vmatprep.subr.bf16.mxu0 0
    %10254 = vmatpush1.bf16.msra.mxu0 %v10210
    %10255 = vmatprep.subr.bf16.mxu0 0
    %10256 = vmatpush1.bf16.msra.mxu0 %v10211
    %10257 = vmatprep.subr.bf16.mxu0 0
    %10258 = vmatpush1.bf16.msra.mxu0 %v10212
    %10259 = vmatprep.subr.bf16.mxu0 0
    %10260 = vmatpush1.bf16.msra.mxu0 %v10213
    %10261 = vmatprep.subr.bf16.mxu0 0
    %10262 = vmatpush1.bf16.msra.mxu0 %v10214
    %10263 = vmatprep.mubr.bf16.mxu0 %v10120
    %10264 = vmatmul.mubr.bf16.gmra.mrb[0].mxu0 %v10119
    %v10265 = vpop.f32.mrb[0].mxu0
    %v10266 = vadd.f32 0.0, %v10265
    %v10267 = vpop.f32.mrb[0].mxu0
    %v10268 = vpop.f32.mrb[0].mxu0
    %v10269 = vadd.f32 0.0, %v10268
    %v10270 = vpop.f32.mrb[0].mxu0
    %10271 = vmatprep.mubr.bf16.mxu0 %v10122
    %10272 = vmatmul.mubr.bf16.gmra.mrb[0].mxu0 %v10121
    %v10273 = vpop.f32.mrb[0].mxu0
    %v10274 = vadd.f32 0.0, %v10273
    %v10275 = vpop.f32.mrb[0].mxu0
    %v10276 = vpop.f32.mrb[0].mxu0
    %v10277 = vadd.f32 0.0, %v10276
    %v10278 = vpop.f32.mrb[0].mxu0
    %10279 = vmatprep.mubr.bf16.mxu0 %v10124
    %10280 = vmatmul.mubr.bf16.gmra.mrb[0].mxu0 %v10123
    %v10281 = vpop.f32.mrb[0].mxu0
    %v10282 = vadd.f32 0.0, %v10281
    %v10283 = vpop.f32.mrb[0].mxu0
    %v10284 = vpop.f32.mrb[0].mxu0
    %v10285 = vadd.f32 0.0, %v10284
    %v10286 = vpop.f32.mrb[0].mxu0
    %10287 = vmatprep.mubr.bf16.mxu0 %v10126
    %10288 = vmatmul.mubr.bf16.gmra.mrb[0].mxu0 %v10125
    %v10289 = vpop.f32.mrb[0].mxu0
    %v10290 = vadd.f32 0.0, %v10289
    %v10291 = vpop.f32.mrb[0].mxu0
    %v10292 = vpop.f32.mrb[0].mxu0
    %v10293 = vadd.f32 0.0, %v10292
    %v10294 = vpop.f32.mrb[0].mxu0
    %10295 = vmatprep.mubr.bf16.mxu0 %v10128
    %10296 = vmatmul.mubr.bf16.gmra.mrb[0].mxu0 %v10127
    %v10297 = vpop.f32.mrb[0].mxu0
    %v10298 = vadd.f32 0.0, %v10297
    %v10299 = vpop.f32.mrb[0].mxu0
    %v10300 = vpop.f32.mrb[0].mxu0
    %v10301 = vadd.f32 0.0, %v10300
    %v10302 = vpop.f32.mrb[0].mxu0
    %10303 = vmatprep.mubr.bf16.mxu0 %v10130
    %10304 = vmatmul.mubr.bf16.gmra.mrb[0].mxu0 %v10129
    %v10305 = vpop.f32.mrb[0].mxu0
    %v10306 = vadd.f32 0.0, %v10305
    %v10307 = vpop.f32.mrb[0].mxu0
    %v10308 = vpop.f32.mrb[0].mxu0
    %v10309 = vadd.f32 0.0, %v10308
    %v10310 = vpop.f32.mrb[0].mxu0
    %10311 = vmatprep.mubr.bf16.mxu0 %v10132
    %10312 = vmatmul.mubr.bf16.gmra.mrb[0].mxu0 %v10131
    %v10313 = vpop.f32.mrb[0].mxu0
    %v10314 = vadd.f32 0.0, %v10313
    %v10315 = vpop.f32.mrb[0].mxu0
    %v10316 = vpop.f32.mrb[0].mxu0
    %v10317 = vadd.f32 0.0, %v10316
    %v10318 = vpop.f32.mrb[0].mxu0
    %10319 = vmatprep.mubr.bf16.mxu0 %v10134
    %10320 = vmatmul.mubr.bf16.gmra.mrb[0].mxu0 %v10133
    %v10321 = vpop.f32.mrb[0].mxu0
    %v10322 = vadd.f32 0.0, %v10321
    %v10323 = vpop.f32.mrb[0].mxu0
    %v10324 = vpop.f32.mrb[0].mxu0
    %v10325 = vadd.f32 0.0, %v10324
    %v10326 = vpop.f32.mrb[0].mxu0
    %10327 = vdwg.mxu0
    %10328 = vadd.xlane.f32.xlu0 %v10266
    %v10329 = vpop.xlane.xlu0 %10328
    %10330 = vadd.xlane.f32.xlu0 %v10269
    %v10331 = vpop.xlane.xlu0 %10330
    %10332 = vadd.xlane.f32.xlu0 %v10274
    %v10333 = vpop.xlane.xlu0 %10332
    %10334 = vadd.xlane.f32.xlu0 %v10277
    %v10335 = vpop.xlane.xlu0 %10334
    %10336 = vadd.xlane.f32.xlu0 %v10282
    %v10337 = vpop.xlane.xlu0 %10336
    %10338 = vadd.xlane.f32.xlu0 %v10285
    %v10339 = vpop.xlane.xlu0 %10338
    %10340 = vadd.xlane.f32.xlu0 %v10290
    %v10341 = vpop.xlane.xlu0 %10340
    %10342 = vadd.xlane.f32.xlu0 %v10293
    %v10343 = vpop.xlane.xlu0 %10342
    %10344 = vadd.xlane.f32.xlu0 %v10298
    %v10345 = vpop.xlane.xlu0 %10344
    %10346 = vadd.xlane.f32.xlu0 %v10301
    %v10347 = vpop.xlane.xlu0 %10346
    %10348 = vadd.xlane.f32.xlu0 %v10306
    %v10349 = vpop.xlane.xlu0 %10348
    %10350 = vadd.xlane.f32.xlu0 %v10309
    %v10351 = vpop.xlane.xlu0 %10350
    %10352 = vadd.xlane.f32.xlu0 %v10314
    %v10353 = vpop.xlane.xlu0 %10352
    %10354 = vadd.xlane.f32.xlu0 %v10317
    %v10355 = vpop.xlane.xlu0 %10354
    %10356 = vadd.xlane.f32.xlu0 %v10322
    %v10357 = vpop.xlane.xlu0 %10356
    %10358 = vadd.xlane.f32.xlu0 %v10325
    %v10359 = vpop.xlane.xlu0 %10358
    %v10360 = vmul.f32 %v10329, %v1638
    %v10361 = vmul.f32 %v10331, %v1638
    %v10362 = vmul.f32 %v10333, %v1638
    %v10363 = vmul.f32 %v10335, %v1638
    %v10364 = vmul.f32 %v10337, %v1638
    %v10365 = vmul.f32 %v10339, %v1638
    %v10366 = vmul.f32 %v10341, %v1638
    %v10367 = vmul.f32 %v10343, %v1638
    %v10368 = vmul.f32 %v10345, %v1638
    %v10369 = vmul.f32 %v10347, %v1638
    %v10370 = vmul.f32 %v10349, %v1638
    %v10371 = vmul.f32 %v10351, %v1638
    %v10372 = vmul.f32 %v10353, %v1638
    %v10373 = vmul.f32 %v10355, %v1638
    %v10374 = vmul.f32 %v10357, %v1638
    %v10375 = vmul.f32 %v10359, %v1638
    %v10376 = vmul.f32 %v10266, %v10266
    %v10377 = vmul.f32 %v10269, %v10269
    %v10378 = vmul.f32 %v10274, %v10274
    %v10379 = vmul.f32 %v10277, %v10277
    %v10380 = vmul.f32 %v10282, %v10282
    %v10381 = vmul.f32 %v10285, %v10285
    %v10382 = vmul.f32 %v10290, %v10290
    %v10383 = vmul.f32 %v10293, %v10293
    %v10384 = vmul.f32 %v10298, %v10298
    %v10385 = vmul.f32 %v10301, %v10301
    %v10386 = vmul.f32 %v10306, %v10306
    %v10387 = vmul.f32 %v10309, %v10309
    %v10388 = vmul.f32 %v10314, %v10314
    %v10389 = vmul.f32 %v10317, %v10317
    %v10390 = vmul.f32 %v10322, %v10322
    %v10391 = vmul.f32 %v10325, %v10325
    %10392 = vadd.xlane.f32.xlu0 %v10376
    %v10393 = vpop.xlane.xlu0 %10392
    %10394 = vadd.xlane.f32.xlu0 %v10377
    %v10395 = vpop.xlane.xlu0 %10394
    %10396 = vadd.xlane.f32.xlu0 %v10378
    %v10397 = vpop.xlane.xlu0 %10396
    %10398 = vadd.xlane.f32.xlu0 %v10379
    %v10399 = vpop.xlane.xlu0 %10398
    %10400 = vadd.xlane.f32.xlu0 %v10380
    %v10401 = vpop.xlane.xlu0 %10400
    %10402 = vadd.xlane.f32.xlu0 %v10381
    %v10403 = vpop.xlane.xlu0 %10402
    %10404 = vadd.xlane.f32.xlu0 %v10382
    %v10405 = vpop.xlane.xlu0 %10404
    %10406 = vadd.xlane.f32.xlu0 %v10383
    %v10407 = vpop.xlane.xlu0 %10406
    %10408 = vadd.xlane.f32.xlu0 %v10384
    %v10409 = vpop.xlane.xlu0 %10408
    %10410 = vadd.xlane.f32.xlu0 %v10385
    %v10411 = vpop.xlane.xlu0 %10410
    %10412 = vadd.xlane.f32.xlu0 %v10386
    %v10413 = vpop.xlane.xlu0 %10412
    %10414 = vadd.xlane.f32.xlu0 %v10387
    %v10415 = vpop.xlane.xlu0 %10414
    %10416 = vadd.xlane.f32.xlu0 %v10388
    %v10417 = vpop.xlane.xlu0 %10416
    %10418 = vadd.xlane.f32.xlu0 %v10389
    %v10419 = vpop.xlane.xlu0 %10418
    %10420 = vadd.xlane.f32.xlu0 %v10390
    %v10421 = vpop.xlane.xlu0 %10420
    %10422 = vadd.xlane.f32.xlu0 %v10391
    %v10423 = vpop.xlane.xlu0 %10422
    %v10424 = vmul.f32 %v10393, %v1638
    %v10425 = vmul.f32 %v10395, %v1638
    %v10426 = vmul.f32 %v10397, %v1638
    %v10427 = vmul.f32 %v10399, %v1638
    %v10428 = vmul.f32 %v10401, %v1638
    %v10429 = vmul.f32 %v10403, %v1638
    %v10430 = vmul.f32 %v10405, %v1638
    %v10431 = vmul.f32 %v10407, %v1638
    %v10432 = vmul.f32 %v10409, %v1638
    %v10433 = vmul.f32 %v10411, %v1638
    %v10434 = vmul.f32 %v10413, %v1638
    %v10435 = vmul.f32 %v10415, %v1638
    %v10436 = vmul.f32 %v10417, %v1638
    %v10437 = vmul.f32 %v10419, %v1638
    %v10438 = vmul.f32 %v10421, %v1638
    %v10439 = vmul.f32 %v10423, %v1638
    %v10440 = vmul.f32 %v10360, %v10360
    %v10441 = vmul.f32 %v10361, %v10361
    %v10442 = vmul.f32 %v10362, %v10362
    %v10443 = vmul.f32 %v10363, %v10363
    %v10444 = vmul.f32 %v10364, %v10364
    %v10445 = vmul.f32 %v10365, %v10365
    %v10446 = vmul.f32 %v10366, %v10366
    %v10447 = vmul.f32 %v10367, %v10367
    %v10448 = vmul.f32 %v10368, %v10368
    %v10449 = vmul.f32 %v10369, %v10369
    %v10450 = vmul.f32 %v10370, %v10370
    %v10451 = vmul.f32 %v10371, %v10371
    %v10452 = vmul.f32 %v10372, %v10372
    %v10453 = vmul.f32 %v10373, %v10373
    %v10454 = vmul.f32 %v10374, %v10374
    %v10455 = vmul.f32 %v10375, %v10375
    %v10456 = vsub.f32 %v10424, %v10440
    %v10457 = vsub.f32 %v10425, %v10441
    %v10458 = vsub.f32 %v10426, %v10442
    %v10459 = vsub.f32 %v10427, %v10443
    %v10460 = vsub.f32 %v10428, %v10444
    %v10461 = vsub.f32 %v10429, %v10445
    %v10462 = vsub.f32 %v10430, %v10446
    %v10463 = vsub.f32 %v10431, %v10447
    %v10464 = vsub.f32 %v10432, %v10448
    %v10465 = vsub.f32 %v10433, %v10449
    %v10466 = vsub.f32 %v10434, %v10450
    %v10467 = vsub.f32 %v10435, %v10451
    %v10468 = vsub.f32 %v10436, %v10452
    %v10469 = vsub.f32 %v10437, %v10453
    %v10470 = vsub.f32 %v10438, %v10454
    %v10471 = vsub.f32 %v10439, %v10455
    %v10472 = vmax.f32 %v10456, 0.0
    %v10473 = vmax.f32 %v10457, 0.0
    %v10474 = vmax.f32 %v10458, 0.0
    %v10475 = vmax.f32 %v10459, 0.0
    %v10476 = vmax.f32 %v10460, 0.0
    %v10477 = vmax.f32 %v10461, 0.0
    %v10478 = vmax.f32 %v10462, 0.0
    %v10479 = vmax.f32 %v10463, 0.0
    %v10480 = vmax.f32 %v10464, 0.0
    %v10481 = vmax.f32 %v10465, 0.0
    %v10482 = vmax.f32 %v10466, 0.0
    %v10483 = vmax.f32 %v10467, 0.0
    %v10484 = vmax.f32 %v10468, 0.0
    %v10485 = vmax.f32 %v10469, 0.0
    %v10486 = vmax.f32 %v10470, 0.0
    %v10487 = vmax.f32 %v10471, 0.0
    %v10488 = vsub.f32 %v10266, %v10360
    %v10489 = vsub.f32 %v10269, %v10361
    %v10490 = vsub.f32 %v10274, %v10362
    %v10491 = vsub.f32 %v10277, %v10363
    %v10492 = vsub.f32 %v10282, %v10364
    %v10493 = vsub.f32 %v10285, %v10365
    %v10494 = vsub.f32 %v10290, %v10366
    %v10495 = vsub.f32 %v10293, %v10367
    %v10496 = vsub.f32 %v10298, %v10368
    %v10497 = vsub.f32 %v10301, %v10369
    %v10498 = vsub.f32 %v10306, %v10370
    %v10499 = vsub.f32 %v10309, %v10371
    %v10500 = vsub.f32 %v10314, %v10372
    %v10501 = vsub.f32 %v10317, %v10373
    %v10502 = vsub.f32 %v10322, %v10374
    %v10503 = vsub.f32 %v10325, %v10375
    %v10504 = vadd.f32 %v10472, 1e-05
    %v10505 = vadd.f32 %v10473, 1e-05
    %v10506 = vadd.f32 %v10474, 1e-05
    %v10507 = vadd.f32 %v10475, 1e-05
    %v10508 = vadd.f32 %v10476, 1e-05
    %v10509 = vadd.f32 %v10477, 1e-05
    %v10510 = vadd.f32 %v10478, 1e-05
    %v10511 = vadd.f32 %v10479, 1e-05
    %v10512 = vadd.f32 %v10480, 1e-05
    %v10513 = vadd.f32 %v10481, 1e-05
    %v10514 = vadd.f32 %v10482, 1e-05
    %v10515 = vadd.f32 %v10483, 1e-05
    %v10516 = vadd.f32 %v10484, 1e-05
    %v10517 = vadd.f32 %v10485, 1e-05
    %v10518 = vadd.f32 %v10486, 1e-05
    %v10519 = vadd.f32 %v10487, 1e-05
    %v10520 = vrsqrt.pop %v10504
    %v10521 = vrsqrt.pop %v10505
    %v10522 = vrsqrt.pop %v10506
    %v10523 = vrsqrt.pop %v10507
    %v10524 = vrsqrt.pop %v10508
    %v10525 = vrsqrt.pop %v10509
    %v10526 = vrsqrt.pop %v10510
    %v10527 = vrsqrt.pop %v10511
    %v10528 = vrsqrt.pop %v10512
    %v10529 = vrsqrt.pop %v10513
    %v10530 = vrsqrt.pop %v10514
    %v10531 = vrsqrt.pop %v10515
    %v10532 = vrsqrt.pop %v10516
    %v10533 = vrsqrt.pop %v10517
    %v10534 = vrsqrt.pop %v10518
    %v10535 = vrsqrt.pop %v10519
    %v10536 = vmul.f32 %v10488, %v10520
    %v10537 = vmul.f32 %v10489, %v10521
    %v10538 = vmul.f32 %v10490, %v10522
    %v10539 = vmul.f32 %v10491, %v10523
    %v10540 = vmul.f32 %v10492, %v10524
    %v10541 = vmul.f32 %v10493, %v10525
    %v10542 = vmul.f32 %v10494, %v10526
    %v10543 = vmul.f32 %v10495, %v10527
    %v10544 = vmul.f32 %v10496, %v10528
    %v10545 = vmul.f32 %v10497, %v10529
    %v10546 = vmul.f32 %v10498, %v10530
    %v10547 = vmul.f32 %v10499, %v10531
    %v10548 = vmul.f32 %v10500, %v10532
    %v10549 = vmul.f32 %v10501, %v10533
    %v10550 = vmul.f32 %v10502, %v10534
    %v10551 = vmul.f32 %v10503, %v10535
    %v10552 = vlaneseq
    %v10553 = vshrl.u32 %v10552, 7
    %v10554 = vsub.s32 2, %v10553
    %v10555 = vrot.slane %v8117, %v10554
    %v10556 = vmul.f32 %v10536, %v10555
    %v10557 = vmul.f32 %v10537, %v10555
    %v10558 = vmul.f32 %v10538, %v10555
    %v10559 = vmul.f32 %v10539, %v10555
    %v10560 = vmul.f32 %v10540, %v10555
    %v10561 = vmul.f32 %v10541, %v10555
    %v10562 = vmul.f32 %v10542, %v10555
    %v10563 = vmul.f32 %v10543, %v10555
    %v10564 = vmul.f32 %v10544, %v10555
    %v10565 = vmul.f32 %v10545, %v10555
    %v10566 = vmul.f32 %v10546, %v10555
    %v10567 = vmul.f32 %v10547, %v10555
    %v10568 = vmul.f32 %v10548, %v10555
    %v10569 = vmul.f32 %v10549, %v10555
    %v10570 = vmul.f32 %v10550, %v10555
    %v10571 = vmul.f32 %v10551, %v10555
    %v10572 = vlaneseq
    %v10573 = vshrl.u32 %v10572, 7
    %v10574 = vsub.s32 3, %v10573
    %v10575 = vrot.slane %v8117, %v10574
    %v10576 = vadd.f32 %v10556, %v10575
    %v10577 = vadd.f32 %v10557, %v10575
    %v10578 = vadd.f32 %v10558, %v10575
    %v10579 = vadd.f32 %v10559, %v10575
    %v10580 = vadd.f32 %v10560, %v10575
    %v10581 = vadd.f32 %v10561, %v10575
    %v10582 = vadd.f32 %v10562, %v10575
    %v10583 = vadd.f32 %v10563, %v10575
    %v10584 = vadd.f32 %v10564, %v10575
    %v10585 = vadd.f32 %v10565, %v10575
    %v10586 = vadd.f32 %v10566, %v10575
    %v10587 = vadd.f32 %v10567, %v10575
    %v10588 = vadd.f32 %v10568, %v10575
    %v10589 = vadd.f32 %v10569, %v10575
    %v10590 = vadd.f32 %v10570, %v10575
    %v10591 = vadd.f32 %v10571, %v10575
    %v10592 = vadd.f32 %v5373, %v10576
    %v10593 = vadd.f32 %v5374, %v10577
    %v10594 = vadd.f32 %v5375, %v10578
    %v10595 = vadd.f32 %v5376, %v10579
    %v10596 = vadd.f32 %v5377, %v10580
    %v10597 = vadd.f32 %v5378, %v10581
    %v10598 = vadd.f32 %v5379, %v10582
    %v10599 = vadd.f32 %v5380, %v10583
    %v10600 = vadd.f32 %v5381, %v10584
    %v10601 = vadd.f32 %v5382, %v10585
    %v10602 = vadd.f32 %v5383, %v10586
    %v10603 = vadd.f32 %v5384, %v10587
    %v10604 = vadd.f32 %v5385, %v10588
    %v10605 = vadd.f32 %v5386, %v10589
    %v10606 = vadd.f32 %v5387, %v10590
    %v10607 = vadd.f32 %v5388, %v10591
    %10608 = vst [vmem:[#allocation13] sm:$0xff] %v7989
    %10609 = vst [vmem:[#allocation13 + $0x8] sm:$0xff] %v7990
    %10610 = vst [vmem:[#allocation13 + $0x10] sm:$0xff] %v7991
    %10611 = vst [vmem:[#allocation13 + $0x18] sm:$0xff] %v7992
    %10612 = vst [vmem:[#allocation13 + $0x20] sm:$0xff] %v7993
    %10613 = vst [vmem:[#allocation13 + $0x28] sm:$0xff] %v7994
    %10614 = vst [vmem:[#allocation13 + $0x30] sm:$0xff] %v7995
    %10615 = vst [vmem:[#allocation13 + $0x38] sm:$0xff] %v7996
    %10616 = vst [vmem:[#allocation13 + $0x40] sm:$0xff] %v7997
    %10617 = vst [vmem:[#allocation13 + $0x48] sm:$0xff] %v7998
    %10618 = vst [vmem:[#allocation13 + $0x50] sm:$0xff] %v7999
    %10619 = vst [vmem:[#allocation13 + $0x58] sm:$0xff] %v8000
    %10620 = vst [vmem:[#allocation13 + $0x60] sm:$0xff] %v8001
    %10621 = vst [vmem:[#allocation13 + $0x68] sm:$0xff] %v8002
    %10622 = vst [vmem:[#allocation13 + $0x70] sm:$0xff] %v8003
    %10623 = vst [vmem:[#allocation13 + $0x78] sm:$0xff] %v8004
    %10624 = vst [vmem:[#allocation14] sm:$0xff] %v10592
    %10625 = vst [vmem:[#allocation14 + $0x8] sm:$0xff] %v10593
    %10626 = vst [vmem:[#allocation14 + $0x10] sm:$0xff] %v10594
    %10627 = vst [vmem:[#allocation14 + $0x18] sm:$0xff] %v10595
    %10628 = vst [vmem:[#allocation14 + $0x20] sm:$0xff] %v10596
    %10629 = vst [vmem:[#allocation14 + $0x28] sm:$0xff] %v10597
    %10630 = vst [vmem:[#allocation14 + $0x30] sm:$0xff] %v10598
    %10631 = vst [vmem:[#allocation14 + $0x38] sm:$0xff] %v10599
    %10632 = vst [vmem:[#allocation14 + $0x40] sm:$0xff] %v10600
    %10633 = vst [vmem:[#allocation14 + $0x48] sm:$0xff] %v10601
    %10634 = vst [vmem:[#allocation14 + $0x50] sm:$0xff] %v10602
    %10635 = vst [vmem:[#allocation14 + $0x58] sm:$0xff] %v10603
    %10636 = vst [vmem:[#allocation14 + $0x60] sm:$0xff] %v10604
    %10637 = vst [vmem:[#allocation14 + $0x68] sm:$0xff] %v10605
    %10638 = vst [vmem:[#allocation14 + $0x70] sm:$0xff] %v10606
    %10639 = vst [vmem:[#allocation14 + $0x78] sm:$0xff] %v10607
    // Predicated region
    $region58: #{local_feature_transformer.1} parent=1 // pred_check
      _
    $region59: #{local_feature_transformer.1} parent=1 // pred_check_branch
      %10641 = sbr.rel (0) target = $region61
    $region60: #{local_feature_transformer.1} parent=1 // pred_region
      %s10643 = ssub.s32 2048, 2048
      %10644 = vsyncadd [#allocation4], %s10643
      %s10645 = sshll.u32 [#allocation13], 4
      %s10646 = int_to_ptr.vmem [resolvable:$true] %s10645
      %10651 = dma.vmem_to_hbm [thread:$0]  %s10646, 2048, %s8, [#allocation4], 128, 128, 8
    $region61: #{local_feature_transformer.1} parent=1 // pred_fallthru
      _
    // Predicated region
    $region62: #{local_feature_transformer.1} parent=1 // pred_check
      _
    $region63: #{local_feature_transformer.1} parent=1 // pred_check_branch
      %10653 = sbr.rel (0) target = $region65
    $region64: #{local_feature_transformer.1} parent=1 // pred_region
      %s10655 = ssub.s32 2048, 2048
      %10656 = vsyncadd [#allocation15], %s10655
      %s10657 = sshll.u32 [#allocation14], 4
      %s10658 = int_to_ptr.vmem [resolvable:$true] %s10657
      %10663 = dma.vmem_to_hbm [thread:$0]  %s10658, 2048, %s9, [#allocation15], 128, 128, 8
    $region65: #{local_feature_transformer.1} parent=1 // pred_fallthru
      _
    // Predicated region
    $region66: #{local_feature_transformer.1} parent=1 // pred_check
      _
    $region67: #{local_feature_transformer.1} parent=1 // pred_check_branch
      %10665 = sbr.rel (0) target = $region69
    $region68: #{local_feature_transformer.1} parent=1 // pred_region
      %10666 = dma.done [#allocation4], 2048
    $region69: #{local_feature_transformer.1} parent=1 // pred_fallthru
      _
    // Predicated region
    $region70: #{local_feature_transformer.1} parent=1 // pred_check
      _
    $region71: #{local_feature_transformer.1} parent=1 // pred_check_branch
      %10668 = sbr.rel (0) target = $region73
    $region72: #{local_feature_transformer.1} parent=1 // pred_region
      %10669 = dma.done [#allocation15], 2048
    $region73: #{local_feature_transformer.1} parent=1 // pred_fallthru
      _
    %10670 = vsyncpa [#allocation3], 1
    %10671 = vsyncpa [#allocation6], 1
    %10672 = vsyncpa [#allocation9], 1
    %10673 = vsyncpa [#allocation12], 1
    %10674 = vsyncpa [#allocation4], 1
    %10675 = vsyncpa [#allocation15], 1

</llo_original>
